<compile_context>
chip_gen: v7x
topology: tpu7x:2x2x1
jax: 0.10.0
libtpu: 0.0.40
codegen_flags: <defaults>
</compile_context>

<pallas_src>
import functools
import math

import jax
import jax.numpy as jnp
from jax.experimental import pallas as pl
from jax.experimental.pallas import tpu as pltpu

VOCAB = 12
EMBEDDING_DIM = 32
DECODER_ATTENTION_BLOCKS = 2
NUM_HEADS = 4
HEAD_DIM = EMBEDDING_DIM // NUM_HEADS
ATTN_SCALE = 1.0 / math.sqrt(HEAD_DIM)
LN_EPS = 1e-5


# ----------------------------------------------------------------------------
# In-kernel helpers (operate on VMEM-resident values)
# ----------------------------------------------------------------------------
def _layer_norm(x, gamma, beta):
    mean = jnp.mean(x, axis=-1, keepdims=True)
    var = jnp.mean(jnp.square(x - mean), axis=-1, keepdims=True)
    return (x - mean) * jax.lax.rsqrt(var + LN_EPS) * gamma + beta


def _softmax_rows(x, approx=True):
    x = x - jnp.max(x, axis=-1, keepdims=True)
    p = jnp.exp(x)
    return p * pl.reciprocal(jnp.sum(p, axis=-1, keepdims=True), approx=approx)


def _mha(x, kv, batch, sq, sk, w, b, bias):
    """Multi-head attention over flattened (batch*seq, D) activations.

    w: (4*D, D) packed [wq; wk; wv; wo];  b: (4, D) packed [bq; bk; bv; bo].
    bias: additive (sq, sk) score bias, or None (no masking).
    """
    d = x.shape[-1]
    wq, wk, wv, wo = w[0:d], w[d:2 * d], w[2 * d:3 * d], w[3 * d:4 * d]
    bq, bk, bv, bo = b[0:1], b[1:2], b[2:3], b[3:4]

    # Projections over all batch*seq rows at once (single deep matmuls).
    q = jnp.dot(x, wq, preferred_element_type=jnp.float32) + bq    # (batch*sq, D)
    k = jnp.dot(kv, wk, preferred_element_type=jnp.float32) + bk   # (batch*sk, D)
    v = jnp.dot(kv, wv, preferred_element_type=jnp.float32) + bv

    outs = []
    for bb in range(batch):                    # static unroll (batch == 2)
        qb = q[bb * sq:(bb + 1) * sq]          # (sq, D)
        kb = k[bb * sk:(bb + 1) * sk]          # (sk, D)
        vb = v[bb * sk:(bb + 1) * sk]
        ctxs = []
        for h in range(NUM_HEADS):             # static unroll (4 heads)
            lo, hi = h * HEAD_DIM, (h + 1) * HEAD_DIM
            s = jax.lax.dot_general(
                qb[:, lo:hi], kb[:, lo:hi],
                dimension_numbers=(((1,), (1,)), ((), ())),
                preferred_element_type=jnp.float32) * ATTN_SCALE   # (sq, sk)
            if bias is not None:
                s = s + bias
            p = _softmax_rows(s, approx=True)
            ctxs.append(jnp.dot(p, vb[:, lo:hi],
                                preferred_element_type=jnp.float32))  # (sq, hd)
        # Concatenate heads -> one depth-32 output projection with wo.
        ctx = jnp.concatenate(ctxs, axis=-1)                          # (sq, D)
        outs.append(jnp.dot(ctx, wo, preferred_element_type=jnp.float32) + bo)
    return jnp.concatenate(outs, axis=0)                              # (batch*sq, D)


# ----------------------------------------------------------------------------
# Single fused kernel: embed + norm_1 + self-attn + cross-attn x2 + head
# ----------------------------------------------------------------------------
def _fused_decoder_kernel(batch, sq, sk,
                          labels_ref, y_ref, emb_ref, ln_ref,
                          attn_w_ref, attn_b_ref, wout_ref, bout_ref,
                          out_ref):
    vocab, d = emb_ref.shape
    rows = batch * sq

    # ---- embedding lookup as a one-hot matmul (MXU) + norm_1, all rows -----
    lab = labels_ref[...]                                          # (1, rows) int32
    iota_v = jax.lax.broadcasted_iota(jnp.int32, (vocab, rows), 0)
    onehot_t = (jnp.broadcast_to(lab, (vocab, rows)) == iota_v).astype(jnp.float32)
    x = jax.lax.dot_general(onehot_t, emb_ref[...],
                            dimension_numbers=(((0,), (0,)), ((), ())),
                            preferred_element_type=jnp.float32)    # (rows, D)
    ln = ln_ref[...]                                               # (4, D)
    x = _layer_norm(x, ln[0:1], ln[1:2])

    # ---- causal mask generated in-kernel: triu(ones(sq,sq), 1) * -1e9 ------
    row_id = jax.lax.broadcasted_iota(jnp.int32, (sq, sq), 0)
    col_id = jax.lax.broadcasted_iota(jnp.int32, (sq, sq), 1)
    causal_bias = jnp.where(col_id > row_id, jnp.float32(-1e9), jnp.float32(0.0))

    # ---- self-attention (causal), then cross-attention blocks (no mask) ----
    x = _mha(x, x, batch, sq, sq, attn_w_ref[0], attn_b_ref[0], causal_bias)
    y = y_ref[...]                                                 # (batch*sk, D)
    for blk in range(1, attn_w_ref.shape[0]):                      # static (2 blocks)
        x = _mha(x, y, batch, sq, sk, attn_w_ref[blk], attn_b_ref[blk], None)

    # ---- norm_2 + output linear + softmax over the class dimension ---------
    x = _layer_norm(x, ln[2:3], ln[3:4])
    logits = jnp.dot(x, wout_ref[...],
                     preferred_element_type=jnp.float32) + bout_ref[...]
    out_ref[...] = _softmax_rows(logits, approx=False)             # (rows, VOCAB)


# ----------------------------------------------------------------------------
# Wrapper: pack weights, single pallas_call, reshape output
# ----------------------------------------------------------------------------
@jax.jit
def decoder_forward(params, x_labels, y_patches):
    B, S = x_labels.shape
    _, Sk, D = y_patches.shape
    V = VOCAB
    n_blocks = 1 + DECODER_ATTENTION_BLOCKS

    # Pack attention weights/biases: one slab per kind (few DMA descriptors).
    blocks = [params["self_attn"]] + list(params["cross_attn"])
    attn_w = jnp.stack(
        [jnp.concatenate([p["wq"], p["wk"], p["wv"], p["wo"]], axis=0)
         for p in blocks])                                   # (n_blocks, 4*D, D)
    attn_b = jnp.stack(
        [jnp.stack([p["bq"], p["bk"], p["bv"], p["bo"]], axis=0)
         for p in blocks])                                   # (n_blocks, 4, D)
    ln = jnp.stack([params["ln1_g"], params["ln1_b"],
                    params["ln2_g"], params["ln2_b"]], axis=0)  # (4, D)

    labels_flat = x_labels.astype(jnp.int32).reshape(1, B * S)
    y_flat = y_patches.reshape(B * Sk, D)
    b_out = params["b_out"].reshape(1, V)

    kernel = functools.partial(_fused_decoder_kernel, B, S, Sk)
    out_flat = pl.pallas_call(
        kernel,
        out_shape=jax.ShapeDtypeStruct((B * S, V), jnp.float32),
        grid=(1,),                                   # single step: fully fused
        in_specs=[
            pl.BlockSpec((1, B * S), lambda i: (0, 0)),
            pl.BlockSpec((B * Sk, D), lambda i: (0, 0)),
            pl.BlockSpec((V, D), lambda i: (0, 0)),
            pl.BlockSpec((4, D), lambda i: (0, 0)),
            pl.BlockSpec((n_blocks, 4 * D, D), lambda i: (0, 0, 0)),
            pl.BlockSpec((n_blocks, 4, D), lambda i: (0, 0, 0)),
            pl.BlockSpec((D, V), lambda i: (0, 0)),
            pl.BlockSpec((1, V), lambda i: (0, 0)),
        ],
        out_specs=pl.BlockSpec((B * S, V), lambda i: (0, 0)),
        compiler_params=pltpu.CompilerParams(
            dimension_semantics=("arbitrary",)),
    )(labels_flat, y_flat, params["emb"], ln, attn_w, attn_b,
      params["w_out"], b_out)
    return out_flat.reshape(B, S, V)


# ----------------------------------------------------------------------------
# Parameter init (deterministic, in-script)
# ----------------------------------------------------------------------------
def init_attention_params(key, d):
    ks = jax.random.split(key, 4)
    return {
        "wq": 0.02 * jax.random.normal(ks[0], (d, d), jnp.float32),
        "bq": jnp.zeros((d,), jnp.float32),
        "wk": 0.02 * jax.random.normal(ks[1], (d, d), jnp.float32),
        "bk": jnp.zeros((d,), jnp.float32),
        "wv": 0.02 * jax.random.normal(ks[2], (d, d), jnp.float32),
        "bv": jnp.zeros((d,), jnp.float32),
        "wo": 0.02 * jax.random.normal(ks[3], (d, d), jnp.float32),
        "bo": jnp.zeros((d,), jnp.float32),
    }


def init_decoder_params(key):
    d = EMBEDDING_DIM
    keys = jax.random.split(key, 3 + DECODER_ATTENTION_BLOCKS)
    return {
        "emb": 0.02 * jax.random.normal(keys[0], (VOCAB, d), jnp.float32),
        "ln1_g": jnp.ones((d,), jnp.float32),
        "ln1_b": jnp.zeros((d,), jnp.float32),
        "self_attn": init_attention_params(keys[1], d),
        "cross_attn": [init_attention_params(keys[2 + i], d)
                       for i in range(DECODER_ATTENTION_BLOCKS)],
        "ln2_g": jnp.ones((d,), jnp.float32),
        "ln2_b": jnp.zeros((d,), jnp.float32),
        "w_out": 0.02 * jax.random.normal(keys[-1], (d, VOCAB), jnp.float32),
        "b_out": jnp.zeros((VOCAB,), jnp.float32),
    }


if __name__ == "__main__":
    key = jax.random.PRNGKey(0)
    k_param, k_lab, k_patch = jax.random.split(key, 3)

    B, S_LAB, S_PATCH = 2, 8, 16
    params = init_decoder_params(k_param)
    x_labels = jax.random.randint(k_lab, (B, S_LAB), 0, VOCAB, dtype=jnp.int32)
    y_patches = jax.random.normal(k_patch, (B, S_PATCH, EMBEDDING_DIM), jnp.float32)

    out = decoder_forward(params, x_labels, y_patches)
    out = jax.block_until_ready(out)

    assert out.shape == (B, S_LAB, VOCAB), out.shape
    assert bool(jnp.all(jnp.isfinite(out)))
    assert bool(jnp.allclose(out.sum(axis=-1), 1.0, atol=1e-4))
    print("KERNEL_OK")
</pallas_src>

<mosaic_0001>
module attributes {stable_mosaic.version = 11 : i64} {
  func.func @_fused_decoder_kernel(%arg0: i32, %arg1: memref<1x16xi32, #tpu.memory_space<vmem>>, %arg2: memref<32x32xf32, #tpu.memory_space<vmem>>, %arg3: memref<12x32xf32, #tpu.memory_space<vmem>>, %arg4: memref<4x32xf32, #tpu.memory_space<vmem>>, %arg5: memref<3x128x32xf32, #tpu.memory_space<vmem>>, %arg6: memref<3x4x32xf32, #tpu.memory_space<vmem>>, %arg7: memref<32x12xf32, #tpu.memory_space<vmem>>, %arg8: memref<1x12xf32, #tpu.memory_space<vmem>>, %arg9: memref<16x12xf32, #tpu.memory_space<vmem>>) attributes {dimension_semantics = [#tpu.dimension_semantics<arbitrary>], iteration_bounds = array<i64: 1>, scalar_prefetch = 0 : i64, scratch_operands = 0 : i64, tpu.core_type = #tpu.core_type<tc>, window_params = [{pipeline_mode = #tpu.pipeline_mode<synchronous>, transform_indices = @transform_0, window_bounds = array<i64: 1, 16>}, {pipeline_mode = #tpu.pipeline_mode<synchronous>, transform_indices = @transform_1, window_bounds = array<i64: 32, 32>}, {pipeline_mode = #tpu.pipeline_mode<synchronous>, transform_indices = @transform_2, window_bounds = array<i64: 12, 32>}, {pipeline_mode = #tpu.pipeline_mode<synchronous>, transform_indices = @transform_3, window_bounds = array<i64: 4, 32>}, {pipeline_mode = #tpu.pipeline_mode<synchronous>, transform_indices = @transform_4, window_bounds = array<i64: 3, 128, 32>}, {pipeline_mode = #tpu.pipeline_mode<synchronous>, transform_indices = @transform_5, window_bounds = array<i64: 3, 4, 32>}, {pipeline_mode = #tpu.pipeline_mode<synchronous>, transform_indices = @transform_6, window_bounds = array<i64: 32, 12>}, {pipeline_mode = #tpu.pipeline_mode<synchronous>, transform_indices = @transform_7, window_bounds = array<i64: 1, 12>}, {pipeline_mode = #tpu.pipeline_mode<synchronous>, transform_indices = @transform_8, window_bounds = array<i64: 16, 12>}]} {
    %c0 = arith.constant 0 : index
    %c0_0 = arith.constant 0 : index
    %0 = vector.load %arg1[%c0, %c0_0] : memref<1x16xi32, #tpu.memory_space<vmem>>, vector<1x16xi32>
    %1 = tpu.iota {dimensions = array<i32: 0>} : vector<12x16xi32>
    %2 = vector.shape_cast %0 : vector<1x16xi32> to vector<1x16xi32>
    %3 = vector.broadcast %2 : vector<1x16xi32> to vector<12x16xi32>
    %4 = arith.cmpi eq, %3, %1 : vector<12x16xi32>
    %5 = arith.extui %4 : vector<12x16xi1> to vector<12x16xi32>
    %6 = arith.sitofp %5 : vector<12x16xi32> to vector<12x16xf32>
    %c0_1 = arith.constant 0 : index
    %c0_2 = arith.constant 0 : index
    %7 = vector.load %arg3[%c0_1, %c0_2] : memref<12x32xf32, #tpu.memory_space<vmem>>, vector<12x32xf32>
    %cst = arith.constant dense<0.000000e+00> : vector<16x32xf32>
    %8 = tpu.matmul %6, %7, %cst {dimension_numbers = #tpu.dot_dimension_numbers<[0], [0], [1], [1], [0, 1, 1, 1], [], []>} : vector<12x16xf32>, vector<12x32xf32>, vector<16x32xf32> -> vector<16x32xf32>
    %c0_3 = arith.constant 0 : index
    %c0_4 = arith.constant 0 : index
    %9 = vector.load %arg4[%c0_3, %c0_4] : memref<4x32xf32, #tpu.memory_space<vmem>>, vector<4x32xf32>
    %10 = vector.extract_strided_slice %9 {offsets = [0, 0], sizes = [1, 32], strides = [1, 1]} : vector<4x32xf32> to vector<1x32xf32>
    %11 = vector.extract_strided_slice %9 {offsets = [1, 0], sizes = [1, 32], strides = [1, 1]} : vector<4x32xf32> to vector<1x32xf32>
    %cst_5 = arith.constant dense<0.000000e+00> : vector<16xf32>
    %12 = vector.multi_reduction <add>, %8, %cst_5 [1] : vector<16x32xf32> to vector<16xf32>
    %13 = vector.shape_cast %12 : vector<16xf32> to vector<16x1xf32>
    %cst_6 = arith.constant 3.200000e+01 : f32
    %14 = vector.broadcast %cst_6 : f32 to vector<16x1xf32>
    %15 = arith.divf %13, %14 : vector<16x1xf32>
    %16 = vector.broadcast %15 : vector<16x1xf32> to vector<16x32xf32>
    %17 = arith.subf %8, %16 : vector<16x32xf32>
    %18 = arith.mulf %17, %17 : vector<16x32xf32>
    %cst_7 = arith.constant dense<0.000000e+00> : vector<16xf32>
    %19 = vector.multi_reduction <add>, %18, %cst_7 [1] : vector<16x32xf32> to vector<16xf32>
    %20 = vector.shape_cast %19 : vector<16xf32> to vector<16x1xf32>
    %cst_8 = arith.constant 3.200000e+01 : f32
    %21 = vector.broadcast %cst_8 : f32 to vector<16x1xf32>
    %22 = arith.divf %20, %21 : vector<16x1xf32>
    %23 = vector.broadcast %15 : vector<16x1xf32> to vector<16x32xf32>
    %24 = arith.subf %8, %23 : vector<16x32xf32>
    %cst_9 = arith.constant 9.99999974E-6 : f32
    %25 = vector.broadcast %cst_9 : f32 to vector<16x1xf32>
    %26 = arith.addf %22, %25 : vector<16x1xf32>
    %27 = math.rsqrt %26 : vector<16x1xf32>
    %28 = vector.broadcast %27 : vector<16x1xf32> to vector<16x32xf32>
    %29 = arith.mulf %24, %28 : vector<16x32xf32>
    %30 = vector.broadcast %10 : vector<1x32xf32> to vector<16x32xf32>
    %31 = arith.mulf %29, %30 : vector<16x32xf32>
    %32 = vector.broadcast %11 : vector<1x32xf32> to vector<16x32xf32>
    %33 = arith.addf %31, %32 : vector<16x32xf32>
    %34 = tpu.iota {dimensions = array<i32: 0>} : vector<8x8xi32>
    %35 = tpu.iota {dimensions = array<i32: 1>} : vector<8x8xi32>
    %36 = arith.cmpi sgt, %35, %34 : vector<8x8xi32>
    %cst_10 = arith.constant -1.000000e+09 : f32
    %cst_11 = arith.constant 0.000000e+00 : f32
    %37 = vector.broadcast %cst_10 : f32 to vector<8x8xf32>
    %38 = vector.broadcast %cst_11 : f32 to vector<8x8xf32>
    %39 = arith.select %36, %37, %38 : vector<8x8xi1>, vector<8x8xf32>
    %c0_12 = arith.constant 0 : index
    %c0_13 = arith.constant 0 : index
    %c0_14 = arith.constant 0 : index
    %40 = vector.load %arg5[%c0_12, %c0_13, %c0_14] : memref<3x128x32xf32, #tpu.memory_space<vmem>>, vector<1x128x32xf32>
    %41 = vector.shape_cast %40 : vector<1x128x32xf32> to vector<128x32xf32>
    %c0_15 = arith.constant 0 : index
    %c0_16 = arith.constant 0 : index
    %c0_17 = arith.constant 0 : index
    %42 = vector.load %arg6[%c0_15, %c0_16, %c0_17] : memref<3x4x32xf32, #tpu.memory_space<vmem>>, vector<1x4x32xf32>
    %43 = vector.shape_cast %42 : vector<1x4x32xf32> to vector<4x32xf32>
    %44 = vector.extract_strided_slice %41 {offsets = [0, 0], sizes = [32, 32], strides = [1, 1]} : vector<128x32xf32> to vector<32x32xf32>
    %45 = vector.extract_strided_slice %41 {offsets = [32, 0], sizes = [32, 32], strides = [1, 1]} : vector<128x32xf32> to vector<32x32xf32>
    %46 = vector.extract_strided_slice %41 {offsets = [64, 0], sizes = [32, 32], strides = [1, 1]} : vector<128x32xf32> to vector<32x32xf32>
    %47 = vector.extract_strided_slice %41 {offsets = [96, 0], sizes = [32, 32], strides = [1, 1]} : vector<128x32xf32> to vector<32x32xf32>
    %48 = vector.extract_strided_slice %43 {offsets = [0, 0], sizes = [1, 32], strides = [1, 1]} : vector<4x32xf32> to vector<1x32xf32>
    %49 = vector.extract_strided_slice %43 {offsets = [1, 0], sizes = [1, 32], strides = [1, 1]} : vector<4x32xf32> to vector<1x32xf32>
    %50 = vector.extract_strided_slice %43 {offsets = [2, 0], sizes = [1, 32], strides = [1, 1]} : vector<4x32xf32> to vector<1x32xf32>
    %51 = vector.extract_strided_slice %43 {offsets = [3, 0], sizes = [1, 32], strides = [1, 1]} : vector<4x32xf32> to vector<1x32xf32>
    %cst_18 = arith.constant dense<0.000000e+00> : vector<16x32xf32>
    %52 = tpu.matmul %33, %44, %cst_18 {dimension_numbers = #tpu.dot_dimension_numbers<[1], [0], [0], [1], [0, 0, 1, 1], [], []>} : vector<16x32xf32>, vector<32x32xf32>, vector<16x32xf32> -> vector<16x32xf32>
    %53 = vector.broadcast %48 : vector<1x32xf32> to vector<16x32xf32>
    %54 = arith.addf %52, %53 : vector<16x32xf32>
    %cst_19 = arith.constant dense<0.000000e+00> : vector<16x32xf32>
    %55 = tpu.matmul %33, %45, %cst_19 {dimension_numbers = #tpu.dot_dimension_numbers<[1], [0], [0], [1], [0, 0, 1, 1], [], []>} : vector<16x32xf32>, vector<32x32xf32>, vector<16x32xf32> -> vector<16x32xf32>
    %56 = vector.broadcast %49 : vector<1x32xf32> to vector<16x32xf32>
    %57 = arith.addf %55, %56 : vector<16x32xf32>
    %cst_20 = arith.constant dense<0.000000e+00> : vector<16x32xf32>
    %58 = tpu.matmul %33, %46, %cst_20 {dimension_numbers = #tpu.dot_dimension_numbers<[1], [0], [0], [1], [0, 0, 1, 1], [], []>} : vector<16x32xf32>, vector<32x32xf32>, vector<16x32xf32> -> vector<16x32xf32>
    %59 = vector.broadcast %50 : vector<1x32xf32> to vector<16x32xf32>
    %60 = arith.addf %58, %59 : vector<16x32xf32>
    %61 = vector.extract_strided_slice %54 {offsets = [0, 0], sizes = [8, 32], strides = [1, 1]} : vector<16x32xf32> to vector<8x32xf32>
    %62 = vector.extract_strided_slice %57 {offsets = [0, 0], sizes = [8, 32], strides = [1, 1]} : vector<16x32xf32> to vector<8x32xf32>
    %63 = vector.extract_strided_slice %60 {offsets = [0, 0], sizes = [8, 32], strides = [1, 1]} : vector<16x32xf32> to vector<8x32xf32>
    %64 = vector.extract_strided_slice %61 {offsets = [0, 0], sizes = [8, 8], strides = [1, 1]} : vector<8x32xf32> to vector<8x8xf32>
    %65 = vector.extract_strided_slice %62 {offsets = [0, 0], sizes = [8, 8], strides = [1, 1]} : vector<8x32xf32> to vector<8x8xf32>
    %cst_21 = arith.constant dense<0.000000e+00> : vector<8x8xf32>
    %66 = tpu.matmul %64, %65, %cst_21 {dimension_numbers = #tpu.dot_dimension_numbers<[1], [1], [0], [0], [0, 0, 1, 0], [], []>} : vector<8x8xf32>, vector<8x8xf32>, vector<8x8xf32> -> vector<8x8xf32>
    %cst_22 = arith.constant 0.353553385 : f32
    %67 = vector.broadcast %cst_22 : f32 to vector<8x8xf32>
    %68 = arith.mulf %66, %67 : vector<8x8xf32>
    %69 = arith.addf %68, %39 : vector<8x8xf32>
    %cst_23 = arith.constant dense<0xFF800000> : vector<8xf32>
    %70 = vector.multi_reduction <maximumf>, %69, %cst_23 [1] : vector<8x8xf32> to vector<8xf32>
    %71 = vector.shape_cast %70 : vector<8xf32> to vector<8x1xf32>
    %72 = vector.broadcast %71 : vector<8x1xf32> to vector<8x8xf32>
    %73 = arith.subf %69, %72 : vector<8x8xf32>
    %74 = math.exp %73 : vector<8x8xf32>
    %cst_24 = arith.constant dense<0.000000e+00> : vector<8xf32>
    %75 = vector.multi_reduction <add>, %74, %cst_24 [1] : vector<8x8xf32> to vector<8xf32>
    %76 = vector.shape_cast %75 : vector<8xf32> to vector<8x1xf32>
    %77 = tpu.reciprocal %76 {approx = true} : vector<8x1xf32> -> vector<8x1xf32>
    %78 = vector.broadcast %77 : vector<8x1xf32> to vector<8x8xf32>
    %79 = arith.mulf %74, %78 : vector<8x8xf32>
    %80 = vector.extract_strided_slice %63 {offsets = [0, 0], sizes = [8, 8], strides = [1, 1]} : vector<8x32xf32> to vector<8x8xf32>
    %cst_25 = arith.constant dense<0.000000e+00> : vector<8x8xf32>
    %81 = tpu.matmul %79, %80, %cst_25 {dimension_numbers = #tpu.dot_dimension_numbers<[1], [0], [0], [1], [0, 0, 1, 1], [], []>} : vector<8x8xf32>, vector<8x8xf32>, vector<8x8xf32> -> vector<8x8xf32>
    %82 = vector.extract_strided_slice %61 {offsets = [0, 8], sizes = [8, 8], strides = [1, 1]} : vector<8x32xf32> to vector<8x8xf32>
    %83 = vector.extract_strided_slice %62 {offsets = [0, 8], sizes = [8, 8], strides = [1, 1]} : vector<8x32xf32> to vector<8x8xf32>
    %cst_26 = arith.constant dense<0.000000e+00> : vector<8x8xf32>
    %84 = tpu.matmul %82, %83, %cst_26 {dimension_numbers = #tpu.dot_dimension_numbers<[1], [1], [0], [0], [0, 0, 1, 0], [], []>} : vector<8x8xf32>, vector<8x8xf32>, vector<8x8xf32> -> vector<8x8xf32>
    %cst_27 = arith.constant 0.353553385 : f32
    %85 = vector.broadcast %cst_27 : f32 to vector<8x8xf32>
    %86 = arith.mulf %84, %85 : vector<8x8xf32>
    %87 = arith.addf %86, %39 : vector<8x8xf32>
    %cst_28 = arith.constant dense<0xFF800000> : vector<8xf32>
    %88 = vector.multi_reduction <maximumf>, %87, %cst_28 [1] : vector<8x8xf32> to vector<8xf32>
    %89 = vector.shape_cast %88 : vector<8xf32> to vector<8x1xf32>
    %90 = vector.broadcast %89 : vector<8x1xf32> to vector<8x8xf32>
    %91 = arith.subf %87, %90 : vector<8x8xf32>
    %92 = math.exp %91 : vector<8x8xf32>
    %cst_29 = arith.constant dense<0.000000e+00> : vector<8xf32>
    %93 = vector.multi_reduction <add>, %92, %cst_29 [1] : vector<8x8xf32> to vector<8xf32>
    %94 = vector.shape_cast %93 : vector<8xf32> to vector<8x1xf32>
    %95 = tpu.reciprocal %94 {approx = true} : vector<8x1xf32> -> vector<8x1xf32>
    %96 = vector.broadcast %95 : vector<8x1xf32> to vector<8x8xf32>
    %97 = arith.mulf %92, %96 : vector<8x8xf32>
    %98 = vector.extract_strided_slice %63 {offsets = [0, 8], sizes = [8, 8], strides = [1, 1]} : vector<8x32xf32> to vector<8x8xf32>
    %cst_30 = arith.constant dense<0.000000e+00> : vector<8x8xf32>
    %99 = tpu.matmul %97, %98, %cst_30 {dimension_numbers = #tpu.dot_dimension_numbers<[1], [0], [0], [1], [0, 0, 1, 1], [], []>} : vector<8x8xf32>, vector<8x8xf32>, vector<8x8xf32> -> vector<8x8xf32>
    %100 = vector.extract_strided_slice %61 {offsets = [0, 16], sizes = [8, 8], strides = [1, 1]} : vector<8x32xf32> to vector<8x8xf32>
    %101 = vector.extract_strided_slice %62 {offsets = [0, 16], sizes = [8, 8], strides = [1, 1]} : vector<8x32xf32> to vector<8x8xf32>
    %cst_31 = arith.constant dense<0.000000e+00> : vector<8x8xf32>
    %102 = tpu.matmul %100, %101, %cst_31 {dimension_numbers = #tpu.dot_dimension_numbers<[1], [1], [0], [0], [0, 0, 1, 0], [], []>} : vector<8x8xf32>, vector<8x8xf32>, vector<8x8xf32> -> vector<8x8xf32>
    %cst_32 = arith.constant 0.353553385 : f32
    %103 = vector.broadcast %cst_32 : f32 to vector<8x8xf32>
    %104 = arith.mulf %102, %103 : vector<8x8xf32>
    %105 = arith.addf %104, %39 : vector<8x8xf32>
    %cst_33 = arith.constant dense<0xFF800000> : vector<8xf32>
    %106 = vector.multi_reduction <maximumf>, %105, %cst_33 [1] : vector<8x8xf32> to vector<8xf32>
    %107 = vector.shape_cast %106 : vector<8xf32> to vector<8x1xf32>
    %108 = vector.broadcast %107 : vector<8x1xf32> to vector<8x8xf32>
    %109 = arith.subf %105, %108 : vector<8x8xf32>
    %110 = math.exp %109 : vector<8x8xf32>
    %cst_34 = arith.constant dense<0.000000e+00> : vector<8xf32>
    %111 = vector.multi_reduction <add>, %110, %cst_34 [1] : vector<8x8xf32> to vector<8xf32>
    %112 = vector.shape_cast %111 : vector<8xf32> to vector<8x1xf32>
    %113 = tpu.reciprocal %112 {approx = true} : vector<8x1xf32> -> vector<8x1xf32>
    %114 = vector.broadcast %113 : vector<8x1xf32> to vector<8x8xf32>
    %115 = arith.mulf %110, %114 : vector<8x8xf32>
    %116 = vector.extract_strided_slice %63 {offsets = [0, 16], sizes = [8, 8], strides = [1, 1]} : vector<8x32xf32> to vector<8x8xf32>
    %cst_35 = arith.constant dense<0.000000e+00> : vector<8x8xf32>
    %117 = tpu.matmul %115, %116, %cst_35 {dimension_numbers = #tpu.dot_dimension_numbers<[1], [0], [0], [1], [0, 0, 1, 1], [], []>} : vector<8x8xf32>, vector<8x8xf32>, vector<8x8xf32> -> vector<8x8xf32>
    %118 = vector.extract_strided_slice %61 {offsets = [0, 24], sizes = [8, 8], strides = [1, 1]} : vector<8x32xf32> to vector<8x8xf32>
    %119 = vector.extract_strided_slice %62 {offsets = [0, 24], sizes = [8, 8], strides = [1, 1]} : vector<8x32xf32> to vector<8x8xf32>
    %cst_36 = arith.constant dense<0.000000e+00> : vector<8x8xf32>
    %120 = tpu.matmul %118, %119, %cst_36 {dimension_numbers = #tpu.dot_dimension_numbers<[1], [1], [0], [0], [0, 0, 1, 0], [], []>} : vector<8x8xf32>, vector<8x8xf32>, vector<8x8xf32> -> vector<8x8xf32>
    %cst_37 = arith.constant 0.353553385 : f32
    %121 = vector.broadcast %cst_37 : f32 to vector<8x8xf32>
    %122 = arith.mulf %120, %121 : vector<8x8xf32>
    %123 = arith.addf %122, %39 : vector<8x8xf32>
    %cst_38 = arith.constant dense<0xFF800000> : vector<8xf32>
    %124 = vector.multi_reduction <maximumf>, %123, %cst_38 [1] : vector<8x8xf32> to vector<8xf32>
    %125 = vector.shape_cast %124 : vector<8xf32> to vector<8x1xf32>
    %126 = vector.broadcast %125 : vector<8x1xf32> to vector<8x8xf32>
    %127 = arith.subf %123, %126 : vector<8x8xf32>
    %128 = math.exp %127 : vector<8x8xf32>
    %cst_39 = arith.constant dense<0.000000e+00> : vector<8xf32>
    %129 = vector.multi_reduction <add>, %128, %cst_39 [1] : vector<8x8xf32> to vector<8xf32>
    %130 = vector.shape_cast %129 : vector<8xf32> to vector<8x1xf32>
    %131 = tpu.reciprocal %130 {approx = true} : vector<8x1xf32> -> vector<8x1xf32>
    %132 = vector.broadcast %131 : vector<8x1xf32> to vector<8x8xf32>
    %133 = arith.mulf %128, %132 : vector<8x8xf32>
    %134 = vector.extract_strided_slice %63 {offsets = [0, 24], sizes = [8, 8], strides = [1, 1]} : vector<8x32xf32> to vector<8x8xf32>
    %cst_40 = arith.constant dense<0.000000e+00> : vector<8x8xf32>
    %135 = tpu.matmul %133, %134, %cst_40 {dimension_numbers = #tpu.dot_dimension_numbers<[1], [0], [0], [1], [0, 0, 1, 1], [], []>} : vector<8x8xf32>, vector<8x8xf32>, vector<8x8xf32> -> vector<8x8xf32>
    %136 = tpu.concatenate %81, %99, %117, %135 in 1 : vector<8x8xf32>, vector<8x8xf32>, vector<8x8xf32>, vector<8x8xf32> -> vector<8x32xf32>
    %cst_41 = arith.constant dense<0.000000e+00> : vector<8x32xf32>
    %137 = tpu.matmul %136, %47, %cst_41 {dimension_numbers = #tpu.dot_dimension_numbers<[1], [0], [0], [1], [0, 0, 1, 1], [], []>} : vector<8x32xf32>, vector<32x32xf32>, vector<8x32xf32> -> vector<8x32xf32>
    %138 = vector.broadcast %51 : vector<1x32xf32> to vector<8x32xf32>
    %139 = arith.addf %137, %138 : vector<8x32xf32>
    %140 = vector.extract_strided_slice %54 {offsets = [8, 0], sizes = [8, 32], strides = [1, 1]} : vector<16x32xf32> to vector<8x32xf32>
    %141 = vector.extract_strided_slice %57 {offsets = [8, 0], sizes = [8, 32], strides = [1, 1]} : vector<16x32xf32> to vector<8x32xf32>
    %142 = vector.extract_strided_slice %60 {offsets = [8, 0], sizes = [8, 32], strides = [1, 1]} : vector<16x32xf32> to vector<8x32xf32>
    %143 = vector.extract_strided_slice %140 {offsets = [0, 0], sizes = [8, 8], strides = [1, 1]} : vector<8x32xf32> to vector<8x8xf32>
    %144 = vector.extract_strided_slice %141 {offsets = [0, 0], sizes = [8, 8], strides = [1, 1]} : vector<8x32xf32> to vector<8x8xf32>
    %cst_42 = arith.constant dense<0.000000e+00> : vector<8x8xf32>
    %145 = tpu.matmul %143, %144, %cst_42 {dimension_numbers = #tpu.dot_dimension_numbers<[1], [1], [0], [0], [0, 0, 1, 0], [], []>} : vector<8x8xf32>, vector<8x8xf32>, vector<8x8xf32> -> vector<8x8xf32>
    %cst_43 = arith.constant 0.353553385 : f32
    %146 = vector.broadcast %cst_43 : f32 to vector<8x8xf32>
    %147 = arith.mulf %145, %146 : vector<8x8xf32>
    %148 = arith.addf %147, %39 : vector<8x8xf32>
    %cst_44 = arith.constant dense<0xFF800000> : vector<8xf32>
    %149 = vector.multi_reduction <maximumf>, %148, %cst_44 [1] : vector<8x8xf32> to vector<8xf32>
    %150 = vector.shape_cast %149 : vector<8xf32> to vector<8x1xf32>
    %151 = vector.broadcast %150 : vector<8x1xf32> to vector<8x8xf32>
    %152 = arith.subf %148, %151 : vector<8x8xf32>
    %153 = math.exp %152 : vector<8x8xf32>
    %cst_45 = arith.constant dense<0.000000e+00> : vector<8xf32>
    %154 = vector.multi_reduction <add>, %153, %cst_45 [1] : vector<8x8xf32> to vector<8xf32>
    %155 = vector.shape_cast %154 : vector<8xf32> to vector<8x1xf32>
    %156 = tpu.reciprocal %155 {approx = true} : vector<8x1xf32> -> vector<8x1xf32>
    %157 = vector.broadcast %156 : vector<8x1xf32> to vector<8x8xf32>
    %158 = arith.mulf %153, %157 : vector<8x8xf32>
    %159 = vector.extract_strided_slice %142 {offsets = [0, 0], sizes = [8, 8], strides = [1, 1]} : vector<8x32xf32> to vector<8x8xf32>
    %cst_46 = arith.constant dense<0.000000e+00> : vector<8x8xf32>
    %160 = tpu.matmul %158, %159, %cst_46 {dimension_numbers = #tpu.dot_dimension_numbers<[1], [0], [0], [1], [0, 0, 1, 1], [], []>} : vector<8x8xf32>, vector<8x8xf32>, vector<8x8xf32> -> vector<8x8xf32>
    %161 = vector.extract_strided_slice %140 {offsets = [0, 8], sizes = [8, 8], strides = [1, 1]} : vector<8x32xf32> to vector<8x8xf32>
    %162 = vector.extract_strided_slice %141 {offsets = [0, 8], sizes = [8, 8], strides = [1, 1]} : vector<8x32xf32> to vector<8x8xf32>
    %cst_47 = arith.constant dense<0.000000e+00> : vector<8x8xf32>
    %163 = tpu.matmul %161, %162, %cst_47 {dimension_numbers = #tpu.dot_dimension_numbers<[1], [1], [0], [0], [0, 0, 1, 0], [], []>} : vector<8x8xf32>, vector<8x8xf32>, vector<8x8xf32> -> vector<8x8xf32>
    %cst_48 = arith.constant 0.353553385 : f32
    %164 = vector.broadcast %cst_48 : f32 to vector<8x8xf32>
    %165 = arith.mulf %163, %164 : vector<8x8xf32>
    %166 = arith.addf %165, %39 : vector<8x8xf32>
    %cst_49 = arith.constant dense<0xFF800000> : vector<8xf32>
    %167 = vector.multi_reduction <maximumf>, %166, %cst_49 [1] : vector<8x8xf32> to vector<8xf32>
    %168 = vector.shape_cast %167 : vector<8xf32> to vector<8x1xf32>
    %169 = vector.broadcast %168 : vector<8x1xf32> to vector<8x8xf32>
    %170 = arith.subf %166, %169 : vector<8x8xf32>
    %171 = math.exp %170 : vector<8x8xf32>
    %cst_50 = arith.constant dense<0.000000e+00> : vector<8xf32>
    %172 = vector.multi_reduction <add>, %171, %cst_50 [1] : vector<8x8xf32> to vector<8xf32>
    %173 = vector.shape_cast %172 : vector<8xf32> to vector<8x1xf32>
    %174 = tpu.reciprocal %173 {approx = true} : vector<8x1xf32> -> vector<8x1xf32>
    %175 = vector.broadcast %174 : vector<8x1xf32> to vector<8x8xf32>
    %176 = arith.mulf %171, %175 : vector<8x8xf32>
    %177 = vector.extract_strided_slice %142 {offsets = [0, 8], sizes = [8, 8], strides = [1, 1]} : vector<8x32xf32> to vector<8x8xf32>
    %cst_51 = arith.constant dense<0.000000e+00> : vector<8x8xf32>
    %178 = tpu.matmul %176, %177, %cst_51 {dimension_numbers = #tpu.dot_dimension_numbers<[1], [0], [0], [1], [0, 0, 1, 1], [], []>} : vector<8x8xf32>, vector<8x8xf32>, vector<8x8xf32> -> vector<8x8xf32>
    %179 = vector.extract_strided_slice %140 {offsets = [0, 16], sizes = [8, 8], strides = [1, 1]} : vector<8x32xf32> to vector<8x8xf32>
    %180 = vector.extract_strided_slice %141 {offsets = [0, 16], sizes = [8, 8], strides = [1, 1]} : vector<8x32xf32> to vector<8x8xf32>
    %cst_52 = arith.constant dense<0.000000e+00> : vector<8x8xf32>
    %181 = tpu.matmul %179, %180, %cst_52 {dimension_numbers = #tpu.dot_dimension_numbers<[1], [1], [0], [0], [0, 0, 1, 0], [], []>} : vector<8x8xf32>, vector<8x8xf32>, vector<8x8xf32> -> vector<8x8xf32>
    %cst_53 = arith.constant 0.353553385 : f32
    %182 = vector.broadcast %cst_53 : f32 to vector<8x8xf32>
    %183 = arith.mulf %181, %182 : vector<8x8xf32>
    %184 = arith.addf %183, %39 : vector<8x8xf32>
    %cst_54 = arith.constant dense<0xFF800000> : vector<8xf32>
    %185 = vector.multi_reduction <maximumf>, %184, %cst_54 [1] : vector<8x8xf32> to vector<8xf32>
    %186 = vector.shape_cast %185 : vector<8xf32> to vector<8x1xf32>
    %187 = vector.broadcast %186 : vector<8x1xf32> to vector<8x8xf32>
    %188 = arith.subf %184, %187 : vector<8x8xf32>
    %189 = math.exp %188 : vector<8x8xf32>
    %cst_55 = arith.constant dense<0.000000e+00> : vector<8xf32>
    %190 = vector.multi_reduction <add>, %189, %cst_55 [1] : vector<8x8xf32> to vector<8xf32>
    %191 = vector.shape_cast %190 : vector<8xf32> to vector<8x1xf32>
    %192 = tpu.reciprocal %191 {approx = true} : vector<8x1xf32> -> vector<8x1xf32>
    %193 = vector.broadcast %192 : vector<8x1xf32> to vector<8x8xf32>
    %194 = arith.mulf %189, %193 : vector<8x8xf32>
    %195 = vector.extract_strided_slice %142 {offsets = [0, 16], sizes = [8, 8], strides = [1, 1]} : vector<8x32xf32> to vector<8x8xf32>
    %cst_56 = arith.constant dense<0.000000e+00> : vector<8x8xf32>
    %196 = tpu.matmul %194, %195, %cst_56 {dimension_numbers = #tpu.dot_dimension_numbers<[1], [0], [0], [1], [0, 0, 1, 1], [], []>} : vector<8x8xf32>, vector<8x8xf32>, vector<8x8xf32> -> vector<8x8xf32>
    %197 = vector.extract_strided_slice %140 {offsets = [0, 24], sizes = [8, 8], strides = [1, 1]} : vector<8x32xf32> to vector<8x8xf32>
    %198 = vector.extract_strided_slice %141 {offsets = [0, 24], sizes = [8, 8], strides = [1, 1]} : vector<8x32xf32> to vector<8x8xf32>
    %cst_57 = arith.constant dense<0.000000e+00> : vector<8x8xf32>
    %199 = tpu.matmul %197, %198, %cst_57 {dimension_numbers = #tpu.dot_dimension_numbers<[1], [1], [0], [0], [0, 0, 1, 0], [], []>} : vector<8x8xf32>, vector<8x8xf32>, vector<8x8xf32> -> vector<8x8xf32>
    %cst_58 = arith.constant 0.353553385 : f32
    %200 = vector.broadcast %cst_58 : f32 to vector<8x8xf32>
    %201 = arith.mulf %199, %200 : vector<8x8xf32>
    %202 = arith.addf %201, %39 : vector<8x8xf32>
    %cst_59 = arith.constant dense<0xFF800000> : vector<8xf32>
    %203 = vector.multi_reduction <maximumf>, %202, %cst_59 [1] : vector<8x8xf32> to vector<8xf32>
    %204 = vector.shape_cast %203 : vector<8xf32> to vector<8x1xf32>
    %205 = vector.broadcast %204 : vector<8x1xf32> to vector<8x8xf32>
    %206 = arith.subf %202, %205 : vector<8x8xf32>
    %207 = math.exp %206 : vector<8x8xf32>
    %cst_60 = arith.constant dense<0.000000e+00> : vector<8xf32>
    %208 = vector.multi_reduction <add>, %207, %cst_60 [1] : vector<8x8xf32> to vector<8xf32>
    %209 = vector.shape_cast %208 : vector<8xf32> to vector<8x1xf32>
    %210 = tpu.reciprocal %209 {approx = true} : vector<8x1xf32> -> vector<8x1xf32>
    %211 = vector.broadcast %210 : vector<8x1xf32> to vector<8x8xf32>
    %212 = arith.mulf %207, %211 : vector<8x8xf32>
    %213 = vector.extract_strided_slice %142 {offsets = [0, 24], sizes = [8, 8], strides = [1, 1]} : vector<8x32xf32> to vector<8x8xf32>
    %cst_61 = arith.constant dense<0.000000e+00> : vector<8x8xf32>
    %214 = tpu.matmul %212, %213, %cst_61 {dimension_numbers = #tpu.dot_dimension_numbers<[1], [0], [0], [1], [0, 0, 1, 1], [], []>} : vector<8x8xf32>, vector<8x8xf32>, vector<8x8xf32> -> vector<8x8xf32>
    %215 = tpu.concatenate %160, %178, %196, %214 in 1 : vector<8x8xf32>, vector<8x8xf32>, vector<8x8xf32>, vector<8x8xf32> -> vector<8x32xf32>
    %cst_62 = arith.constant dense<0.000000e+00> : vector<8x32xf32>
    %216 = tpu.matmul %215, %47, %cst_62 {dimension_numbers = #tpu.dot_dimension_numbers<[1], [0], [0], [1], [0, 0, 1, 1], [], []>} : vector<8x32xf32>, vector<32x32xf32>, vector<8x32xf32> -> vector<8x32xf32>
    %217 = vector.broadcast %51 : vector<1x32xf32> to vector<8x32xf32>
    %218 = arith.addf %216, %217 : vector<8x32xf32>
    %219 = tpu.concatenate %139, %218 in 0 : vector<8x32xf32>, vector<8x32xf32> -> vector<16x32xf32>
    %c0_63 = arith.constant 0 : index
    %c0_64 = arith.constant 0 : index
    %220 = vector.load %arg2[%c0_63, %c0_64] : memref<32x32xf32, #tpu.memory_space<vmem>>, vector<32x32xf32>
    %c1 = arith.constant 1 : index
    %c0_65 = arith.constant 0 : index
    %c0_66 = arith.constant 0 : index
    %221 = vector.load %arg5[%c1, %c0_65, %c0_66] : memref<3x128x32xf32, #tpu.memory_space<vmem>>, vector<1x128x32xf32>
    %222 = vector.shape_cast %221 : vector<1x128x32xf32> to vector<128x32xf32>
    %c1_67 = arith.constant 1 : index
    %c0_68 = arith.constant 0 : index
    %c0_69 = arith.constant 0 : index
    %223 = vector.load %arg6[%c1_67, %c0_68, %c0_69] : memref<3x4x32xf32, #tpu.memory_space<vmem>>, vector<1x4x32xf32>
    %224 = vector.shape_cast %223 : vector<1x4x32xf32> to vector<4x32xf32>
    %225 = vector.extract_strided_slice %222 {offsets = [0, 0], sizes = [32, 32], strides = [1, 1]} : vector<128x32xf32> to vector<32x32xf32>
    %226 = vector.extract_strided_slice %222 {offsets = [32, 0], sizes = [32, 32], strides = [1, 1]} : vector<128x32xf32> to vector<32x32xf32>
    %227 = vector.extract_strided_slice %222 {offsets = [64, 0], sizes = [32, 32], strides = [1, 1]} : vector<128x32xf32> to vector<32x32xf32>
    %228 = vector.extract_strided_slice %222 {offsets = [96, 0], sizes = [32, 32], strides = [1, 1]} : vector<128x32xf32> to vector<32x32xf32>
    %229 = vector.extract_strided_slice %224 {offsets = [0, 0], sizes = [1, 32], strides = [1, 1]} : vector<4x32xf32> to vector<1x32xf32>
    %230 = vector.extract_strided_slice %224 {offsets = [1, 0], sizes = [1, 32], strides = [1, 1]} : vector<4x32xf32> to vector<1x32xf32>
    %231 = vector.extract_strided_slice %224 {offsets = [2, 0], sizes = [1, 32], strides = [1, 1]} : vector<4x32xf32> to vector<1x32xf32>
    %232 = vector.extract_strided_slice %224 {offsets = [3, 0], sizes = [1, 32], strides = [1, 1]} : vector<4x32xf32> to vector<1x32xf32>
    %cst_70 = arith.constant dense<0.000000e+00> : vector<16x32xf32>
    %233 = tpu.matmul %219, %225, %cst_70 {dimension_numbers = #tpu.dot_dimension_numbers<[1], [0], [0], [1], [0, 0, 1, 1], [], []>} : vector<16x32xf32>, vector<32x32xf32>, vector<16x32xf32> -> vector<16x32xf32>
    %234 = vector.broadcast %229 : vector<1x32xf32> to vector<16x32xf32>
    %235 = arith.addf %233, %234 : vector<16x32xf32>
    %cst_71 = arith.constant dense<0.000000e+00> : vector<32x32xf32>
    %236 = tpu.matmul %220, %226, %cst_71 {dimension_numbers = #tpu.dot_dimension_numbers<[1], [0], [0], [1], [0, 0, 1, 1], [], []>} : vector<32x32xf32>, vector<32x32xf32>, vector<32x32xf32> -> vector<32x32xf32>
    %237 = vector.broadcast %230 : vector<1x32xf32> to vector<32x32xf32>
    %238 = arith.addf %236, %237 : vector<32x32xf32>
    %cst_72 = arith.constant dense<0.000000e+00> : vector<32x32xf32>
    %239 = tpu.matmul %220, %227, %cst_72 {dimension_numbers = #tpu.dot_dimension_numbers<[1], [0], [0], [1], [0, 0, 1, 1], [], []>} : vector<32x32xf32>, vector<32x32xf32>, vector<32x32xf32> -> vector<32x32xf32>
    %240 = vector.broadcast %231 : vector<1x32xf32> to vector<32x32xf32>
    %241 = arith.addf %239, %240 : vector<32x32xf32>
    %242 = vector.extract_strided_slice %235 {offsets = [0, 0], sizes = [8, 32], strides = [1, 1]} : vector<16x32xf32> to vector<8x32xf32>
    %243 = vector.extract_strided_slice %238 {offsets = [0, 0], sizes = [16, 32], strides = [1, 1]} : vector<32x32xf32> to vector<16x32xf32>
    %244 = vector.extract_strided_slice %241 {offsets = [0, 0], sizes = [16, 32], strides = [1, 1]} : vector<32x32xf32> to vector<16x32xf32>
    %245 = vector.extract_strided_slice %242 {offsets = [0, 0], sizes = [8, 8], strides = [1, 1]} : vector<8x32xf32> to vector<8x8xf32>
    %246 = vector.extract_strided_slice %243 {offsets = [0, 0], sizes = [16, 8], strides = [1, 1]} : vector<16x32xf32> to vector<16x8xf32>
    %cst_73 = arith.constant dense<0.000000e+00> : vector<8x16xf32>
    %247 = tpu.matmul %245, %246, %cst_73 {dimension_numbers = #tpu.dot_dimension_numbers<[1], [1], [0], [0], [0, 0, 1, 0], [], []>} : vector<8x8xf32>, vector<16x8xf32>, vector<8x16xf32> -> vector<8x16xf32>
    %cst_74 = arith.constant 0.353553385 : f32
    %248 = vector.broadcast %cst_74 : f32 to vector<8x16xf32>
    %249 = arith.mulf %247, %248 : vector<8x16xf32>
    %cst_75 = arith.constant dense<0xFF800000> : vector<8xf32>
    %250 = vector.multi_reduction <maximumf>, %249, %cst_75 [1] : vector<8x16xf32> to vector<8xf32>
    %251 = vector.shape_cast %250 : vector<8xf32> to vector<8x1xf32>
    %252 = vector.broadcast %251 : vector<8x1xf32> to vector<8x16xf32>
    %253 = arith.subf %249, %252 : vector<8x16xf32>
    %254 = math.exp %253 : vector<8x16xf32>
    %cst_76 = arith.constant dense<0.000000e+00> : vector<8xf32>
    %255 = vector.multi_reduction <add>, %254, %cst_76 [1] : vector<8x16xf32> to vector<8xf32>
    %256 = vector.shape_cast %255 : vector<8xf32> to vector<8x1xf32>
    %257 = tpu.reciprocal %256 {approx = true} : vector<8x1xf32> -> vector<8x1xf32>
    %258 = vector.broadcast %257 : vector<8x1xf32> to vector<8x16xf32>
    %259 = arith.mulf %254, %258 : vector<8x16xf32>
    %260 = vector.extract_strided_slice %244 {offsets = [0, 0], sizes = [16, 8], strides = [1, 1]} : vector<16x32xf32> to vector<16x8xf32>
    %cst_77 = arith.constant dense<0.000000e+00> : vector<8x8xf32>
    %261 = tpu.matmul %259, %260, %cst_77 {dimension_numbers = #tpu.dot_dimension_numbers<[1], [0], [0], [1], [0, 0, 1, 1], [], []>} : vector<8x16xf32>, vector<16x8xf32>, vector<8x8xf32> -> vector<8x8xf32>
    %262 = vector.extract_strided_slice %242 {offsets = [0, 8], sizes = [8, 8], strides = [1, 1]} : vector<8x32xf32> to vector<8x8xf32>
    %263 = vector.extract_strided_slice %243 {offsets = [0, 8], sizes = [16, 8], strides = [1, 1]} : vector<16x32xf32> to vector<16x8xf32>
    %cst_78 = arith.constant dense<0.000000e+00> : vector<8x16xf32>
    %264 = tpu.matmul %262, %263, %cst_78 {dimension_numbers = #tpu.dot_dimension_numbers<[1], [1], [0], [0], [0, 0, 1, 0], [], []>} : vector<8x8xf32>, vector<16x8xf32>, vector<8x16xf32> -> vector<8x16xf32>
    %cst_79 = arith.constant 0.353553385 : f32
    %265 = vector.broadcast %cst_79 : f32 to vector<8x16xf32>
    %266 = arith.mulf %264, %265 : vector<8x16xf32>
    %cst_80 = arith.constant dense<0xFF800000> : vector<8xf32>
    %267 = vector.multi_reduction <maximumf>, %266, %cst_80 [1] : vector<8x16xf32> to vector<8xf32>
    %268 = vector.shape_cast %267 : vector<8xf32> to vector<8x1xf32>
    %269 = vector.broadcast %268 : vector<8x1xf32> to vector<8x16xf32>
    %270 = arith.subf %266, %269 : vector<8x16xf32>
    %271 = math.exp %270 : vector<8x16xf32>
    %cst_81 = arith.constant dense<0.000000e+00> : vector<8xf32>
    %272 = vector.multi_reduction <add>, %271, %cst_81 [1] : vector<8x16xf32> to vector<8xf32>
    %273 = vector.shape_cast %272 : vector<8xf32> to vector<8x1xf32>
    %274 = tpu.reciprocal %273 {approx = true} : vector<8x1xf32> -> vector<8x1xf32>
    %275 = vector.broadcast %274 : vector<8x1xf32> to vector<8x16xf32>
    %276 = arith.mulf %271, %275 : vector<8x16xf32>
    %277 = vector.extract_strided_slice %244 {offsets = [0, 8], sizes = [16, 8], strides = [1, 1]} : vector<16x32xf32> to vector<16x8xf32>
    %cst_82 = arith.constant dense<0.000000e+00> : vector<8x8xf32>
    %278 = tpu.matmul %276, %277, %cst_82 {dimension_numbers = #tpu.dot_dimension_numbers<[1], [0], [0], [1], [0, 0, 1, 1], [], []>} : vector<8x16xf32>, vector<16x8xf32>, vector<8x8xf32> -> vector<8x8xf32>
    %279 = vector.extract_strided_slice %242 {offsets = [0, 16], sizes = [8, 8], strides = [1, 1]} : vector<8x32xf32> to vector<8x8xf32>
    %280 = vector.extract_strided_slice %243 {offsets = [0, 16], sizes = [16, 8], strides = [1, 1]} : vector<16x32xf32> to vector<16x8xf32>
    %cst_83 = arith.constant dense<0.000000e+00> : vector<8x16xf32>
    %281 = tpu.matmul %279, %280, %cst_83 {dimension_numbers = #tpu.dot_dimension_numbers<[1], [1], [0], [0], [0, 0, 1, 0], [], []>} : vector<8x8xf32>, vector<16x8xf32>, vector<8x16xf32> -> vector<8x16xf32>
    %cst_84 = arith.constant 0.353553385 : f32
    %282 = vector.broadcast %cst_84 : f32 to vector<8x16xf32>
    %283 = arith.mulf %281, %282 : vector<8x16xf32>
    %cst_85 = arith.constant dense<0xFF800000> : vector<8xf32>
    %284 = vector.multi_reduction <maximumf>, %283, %cst_85 [1] : vector<8x16xf32> to vector<8xf32>
    %285 = vector.shape_cast %284 : vector<8xf32> to vector<8x1xf32>
    %286 = vector.broadcast %285 : vector<8x1xf32> to vector<8x16xf32>
    %287 = arith.subf %283, %286 : vector<8x16xf32>
    %288 = math.exp %287 : vector<8x16xf32>
    %cst_86 = arith.constant dense<0.000000e+00> : vector<8xf32>
    %289 = vector.multi_reduction <add>, %288, %cst_86 [1] : vector<8x16xf32> to vector<8xf32>
    %290 = vector.shape_cast %289 : vector<8xf32> to vector<8x1xf32>
    %291 = tpu.reciprocal %290 {approx = true} : vector<8x1xf32> -> vector<8x1xf32>
    %292 = vector.broadcast %291 : vector<8x1xf32> to vector<8x16xf32>
    %293 = arith.mulf %288, %292 : vector<8x16xf32>
    %294 = vector.extract_strided_slice %244 {offsets = [0, 16], sizes = [16, 8], strides = [1, 1]} : vector<16x32xf32> to vector<16x8xf32>
    %cst_87 = arith.constant dense<0.000000e+00> : vector<8x8xf32>
    %295 = tpu.matmul %293, %294, %cst_87 {dimension_numbers = #tpu.dot_dimension_numbers<[1], [0], [0], [1], [0, 0, 1, 1], [], []>} : vector<8x16xf32>, vector<16x8xf32>, vector<8x8xf32> -> vector<8x8xf32>
    %296 = vector.extract_strided_slice %242 {offsets = [0, 24], sizes = [8, 8], strides = [1, 1]} : vector<8x32xf32> to vector<8x8xf32>
    %297 = vector.extract_strided_slice %243 {offsets = [0, 24], sizes = [16, 8], strides = [1, 1]} : vector<16x32xf32> to vector<16x8xf32>
    %cst_88 = arith.constant dense<0.000000e+00> : vector<8x16xf32>
    %298 = tpu.matmul %296, %297, %cst_88 {dimension_numbers = #tpu.dot_dimension_numbers<[1], [1], [0], [0], [0, 0, 1, 0], [], []>} : vector<8x8xf32>, vector<16x8xf32>, vector<8x16xf32> -> vector<8x16xf32>
    %cst_89 = arith.constant 0.353553385 : f32
    %299 = vector.broadcast %cst_89 : f32 to vector<8x16xf32>
    %300 = arith.mulf %298, %299 : vector<8x16xf32>
    %cst_90 = arith.constant dense<0xFF800000> : vector<8xf32>
    %301 = vector.multi_reduction <maximumf>, %300, %cst_90 [1] : vector<8x16xf32> to vector<8xf32>
    %302 = vector.shape_cast %301 : vector<8xf32> to vector<8x1xf32>
    %303 = vector.broadcast %302 : vector<8x1xf32> to vector<8x16xf32>
    %304 = arith.subf %300, %303 : vector<8x16xf32>
    %305 = math.exp %304 : vector<8x16xf32>
    %cst_91 = arith.constant dense<0.000000e+00> : vector<8xf32>
    %306 = vector.multi_reduction <add>, %305, %cst_91 [1] : vector<8x16xf32> to vector<8xf32>
    %307 = vector.shape_cast %306 : vector<8xf32> to vector<8x1xf32>
    %308 = tpu.reciprocal %307 {approx = true} : vector<8x1xf32> -> vector<8x1xf32>
    %309 = vector.broadcast %308 : vector<8x1xf32> to vector<8x16xf32>
    %310 = arith.mulf %305, %309 : vector<8x16xf32>
    %311 = vector.extract_strided_slice %244 {offsets = [0, 24], sizes = [16, 8], strides = [1, 1]} : vector<16x32xf32> to vector<16x8xf32>
    %cst_92 = arith.constant dense<0.000000e+00> : vector<8x8xf32>
    %312 = tpu.matmul %310, %311, %cst_92 {dimension_numbers = #tpu.dot_dimension_numbers<[1], [0], [0], [1], [0, 0, 1, 1], [], []>} : vector<8x16xf32>, vector<16x8xf32>, vector<8x8xf32> -> vector<8x8xf32>
    %313 = tpu.concatenate %261, %278, %295, %312 in 1 : vector<8x8xf32>, vector<8x8xf32>, vector<8x8xf32>, vector<8x8xf32> -> vector<8x32xf32>
    %cst_93 = arith.constant dense<0.000000e+00> : vector<8x32xf32>
    %314 = tpu.matmul %313, %228, %cst_93 {dimension_numbers = #tpu.dot_dimension_numbers<[1], [0], [0], [1], [0, 0, 1, 1], [], []>} : vector<8x32xf32>, vector<32x32xf32>, vector<8x32xf32> -> vector<8x32xf32>
    %315 = vector.broadcast %232 : vector<1x32xf32> to vector<8x32xf32>
    %316 = arith.addf %314, %315 : vector<8x32xf32>
    %317 = vector.extract_strided_slice %235 {offsets = [8, 0], sizes = [8, 32], strides = [1, 1]} : vector<16x32xf32> to vector<8x32xf32>
    %318 = vector.extract_strided_slice %238 {offsets = [16, 0], sizes = [16, 32], strides = [1, 1]} : vector<32x32xf32> to vector<16x32xf32>
    %319 = vector.extract_strided_slice %241 {offsets = [16, 0], sizes = [16, 32], strides = [1, 1]} : vector<32x32xf32> to vector<16x32xf32>
    %320 = vector.extract_strided_slice %317 {offsets = [0, 0], sizes = [8, 8], strides = [1, 1]} : vector<8x32xf32> to vector<8x8xf32>
    %321 = vector.extract_strided_slice %318 {offsets = [0, 0], sizes = [16, 8], strides = [1, 1]} : vector<16x32xf32> to vector<16x8xf32>
    %cst_94 = arith.constant dense<0.000000e+00> : vector<8x16xf32>
    %322 = tpu.matmul %320, %321, %cst_94 {dimension_numbers = #tpu.dot_dimension_numbers<[1], [1], [0], [0], [0, 0, 1, 0], [], []>} : vector<8x8xf32>, vector<16x8xf32>, vector<8x16xf32> -> vector<8x16xf32>
    %cst_95 = arith.constant 0.353553385 : f32
    %323 = vector.broadcast %cst_95 : f32 to vector<8x16xf32>
    %324 = arith.mulf %322, %323 : vector<8x16xf32>
    %cst_96 = arith.constant dense<0xFF800000> : vector<8xf32>
    %325 = vector.multi_reduction <maximumf>, %324, %cst_96 [1] : vector<8x16xf32> to vector<8xf32>
    %326 = vector.shape_cast %325 : vector<8xf32> to vector<8x1xf32>
    %327 = vector.broadcast %326 : vector<8x1xf32> to vector<8x16xf32>
    %328 = arith.subf %324, %327 : vector<8x16xf32>
    %329 = math.exp %328 : vector<8x16xf32>
    %cst_97 = arith.constant dense<0.000000e+00> : vector<8xf32>
    %330 = vector.multi_reduction <add>, %329, %cst_97 [1] : vector<8x16xf32> to vector<8xf32>
    %331 = vector.shape_cast %330 : vector<8xf32> to vector<8x1xf32>
    %332 = tpu.reciprocal %331 {approx = true} : vector<8x1xf32> -> vector<8x1xf32>
    %333 = vector.broadcast %332 : vector<8x1xf32> to vector<8x16xf32>
    %334 = arith.mulf %329, %333 : vector<8x16xf32>
    %335 = vector.extract_strided_slice %319 {offsets = [0, 0], sizes = [16, 8], strides = [1, 1]} : vector<16x32xf32> to vector<16x8xf32>
    %cst_98 = arith.constant dense<0.000000e+00> : vector<8x8xf32>
    %336 = tpu.matmul %334, %335, %cst_98 {dimension_numbers = #tpu.dot_dimension_numbers<[1], [0], [0], [1], [0, 0, 1, 1], [], []>} : vector<8x16xf32>, vector<16x8xf32>, vector<8x8xf32> -> vector<8x8xf32>
    %337 = vector.extract_strided_slice %317 {offsets = [0, 8], sizes = [8, 8], strides = [1, 1]} : vector<8x32xf32> to vector<8x8xf32>
    %338 = vector.extract_strided_slice %318 {offsets = [0, 8], sizes = [16, 8], strides = [1, 1]} : vector<16x32xf32> to vector<16x8xf32>
    %cst_99 = arith.constant dense<0.000000e+00> : vector<8x16xf32>
    %339 = tpu.matmul %337, %338, %cst_99 {dimension_numbers = #tpu.dot_dimension_numbers<[1], [1], [0], [0], [0, 0, 1, 0], [], []>} : vector<8x8xf32>, vector<16x8xf32>, vector<8x16xf32> -> vector<8x16xf32>
    %cst_100 = arith.constant 0.353553385 : f32
    %340 = vector.broadcast %cst_100 : f32 to vector<8x16xf32>
    %341 = arith.mulf %339, %340 : vector<8x16xf32>
    %cst_101 = arith.constant dense<0xFF800000> : vector<8xf32>
    %342 = vector.multi_reduction <maximumf>, %341, %cst_101 [1] : vector<8x16xf32> to vector<8xf32>
    %343 = vector.shape_cast %342 : vector<8xf32> to vector<8x1xf32>
    %344 = vector.broadcast %343 : vector<8x1xf32> to vector<8x16xf32>
    %345 = arith.subf %341, %344 : vector<8x16xf32>
    %346 = math.exp %345 : vector<8x16xf32>
    %cst_102 = arith.constant dense<0.000000e+00> : vector<8xf32>
    %347 = vector.multi_reduction <add>, %346, %cst_102 [1] : vector<8x16xf32> to vector<8xf32>
    %348 = vector.shape_cast %347 : vector<8xf32> to vector<8x1xf32>
    %349 = tpu.reciprocal %348 {approx = true} : vector<8x1xf32> -> vector<8x1xf32>
    %350 = vector.broadcast %349 : vector<8x1xf32> to vector<8x16xf32>
    %351 = arith.mulf %346, %350 : vector<8x16xf32>
    %352 = vector.extract_strided_slice %319 {offsets = [0, 8], sizes = [16, 8], strides = [1, 1]} : vector<16x32xf32> to vector<16x8xf32>
    %cst_103 = arith.constant dense<0.000000e+00> : vector<8x8xf32>
    %353 = tpu.matmul %351, %352, %cst_103 {dimension_numbers = #tpu.dot_dimension_numbers<[1], [0], [0], [1], [0, 0, 1, 1], [], []>} : vector<8x16xf32>, vector<16x8xf32>, vector<8x8xf32> -> vector<8x8xf32>
    %354 = vector.extract_strided_slice %317 {offsets = [0, 16], sizes = [8, 8], strides = [1, 1]} : vector<8x32xf32> to vector<8x8xf32>
    %355 = vector.extract_strided_slice %318 {offsets = [0, 16], sizes = [16, 8], strides = [1, 1]} : vector<16x32xf32> to vector<16x8xf32>
    %cst_104 = arith.constant dense<0.000000e+00> : vector<8x16xf32>
    %356 = tpu.matmul %354, %355, %cst_104 {dimension_numbers = #tpu.dot_dimension_numbers<[1], [1], [0], [0], [0, 0, 1, 0], [], []>} : vector<8x8xf32>, vector<16x8xf32>, vector<8x16xf32> -> vector<8x16xf32>
    %cst_105 = arith.constant 0.353553385 : f32
    %357 = vector.broadcast %cst_105 : f32 to vector<8x16xf32>
    %358 = arith.mulf %356, %357 : vector<8x16xf32>
    %cst_106 = arith.constant dense<0xFF800000> : vector<8xf32>
    %359 = vector.multi_reduction <maximumf>, %358, %cst_106 [1] : vector<8x16xf32> to vector<8xf32>
    %360 = vector.shape_cast %359 : vector<8xf32> to vector<8x1xf32>
    %361 = vector.broadcast %360 : vector<8x1xf32> to vector<8x16xf32>
    %362 = arith.subf %358, %361 : vector<8x16xf32>
    %363 = math.exp %362 : vector<8x16xf32>
    %cst_107 = arith.constant dense<0.000000e+00> : vector<8xf32>
    %364 = vector.multi_reduction <add>, %363, %cst_107 [1] : vector<8x16xf32> to vector<8xf32>
    %365 = vector.shape_cast %364 : vector<8xf32> to vector<8x1xf32>
    %366 = tpu.reciprocal %365 {approx = true} : vector<8x1xf32> -> vector<8x1xf32>
    %367 = vector.broadcast %366 : vector<8x1xf32> to vector<8x16xf32>
    %368 = arith.mulf %363, %367 : vector<8x16xf32>
    %369 = vector.extract_strided_slice %319 {offsets = [0, 16], sizes = [16, 8], strides = [1, 1]} : vector<16x32xf32> to vector<16x8xf32>
    %cst_108 = arith.constant dense<0.000000e+00> : vector<8x8xf32>
    %370 = tpu.matmul %368, %369, %cst_108 {dimension_numbers = #tpu.dot_dimension_numbers<[1], [0], [0], [1], [0, 0, 1, 1], [], []>} : vector<8x16xf32>, vector<16x8xf32>, vector<8x8xf32> -> vector<8x8xf32>
    %371 = vector.extract_strided_slice %317 {offsets = [0, 24], sizes = [8, 8], strides = [1, 1]} : vector<8x32xf32> to vector<8x8xf32>
    %372 = vector.extract_strided_slice %318 {offsets = [0, 24], sizes = [16, 8], strides = [1, 1]} : vector<16x32xf32> to vector<16x8xf32>
    %cst_109 = arith.constant dense<0.000000e+00> : vector<8x16xf32>
    %373 = tpu.matmul %371, %372, %cst_109 {dimension_numbers = #tpu.dot_dimension_numbers<[1], [1], [0], [0], [0, 0, 1, 0], [], []>} : vector<8x8xf32>, vector<16x8xf32>, vector<8x16xf32> -> vector<8x16xf32>
    %cst_110 = arith.constant 0.353553385 : f32
    %374 = vector.broadcast %cst_110 : f32 to vector<8x16xf32>
    %375 = arith.mulf %373, %374 : vector<8x16xf32>
    %cst_111 = arith.constant dense<0xFF800000> : vector<8xf32>
    %376 = vector.multi_reduction <maximumf>, %375, %cst_111 [1] : vector<8x16xf32> to vector<8xf32>
    %377 = vector.shape_cast %376 : vector<8xf32> to vector<8x1xf32>
    %378 = vector.broadcast %377 : vector<8x1xf32> to vector<8x16xf32>
    %379 = arith.subf %375, %378 : vector<8x16xf32>
    %380 = math.exp %379 : vector<8x16xf32>
    %cst_112 = arith.constant dense<0.000000e+00> : vector<8xf32>
    %381 = vector.multi_reduction <add>, %380, %cst_112 [1] : vector<8x16xf32> to vector<8xf32>
    %382 = vector.shape_cast %381 : vector<8xf32> to vector<8x1xf32>
    %383 = tpu.reciprocal %382 {approx = true} : vector<8x1xf32> -> vector<8x1xf32>
    %384 = vector.broadcast %383 : vector<8x1xf32> to vector<8x16xf32>
    %385 = arith.mulf %380, %384 : vector<8x16xf32>
    %386 = vector.extract_strided_slice %319 {offsets = [0, 24], sizes = [16, 8], strides = [1, 1]} : vector<16x32xf32> to vector<16x8xf32>
    %cst_113 = arith.constant dense<0.000000e+00> : vector<8x8xf32>
    %387 = tpu.matmul %385, %386, %cst_113 {dimension_numbers = #tpu.dot_dimension_numbers<[1], [0], [0], [1], [0, 0, 1, 1], [], []>} : vector<8x16xf32>, vector<16x8xf32>, vector<8x8xf32> -> vector<8x8xf32>
    %388 = tpu.concatenate %336, %353, %370, %387 in 1 : vector<8x8xf32>, vector<8x8xf32>, vector<8x8xf32>, vector<8x8xf32> -> vector<8x32xf32>
    %cst_114 = arith.constant dense<0.000000e+00> : vector<8x32xf32>
    %389 = tpu.matmul %388, %228, %cst_114 {dimension_numbers = #tpu.dot_dimension_numbers<[1], [0], [0], [1], [0, 0, 1, 1], [], []>} : vector<8x32xf32>, vector<32x32xf32>, vector<8x32xf32> -> vector<8x32xf32>
    %390 = vector.broadcast %232 : vector<1x32xf32> to vector<8x32xf32>
    %391 = arith.addf %389, %390 : vector<8x32xf32>
    %392 = tpu.concatenate %316, %391 in 0 : vector<8x32xf32>, vector<8x32xf32> -> vector<16x32xf32>
    %c2 = arith.constant 2 : index
    %c0_115 = arith.constant 0 : index
    %c0_116 = arith.constant 0 : index
    %393 = vector.load %arg5[%c2, %c0_115, %c0_116] : memref<3x128x32xf32, #tpu.memory_space<vmem>>, vector<1x128x32xf32>
    %394 = vector.shape_cast %393 : vector<1x128x32xf32> to vector<128x32xf32>
    %c2_117 = arith.constant 2 : index
    %c0_118 = arith.constant 0 : index
    %c0_119 = arith.constant 0 : index
    %395 = vector.load %arg6[%c2_117, %c0_118, %c0_119] : memref<3x4x32xf32, #tpu.memory_space<vmem>>, vector<1x4x32xf32>
    %396 = vector.shape_cast %395 : vector<1x4x32xf32> to vector<4x32xf32>
    %397 = vector.extract_strided_slice %394 {offsets = [0, 0], sizes = [32, 32], strides = [1, 1]} : vector<128x32xf32> to vector<32x32xf32>
    %398 = vector.extract_strided_slice %394 {offsets = [32, 0], sizes = [32, 32], strides = [1, 1]} : vector<128x32xf32> to vector<32x32xf32>
    %399 = vector.extract_strided_slice %394 {offsets = [64, 0], sizes = [32, 32], strides = [1, 1]} : vector<128x32xf32> to vector<32x32xf32>
    %400 = vector.extract_strided_slice %394 {offsets = [96, 0], sizes = [32, 32], strides = [1, 1]} : vector<128x32xf32> to vector<32x32xf32>
    %401 = vector.extract_strided_slice %396 {offsets = [0, 0], sizes = [1, 32], strides = [1, 1]} : vector<4x32xf32> to vector<1x32xf32>
    %402 = vector.extract_strided_slice %396 {offsets = [1, 0], sizes = [1, 32], strides = [1, 1]} : vector<4x32xf32> to vector<1x32xf32>
    %403 = vector.extract_strided_slice %396 {offsets = [2, 0], sizes = [1, 32], strides = [1, 1]} : vector<4x32xf32> to vector<1x32xf32>
    %404 = vector.extract_strided_slice %396 {offsets = [3, 0], sizes = [1, 32], strides = [1, 1]} : vector<4x32xf32> to vector<1x32xf32>
    %cst_120 = arith.constant dense<0.000000e+00> : vector<16x32xf32>
    %405 = tpu.matmul %392, %397, %cst_120 {dimension_numbers = #tpu.dot_dimension_numbers<[1], [0], [0], [1], [0, 0, 1, 1], [], []>} : vector<16x32xf32>, vector<32x32xf32>, vector<16x32xf32> -> vector<16x32xf32>
    %406 = vector.broadcast %401 : vector<1x32xf32> to vector<16x32xf32>
    %407 = arith.addf %405, %406 : vector<16x32xf32>
    %cst_121 = arith.constant dense<0.000000e+00> : vector<32x32xf32>
    %408 = tpu.matmul %220, %398, %cst_121 {dimension_numbers = #tpu.dot_dimension_numbers<[1], [0], [0], [1], [0, 0, 1, 1], [], []>} : vector<32x32xf32>, vector<32x32xf32>, vector<32x32xf32> -> vector<32x32xf32>
    %409 = vector.broadcast %402 : vector<1x32xf32> to vector<32x32xf32>
    %410 = arith.addf %408, %409 : vector<32x32xf32>
    %cst_122 = arith.constant dense<0.000000e+00> : vector<32x32xf32>
    %411 = tpu.matmul %220, %399, %cst_122 {dimension_numbers = #tpu.dot_dimension_numbers<[1], [0], [0], [1], [0, 0, 1, 1], [], []>} : vector<32x32xf32>, vector<32x32xf32>, vector<32x32xf32> -> vector<32x32xf32>
    %412 = vector.broadcast %403 : vector<1x32xf32> to vector<32x32xf32>
    %413 = arith.addf %411, %412 : vector<32x32xf32>
    %414 = vector.extract_strided_slice %407 {offsets = [0, 0], sizes = [8, 32], strides = [1, 1]} : vector<16x32xf32> to vector<8x32xf32>
    %415 = vector.extract_strided_slice %410 {offsets = [0, 0], sizes = [16, 32], strides = [1, 1]} : vector<32x32xf32> to vector<16x32xf32>
    %416 = vector.extract_strided_slice %413 {offsets = [0, 0], sizes = [16, 32], strides = [1, 1]} : vector<32x32xf32> to vector<16x32xf32>
    %417 = vector.extract_strided_slice %414 {offsets = [0, 0], sizes = [8, 8], strides = [1, 1]} : vector<8x32xf32> to vector<8x8xf32>
    %418 = vector.extract_strided_slice %415 {offsets = [0, 0], sizes = [16, 8], strides = [1, 1]} : vector<16x32xf32> to vector<16x8xf32>
    %cst_123 = arith.constant dense<0.000000e+00> : vector<8x16xf32>
    %419 = tpu.matmul %417, %418, %cst_123 {dimension_numbers = #tpu.dot_dimension_numbers<[1], [1], [0], [0], [0, 0, 1, 0], [], []>} : vector<8x8xf32>, vector<16x8xf32>, vector<8x16xf32> -> vector<8x16xf32>
    %cst_124 = arith.constant 0.353553385 : f32
    %420 = vector.broadcast %cst_124 : f32 to vector<8x16xf32>
    %421 = arith.mulf %419, %420 : vector<8x16xf32>
    %cst_125 = arith.constant dense<0xFF800000> : vector<8xf32>
    %422 = vector.multi_reduction <maximumf>, %421, %cst_125 [1] : vector<8x16xf32> to vector<8xf32>
    %423 = vector.shape_cast %422 : vector<8xf32> to vector<8x1xf32>
    %424 = vector.broadcast %423 : vector<8x1xf32> to vector<8x16xf32>
    %425 = arith.subf %421, %424 : vector<8x16xf32>
    %426 = math.exp %425 : vector<8x16xf32>
    %cst_126 = arith.constant dense<0.000000e+00> : vector<8xf32>
    %427 = vector.multi_reduction <add>, %426, %cst_126 [1] : vector<8x16xf32> to vector<8xf32>
    %428 = vector.shape_cast %427 : vector<8xf32> to vector<8x1xf32>
    %429 = tpu.reciprocal %428 {approx = true} : vector<8x1xf32> -> vector<8x1xf32>
    %430 = vector.broadcast %429 : vector<8x1xf32> to vector<8x16xf32>
    %431 = arith.mulf %426, %430 : vector<8x16xf32>
    %432 = vector.extract_strided_slice %416 {offsets = [0, 0], sizes = [16, 8], strides = [1, 1]} : vector<16x32xf32> to vector<16x8xf32>
    %cst_127 = arith.constant dense<0.000000e+00> : vector<8x8xf32>
    %433 = tpu.matmul %431, %432, %cst_127 {dimension_numbers = #tpu.dot_dimension_numbers<[1], [0], [0], [1], [0, 0, 1, 1], [], []>} : vector<8x16xf32>, vector<16x8xf32>, vector<8x8xf32> -> vector<8x8xf32>
    %434 = vector.extract_strided_slice %414 {offsets = [0, 8], sizes = [8, 8], strides = [1, 1]} : vector<8x32xf32> to vector<8x8xf32>
    %435 = vector.extract_strided_slice %415 {offsets = [0, 8], sizes = [16, 8], strides = [1, 1]} : vector<16x32xf32> to vector<16x8xf32>
    %cst_128 = arith.constant dense<0.000000e+00> : vector<8x16xf32>
    %436 = tpu.matmul %434, %435, %cst_128 {dimension_numbers = #tpu.dot_dimension_numbers<[1], [1], [0], [0], [0, 0, 1, 0], [], []>} : vector<8x8xf32>, vector<16x8xf32>, vector<8x16xf32> -> vector<8x16xf32>
    %cst_129 = arith.constant 0.353553385 : f32
    %437 = vector.broadcast %cst_129 : f32 to vector<8x16xf32>
    %438 = arith.mulf %436, %437 : vector<8x16xf32>
    %cst_130 = arith.constant dense<0xFF800000> : vector<8xf32>
    %439 = vector.multi_reduction <maximumf>, %438, %cst_130 [1] : vector<8x16xf32> to vector<8xf32>
    %440 = vector.shape_cast %439 : vector<8xf32> to vector<8x1xf32>
    %441 = vector.broadcast %440 : vector<8x1xf32> to vector<8x16xf32>
    %442 = arith.subf %438, %441 : vector<8x16xf32>
    %443 = math.exp %442 : vector<8x16xf32>
    %cst_131 = arith.constant dense<0.000000e+00> : vector<8xf32>
    %444 = vector.multi_reduction <add>, %443, %cst_131 [1] : vector<8x16xf32> to vector<8xf32>
    %445 = vector.shape_cast %444 : vector<8xf32> to vector<8x1xf32>
    %446 = tpu.reciprocal %445 {approx = true} : vector<8x1xf32> -> vector<8x1xf32>
    %447 = vector.broadcast %446 : vector<8x1xf32> to vector<8x16xf32>
    %448 = arith.mulf %443, %447 : vector<8x16xf32>
    %449 = vector.extract_strided_slice %416 {offsets = [0, 8], sizes = [16, 8], strides = [1, 1]} : vector<16x32xf32> to vector<16x8xf32>
    %cst_132 = arith.constant dense<0.000000e+00> : vector<8x8xf32>
    %450 = tpu.matmul %448, %449, %cst_132 {dimension_numbers = #tpu.dot_dimension_numbers<[1], [0], [0], [1], [0, 0, 1, 1], [], []>} : vector<8x16xf32>, vector<16x8xf32>, vector<8x8xf32> -> vector<8x8xf32>
    %451 = vector.extract_strided_slice %414 {offsets = [0, 16], sizes = [8, 8], strides = [1, 1]} : vector<8x32xf32> to vector<8x8xf32>
    %452 = vector.extract_strided_slice %415 {offsets = [0, 16], sizes = [16, 8], strides = [1, 1]} : vector<16x32xf32> to vector<16x8xf32>
    %cst_133 = arith.constant dense<0.000000e+00> : vector<8x16xf32>
    %453 = tpu.matmul %451, %452, %cst_133 {dimension_numbers = #tpu.dot_dimension_numbers<[1], [1], [0], [0], [0, 0, 1, 0], [], []>} : vector<8x8xf32>, vector<16x8xf32>, vector<8x16xf32> -> vector<8x16xf32>
    %cst_134 = arith.constant 0.353553385 : f32
    %454 = vector.broadcast %cst_134 : f32 to vector<8x16xf32>
    %455 = arith.mulf %453, %454 : vector<8x16xf32>
    %cst_135 = arith.constant dense<0xFF800000> : vector<8xf32>
    %456 = vector.multi_reduction <maximumf>, %455, %cst_135 [1] : vector<8x16xf32> to vector<8xf32>
    %457 = vector.shape_cast %456 : vector<8xf32> to vector<8x1xf32>
    %458 = vector.broadcast %457 : vector<8x1xf32> to vector<8x16xf32>
    %459 = arith.subf %455, %458 : vector<8x16xf32>
    %460 = math.exp %459 : vector<8x16xf32>
    %cst_136 = arith.constant dense<0.000000e+00> : vector<8xf32>
    %461 = vector.multi_reduction <add>, %460, %cst_136 [1] : vector<8x16xf32> to vector<8xf32>
    %462 = vector.shape_cast %461 : vector<8xf32> to vector<8x1xf32>
    %463 = tpu.reciprocal %462 {approx = true} : vector<8x1xf32> -> vector<8x1xf32>
    %464 = vector.broadcast %463 : vector<8x1xf32> to vector<8x16xf32>
    %465 = arith.mulf %460, %464 : vector<8x16xf32>
    %466 = vector.extract_strided_slice %416 {offsets = [0, 16], sizes = [16, 8], strides = [1, 1]} : vector<16x32xf32> to vector<16x8xf32>
    %cst_137 = arith.constant dense<0.000000e+00> : vector<8x8xf32>
    %467 = tpu.matmul %465, %466, %cst_137 {dimension_numbers = #tpu.dot_dimension_numbers<[1], [0], [0], [1], [0, 0, 1, 1], [], []>} : vector<8x16xf32>, vector<16x8xf32>, vector<8x8xf32> -> vector<8x8xf32>
    %468 = vector.extract_strided_slice %414 {offsets = [0, 24], sizes = [8, 8], strides = [1, 1]} : vector<8x32xf32> to vector<8x8xf32>
    %469 = vector.extract_strided_slice %415 {offsets = [0, 24], sizes = [16, 8], strides = [1, 1]} : vector<16x32xf32> to vector<16x8xf32>
    %cst_138 = arith.constant dense<0.000000e+00> : vector<8x16xf32>
    %470 = tpu.matmul %468, %469, %cst_138 {dimension_numbers = #tpu.dot_dimension_numbers<[1], [1], [0], [0], [0, 0, 1, 0], [], []>} : vector<8x8xf32>, vector<16x8xf32>, vector<8x16xf32> -> vector<8x16xf32>
    %cst_139 = arith.constant 0.353553385 : f32
    %471 = vector.broadcast %cst_139 : f32 to vector<8x16xf32>
    %472 = arith.mulf %470, %471 : vector<8x16xf32>
    %cst_140 = arith.constant dense<0xFF800000> : vector<8xf32>
    %473 = vector.multi_reduction <maximumf>, %472, %cst_140 [1] : vector<8x16xf32> to vector<8xf32>
    %474 = vector.shape_cast %473 : vector<8xf32> to vector<8x1xf32>
    %475 = vector.broadcast %474 : vector<8x1xf32> to vector<8x16xf32>
    %476 = arith.subf %472, %475 : vector<8x16xf32>
    %477 = math.exp %476 : vector<8x16xf32>
    %cst_141 = arith.constant dense<0.000000e+00> : vector<8xf32>
    %478 = vector.multi_reduction <add>, %477, %cst_141 [1] : vector<8x16xf32> to vector<8xf32>
    %479 = vector.shape_cast %478 : vector<8xf32> to vector<8x1xf32>
    %480 = tpu.reciprocal %479 {approx = true} : vector<8x1xf32> -> vector<8x1xf32>
    %481 = vector.broadcast %480 : vector<8x1xf32> to vector<8x16xf32>
    %482 = arith.mulf %477, %481 : vector<8x16xf32>
    %483 = vector.extract_strided_slice %416 {offsets = [0, 24], sizes = [16, 8], strides = [1, 1]} : vector<16x32xf32> to vector<16x8xf32>
    %cst_142 = arith.constant dense<0.000000e+00> : vector<8x8xf32>
    %484 = tpu.matmul %482, %483, %cst_142 {dimension_numbers = #tpu.dot_dimension_numbers<[1], [0], [0], [1], [0, 0, 1, 1], [], []>} : vector<8x16xf32>, vector<16x8xf32>, vector<8x8xf32> -> vector<8x8xf32>
    %485 = tpu.concatenate %433, %450, %467, %484 in 1 : vector<8x8xf32>, vector<8x8xf32>, vector<8x8xf32>, vector<8x8xf32> -> vector<8x32xf32>
    %cst_143 = arith.constant dense<0.000000e+00> : vector<8x32xf32>
    %486 = tpu.matmul %485, %400, %cst_143 {dimension_numbers = #tpu.dot_dimension_numbers<[1], [0], [0], [1], [0, 0, 1, 1], [], []>} : vector<8x32xf32>, vector<32x32xf32>, vector<8x32xf32> -> vector<8x32xf32>
    %487 = vector.broadcast %404 : vector<1x32xf32> to vector<8x32xf32>
    %488 = arith.addf %486, %487 : vector<8x32xf32>
    %489 = vector.extract_strided_slice %407 {offsets = [8, 0], sizes = [8, 32], strides = [1, 1]} : vector<16x32xf32> to vector<8x32xf32>
    %490 = vector.extract_strided_slice %410 {offsets = [16, 0], sizes = [16, 32], strides = [1, 1]} : vector<32x32xf32> to vector<16x32xf32>
    %491 = vector.extract_strided_slice %413 {offsets = [16, 0], sizes = [16, 32], strides = [1, 1]} : vector<32x32xf32> to vector<16x32xf32>
    %492 = vector.extract_strided_slice %489 {offsets = [0, 0], sizes = [8, 8], strides = [1, 1]} : vector<8x32xf32> to vector<8x8xf32>
    %493 = vector.extract_strided_slice %490 {offsets = [0, 0], sizes = [16, 8], strides = [1, 1]} : vector<16x32xf32> to vector<16x8xf32>
    %cst_144 = arith.constant dense<0.000000e+00> : vector<8x16xf32>
    %494 = tpu.matmul %492, %493, %cst_144 {dimension_numbers = #tpu.dot_dimension_numbers<[1], [1], [0], [0], [0, 0, 1, 0], [], []>} : vector<8x8xf32>, vector<16x8xf32>, vector<8x16xf32> -> vector<8x16xf32>
    %cst_145 = arith.constant 0.353553385 : f32
    %495 = vector.broadcast %cst_145 : f32 to vector<8x16xf32>
    %496 = arith.mulf %494, %495 : vector<8x16xf32>
    %cst_146 = arith.constant dense<0xFF800000> : vector<8xf32>
    %497 = vector.multi_reduction <maximumf>, %496, %cst_146 [1] : vector<8x16xf32> to vector<8xf32>
    %498 = vector.shape_cast %497 : vector<8xf32> to vector<8x1xf32>
    %499 = vector.broadcast %498 : vector<8x1xf32> to vector<8x16xf32>
    %500 = arith.subf %496, %499 : vector<8x16xf32>
    %501 = math.exp %500 : vector<8x16xf32>
    %cst_147 = arith.constant dense<0.000000e+00> : vector<8xf32>
    %502 = vector.multi_reduction <add>, %501, %cst_147 [1] : vector<8x16xf32> to vector<8xf32>
    %503 = vector.shape_cast %502 : vector<8xf32> to vector<8x1xf32>
    %504 = tpu.reciprocal %503 {approx = true} : vector<8x1xf32> -> vector<8x1xf32>
    %505 = vector.broadcast %504 : vector<8x1xf32> to vector<8x16xf32>
    %506 = arith.mulf %501, %505 : vector<8x16xf32>
    %507 = vector.extract_strided_slice %491 {offsets = [0, 0], sizes = [16, 8], strides = [1, 1]} : vector<16x32xf32> to vector<16x8xf32>
    %cst_148 = arith.constant dense<0.000000e+00> : vector<8x8xf32>
    %508 = tpu.matmul %506, %507, %cst_148 {dimension_numbers = #tpu.dot_dimension_numbers<[1], [0], [0], [1], [0, 0, 1, 1], [], []>} : vector<8x16xf32>, vector<16x8xf32>, vector<8x8xf32> -> vector<8x8xf32>
    %509 = vector.extract_strided_slice %489 {offsets = [0, 8], sizes = [8, 8], strides = [1, 1]} : vector<8x32xf32> to vector<8x8xf32>
    %510 = vector.extract_strided_slice %490 {offsets = [0, 8], sizes = [16, 8], strides = [1, 1]} : vector<16x32xf32> to vector<16x8xf32>
    %cst_149 = arith.constant dense<0.000000e+00> : vector<8x16xf32>
    %511 = tpu.matmul %509, %510, %cst_149 {dimension_numbers = #tpu.dot_dimension_numbers<[1], [1], [0], [0], [0, 0, 1, 0], [], []>} : vector<8x8xf32>, vector<16x8xf32>, vector<8x16xf32> -> vector<8x16xf32>
    %cst_150 = arith.constant 0.353553385 : f32
    %512 = vector.broadcast %cst_150 : f32 to vector<8x16xf32>
    %513 = arith.mulf %511, %512 : vector<8x16xf32>
    %cst_151 = arith.constant dense<0xFF800000> : vector<8xf32>
    %514 = vector.multi_reduction <maximumf>, %513, %cst_151 [1] : vector<8x16xf32> to vector<8xf32>
    %515 = vector.shape_cast %514 : vector<8xf32> to vector<8x1xf32>
    %516 = vector.broadcast %515 : vector<8x1xf32> to vector<8x16xf32>
    %517 = arith.subf %513, %516 : vector<8x16xf32>
    %518 = math.exp %517 : vector<8x16xf32>
    %cst_152 = arith.constant dense<0.000000e+00> : vector<8xf32>
    %519 = vector.multi_reduction <add>, %518, %cst_152 [1] : vector<8x16xf32> to vector<8xf32>
    %520 = vector.shape_cast %519 : vector<8xf32> to vector<8x1xf32>
    %521 = tpu.reciprocal %520 {approx = true} : vector<8x1xf32> -> vector<8x1xf32>
    %522 = vector.broadcast %521 : vector<8x1xf32> to vector<8x16xf32>
    %523 = arith.mulf %518, %522 : vector<8x16xf32>
    %524 = vector.extract_strided_slice %491 {offsets = [0, 8], sizes = [16, 8], strides = [1, 1]} : vector<16x32xf32> to vector<16x8xf32>
    %cst_153 = arith.constant dense<0.000000e+00> : vector<8x8xf32>
    %525 = tpu.matmul %523, %524, %cst_153 {dimension_numbers = #tpu.dot_dimension_numbers<[1], [0], [0], [1], [0, 0, 1, 1], [], []>} : vector<8x16xf32>, vector<16x8xf32>, vector<8x8xf32> -> vector<8x8xf32>
    %526 = vector.extract_strided_slice %489 {offsets = [0, 16], sizes = [8, 8], strides = [1, 1]} : vector<8x32xf32> to vector<8x8xf32>
    %527 = vector.extract_strided_slice %490 {offsets = [0, 16], sizes = [16, 8], strides = [1, 1]} : vector<16x32xf32> to vector<16x8xf32>
    %cst_154 = arith.constant dense<0.000000e+00> : vector<8x16xf32>
    %528 = tpu.matmul %526, %527, %cst_154 {dimension_numbers = #tpu.dot_dimension_numbers<[1], [1], [0], [0], [0, 0, 1, 0], [], []>} : vector<8x8xf32>, vector<16x8xf32>, vector<8x16xf32> -> vector<8x16xf32>
    %cst_155 = arith.constant 0.353553385 : f32
    %529 = vector.broadcast %cst_155 : f32 to vector<8x16xf32>
    %530 = arith.mulf %528, %529 : vector<8x16xf32>
    %cst_156 = arith.constant dense<0xFF800000> : vector<8xf32>
    %531 = vector.multi_reduction <maximumf>, %530, %cst_156 [1] : vector<8x16xf32> to vector<8xf32>
    %532 = vector.shape_cast %531 : vector<8xf32> to vector<8x1xf32>
    %533 = vector.broadcast %532 : vector<8x1xf32> to vector<8x16xf32>
    %534 = arith.subf %530, %533 : vector<8x16xf32>
    %535 = math.exp %534 : vector<8x16xf32>
    %cst_157 = arith.constant dense<0.000000e+00> : vector<8xf32>
    %536 = vector.multi_reduction <add>, %535, %cst_157 [1] : vector<8x16xf32> to vector<8xf32>
    %537 = vector.shape_cast %536 : vector<8xf32> to vector<8x1xf32>
    %538 = tpu.reciprocal %537 {approx = true} : vector<8x1xf32> -> vector<8x1xf32>
    %539 = vector.broadcast %538 : vector<8x1xf32> to vector<8x16xf32>
    %540 = arith.mulf %535, %539 : vector<8x16xf32>
    %541 = vector.extract_strided_slice %491 {offsets = [0, 16], sizes = [16, 8], strides = [1, 1]} : vector<16x32xf32> to vector<16x8xf32>
    %cst_158 = arith.constant dense<0.000000e+00> : vector<8x8xf32>
    %542 = tpu.matmul %540, %541, %cst_158 {dimension_numbers = #tpu.dot_dimension_numbers<[1], [0], [0], [1], [0, 0, 1, 1], [], []>} : vector<8x16xf32>, vector<16x8xf32>, vector<8x8xf32> -> vector<8x8xf32>
    %543 = vector.extract_strided_slice %489 {offsets = [0, 24], sizes = [8, 8], strides = [1, 1]} : vector<8x32xf32> to vector<8x8xf32>
    %544 = vector.extract_strided_slice %490 {offsets = [0, 24], sizes = [16, 8], strides = [1, 1]} : vector<16x32xf32> to vector<16x8xf32>
    %cst_159 = arith.constant dense<0.000000e+00> : vector<8x16xf32>
    %545 = tpu.matmul %543, %544, %cst_159 {dimension_numbers = #tpu.dot_dimension_numbers<[1], [1], [0], [0], [0, 0, 1, 0], [], []>} : vector<8x8xf32>, vector<16x8xf32>, vector<8x16xf32> -> vector<8x16xf32>
    %cst_160 = arith.constant 0.353553385 : f32
    %546 = vector.broadcast %cst_160 : f32 to vector<8x16xf32>
    %547 = arith.mulf %545, %546 : vector<8x16xf32>
    %cst_161 = arith.constant dense<0xFF800000> : vector<8xf32>
    %548 = vector.multi_reduction <maximumf>, %547, %cst_161 [1] : vector<8x16xf32> to vector<8xf32>
    %549 = vector.shape_cast %548 : vector<8xf32> to vector<8x1xf32>
    %550 = vector.broadcast %549 : vector<8x1xf32> to vector<8x16xf32>
    %551 = arith.subf %547, %550 : vector<8x16xf32>
    %552 = math.exp %551 : vector<8x16xf32>
    %cst_162 = arith.constant dense<0.000000e+00> : vector<8xf32>
    %553 = vector.multi_reduction <add>, %552, %cst_162 [1] : vector<8x16xf32> to vector<8xf32>
    %554 = vector.shape_cast %553 : vector<8xf32> to vector<8x1xf32>
    %555 = tpu.reciprocal %554 {approx = true} : vector<8x1xf32> -> vector<8x1xf32>
    %556 = vector.broadcast %555 : vector<8x1xf32> to vector<8x16xf32>
    %557 = arith.mulf %552, %556 : vector<8x16xf32>
    %558 = vector.extract_strided_slice %491 {offsets = [0, 24], sizes = [16, 8], strides = [1, 1]} : vector<16x32xf32> to vector<16x8xf32>
    %cst_163 = arith.constant dense<0.000000e+00> : vector<8x8xf32>
    %559 = tpu.matmul %557, %558, %cst_163 {dimension_numbers = #tpu.dot_dimension_numbers<[1], [0], [0], [1], [0, 0, 1, 1], [], []>} : vector<8x16xf32>, vector<16x8xf32>, vector<8x8xf32> -> vector<8x8xf32>
    %560 = tpu.concatenate %508, %525, %542, %559 in 1 : vector<8x8xf32>, vector<8x8xf32>, vector<8x8xf32>, vector<8x8xf32> -> vector<8x32xf32>
    %cst_164 = arith.constant dense<0.000000e+00> : vector<8x32xf32>
    %561 = tpu.matmul %560, %400, %cst_164 {dimension_numbers = #tpu.dot_dimension_numbers<[1], [0], [0], [1], [0, 0, 1, 1], [], []>} : vector<8x32xf32>, vector<32x32xf32>, vector<8x32xf32> -> vector<8x32xf32>
    %562 = vector.broadcast %404 : vector<1x32xf32> to vector<8x32xf32>
    %563 = arith.addf %561, %562 : vector<8x32xf32>
    %564 = tpu.concatenate %488, %563 in 0 : vector<8x32xf32>, vector<8x32xf32> -> vector<16x32xf32>
    %565 = vector.extract_strided_slice %9 {offsets = [2, 0], sizes = [1, 32], strides = [1, 1]} : vector<4x32xf32> to vector<1x32xf32>
    %566 = vector.extract_strided_slice %9 {offsets = [3, 0], sizes = [1, 32], strides = [1, 1]} : vector<4x32xf32> to vector<1x32xf32>
    %cst_165 = arith.constant dense<0.000000e+00> : vector<16xf32>
    %567 = vector.multi_reduction <add>, %564, %cst_165 [1] : vector<16x32xf32> to vector<16xf32>
    %568 = vector.shape_cast %567 : vector<16xf32> to vector<16x1xf32>
    %cst_166 = arith.constant 3.200000e+01 : f32
    %569 = vector.broadcast %cst_166 : f32 to vector<16x1xf32>
    %570 = arith.divf %568, %569 : vector<16x1xf32>
    %571 = vector.broadcast %570 : vector<16x1xf32> to vector<16x32xf32>
    %572 = arith.subf %564, %571 : vector<16x32xf32>
    %573 = arith.mulf %572, %572 : vector<16x32xf32>
    %cst_167 = arith.constant dense<0.000000e+00> : vector<16xf32>
    %574 = vector.multi_reduction <add>, %573, %cst_167 [1] : vector<16x32xf32> to vector<16xf32>
    %575 = vector.shape_cast %574 : vector<16xf32> to vector<16x1xf32>
    %cst_168 = arith.constant 3.200000e+01 : f32
    %576 = vector.broadcast %cst_168 : f32 to vector<16x1xf32>
    %577 = arith.divf %575, %576 : vector<16x1xf32>
    %578 = vector.broadcast %570 : vector<16x1xf32> to vector<16x32xf32>
    %579 = arith.subf %564, %578 : vector<16x32xf32>
    %cst_169 = arith.constant 9.99999974E-6 : f32
    %580 = vector.broadcast %cst_169 : f32 to vector<16x1xf32>
    %581 = arith.addf %577, %580 : vector<16x1xf32>
    %582 = math.rsqrt %581 : vector<16x1xf32>
    %583 = vector.broadcast %582 : vector<16x1xf32> to vector<16x32xf32>
    %584 = arith.mulf %579, %583 : vector<16x32xf32>
    %585 = vector.broadcast %565 : vector<1x32xf32> to vector<16x32xf32>
    %586 = arith.mulf %584, %585 : vector<16x32xf32>
    %587 = vector.broadcast %566 : vector<1x32xf32> to vector<16x32xf32>
    %588 = arith.addf %586, %587 : vector<16x32xf32>
    %c0_170 = arith.constant 0 : index
    %c0_171 = arith.constant 0 : index
    %589 = vector.load %arg7[%c0_170, %c0_171] : memref<32x12xf32, #tpu.memory_space<vmem>>, vector<32x12xf32>
    %cst_172 = arith.constant dense<0.000000e+00> : vector<16x12xf32>
    %590 = tpu.matmul %588, %589, %cst_172 {dimension_numbers = #tpu.dot_dimension_numbers<[1], [0], [0], [1], [0, 0, 1, 1], [], []>} : vector<16x32xf32>, vector<32x12xf32>, vector<16x12xf32> -> vector<16x12xf32>
    %c0_173 = arith.constant 0 : index
    %c0_174 = arith.constant 0 : index
    %591 = vector.load %arg8[%c0_173, %c0_174] : memref<1x12xf32, #tpu.memory_space<vmem>>, vector<1x12xf32>
    %592 = vector.broadcast %591 : vector<1x12xf32> to vector<16x12xf32>
    %593 = arith.addf %590, %592 : vector<16x12xf32>
    %cst_175 = arith.constant dense<0xFF800000> : vector<16xf32>
    %594 = vector.multi_reduction <maximumf>, %593, %cst_175 [1] : vector<16x12xf32> to vector<16xf32>
    %595 = vector.shape_cast %594 : vector<16xf32> to vector<16x1xf32>
    %596 = vector.broadcast %595 : vector<16x1xf32> to vector<16x12xf32>
    %597 = arith.subf %593, %596 : vector<16x12xf32>
    %598 = math.exp %597 : vector<16x12xf32>
    %cst_176 = arith.constant dense<0.000000e+00> : vector<16xf32>
    %599 = vector.multi_reduction <add>, %598, %cst_176 [1] : vector<16x12xf32> to vector<16xf32>
    %600 = vector.shape_cast %599 : vector<16xf32> to vector<16x1xf32>
    %601 = tpu.reciprocal %600 : vector<16x1xf32> -> vector<16x1xf32>
    %602 = vector.broadcast %601 : vector<16x1xf32> to vector<16x12xf32>
    %603 = arith.mulf %598, %602 : vector<16x12xf32>
    %c0_177 = arith.constant 0 : index
    %c0_178 = arith.constant 0 : index
    %604 = vector.load %arg9[%c0_177, %c0_178] : memref<16x12xf32, #tpu.memory_space<vmem>>, vector<16x12xf32>
    tpu.vector_store %arg9[%c0_177, %c0_178], %603 {strides = array<i32>} : memref<16x12xf32, #tpu.memory_space<vmem>>, vector<16x12xf32>,
    return
  }
  func.func @transform_0(%arg0: i32) -> (i32, i32) {
    %c0_i32 = arith.constant 0 : i32
    %c0_i32_0 = arith.constant 0 : i32
    %c0_i32_1 = arith.constant 0 : i32
    return %c0_i32, %c0_i32_0 : i32, i32
  }
  func.func @transform_1(%arg0: i32) -> (i32, i32) {
    %c0_i32 = arith.constant 0 : i32
    %c0_i32_0 = arith.constant 0 : i32
    %c0_i32_1 = arith.constant 0 : i32
    return %c0_i32, %c0_i32_0 : i32, i32
  }
  func.func @transform_2(%arg0: i32) -> (i32, i32) {
    %c0_i32 = arith.constant 0 : i32
    %c0_i32_0 = arith.constant 0 : i32
    %c0_i32_1 = arith.constant 0 : i32
    return %c0_i32, %c0_i32_0 : i32, i32
  }
  func.func @transform_3(%arg0: i32) -> (i32, i32) {
    %c0_i32 = arith.constant 0 : i32
    %c0_i32_0 = arith.constant 0 : i32
    %c0_i32_1 = arith.constant 0 : i32
    return %c0_i32, %c0_i32_0 : i32, i32
  }
  func.func @transform_4(%arg0: i32) -> (i32, i32, i32) {
    %c0_i32 = arith.constant 0 : i32
    %c0_i32_0 = arith.constant 0 : i32
    %c0_i32_1 = arith.constant 0 : i32
    %c0_i32_2 = arith.constant 0 : i32
    return %c0_i32, %c0_i32_0, %c0_i32_1 : i32, i32, i32
  }
  func.func @transform_5(%arg0: i32) -> (i32, i32, i32) {
    %c0_i32 = arith.constant 0 : i32
    %c0_i32_0 = arith.constant 0 : i32
    %c0_i32_1 = arith.constant 0 : i32
    %c0_i32_2 = arith.constant 0 : i32
    return %c0_i32, %c0_i32_0, %c0_i32_1 : i32, i32, i32
  }
  func.func @transform_6(%arg0: i32) -> (i32, i32) {
    %c0_i32 = arith.constant 0 : i32
    %c0_i32_0 = arith.constant 0 : i32
    %c0_i32_1 = arith.constant 0 : i32
    return %c0_i32, %c0_i32_0 : i32, i32
  }
  func.func @transform_7(%arg0: i32) -> (i32, i32) {
    %c0_i32 = arith.constant 0 : i32
    %c0_i32_0 = arith.constant 0 : i32
    %c0_i32_1 = arith.constant 0 : i32
    return %c0_i32, %c0_i32_0 : i32, i32
  }
  func.func @transform_8(%arg0: i32) -> (i32, i32) {
    %c0_i32 = arith.constant 0 : i32
    %c0_i32_0 = arith.constant 0 : i32
    %c0_i32_1 = arith.constant 0 : i32
    return %c0_i32, %c0_i32_0 : i32, i32
  }
}

</mosaic_0001>

<llo_original>
// kernel: decoder_forward.1
$region0: #{decoder_forward.1}
  #allocation0 [shape = 'u32[]', space=smem, size = 0x4, offset = 0x4, fixed_abs, tag = 'smem constant byte address 0x4 - core index']
  #allocation1 [shape = 'u32[144,128]{1,0:T(1,128)}', space=vmem, size = 0x12000, scoped, tag = 'internal scratch']
  %s0 = inlined_call_operand.vmem [shape: s32[1,16], index: 0, kind: input, shape index: {}]
  %s1 = inlined_call_operand.vmem [shape: f32[32,32], index: 1, kind: input, shape index: {}]
  %s2 = inlined_call_operand.vmem [shape: f32[12,32], index: 2, kind: input, shape index: {}]
  %s3 = inlined_call_operand.vmem [shape: f32[4,32], index: 3, kind: input, shape index: {}]
  %s4 = inlined_call_operand.vmem [shape: f32[3,128,32], index: 4, kind: input, shape index: {}]
  %s5 = inlined_call_operand.vmem [shape: f32[3,4,32], index: 5, kind: input, shape index: {}]
  %s6 = inlined_call_operand.vmem [shape: f32[32,12], index: 6, kind: input, shape index: {}]
  %s7 = inlined_call_operand.vmem [shape: f32[1,12], index: 7, kind: input, shape index: {}]
  %s8 = inlined_call_operand.hbm [shape: f32[16,12], index: 8, kind: output, shape index: {}]
  %s9 = sld [smem:[#allocation0]]
  $region42: #{decoder_forward.1} parent=0
    _
  %s11 = ssub.s32 1, %s9
  %s12 = scalar_select 0, %s11, %s9
  $region1: #{decoder_forward.1} parent=0
    #allocation2 [shape = 'u8[8192]{0}', space=vmem, size = 0x2000, scoped, tag = 'output window, operand 0, single buffered']
    #allocation3 [shape = 's32[1]{0}', space=sflag, size = 0x4, scoped, tag = 'scoped memory for decoder_forward.1']
    %13 = vsyncpa [#allocation3], 0
    // Predicated region
    $region2: #{decoder_forward.1} parent=1 // pred_check
      _
    $region3: #{decoder_forward.1} parent=1 // pred_check_branch
      %15 = sbr.rel (0) target = $region5
    $region4: #{decoder_forward.1} parent=1 // pred_region
      _
    $region5: #{decoder_forward.1} parent=1 // pred_fallthru
      _
    // Predicated region
    $region6: #{decoder_forward.1} parent=1 // pred_check
      _
    $region7: #{decoder_forward.1} parent=1 // pred_check_branch
      %17 = sbr.rel (0) target = $region9
    $region8: #{decoder_forward.1} parent=1 // pred_region
      _
    $region9: #{decoder_forward.1} parent=1 // pred_fallthru
      _
    // Predicated region
    $region10: #{decoder_forward.1} parent=1 // pred_check
      _
    $region11: #{decoder_forward.1} parent=1 // pred_check_branch
      %19 = sbr.rel (0) target = $region13
    $region12: #{decoder_forward.1} parent=1 // pred_region
      _
    $region13: #{decoder_forward.1} parent=1 // pred_fallthru
      _
    // Predicated region
    $region14: #{decoder_forward.1} parent=1 // pred_check
      _
    $region15: #{decoder_forward.1} parent=1 // pred_check_branch
      %21 = sbr.rel (0) target = $region17
    $region16: #{decoder_forward.1} parent=1 // pred_region
      _
    $region17: #{decoder_forward.1} parent=1 // pred_fallthru
      _
    // Predicated region
    $region18: #{decoder_forward.1} parent=1 // pred_check
      _
    $region19: #{decoder_forward.1} parent=1 // pred_check_branch
      %23 = sbr.rel (0) target = $region21
    $region20: #{decoder_forward.1} parent=1 // pred_region
      _
    $region21: #{decoder_forward.1} parent=1 // pred_fallthru
      _
    // Predicated region
    $region22: #{decoder_forward.1} parent=1 // pred_check
      _
    $region23: #{decoder_forward.1} parent=1 // pred_check_branch
      %25 = sbr.rel (0) target = $region25
    $region24: #{decoder_forward.1} parent=1 // pred_region
      _
    $region25: #{decoder_forward.1} parent=1 // pred_fallthru
      _
    // Predicated region
    $region26: #{decoder_forward.1} parent=1 // pred_check
      _
    $region27: #{decoder_forward.1} parent=1 // pred_check_branch
      %27 = sbr.rel (0) target = $region29
    $region28: #{decoder_forward.1} parent=1 // pred_region
      _
    $region29: #{decoder_forward.1} parent=1 // pred_fallthru
      _
    // Predicated region
    $region30: #{decoder_forward.1} parent=1 // pred_check
      _
    $region31: #{decoder_forward.1} parent=1 // pred_check_branch
      %29 = sbr.rel (0) target = $region33
    $region32: #{decoder_forward.1} parent=1 // pred_region
      _
    $region33: #{decoder_forward.1} parent=1 // pred_fallthru
      _
    %v30 = vld [vmem:[%s0] sm:$0x1]
    %v31 = vlaneseq
    %v32 = vshrl.u32 %v31, 7
    %v33 = vadd.s32 %v32, 8
    %v34 = vlaneseq
    %v35 = vshrl.u32 %v34, 7
    %v36 = vsub.s32 0, %v35
    %v37 = vrot.slane %v30, %v36
    %vm38 = vcmp.eq.s32.totalorder %v37, %v32
    %vm39 = vcmp.eq.s32.totalorder %v37, %v33
    %v40 = vsel %vm38, 1, 0
    %v41 = vsel %vm39, 1, 0
    %v42 = vcvt.s32.f32 %v40
    %v43 = vcvt.s32.f32 %v41
    %v44 = vld [vmem:[%s2] sm:$0xff]
    %v45 = vld [vmem:[%s2 + $0x8] sm:$0xf]
    %46 = vxpose.xlu0.b32.start [1/16] %v42, 128
    %47 = vxpose.xlu0.b32.cont [2/16] %v43, 128
    %48 = vxpose.xlu0.b32.cont [3/16] 0.0, 128
    %49 = vxpose.xlu0.b32.cont [4/16] 0.0, 128
    %50 = vxpose.xlu0.b32.cont [5/16] 0.0, 128
    %51 = vxpose.xlu0.b32.cont [6/16] 0.0, 128
    %52 = vxpose.xlu0.b32.cont [7/16] 0.0, 128
    %53 = vxpose.xlu0.b32.cont [8/16] 0.0, 128
    %54 = vxpose.xlu0.b32.cont [9/16] 0.0, 128
    %55 = vxpose.xlu0.b32.cont [10/16] 0.0, 128
    %56 = vxpose.xlu0.b32.cont [11/16] 0.0, 128
    %57 = vxpose.xlu0.b32.cont [12/16] 0.0, 128
    %58 = vxpose.xlu0.b32.cont [13/16] 0.0, 128
    %59 = vxpose.xlu0.b32.cont [14/16] 0.0, 128
    %60 = vxpose.xlu0.b32.cont [15/16] 0.0, 128
    %61 = vxpose.xlu0.b32.end [16/16] 0.0, 128
    %v62 = vpop.trf.xlu0
    %v63 = vpop.trf.xlu0
    %v64 = vpop.trf.xlu0
    %v65 = vpop.trf.xlu0
    %v66 = vpop.trf.xlu0
    %v67 = vpop.trf.xlu0
    %v68 = vpop.trf.xlu0
    %v69 = vpop.trf.xlu0
    %v70 = vpop.trf.xlu0
    %v71 = vpop.trf.xlu0
    %v72 = vpop.trf.xlu0
    %v73 = vpop.trf.xlu0
    %v74 = vpop.trf.xlu0
    %v75 = vpop.trf.xlu0
    %v76 = vpop.trf.xlu0
    %v77 = vpop.trf.xlu0
    %vm78 = vcmask 97280
    %v80 = vsel %vm78, %v62, 0
    %v83 = vsel %vm78, %v63, 0
    %vm85 = vcmask 1043456
    %v87 = vsel %vm85, %v45, 0
    %89 = vmatprep.subr.mxu0 0.0
    %90 = vmatpush1.msra.mxu0 %v44
    %91 = vmatprep.subr.mxu0 0.0
    %92 = vmatpush1.msra.mxu0 %v87
    %93 = vmatprep.subr.mxu0 0.0
    %94 = vmatpush1.msra.mxu0 0.0
    %95 = vmatprep.subr.mxu0 0.0
    %96 = vmatpush1.msra.mxu0 0.0
    %97 = vmatprep.subr.mxu0 0.0
    %98 = vmatpush1.msra.mxu0 0.0
    %99 = vmatprep.subr.mxu0 0.0
    %100 = vmatpush1.msra.mxu0 0.0
    %101 = vmatprep.subr.mxu0 0.0
    %102 = vmatpush1.msra.mxu0 0.0
    %103 = vmatprep.subr.mxu0 0.0
    %104 = vmatpush1.msra.mxu0 0.0
    %105 = vmatprep.subr.mxu0 0.0
    %106 = vmatpush1.msra.mxu0 0.0
    %107 = vmatprep.subr.mxu0 0.0
    %108 = vmatpush1.msra.mxu0 0.0
    %109 = vmatprep.subr.mxu0 0.0
    %110 = vmatpush1.msra.mxu0 0.0
    %111 = vmatprep.subr.mxu0 0.0
    %112 = vmatpush1.msra.mxu0 0.0
    %113 = vmatprep.subr.mxu0 0.0
    %114 = vmatpush1.msra.mxu0 0.0
    %115 = vmatprep.subr.mxu0 0.0
    %116 = vmatpush1.msra.mxu0 0.0
    %117 = vmatprep.subr.mxu0 0.0
    %118 = vmatpush1.msra.mxu0 0.0
    %119 = vmatprep.subr.mxu0 0.0
    %120 = vmatpush1.msra.mxu0 0.0
    %121 = vmatprep.subr.mxu0 0.0
    %122 = vmatpush1.msra.mxu0 0.0
    %123 = vmatprep.subr.mxu0 0.0
    %124 = vmatpush1.msra.mxu0 0.0
    %125 = vmatprep.subr.mxu0 0.0
    %126 = vmatpush1.msra.mxu0 0.0
    %127 = vmatprep.subr.mxu0 0.0
    %128 = vmatpush1.msra.mxu0 0.0
    %129 = vmatprep.subr.mxu0 0.0
    %130 = vmatpush1.msra.mxu0 0.0
    %131 = vmatprep.subr.mxu0 0.0
    %132 = vmatpush1.msra.mxu0 0.0
    %133 = vmatprep.subr.mxu0 0.0
    %134 = vmatpush1.msra.mxu0 0.0
    %135 = vmatprep.subr.mxu0 0.0
    %136 = vmatpush1.msra.mxu0 0.0
    %137 = vmatprep.subr.mxu0 0.0
    %138 = vmatpush1.msra.mxu0 0.0
    %139 = vmatprep.subr.mxu0 0.0
    %140 = vmatpush1.msra.mxu0 0.0
    %141 = vmatprep.subr.mxu0 0.0
    %142 = vmatpush1.msra.mxu0 0.0
    %143 = vmatprep.subr.mxu0 0.0
    %144 = vmatpush1.msra.mxu0 0.0
    %145 = vmatprep.subr.mxu0 0.0
    %146 = vmatpush1.msra.mxu0 0.0
    %147 = vmatprep.subr.mxu0 0.0
    %148 = vmatpush1.msra.mxu0 0.0
    %149 = vmatprep.subr.mxu0 0.0
    %150 = vmatpush1.msra.mxu0 0.0
    %151 = vmatprep.subr.mxu0 0.0
    %152 = vmatpush1.msra.mxu0 0.0
    %153 = vmatprep.mubr.f32.mxu0 0.0
    %154 = vmatmul.mubr.f32.gmra.mrb[0].mxu0 %v80
    %v155 = vpop.f32.mrb[0].mxu0
    %v156 = vadd.f32 0.0, %v155
    %v157 = vpop.f32.mrb[0].mxu0
    %158 = vmatprep.mubr.f32.mxu0 0.0
    %159 = vmatmul.mubr.f32.gmra.mrb[0].mxu0 %v83
    %v160 = vpop.f32.mrb[0].mxu0
    %v161 = vadd.f32 0.0, %v160
    %v162 = vpop.f32.mrb[0].mxu0
    %163 = vdwg.mxu0
    %v164 = vld [vmem:[%s3] sm:$0xf]
    %vm165 = vcmask 261120
    %v166 = vsel %vm165, %v156, 0.0
    %167 = vadd.xlane.f32.xlu0 %v166
    %v168 = vpop.xlane.xlu0 %167
    %v169 = vsel %vm165, %v161, 0.0
    %170 = vadd.xlane.f32.xlu0 %v169
    %v171 = vpop.xlane.xlu0 %170
    %v172 = vrcp.pop 32.0
    %v173 = vmul.f32 %v168, %v172
    %v174 = vmul.f32 %v171, %v172
    %v175 = vsub.f32 %v156, %v173
    %v176 = vsub.f32 %v161, %v174
    %v177 = vmul.f32 %v175, %v175
    %v178 = vmul.f32 %v176, %v176
    %v179 = vsel %vm165, %v177, 0.0
    %180 = vadd.xlane.f32.xlu0 %v179
    %v181 = vpop.xlane.xlu0 %180
    %v182 = vsel %vm165, %v178, 0.0
    %183 = vadd.xlane.f32.xlu0 %v182
    %v184 = vpop.xlane.xlu0 %183
    %v185 = vmul.f32 %v181, %v172
    %v186 = vmul.f32 %v184, %v172
    %v187 = vadd.f32 %v185, 1e-05
    %v188 = vadd.f32 %v186, 1e-05
    %v189 = vrsqrt.pop %v187
    %v190 = vrsqrt.pop %v188
    %v191 = vmul.f32 %v175, %v189
    %v192 = vmul.f32 %v176, %v190
    %v193 = vlaneseq
    %v194 = vshrl.u32 %v193, 7
    %v195 = vsub.s32 0, %v194
    %v196 = vrot.slane %v164, %v195
    %v197 = vmul.f32 %v191, %v196
    %v198 = vmul.f32 %v192, %v196
    %v199 = vlaneseq
    %v200 = vshrl.u32 %v199, 7
    %v201 = vsub.s32 1, %v200
    %v202 = vrot.slane %v164, %v201
    %v203 = vadd.f32 %v197, %v202
    %v204 = vadd.f32 %v198, %v202
    %v205 = vlaneseq
    %v206 = vand.u32 %v205, 127
    %vm207 = vcmp.gt.s32.totalorder %v206, %v32
    %v208 = vsel %vm207, -1e+09, 0.0
    %v209 = vld [vmem:[%s4] sm:$0xff]
    %v210 = vld [vmem:[%s4 + $0x8] sm:$0xff]
    %v211 = vld [vmem:[%s4 + $0x10] sm:$0xff]
    %v212 = vld [vmem:[%s4 + $0x18] sm:$0xff]
    %v213 = vld [vmem:[%s4 + $0x20] sm:$0xff]
    %v214 = vld [vmem:[%s4 + $0x28] sm:$0xff]
    %v215 = vld [vmem:[%s4 + $0x30] sm:$0xff]
    %v216 = vld [vmem:[%s4 + $0x38] sm:$0xff]
    %v217 = vld [vmem:[%s4 + $0x40] sm:$0xff]
    %v218 = vld [vmem:[%s4 + $0x48] sm:$0xff]
    %v219 = vld [vmem:[%s4 + $0x50] sm:$0xff]
    %v220 = vld [vmem:[%s4 + $0x58] sm:$0xff]
    %v221 = vld [vmem:[%s4 + $0x60] sm:$0xff]
    %v222 = vld [vmem:[%s4 + $0x68] sm:$0xff]
    %v223 = vld [vmem:[%s4 + $0x70] sm:$0xff]
    %v224 = vld [vmem:[%s4 + $0x78] sm:$0xff]
    %v225 = vld [vmem:[%s5] sm:$0xf]
    %v226 = vlaneseq
    %v227 = vshrl.u32 %v226, 7
    %v228 = vsub.s32 0, %v227
    %v229 = vrot.slane %v225, %v228
    %v231 = vsel %vm165, %v203, 0
    %v234 = vsel %vm165, %v204, 0
    %236 = vmatprep.subr.mxu0 0.0
    %237 = vmatpush1.msra.mxu0 %v209
    %238 = vmatprep.subr.mxu0 0.0
    %239 = vmatpush1.msra.mxu0 %v210
    %240 = vmatprep.subr.mxu0 0.0
    %241 = vmatpush1.msra.mxu0 %v211
    %242 = vmatprep.subr.mxu0 0.0
    %243 = vmatpush1.msra.mxu0 %v212
    %244 = vmatprep.subr.mxu0 0.0
    %245 = vmatpush1.msra.mxu0 0.0
    %246 = vmatprep.subr.mxu0 0.0
    %247 = vmatpush1.msra.mxu0 0.0
    %248 = vmatprep.subr.mxu0 0.0
    %249 = vmatpush1.msra.mxu0 0.0
    %250 = vmatprep.subr.mxu0 0.0
    %251 = vmatpush1.msra.mxu0 0.0
    %252 = vmatprep.subr.mxu0 0.0
    %253 = vmatpush1.msra.mxu0 0.0
    %254 = vmatprep.subr.mxu0 0.0
    %255 = vmatpush1.msra.mxu0 0.0
    %256 = vmatprep.subr.mxu0 0.0
    %257 = vmatpush1.msra.mxu0 0.0
    %258 = vmatprep.subr.mxu0 0.0
    %259 = vmatpush1.msra.mxu0 0.0
    %260 = vmatprep.subr.mxu0 0.0
    %261 = vmatpush1.msra.mxu0 0.0
    %262 = vmatprep.subr.mxu0 0.0
    %263 = vmatpush1.msra.mxu0 0.0
    %264 = vmatprep.subr.mxu0 0.0
    %265 = vmatpush1.msra.mxu0 0.0
    %266 = vmatprep.subr.mxu0 0.0
    %267 = vmatpush1.msra.mxu0 0.0
    %268 = vmatprep.subr.mxu0 0.0
    %269 = vmatpush1.msra.mxu0 0.0
    %270 = vmatprep.subr.mxu0 0.0
    %271 = vmatpush1.msra.mxu0 0.0
    %272 = vmatprep.subr.mxu0 0.0
    %273 = vmatpush1.msra.mxu0 0.0
    %274 = vmatprep.subr.mxu0 0.0
    %275 = vmatpush1.msra.mxu0 0.0
    %276 = vmatprep.subr.mxu0 0.0
    %277 = vmatpush1.msra.mxu0 0.0
    %278 = vmatprep.subr.mxu0 0.0
    %279 = vmatpush1.msra.mxu0 0.0
    %280 = vmatprep.subr.mxu0 0.0
    %281 = vmatpush1.msra.mxu0 0.0
    %282 = vmatprep.subr.mxu0 0.0
    %283 = vmatpush1.msra.mxu0 0.0
    %284 = vmatprep.subr.mxu0 0.0
    %285 = vmatpush1.msra.mxu0 0.0
    %286 = vmatprep.subr.mxu0 0.0
    %287 = vmatpush1.msra.mxu0 0.0
    %288 = vmatprep.subr.mxu0 0.0
    %289 = vmatpush1.msra.mxu0 0.0
    %290 = vmatprep.subr.mxu0 0.0
    %291 = vmatpush1.msra.mxu0 0.0
    %292 = vmatprep.subr.mxu0 0.0
    %293 = vmatpush1.msra.mxu0 0.0
    %294 = vmatprep.subr.mxu0 0.0
    %295 = vmatpush1.msra.mxu0 0.0
    %296 = vmatprep.subr.mxu0 0.0
    %297 = vmatpush1.msra.mxu0 0.0
    %298 = vmatprep.subr.mxu0 0.0
    %299 = vmatpush1.msra.mxu0 0.0
    %300 = vmatprep.mubr.f32.mxu0 0.0
    %301 = vmatmul.mubr.f32.gmra.mrb[0].mxu0 %v231
    %v302 = vpop.f32.mrb[0].mxu0
    %v303 = vadd.f32 %v229, %v302
    %v304 = vpop.f32.mrb[0].mxu0
    %305 = vmatprep.mubr.f32.mxu0 0.0
    %306 = vmatmul.mubr.f32.gmra.mrb[0].mxu0 %v234
    %v307 = vpop.f32.mrb[0].mxu0
    %v308 = vadd.f32 %v229, %v307
    %v309 = vpop.f32.mrb[0].mxu0
    %310 = vdwg.mxu0
    %v311 = vlaneseq
    %v312 = vshrl.u32 %v311, 7
    %v313 = vsub.s32 1, %v312
    %v314 = vrot.slane %v225, %v313
    %315 = vmatprep.subr.mxu0 0.0
    %316 = vmatpush1.msra.mxu0 %v213
    %317 = vmatprep.subr.mxu0 0.0
    %318 = vmatpush1.msra.mxu0 %v214
    %319 = vmatprep.subr.mxu0 0.0
    %320 = vmatpush1.msra.mxu0 %v215
    %321 = vmatprep.subr.mxu0 0.0
    %322 = vmatpush1.msra.mxu0 %v216
    %323 = vmatprep.subr.mxu0 0.0
    %324 = vmatpush1.msra.mxu0 0.0
    %325 = vmatprep.subr.mxu0 0.0
    %326 = vmatpush1.msra.mxu0 0.0
    %327 = vmatprep.subr.mxu0 0.0
    %328 = vmatpush1.msra.mxu0 0.0
    %329 = vmatprep.subr.mxu0 0.0
    %330 = vmatpush1.msra.mxu0 0.0
    %331 = vmatprep.subr.mxu0 0.0
    %332 = vmatpush1.msra.mxu0 0.0
    %333 = vmatprep.subr.mxu0 0.0
    %334 = vmatpush1.msra.mxu0 0.0
    %335 = vmatprep.subr.mxu0 0.0
    %336 = vmatpush1.msra.mxu0 0.0
    %337 = vmatprep.subr.mxu0 0.0
    %338 = vmatpush1.msra.mxu0 0.0
    %339 = vmatprep.subr.mxu0 0.0
    %340 = vmatpush1.msra.mxu0 0.0
    %341 = vmatprep.subr.mxu0 0.0
    %342 = vmatpush1.msra.mxu0 0.0
    %343 = vmatprep.subr.mxu0 0.0
    %344 = vmatpush1.msra.mxu0 0.0
    %345 = vmatprep.subr.mxu0 0.0
    %346 = vmatpush1.msra.mxu0 0.0
    %347 = vmatprep.subr.mxu0 0.0
    %348 = vmatpush1.msra.mxu0 0.0
    %349 = vmatprep.subr.mxu0 0.0
    %350 = vmatpush1.msra.mxu0 0.0
    %351 = vmatprep.subr.mxu0 0.0
    %352 = vmatpush1.msra.mxu0 0.0
    %353 = vmatprep.subr.mxu0 0.0
    %354 = vmatpush1.msra.mxu0 0.0
    %355 = vmatprep.subr.mxu0 0.0
    %356 = vmatpush1.msra.mxu0 0.0
    %357 = vmatprep.subr.mxu0 0.0
    %358 = vmatpush1.msra.mxu0 0.0
    %359 = vmatprep.subr.mxu0 0.0
    %360 = vmatpush1.msra.mxu0 0.0
    %361 = vmatprep.subr.mxu0 0.0
    %362 = vmatpush1.msra.mxu0 0.0
    %363 = vmatprep.subr.mxu0 0.0
    %364 = vmatpush1.msra.mxu0 0.0
    %365 = vmatprep.subr.mxu0 0.0
    %366 = vmatpush1.msra.mxu0 0.0
    %367 = vmatprep.subr.mxu0 0.0
    %368 = vmatpush1.msra.mxu0 0.0
    %369 = vmatprep.subr.mxu0 0.0
    %370 = vmatpush1.msra.mxu0 0.0
    %371 = vmatprep.subr.mxu0 0.0
    %372 = vmatpush1.msra.mxu0 0.0
    %373 = vmatprep.subr.mxu0 0.0
    %374 = vmatpush1.msra.mxu0 0.0
    %375 = vmatprep.subr.mxu0 0.0
    %376 = vmatpush1.msra.mxu0 0.0
    %377 = vmatprep.subr.mxu0 0.0
    %378 = vmatpush1.msra.mxu0 0.0
    %379 = vmatprep.mubr.f32.mxu0 0.0
    %380 = vmatmul.mubr.f32.gmra.mrb[0].mxu0 %v231
    %v381 = vpop.f32.mrb[0].mxu0
    %v382 = vadd.f32 %v314, %v381
    %v383 = vpop.f32.mrb[0].mxu0
    %384 = vmatprep.mubr.f32.mxu0 0.0
    %385 = vmatmul.mubr.f32.gmra.mrb[0].mxu0 %v234
    %v386 = vpop.f32.mrb[0].mxu0
    %v387 = vadd.f32 %v314, %v386
    %v388 = vpop.f32.mrb[0].mxu0
    %389 = vdwg.mxu0
    %v390 = vlaneseq
    %v391 = vshrl.u32 %v390, 7
    %v392 = vsub.s32 2, %v391
    %v393 = vrot.slane %v225, %v392
    %394 = vmatprep.subr.mxu0 0.0
    %395 = vmatpush1.msra.mxu0 %v217
    %396 = vmatprep.subr.mxu0 0.0
    %397 = vmatpush1.msra.mxu0 %v218
    %398 = vmatprep.subr.mxu0 0.0
    %399 = vmatpush1.msra.mxu0 %v219
    %400 = vmatprep.subr.mxu0 0.0
    %401 = vmatpush1.msra.mxu0 %v220
    %402 = vmatprep.subr.mxu0 0.0
    %403 = vmatpush1.msra.mxu0 0.0
    %404 = vmatprep.subr.mxu0 0.0
    %405 = vmatpush1.msra.mxu0 0.0
    %406 = vmatprep.subr.mxu0 0.0
    %407 = vmatpush1.msra.mxu0 0.0
    %408 = vmatprep.subr.mxu0 0.0
    %409 = vmatpush1.msra.mxu0 0.0
    %410 = vmatprep.subr.mxu0 0.0
    %411 = vmatpush1.msra.mxu0 0.0
    %412 = vmatprep.subr.mxu0 0.0
    %413 = vmatpush1.msra.mxu0 0.0
    %414 = vmatprep.subr.mxu0 0.0
    %415 = vmatpush1.msra.mxu0 0.0
    %416 = vmatprep.subr.mxu0 0.0
    %417 = vmatpush1.msra.mxu0 0.0
    %418 = vmatprep.subr.mxu0 0.0
    %419 = vmatpush1.msra.mxu0 0.0
    %420 = vmatprep.subr.mxu0 0.0
    %421 = vmatpush1.msra.mxu0 0.0
    %422 = vmatprep.subr.mxu0 0.0
    %423 = vmatpush1.msra.mxu0 0.0
    %424 = vmatprep.subr.mxu0 0.0
    %425 = vmatpush1.msra.mxu0 0.0
    %426 = vmatprep.subr.mxu0 0.0
    %427 = vmatpush1.msra.mxu0 0.0
    %428 = vmatprep.subr.mxu0 0.0
    %429 = vmatpush1.msra.mxu0 0.0
    %430 = vmatprep.subr.mxu0 0.0
    %431 = vmatpush1.msra.mxu0 0.0
    %432 = vmatprep.subr.mxu0 0.0
    %433 = vmatpush1.msra.mxu0 0.0
    %434 = vmatprep.subr.mxu0 0.0
    %435 = vmatpush1.msra.mxu0 0.0
    %436 = vmatprep.subr.mxu0 0.0
    %437 = vmatpush1.msra.mxu0 0.0
    %438 = vmatprep.subr.mxu0 0.0
    %439 = vmatpush1.msra.mxu0 0.0
    %440 = vmatprep.subr.mxu0 0.0
    %441 = vmatpush1.msra.mxu0 0.0
    %442 = vmatprep.subr.mxu0 0.0
    %443 = vmatpush1.msra.mxu0 0.0
    %444 = vmatprep.subr.mxu0 0.0
    %445 = vmatpush1.msra.mxu0 0.0
    %446 = vmatprep.subr.mxu0 0.0
    %447 = vmatpush1.msra.mxu0 0.0
    %448 = vmatprep.subr.mxu0 0.0
    %449 = vmatpush1.msra.mxu0 0.0
    %450 = vmatprep.subr.mxu0 0.0
    %451 = vmatpush1.msra.mxu0 0.0
    %452 = vmatprep.subr.mxu0 0.0
    %453 = vmatpush1.msra.mxu0 0.0
    %454 = vmatprep.subr.mxu0 0.0
    %455 = vmatpush1.msra.mxu0 0.0
    %456 = vmatprep.subr.mxu0 0.0
    %457 = vmatpush1.msra.mxu0 0.0
    %458 = vmatprep.mubr.f32.mxu0 0.0
    %459 = vmatmul.mubr.f32.gmra.mrb[0].mxu0 %v231
    %v460 = vpop.f32.mrb[0].mxu0
    %v461 = vadd.f32 %v393, %v460
    %v462 = vpop.f32.mrb[0].mxu0
    %463 = vmatprep.mubr.f32.mxu0 0.0
    %464 = vmatmul.mubr.f32.gmra.mrb[0].mxu0 %v234
    %v465 = vpop.f32.mrb[0].mxu0
    %v466 = vadd.f32 %v393, %v465
    %v467 = vpop.f32.mrb[0].mxu0
    %468 = vdwg.mxu0
    %vm469 = vcmask 64512
    %v471 = vsel %vm469, %v303, 0
    %v474 = vsel %vm469, %v382, 0
    %476 = vmatprep.subr.mxu0 0.0
    %477 = vmatpush1.xpose.msra.mxu0 %v474
    %478 = vmatprep.subr.mxu0 0.0
    %479 = vmatpush1.xpose.msra.mxu0 0.0
    %480 = vmatprep.subr.mxu0 0.0
    %481 = vmatpush1.xpose.msra.mxu0 0.0
    %482 = vmatprep.subr.mxu0 0.0
    %483 = vmatpush1.xpose.msra.mxu0 0.0
    %484 = vmatprep.subr.mxu0 0.0
    %485 = vmatpush1.xpose.msra.mxu0 0.0
    %486 = vmatprep.subr.mxu0 0.0
    %487 = vmatpush1.xpose.msra.mxu0 0.0
    %488 = vmatprep.subr.mxu0 0.0
    %489 = vmatpush1.xpose.msra.mxu0 0.0
    %490 = vmatprep.subr.mxu0 0.0
    %491 = vmatpush1.xpose.msra.mxu0 0.0
    %492 = vmatprep.subr.mxu0 0.0
    %493 = vmatpush1.xpose.msra.mxu0 0.0
    %494 = vmatprep.subr.mxu0 0.0
    %495 = vmatpush1.xpose.msra.mxu0 0.0
    %496 = vmatprep.subr.mxu0 0.0
    %497 = vmatpush1.xpose.msra.mxu0 0.0
    %498 = vmatprep.subr.mxu0 0.0
    %499 = vmatpush1.xpose.msra.mxu0 0.0
    %500 = vmatprep.subr.mxu0 0.0
    %501 = vmatpush1.xpose.msra.mxu0 0.0
    %502 = vmatprep.subr.mxu0 0.0
    %503 = vmatpush1.xpose.msra.mxu0 0.0
    %504 = vmatprep.subr.mxu0 0.0
    %505 = vmatpush1.xpose.msra.mxu0 0.0
    %506 = vmatprep.subr.mxu0 0.0
    %507 = vmatpush1.xpose.msra.mxu0 0.0
    %508 = vmatprep.subr.mxu0 0.0
    %509 = vmatpush1.xpose.msra.mxu0 0.0
    %510 = vmatprep.subr.mxu0 0.0
    %511 = vmatpush1.xpose.msra.mxu0 0.0
    %512 = vmatprep.subr.mxu0 0.0
    %513 = vmatpush1.xpose.msra.mxu0 0.0
    %514 = vmatprep.subr.mxu0 0.0
    %515 = vmatpush1.xpose.msra.mxu0 0.0
    %516 = vmatprep.subr.mxu0 0.0
    %517 = vmatpush1.xpose.msra.mxu0 0.0
    %518 = vmatprep.subr.mxu0 0.0
    %519 = vmatpush1.xpose.msra.mxu0 0.0
    %520 = vmatprep.subr.mxu0 0.0
    %521 = vmatpush1.xpose.msra.mxu0 0.0
    %522 = vmatprep.subr.mxu0 0.0
    %523 = vmatpush1.xpose.msra.mxu0 0.0
    %524 = vmatprep.subr.mxu0 0.0
    %525 = vmatpush1.xpose.msra.mxu0 0.0
    %526 = vmatprep.subr.mxu0 0.0
    %527 = vmatpush1.xpose.msra.mxu0 0.0
    %528 = vmatprep.subr.mxu0 0.0
    %529 = vmatpush1.xpose.msra.mxu0 0.0
    %530 = vmatprep.subr.mxu0 0.0
    %531 = vmatpush1.xpose.msra.mxu0 0.0
    %532 = vmatprep.subr.mxu0 0.0
    %533 = vmatpush1.xpose.msra.mxu0 0.0
    %534 = vmatprep.subr.mxu0 0.0
    %535 = vmatpush1.xpose.msra.mxu0 0.0
    %536 = vmatprep.subr.mxu0 0.0
    %537 = vmatpush1.xpose.msra.mxu0 0.0
    %538 = vmatprep.subr.mxu0 0.0
    %539 = vmatpush1.xpose.msra.mxu0 0.0
    %540 = vmatprep.mubr.f32.mxu0 0.0
    %541 = vmatmul.mubr.f32.gmra.mrb[0].mxu0 %v471
    %v542 = vpop.f32.mrb[0].mxu0
    %v543 = vadd.f32 0.0, %v542
    %v544 = vpop.f32.mrb[0].mxu0
    %545 = vdwg.mxu0
    %v546 = vmul.f32 %v543, 0.35355338
    %v547 = vadd.f32 %v546, %v208
    %v548 = vsel %vm469, %v547, -inf
    %549 = vmax.xlane.f32.xlu0 %v548
    %v550 = vpop.xlane.xlu0 %549
    %v551 = vsub.f32 %v547, %v550
    %v552 = vmul.f32 %v551, 1.442695
    %v553 = vpow.pop %v552
    %v554 = vsel %vm469, %v553, 0.0
    %555 = vadd.xlane.f32.xlu0 %v554
    %v556 = vpop.xlane.xlu0 %555
    %v557 = vrcp.pop %v556
    %v558 = vmul.f32 %v553, %v557
    %v560 = vsel %vm469, %v558, 0
    %562 = vmatprep.subr.mxu0 0.0
    %563 = vmatpush1.msra.mxu0 %v461
    %564 = vmatprep.subr.mxu0 0.0
    %565 = vmatpush1.msra.mxu0 0.0
    %566 = vmatprep.subr.mxu0 0.0
    %567 = vmatpush1.msra.mxu0 0.0
    %568 = vmatprep.subr.mxu0 0.0
    %569 = vmatpush1.msra.mxu0 0.0
    %570 = vmatprep.subr.mxu0 0.0
    %571 = vmatpush1.msra.mxu0 0.0
    %572 = vmatprep.subr.mxu0 0.0
    %573 = vmatpush1.msra.mxu0 0.0
    %574 = vmatprep.subr.mxu0 0.0
    %575 = vmatpush1.msra.mxu0 0.0
    %576 = vmatprep.subr.mxu0 0.0
    %577 = vmatpush1.msra.mxu0 0.0
    %578 = vmatprep.subr.mxu0 0.0
    %579 = vmatpush1.msra.mxu0 0.0
    %580 = vmatprep.subr.mxu0 0.0
    %581 = vmatpush1.msra.mxu0 0.0
    %582 = vmatprep.subr.mxu0 0.0
    %583 = vmatpush1.msra.mxu0 0.0
    %584 = vmatprep.subr.mxu0 0.0
    %585 = vmatpush1.msra.mxu0 0.0
    %586 = vmatprep.subr.mxu0 0.0
    %587 = vmatpush1.msra.mxu0 0.0
    %588 = vmatprep.subr.mxu0 0.0
    %589 = vmatpush1.msra.mxu0 0.0
    %590 = vmatprep.subr.mxu0 0.0
    %591 = vmatpush1.msra.mxu0 0.0
    %592 = vmatprep.subr.mxu0 0.0
    %593 = vmatpush1.msra.mxu0 0.0
    %594 = vmatprep.subr.mxu0 0.0
    %595 = vmatpush1.msra.mxu0 0.0
    %596 = vmatprep.subr.mxu0 0.0
    %597 = vmatpush1.msra.mxu0 0.0
    %598 = vmatprep.subr.mxu0 0.0
    %599 = vmatpush1.msra.mxu0 0.0
    %600 = vmatprep.subr.mxu0 0.0
    %601 = vmatpush1.msra.mxu0 0.0
    %602 = vmatprep.subr.mxu0 0.0
    %603 = vmatpush1.msra.mxu0 0.0
    %604 = vmatprep.subr.mxu0 0.0
    %605 = vmatpush1.msra.mxu0 0.0
    %606 = vmatprep.subr.mxu0 0.0
    %607 = vmatpush1.msra.mxu0 0.0
    %608 = vmatprep.subr.mxu0 0.0
    %609 = vmatpush1.msra.mxu0 0.0
    %610 = vmatprep.subr.mxu0 0.0
    %611 = vmatpush1.msra.mxu0 0.0
    %612 = vmatprep.subr.mxu0 0.0
    %613 = vmatpush1.msra.mxu0 0.0
    %614 = vmatprep.subr.mxu0 0.0
    %615 = vmatpush1.msra.mxu0 0.0
    %616 = vmatprep.subr.mxu0 0.0
    %617 = vmatpush1.msra.mxu0 0.0
    %618 = vmatprep.subr.mxu0 0.0
    %619 = vmatpush1.msra.mxu0 0.0
    %620 = vmatprep.subr.mxu0 0.0
    %621 = vmatpush1.msra.mxu0 0.0
    %622 = vmatprep.subr.mxu0 0.0
    %623 = vmatpush1.msra.mxu0 0.0
    %624 = vmatprep.subr.mxu0 0.0
    %625 = vmatpush1.msra.mxu0 0.0
    %626 = vmatprep.mubr.f32.mxu0 0.0
    %627 = vmatmul.mubr.f32.gmra.mrb[0].mxu0 %v560
    %v628 = vpop.f32.mrb[0].mxu0
    %v629 = vadd.f32 0.0, %v628
    %v630 = vpop.f32.mrb[0].mxu0
    %631 = vdwg.mxu0
    %632 = vrot.lane.b32.xlu0 %v303, 120
    %v633 = vpop.permute.xlu0 %632
    %634 = vrot.lane.b32.xlu0 %v382, 120
    %v635 = vpop.permute.xlu0 %634
    %v636 = vsel %vm469, %v633, 0
    %v638 = vsel %vm469, %v635, 0
    %640 = vmatprep.subr.mxu0 0.0
    %641 = vmatpush1.xpose.msra.mxu0 %v638
    %642 = vmatprep.subr.mxu0 0.0
    %643 = vmatpush1.xpose.msra.mxu0 0.0
    %644 = vmatprep.subr.mxu0 0.0
    %645 = vmatpush1.xpose.msra.mxu0 0.0
    %646 = vmatprep.subr.mxu0 0.0
    %647 = vmatpush1.xpose.msra.mxu0 0.0
    %648 = vmatprep.subr.mxu0 0.0
    %649 = vmatpush1.xpose.msra.mxu0 0.0
    %650 = vmatprep.subr.mxu0 0.0
    %651 = vmatpush1.xpose.msra.mxu0 0.0
    %652 = vmatprep.subr.mxu0 0.0
    %653 = vmatpush1.xpose.msra.mxu0 0.0
    %654 = vmatprep.subr.mxu0 0.0
    %655 = vmatpush1.xpose.msra.mxu0 0.0
    %656 = vmatprep.subr.mxu0 0.0
    %657 = vmatpush1.xpose.msra.mxu0 0.0
    %658 = vmatprep.subr.mxu0 0.0
    %659 = vmatpush1.xpose.msra.mxu0 0.0
    %660 = vmatprep.subr.mxu0 0.0
    %661 = vmatpush1.xpose.msra.mxu0 0.0
    %662 = vmatprep.subr.mxu0 0.0
    %663 = vmatpush1.xpose.msra.mxu0 0.0
    %664 = vmatprep.subr.mxu0 0.0
    %665 = vmatpush1.xpose.msra.mxu0 0.0
    %666 = vmatprep.subr.mxu0 0.0
    %667 = vmatpush1.xpose.msra.mxu0 0.0
    %668 = vmatprep.subr.mxu0 0.0
    %669 = vmatpush1.xpose.msra.mxu0 0.0
    %670 = vmatprep.subr.mxu0 0.0
    %671 = vmatpush1.xpose.msra.mxu0 0.0
    %672 = vmatprep.subr.mxu0 0.0
    %673 = vmatpush1.xpose.msra.mxu0 0.0
    %674 = vmatprep.subr.mxu0 0.0
    %675 = vmatpush1.xpose.msra.mxu0 0.0
    %676 = vmatprep.subr.mxu0 0.0
    %677 = vmatpush1.xpose.msra.mxu0 0.0
    %678 = vmatprep.subr.mxu0 0.0
    %679 = vmatpush1.xpose.msra.mxu0 0.0
    %680 = vmatprep.subr.mxu0 0.0
    %681 = vmatpush1.xpose.msra.mxu0 0.0
    %682 = vmatprep.subr.mxu0 0.0
    %683 = vmatpush1.xpose.msra.mxu0 0.0
    %684 = vmatprep.subr.mxu0 0.0
    %685 = vmatpush1.xpose.msra.mxu0 0.0
    %686 = vmatprep.subr.mxu0 0.0
    %687 = vmatpush1.xpose.msra.mxu0 0.0
    %688 = vmatprep.subr.mxu0 0.0
    %689 = vmatpush1.xpose.msra.mxu0 0.0
    %690 = vmatprep.subr.mxu0 0.0
    %691 = vmatpush1.xpose.msra.mxu0 0.0
    %692 = vmatprep.subr.mxu0 0.0
    %693 = vmatpush1.xpose.msra.mxu0 0.0
    %694 = vmatprep.subr.mxu0 0.0
    %695 = vmatpush1.xpose.msra.mxu0 0.0
    %696 = vmatprep.subr.mxu0 0.0
    %697 = vmatpush1.xpose.msra.mxu0 0.0
    %698 = vmatprep.subr.mxu0 0.0
    %699 = vmatpush1.xpose.msra.mxu0 0.0
    %700 = vmatprep.subr.mxu0 0.0
    %701 = vmatpush1.xpose.msra.mxu0 0.0
    %702 = vmatprep.subr.mxu0 0.0
    %703 = vmatpush1.xpose.msra.mxu0 0.0
    %704 = vmatprep.mubr.f32.mxu0 0.0
    %705 = vmatmul.mubr.f32.gmra.mrb[0].mxu0 %v636
    %v706 = vpop.f32.mrb[0].mxu0
    %v707 = vadd.f32 0.0, %v706
    %v708 = vpop.f32.mrb[0].mxu0
    %709 = vdwg.mxu0
    %v710 = vmul.f32 %v707, 0.35355338
    %v711 = vadd.f32 %v710, %v208
    %v712 = vsel %vm469, %v711, -inf
    %713 = vmax.xlane.f32.xlu0 %v712
    %v714 = vpop.xlane.xlu0 %713
    %v715 = vsub.f32 %v711, %v714
    %v716 = vmul.f32 %v715, 1.442695
    %v717 = vpow.pop %v716
    %v718 = vsel %vm469, %v717, 0.0
    %719 = vadd.xlane.f32.xlu0 %v718
    %v720 = vpop.xlane.xlu0 %719
    %v721 = vrcp.pop %v720
    %v722 = vmul.f32 %v717, %v721
    %724 = vrot.lane.b32.xlu0 %v461, 120
    %v725 = vpop.permute.xlu0 %724
    %v728 = vsel %vm469, %v722, 0
    %730 = vmatprep.subr.mxu0 0.0
    %731 = vmatpush1.msra.mxu0 %v725
    %732 = vmatprep.subr.mxu0 0.0
    %733 = vmatpush1.msra.mxu0 0.0
    %734 = vmatprep.subr.mxu0 0.0
    %735 = vmatpush1.msra.mxu0 0.0
    %736 = vmatprep.subr.mxu0 0.0
    %737 = vmatpush1.msra.mxu0 0.0
    %738 = vmatprep.subr.mxu0 0.0
    %739 = vmatpush1.msra.mxu0 0.0
    %740 = vmatprep.subr.mxu0 0.0
    %741 = vmatpush1.msra.mxu0 0.0
    %742 = vmatprep.subr.mxu0 0.0
    %743 = vmatpush1.msra.mxu0 0.0
    %744 = vmatprep.subr.mxu0 0.0
    %745 = vmatpush1.msra.mxu0 0.0
    %746 = vmatprep.subr.mxu0 0.0
    %747 = vmatpush1.msra.mxu0 0.0
    %748 = vmatprep.subr.mxu0 0.0
    %749 = vmatpush1.msra.mxu0 0.0
    %750 = vmatprep.subr.mxu0 0.0
    %751 = vmatpush1.msra.mxu0 0.0
    %752 = vmatprep.subr.mxu0 0.0
    %753 = vmatpush1.msra.mxu0 0.0
    %754 = vmatprep.subr.mxu0 0.0
    %755 = vmatpush1.msra.mxu0 0.0
    %756 = vmatprep.subr.mxu0 0.0
    %757 = vmatpush1.msra.mxu0 0.0
    %758 = vmatprep.subr.mxu0 0.0
    %759 = vmatpush1.msra.mxu0 0.0
    %760 = vmatprep.subr.mxu0 0.0
    %761 = vmatpush1.msra.mxu0 0.0
    %762 = vmatprep.subr.mxu0 0.0
    %763 = vmatpush1.msra.mxu0 0.0
    %764 = vmatprep.subr.mxu0 0.0
    %765 = vmatpush1.msra.mxu0 0.0
    %766 = vmatprep.subr.mxu0 0.0
    %767 = vmatpush1.msra.mxu0 0.0
    %768 = vmatprep.subr.mxu0 0.0
    %769 = vmatpush1.msra.mxu0 0.0
    %770 = vmatprep.subr.mxu0 0.0
    %771 = vmatpush1.msra.mxu0 0.0
    %772 = vmatprep.subr.mxu0 0.0
    %773 = vmatpush1.msra.mxu0 0.0
    %774 = vmatprep.subr.mxu0 0.0
    %775 = vmatpush1.msra.mxu0 0.0
    %776 = vmatprep.subr.mxu0 0.0
    %777 = vmatpush1.msra.mxu0 0.0
    %778 = vmatprep.subr.mxu0 0.0
    %779 = vmatpush1.msra.mxu0 0.0
    %780 = vmatprep.subr.mxu0 0.0
    %781 = vmatpush1.msra.mxu0 0.0
    %782 = vmatprep.subr.mxu0 0.0
    %783 = vmatpush1.msra.mxu0 0.0
    %784 = vmatprep.subr.mxu0 0.0
    %785 = vmatpush1.msra.mxu0 0.0
    %786 = vmatprep.subr.mxu0 0.0
    %787 = vmatpush1.msra.mxu0 0.0
    %788 = vmatprep.subr.mxu0 0.0
    %789 = vmatpush1.msra.mxu0 0.0
    %790 = vmatprep.subr.mxu0 0.0
    %791 = vmatpush1.msra.mxu0 0.0
    %792 = vmatprep.subr.mxu0 0.0
    %793 = vmatpush1.msra.mxu0 0.0
    %794 = vmatprep.mubr.f32.mxu0 0.0
    %795 = vmatmul.mubr.f32.gmra.mrb[0].mxu0 %v728
    %v796 = vpop.f32.mrb[0].mxu0
    %v797 = vadd.f32 0.0, %v796
    %v798 = vpop.f32.mrb[0].mxu0
    %799 = vdwg.mxu0
    %800 = vrot.lane.b32.xlu0 %v303, 112
    %v801 = vpop.permute.xlu0 %800
    %802 = vrot.lane.b32.xlu0 %v382, 112
    %v803 = vpop.permute.xlu0 %802
    %v804 = vsel %vm469, %v801, 0
    %v806 = vsel %vm469, %v803, 0
    %808 = vmatprep.subr.mxu0 0.0
    %809 = vmatpush1.xpose.msra.mxu0 %v806
    %810 = vmatprep.subr.mxu0 0.0
    %811 = vmatpush1.xpose.msra.mxu0 0.0
    %812 = vmatprep.subr.mxu0 0.0
    %813 = vmatpush1.xpose.msra.mxu0 0.0
    %814 = vmatprep.subr.mxu0 0.0
    %815 = vmatpush1.xpose.msra.mxu0 0.0
    %816 = vmatprep.subr.mxu0 0.0
    %817 = vmatpush1.xpose.msra.mxu0 0.0
    %818 = vmatprep.subr.mxu0 0.0
    %819 = vmatpush1.xpose.msra.mxu0 0.0
    %820 = vmatprep.subr.mxu0 0.0
    %821 = vmatpush1.xpose.msra.mxu0 0.0
    %822 = vmatprep.subr.mxu0 0.0
    %823 = vmatpush1.xpose.msra.mxu0 0.0
    %824 = vmatprep.subr.mxu0 0.0
    %825 = vmatpush1.xpose.msra.mxu0 0.0
    %826 = vmatprep.subr.mxu0 0.0
    %827 = vmatpush1.xpose.msra.mxu0 0.0
    %828 = vmatprep.subr.mxu0 0.0
    %829 = vmatpush1.xpose.msra.mxu0 0.0
    %830 = vmatprep.subr.mxu0 0.0
    %831 = vmatpush1.xpose.msra.mxu0 0.0
    %832 = vmatprep.subr.mxu0 0.0
    %833 = vmatpush1.xpose.msra.mxu0 0.0
    %834 = vmatprep.subr.mxu0 0.0
    %835 = vmatpush1.xpose.msra.mxu0 0.0
    %836 = vmatprep.subr.mxu0 0.0
    %837 = vmatpush1.xpose.msra.mxu0 0.0
    %838 = vmatprep.subr.mxu0 0.0
    %839 = vmatpush1.xpose.msra.mxu0 0.0
    %840 = vmatprep.subr.mxu0 0.0
    %841 = vmatpush1.xpose.msra.mxu0 0.0
    %842 = vmatprep.subr.mxu0 0.0
    %843 = vmatpush1.xpose.msra.mxu0 0.0
    %844 = vmatprep.subr.mxu0 0.0
    %845 = vmatpush1.xpose.msra.mxu0 0.0
    %846 = vmatprep.subr.mxu0 0.0
    %847 = vmatpush1.xpose.msra.mxu0 0.0
    %848 = vmatprep.subr.mxu0 0.0
    %849 = vmatpush1.xpose.msra.mxu0 0.0
    %850 = vmatprep.subr.mxu0 0.0
    %851 = vmatpush1.xpose.msra.mxu0 0.0
    %852 = vmatprep.subr.mxu0 0.0
    %853 = vmatpush1.xpose.msra.mxu0 0.0
    %854 = vmatprep.subr.mxu0 0.0
    %855 = vmatpush1.xpose.msra.mxu0 0.0
    %856 = vmatprep.subr.mxu0 0.0
    %857 = vmatpush1.xpose.msra.mxu0 0.0
    %858 = vmatprep.subr.mxu0 0.0
    %859 = vmatpush1.xpose.msra.mxu0 0.0
    %860 = vmatprep.subr.mxu0 0.0
    %861 = vmatpush1.xpose.msra.mxu0 0.0
    %862 = vmatprep.subr.mxu0 0.0
    %863 = vmatpush1.xpose.msra.mxu0 0.0
    %864 = vmatprep.subr.mxu0 0.0
    %865 = vmatpush1.xpose.msra.mxu0 0.0
    %866 = vmatprep.subr.mxu0 0.0
    %867 = vmatpush1.xpose.msra.mxu0 0.0
    %868 = vmatprep.subr.mxu0 0.0
    %869 = vmatpush1.xpose.msra.mxu0 0.0
    %870 = vmatprep.subr.mxu0 0.0
    %871 = vmatpush1.xpose.msra.mxu0 0.0
    %872 = vmatprep.mubr.f32.mxu0 0.0
    %873 = vmatmul.mubr.f32.gmra.mrb[0].mxu0 %v804
    %v874 = vpop.f32.mrb[0].mxu0
    %v875 = vadd.f32 0.0, %v874
    %v876 = vpop.f32.mrb[0].mxu0
    %877 = vdwg.mxu0
    %v878 = vmul.f32 %v875, 0.35355338
    %v879 = vadd.f32 %v878, %v208
    %v880 = vsel %vm469, %v879, -inf
    %881 = vmax.xlane.f32.xlu0 %v880
    %v882 = vpop.xlane.xlu0 %881
    %v883 = vsub.f32 %v879, %v882
    %v884 = vmul.f32 %v883, 1.442695
    %v885 = vpow.pop %v884
    %v886 = vsel %vm469, %v885, 0.0
    %887 = vadd.xlane.f32.xlu0 %v886
    %v888 = vpop.xlane.xlu0 %887
    %v889 = vrcp.pop %v888
    %v890 = vmul.f32 %v885, %v889
    %891 = vrot.lane.b32.xlu0 %v461, 112
    %v892 = vpop.permute.xlu0 %891
    %v895 = vsel %vm469, %v890, 0
    %897 = vmatprep.subr.mxu0 0.0
    %898 = vmatpush1.msra.mxu0 %v892
    %899 = vmatprep.subr.mxu0 0.0
    %900 = vmatpush1.msra.mxu0 0.0
    %901 = vmatprep.subr.mxu0 0.0
    %902 = vmatpush1.msra.mxu0 0.0
    %903 = vmatprep.subr.mxu0 0.0
    %904 = vmatpush1.msra.mxu0 0.0
    %905 = vmatprep.subr.mxu0 0.0
    %906 = vmatpush1.msra.mxu0 0.0
    %907 = vmatprep.subr.mxu0 0.0
    %908 = vmatpush1.msra.mxu0 0.0
    %909 = vmatprep.subr.mxu0 0.0
    %910 = vmatpush1.msra.mxu0 0.0
    %911 = vmatprep.subr.mxu0 0.0
    %912 = vmatpush1.msra.mxu0 0.0
    %913 = vmatprep.subr.mxu0 0.0
    %914 = vmatpush1.msra.mxu0 0.0
    %915 = vmatprep.subr.mxu0 0.0
    %916 = vmatpush1.msra.mxu0 0.0
    %917 = vmatprep.subr.mxu0 0.0
    %918 = vmatpush1.msra.mxu0 0.0
    %919 = vmatprep.subr.mxu0 0.0
    %920 = vmatpush1.msra.mxu0 0.0
    %921 = vmatprep.subr.mxu0 0.0
    %922 = vmatpush1.msra.mxu0 0.0
    %923 = vmatprep.subr.mxu0 0.0
    %924 = vmatpush1.msra.mxu0 0.0
    %925 = vmatprep.subr.mxu0 0.0
    %926 = vmatpush1.msra.mxu0 0.0
    %927 = vmatprep.subr.mxu0 0.0
    %928 = vmatpush1.msra.mxu0 0.0
    %929 = vmatprep.subr.mxu0 0.0
    %930 = vmatpush1.msra.mxu0 0.0
    %931 = vmatprep.subr.mxu0 0.0
    %932 = vmatpush1.msra.mxu0 0.0
    %933 = vmatprep.subr.mxu0 0.0
    %934 = vmatpush1.msra.mxu0 0.0
    %935 = vmatprep.subr.mxu0 0.0
    %936 = vmatpush1.msra.mxu0 0.0
    %937 = vmatprep.subr.mxu0 0.0
    %938 = vmatpush1.msra.mxu0 0.0
    %939 = vmatprep.subr.mxu0 0.0
    %940 = vmatpush1.msra.mxu0 0.0
    %941 = vmatprep.subr.mxu0 0.0
    %942 = vmatpush1.msra.mxu0 0.0
    %943 = vmatprep.subr.mxu0 0.0
    %944 = vmatpush1.msra.mxu0 0.0
    %945 = vmatprep.subr.mxu0 0.0
    %946 = vmatpush1.msra.mxu0 0.0
    %947 = vmatprep.subr.mxu0 0.0
    %948 = vmatpush1.msra.mxu0 0.0
    %949 = vmatprep.subr.mxu0 0.0
    %950 = vmatpush1.msra.mxu0 0.0
    %951 = vmatprep.subr.mxu0 0.0
    %952 = vmatpush1.msra.mxu0 0.0
    %953 = vmatprep.subr.mxu0 0.0
    %954 = vmatpush1.msra.mxu0 0.0
    %955 = vmatprep.subr.mxu0 0.0
    %956 = vmatpush1.msra.mxu0 0.0
    %957 = vmatprep.subr.mxu0 0.0
    %958 = vmatpush1.msra.mxu0 0.0
    %959 = vmatprep.subr.mxu0 0.0
    %960 = vmatpush1.msra.mxu0 0.0
    %961 = vmatprep.mubr.f32.mxu0 0.0
    %962 = vmatmul.mubr.f32.gmra.mrb[0].mxu0 %v895
    %v963 = vpop.f32.mrb[0].mxu0
    %v964 = vadd.f32 0.0, %v963
    %v965 = vpop.f32.mrb[0].mxu0
    %966 = vdwg.mxu0
    %967 = vrot.lane.b32.xlu0 %v303, 104
    %v968 = vpop.permute.xlu0 %967
    %969 = vrot.lane.b32.xlu0 %v382, 104
    %v970 = vpop.permute.xlu0 %969
    %v971 = vsel %vm469, %v968, 0
    %v973 = vsel %vm469, %v970, 0
    %975 = vmatprep.subr.mxu0 0.0
    %976 = vmatpush1.xpose.msra.mxu0 %v973
    %977 = vmatprep.subr.mxu0 0.0
    %978 = vmatpush1.xpose.msra.mxu0 0.0
    %979 = vmatprep.subr.mxu0 0.0
    %980 = vmatpush1.xpose.msra.mxu0 0.0
    %981 = vmatprep.subr.mxu0 0.0
    %982 = vmatpush1.xpose.msra.mxu0 0.0
    %983 = vmatprep.subr.mxu0 0.0
    %984 = vmatpush1.xpose.msra.mxu0 0.0
    %985 = vmatprep.subr.mxu0 0.0
    %986 = vmatpush1.xpose.msra.mxu0 0.0
    %987 = vmatprep.subr.mxu0 0.0
    %988 = vmatpush1.xpose.msra.mxu0 0.0
    %989 = vmatprep.subr.mxu0 0.0
    %990 = vmatpush1.xpose.msra.mxu0 0.0
    %991 = vmatprep.subr.mxu0 0.0
    %992 = vmatpush1.xpose.msra.mxu0 0.0
    %993 = vmatprep.subr.mxu0 0.0
    %994 = vmatpush1.xpose.msra.mxu0 0.0
    %995 = vmatprep.subr.mxu0 0.0
    %996 = vmatpush1.xpose.msra.mxu0 0.0
    %997 = vmatprep.subr.mxu0 0.0
    %998 = vmatpush1.xpose.msra.mxu0 0.0
    %999 = vmatprep.subr.mxu0 0.0
    %1000 = vmatpush1.xpose.msra.mxu0 0.0
    %1001 = vmatprep.subr.mxu0 0.0
    %1002 = vmatpush1.xpose.msra.mxu0 0.0
    %1003 = vmatprep.subr.mxu0 0.0
    %1004 = vmatpush1.xpose.msra.mxu0 0.0
    %1005 = vmatprep.subr.mxu0 0.0
    %1006 = vmatpush1.xpose.msra.mxu0 0.0
    %1007 = vmatprep.subr.mxu0 0.0
    %1008 = vmatpush1.xpose.msra.mxu0 0.0
    %1009 = vmatprep.subr.mxu0 0.0
    %1010 = vmatpush1.xpose.msra.mxu0 0.0
    %1011 = vmatprep.subr.mxu0 0.0
    %1012 = vmatpush1.xpose.msra.mxu0 0.0
    %1013 = vmatprep.subr.mxu0 0.0
    %1014 = vmatpush1.xpose.msra.mxu0 0.0
    %1015 = vmatprep.subr.mxu0 0.0
    %1016 = vmatpush1.xpose.msra.mxu0 0.0
    %1017 = vmatprep.subr.mxu0 0.0
    %1018 = vmatpush1.xpose.msra.mxu0 0.0
    %1019 = vmatprep.subr.mxu0 0.0
    %1020 = vmatpush1.xpose.msra.mxu0 0.0
    %1021 = vmatprep.subr.mxu0 0.0
    %1022 = vmatpush1.xpose.msra.mxu0 0.0
    %1023 = vmatprep.subr.mxu0 0.0
    %1024 = vmatpush1.xpose.msra.mxu0 0.0
    %1025 = vmatprep.subr.mxu0 0.0
    %1026 = vmatpush1.xpose.msra.mxu0 0.0
    %1027 = vmatprep.subr.mxu0 0.0
    %1028 = vmatpush1.xpose.msra.mxu0 0.0
    %1029 = vmatprep.subr.mxu0 0.0
    %1030 = vmatpush1.xpose.msra.mxu0 0.0
    %1031 = vmatprep.subr.mxu0 0.0
    %1032 = vmatpush1.xpose.msra.mxu0 0.0
    %1033 = vmatprep.subr.mxu0 0.0
    %1034 = vmatpush1.xpose.msra.mxu0 0.0
    %1035 = vmatprep.subr.mxu0 0.0
    %1036 = vmatpush1.xpose.msra.mxu0 0.0
    %1037 = vmatprep.subr.mxu0 0.0
    %1038 = vmatpush1.xpose.msra.mxu0 0.0
    %1039 = vmatprep.mubr.f32.mxu0 0.0
    %1040 = vmatmul.mubr.f32.gmra.mrb[0].mxu0 %v971
    %v1041 = vpop.f32.mrb[0].mxu0
    %v1042 = vadd.f32 0.0, %v1041
    %v1043 = vpop.f32.mrb[0].mxu0
    %1044 = vdwg.mxu0
    %v1045 = vmul.f32 %v1042, 0.35355338
    %v1046 = vadd.f32 %v1045, %v208
    %v1047 = vsel %vm469, %v1046, -inf
    %1048 = vmax.xlane.f32.xlu0 %v1047
    %v1049 = vpop.xlane.xlu0 %1048
    %v1050 = vsub.f32 %v1046, %v1049
    %v1051 = vmul.f32 %v1050, 1.442695
    %v1052 = vpow.pop %v1051
    %v1053 = vsel %vm469, %v1052, 0.0
    %1054 = vadd.xlane.f32.xlu0 %v1053
    %v1055 = vpop.xlane.xlu0 %1054
    %v1056 = vrcp.pop %v1055
    %v1057 = vmul.f32 %v1052, %v1056
    %1058 = vrot.lane.b32.xlu0 %v461, 104
    %v1059 = vpop.permute.xlu0 %1058
    %v1062 = vsel %vm469, %v1057, 0
    %1064 = vmatprep.subr.mxu0 0.0
    %1065 = vmatpush1.msra.mxu0 %v1059
    %1066 = vmatprep.subr.mxu0 0.0
    %1067 = vmatpush1.msra.mxu0 0.0
    %1068 = vmatprep.subr.mxu0 0.0
    %1069 = vmatpush1.msra.mxu0 0.0
    %1070 = vmatprep.subr.mxu0 0.0
    %1071 = vmatpush1.msra.mxu0 0.0
    %1072 = vmatprep.subr.mxu0 0.0
    %1073 = vmatpush1.msra.mxu0 0.0
    %1074 = vmatprep.subr.mxu0 0.0
    %1075 = vmatpush1.msra.mxu0 0.0
    %1076 = vmatprep.subr.mxu0 0.0
    %1077 = vmatpush1.msra.mxu0 0.0
    %1078 = vmatprep.subr.mxu0 0.0
    %1079 = vmatpush1.msra.mxu0 0.0
    %1080 = vmatprep.subr.mxu0 0.0
    %1081 = vmatpush1.msra.mxu0 0.0
    %1082 = vmatprep.subr.mxu0 0.0
    %1083 = vmatpush1.msra.mxu0 0.0
    %1084 = vmatprep.subr.mxu0 0.0
    %1085 = vmatpush1.msra.mxu0 0.0
    %1086 = vmatprep.subr.mxu0 0.0
    %1087 = vmatpush1.msra.mxu0 0.0
    %1088 = vmatprep.subr.mxu0 0.0
    %1089 = vmatpush1.msra.mxu0 0.0
    %1090 = vmatprep.subr.mxu0 0.0
    %1091 = vmatpush1.msra.mxu0 0.0
    %1092 = vmatprep.subr.mxu0 0.0
    %1093 = vmatpush1.msra.mxu0 0.0
    %1094 = vmatprep.subr.mxu0 0.0
    %1095 = vmatpush1.msra.mxu0 0.0
    %1096 = vmatprep.subr.mxu0 0.0
    %1097 = vmatpush1.msra.mxu0 0.0
    %1098 = vmatprep.subr.mxu0 0.0
    %1099 = vmatpush1.msra.mxu0 0.0
    %1100 = vmatprep.subr.mxu0 0.0
    %1101 = vmatpush1.msra.mxu0 0.0
    %1102 = vmatprep.subr.mxu0 0.0
    %1103 = vmatpush1.msra.mxu0 0.0
    %1104 = vmatprep.subr.mxu0 0.0
    %1105 = vmatpush1.msra.mxu0 0.0
    %1106 = vmatprep.subr.mxu0 0.0
    %1107 = vmatpush1.msra.mxu0 0.0
    %1108 = vmatprep.subr.mxu0 0.0
    %1109 = vmatpush1.msra.mxu0 0.0
    %1110 = vmatprep.subr.mxu0 0.0
    %1111 = vmatpush1.msra.mxu0 0.0
    %1112 = vmatprep.subr.mxu0 0.0
    %1113 = vmatpush1.msra.mxu0 0.0
    %1114 = vmatprep.subr.mxu0 0.0
    %1115 = vmatpush1.msra.mxu0 0.0
    %1116 = vmatprep.subr.mxu0 0.0
    %1117 = vmatpush1.msra.mxu0 0.0
    %1118 = vmatprep.subr.mxu0 0.0
    %1119 = vmatpush1.msra.mxu0 0.0
    %1120 = vmatprep.subr.mxu0 0.0
    %1121 = vmatpush1.msra.mxu0 0.0
    %1122 = vmatprep.subr.mxu0 0.0
    %1123 = vmatpush1.msra.mxu0 0.0
    %1124 = vmatprep.subr.mxu0 0.0
    %1125 = vmatpush1.msra.mxu0 0.0
    %1126 = vmatprep.subr.mxu0 0.0
    %1127 = vmatpush1.msra.mxu0 0.0
    %1128 = vmatprep.mubr.f32.mxu0 0.0
    %1129 = vmatmul.mubr.f32.gmra.mrb[0].mxu0 %v1062
    %v1130 = vpop.f32.mrb[0].mxu0
    %v1131 = vadd.f32 0.0, %v1130
    %v1132 = vpop.f32.mrb[0].mxu0
    %1133 = vdwg.mxu0
    %1135 = vrot.lane.b32.xlu0 %v797, 8
    %v1136 = vpop.permute.xlu0 %1135
    %1139 = vrot.lane.b32.xlu0 %v964, 16
    %v1140 = vpop.permute.xlu0 %1139
    %1143 = vrot.lane.b32.xlu0 %v1131, 24
    %v1144 = vpop.permute.xlu0 %1143
    %v1146 = vsel %vm469, %v629, %v1136
    %vm1147 = vcmask 130048
    %v1148 = vsel %vm1147, %v1146, %v1140
    %vm1149 = vcmask 195584
    %v1150 = vsel %vm1149, %v1148, %v1144
    %v1151 = vlaneseq
    %v1152 = vshrl.u32 %v1151, 7
    %v1153 = vsub.s32 3, %v1152
    %v1154 = vrot.slane %v225, %v1153
    %v1156 = vsel %vm165, %v1150, 0
    %1158 = vmatprep.subr.mxu0 0.0
    %1159 = vmatpush1.msra.mxu0 %v221
    %1160 = vmatprep.subr.mxu0 0.0
    %1161 = vmatpush1.msra.mxu0 %v222
    %1162 = vmatprep.subr.mxu0 0.0
    %1163 = vmatpush1.msra.mxu0 %v223
    %1164 = vmatprep.subr.mxu0 0.0
    %1165 = vmatpush1.msra.mxu0 %v224
    %1166 = vmatprep.subr.mxu0 0.0
    %1167 = vmatpush1.msra.mxu0 0.0
    %1168 = vmatprep.subr.mxu0 0.0
    %1169 = vmatpush1.msra.mxu0 0.0
    %1170 = vmatprep.subr.mxu0 0.0
    %1171 = vmatpush1.msra.mxu0 0.0
    %1172 = vmatprep.subr.mxu0 0.0
    %1173 = vmatpush1.msra.mxu0 0.0
    %1174 = vmatprep.subr.mxu0 0.0
    %1175 = vmatpush1.msra.mxu0 0.0
    %1176 = vmatprep.subr.mxu0 0.0
    %1177 = vmatpush1.msra.mxu0 0.0
    %1178 = vmatprep.subr.mxu0 0.0
    %1179 = vmatpush1.msra.mxu0 0.0
    %1180 = vmatprep.subr.mxu0 0.0
    %1181 = vmatpush1.msra.mxu0 0.0
    %1182 = vmatprep.subr.mxu0 0.0
    %1183 = vmatpush1.msra.mxu0 0.0
    %1184 = vmatprep.subr.mxu0 0.0
    %1185 = vmatpush1.msra.mxu0 0.0
    %1186 = vmatprep.subr.mxu0 0.0
    %1187 = vmatpush1.msra.mxu0 0.0
    %1188 = vmatprep.subr.mxu0 0.0
    %1189 = vmatpush1.msra.mxu0 0.0
    %1190 = vmatprep.subr.mxu0 0.0
    %1191 = vmatpush1.msra.mxu0 0.0
    %1192 = vmatprep.subr.mxu0 0.0
    %1193 = vmatpush1.msra.mxu0 0.0
    %1194 = vmatprep.subr.mxu0 0.0
    %1195 = vmatpush1.msra.mxu0 0.0
    %1196 = vmatprep.subr.mxu0 0.0
    %1197 = vmatpush1.msra.mxu0 0.0
    %1198 = vmatprep.subr.mxu0 0.0
    %1199 = vmatpush1.msra.mxu0 0.0
    %1200 = vmatprep.subr.mxu0 0.0
    %1201 = vmatpush1.msra.mxu0 0.0
    %1202 = vmatprep.subr.mxu0 0.0
    %1203 = vmatpush1.msra.mxu0 0.0
    %1204 = vmatprep.subr.mxu0 0.0
    %1205 = vmatpush1.msra.mxu0 0.0
    %1206 = vmatprep.subr.mxu0 0.0
    %1207 = vmatpush1.msra.mxu0 0.0
    %1208 = vmatprep.subr.mxu0 0.0
    %1209 = vmatpush1.msra.mxu0 0.0
    %1210 = vmatprep.subr.mxu0 0.0
    %1211 = vmatpush1.msra.mxu0 0.0
    %1212 = vmatprep.subr.mxu0 0.0
    %1213 = vmatpush1.msra.mxu0 0.0
    %1214 = vmatprep.subr.mxu0 0.0
    %1215 = vmatpush1.msra.mxu0 0.0
    %1216 = vmatprep.subr.mxu0 0.0
    %1217 = vmatpush1.msra.mxu0 0.0
    %1218 = vmatprep.subr.mxu0 0.0
    %1219 = vmatpush1.msra.mxu0 0.0
    %1220 = vmatprep.subr.mxu0 0.0
    %1221 = vmatpush1.msra.mxu0 0.0
    %1222 = vmatprep.mubr.f32.mxu0 0.0
    %1223 = vmatmul.mubr.f32.gmra.mrb[0].mxu0 %v1156
    %v1224 = vpop.f32.mrb[0].mxu0
    %v1225 = vadd.f32 %v1154, %v1224
    %v1226 = vpop.f32.mrb[0].mxu0
    %1227 = vdwg.mxu0
    %v1229 = vsel %vm469, %v308, 0
    %v1232 = vsel %vm469, %v387, 0
    %1234 = vmatprep.subr.mxu0 0.0
    %1235 = vmatpush1.xpose.msra.mxu0 %v1232
    %1236 = vmatprep.subr.mxu0 0.0
    %1237 = vmatpush1.xpose.msra.mxu0 0.0
    %1238 = vmatprep.subr.mxu0 0.0
    %1239 = vmatpush1.xpose.msra.mxu0 0.0
    %1240 = vmatprep.subr.mxu0 0.0
    %1241 = vmatpush1.xpose.msra.mxu0 0.0
    %1242 = vmatprep.subr.mxu0 0.0
    %1243 = vmatpush1.xpose.msra.mxu0 0.0
    %1244 = vmatprep.subr.mxu0 0.0
    %1245 = vmatpush1.xpose.msra.mxu0 0.0
    %1246 = vmatprep.subr.mxu0 0.0
    %1247 = vmatpush1.xpose.msra.mxu0 0.0
    %1248 = vmatprep.subr.mxu0 0.0
    %1249 = vmatpush1.xpose.msra.mxu0 0.0
    %1250 = vmatprep.subr.mxu0 0.0
    %1251 = vmatpush1.xpose.msra.mxu0 0.0
    %1252 = vmatprep.subr.mxu0 0.0
    %1253 = vmatpush1.xpose.msra.mxu0 0.0
    %1254 = vmatprep.subr.mxu0 0.0
    %1255 = vmatpush1.xpose.msra.mxu0 0.0
    %1256 = vmatprep.subr.mxu0 0.0
    %1257 = vmatpush1.xpose.msra.mxu0 0.0
    %1258 = vmatprep.subr.mxu0 0.0
    %1259 = vmatpush1.xpose.msra.mxu0 0.0
    %1260 = vmatprep.subr.mxu0 0.0
    %1261 = vmatpush1.xpose.msra.mxu0 0.0
    %1262 = vmatprep.subr.mxu0 0.0
    %1263 = vmatpush1.xpose.msra.mxu0 0.0
    %1264 = vmatprep.subr.mxu0 0.0
    %1265 = vmatpush1.xpose.msra.mxu0 0.0
    %1266 = vmatprep.subr.mxu0 0.0
    %1267 = vmatpush1.xpose.msra.mxu0 0.0
    %1268 = vmatprep.subr.mxu0 0.0
    %1269 = vmatpush1.xpose.msra.mxu0 0.0
    %1270 = vmatprep.subr.mxu0 0.0
    %1271 = vmatpush1.xpose.msra.mxu0 0.0
    %1272 = vmatprep.subr.mxu0 0.0
    %1273 = vmatpush1.xpose.msra.mxu0 0.0
    %1274 = vmatprep.subr.mxu0 0.0
    %1275 = vmatpush1.xpose.msra.mxu0 0.0
    %1276 = vmatprep.subr.mxu0 0.0
    %1277 = vmatpush1.xpose.msra.mxu0 0.0
    %1278 = vmatprep.subr.mxu0 0.0
    %1279 = vmatpush1.xpose.msra.mxu0 0.0
    %1280 = vmatprep.subr.mxu0 0.0
    %1281 = vmatpush1.xpose.msra.mxu0 0.0
    %1282 = vmatprep.subr.mxu0 0.0
    %1283 = vmatpush1.xpose.msra.mxu0 0.0
    %1284 = vmatprep.subr.mxu0 0.0
    %1285 = vmatpush1.xpose.msra.mxu0 0.0
    %1286 = vmatprep.subr.mxu0 0.0
    %1287 = vmatpush1.xpose.msra.mxu0 0.0
    %1288 = vmatprep.subr.mxu0 0.0
    %1289 = vmatpush1.xpose.msra.mxu0 0.0
    %1290 = vmatprep.subr.mxu0 0.0
    %1291 = vmatpush1.xpose.msra.mxu0 0.0
    %1292 = vmatprep.subr.mxu0 0.0
    %1293 = vmatpush1.xpose.msra.mxu0 0.0
    %1294 = vmatprep.subr.mxu0 0.0
    %1295 = vmatpush1.xpose.msra.mxu0 0.0
    %1296 = vmatprep.subr.mxu0 0.0
    %1297 = vmatpush1.xpose.msra.mxu0 0.0
    %1298 = vmatprep.mubr.f32.mxu0 0.0
    %1299 = vmatmul.mubr.f32.gmra.mrb[0].mxu0 %v1229
    %v1300 = vpop.f32.mrb[0].mxu0
    %v1301 = vadd.f32 0.0, %v1300
    %v1302 = vpop.f32.mrb[0].mxu0
    %1303 = vdwg.mxu0
    %v1304 = vmul.f32 %v1301, 0.35355338
    %v1305 = vadd.f32 %v1304, %v208
    %v1306 = vsel %vm469, %v1305, -inf
    %1307 = vmax.xlane.f32.xlu0 %v1306
    %v1308 = vpop.xlane.xlu0 %1307
    %v1309 = vsub.f32 %v1305, %v1308
    %v1310 = vmul.f32 %v1309, 1.442695
    %v1311 = vpow.pop %v1310
    %v1312 = vsel %vm469, %v1311, 0.0
    %1313 = vadd.xlane.f32.xlu0 %v1312
    %v1314 = vpop.xlane.xlu0 %1313
    %v1315 = vrcp.pop %v1314
    %v1316 = vmul.f32 %v1311, %v1315
    %v1318 = vsel %vm469, %v1316, 0
    %1320 = vmatprep.subr.mxu0 0.0
    %1321 = vmatpush1.msra.mxu0 %v466
    %1322 = vmatprep.subr.mxu0 0.0
    %1323 = vmatpush1.msra.mxu0 0.0
    %1324 = vmatprep.subr.mxu0 0.0
    %1325 = vmatpush1.msra.mxu0 0.0
    %1326 = vmatprep.subr.mxu0 0.0
    %1327 = vmatpush1.msra.mxu0 0.0
    %1328 = vmatprep.subr.mxu0 0.0
    %1329 = vmatpush1.msra.mxu0 0.0
    %1330 = vmatprep.subr.mxu0 0.0
    %1331 = vmatpush1.msra.mxu0 0.0
    %1332 = vmatprep.subr.mxu0 0.0
    %1333 = vmatpush1.msra.mxu0 0.0
    %1334 = vmatprep.subr.mxu0 0.0
    %1335 = vmatpush1.msra.mxu0 0.0
    %1336 = vmatprep.subr.mxu0 0.0
    %1337 = vmatpush1.msra.mxu0 0.0
    %1338 = vmatprep.subr.mxu0 0.0
    %1339 = vmatpush1.msra.mxu0 0.0
    %1340 = vmatprep.subr.mxu0 0.0
    %1341 = vmatpush1.msra.mxu0 0.0
    %1342 = vmatprep.subr.mxu0 0.0
    %1343 = vmatpush1.msra.mxu0 0.0
    %1344 = vmatprep.subr.mxu0 0.0
    %1345 = vmatpush1.msra.mxu0 0.0
    %1346 = vmatprep.subr.mxu0 0.0
    %1347 = vmatpush1.msra.mxu0 0.0
    %1348 = vmatprep.subr.mxu0 0.0
    %1349 = vmatpush1.msra.mxu0 0.0
    %1350 = vmatprep.subr.mxu0 0.0
    %1351 = vmatpush1.msra.mxu0 0.0
    %1352 = vmatprep.subr.mxu0 0.0
    %1353 = vmatpush1.msra.mxu0 0.0
    %1354 = vmatprep.subr.mxu0 0.0
    %1355 = vmatpush1.msra.mxu0 0.0
    %1356 = vmatprep.subr.mxu0 0.0
    %1357 = vmatpush1.msra.mxu0 0.0
    %1358 = vmatprep.subr.mxu0 0.0
    %1359 = vmatpush1.msra.mxu0 0.0
    %1360 = vmatprep.subr.mxu0 0.0
    %1361 = vmatpush1.msra.mxu0 0.0
    %1362 = vmatprep.subr.mxu0 0.0
    %1363 = vmatpush1.msra.mxu0 0.0
    %1364 = vmatprep.subr.mxu0 0.0
    %1365 = vmatpush1.msra.mxu0 0.0
    %1366 = vmatprep.subr.mxu0 0.0
    %1367 = vmatpush1.msra.mxu0 0.0
    %1368 = vmatprep.subr.mxu0 0.0
    %1369 = vmatpush1.msra.mxu0 0.0
    %1370 = vmatprep.subr.mxu0 0.0
    %1371 = vmatpush1.msra.mxu0 0.0
    %1372 = vmatprep.subr.mxu0 0.0
    %1373 = vmatpush1.msra.mxu0 0.0
    %1374 = vmatprep.subr.mxu0 0.0
    %1375 = vmatpush1.msra.mxu0 0.0
    %1376 = vmatprep.subr.mxu0 0.0
    %1377 = vmatpush1.msra.mxu0 0.0
    %1378 = vmatprep.subr.mxu0 0.0
    %1379 = vmatpush1.msra.mxu0 0.0
    %1380 = vmatprep.subr.mxu0 0.0
    %1381 = vmatpush1.msra.mxu0 0.0
    %1382 = vmatprep.subr.mxu0 0.0
    %1383 = vmatpush1.msra.mxu0 0.0
    %1384 = vmatprep.mubr.f32.mxu0 0.0
    %1385 = vmatmul.mubr.f32.gmra.mrb[0].mxu0 %v1318
    %v1386 = vpop.f32.mrb[0].mxu0
    %v1387 = vadd.f32 0.0, %v1386
    %v1388 = vpop.f32.mrb[0].mxu0
    %1389 = vdwg.mxu0
    %1390 = vrot.lane.b32.xlu0 %v308, 120
    %v1391 = vpop.permute.xlu0 %1390
    %1392 = vrot.lane.b32.xlu0 %v387, 120
    %v1393 = vpop.permute.xlu0 %1392
    %v1394 = vsel %vm469, %v1391, 0
    %v1396 = vsel %vm469, %v1393, 0
    %1398 = vmatprep.subr.mxu0 0.0
    %1399 = vmatpush1.xpose.msra.mxu0 %v1396
    %1400 = vmatprep.subr.mxu0 0.0
    %1401 = vmatpush1.xpose.msra.mxu0 0.0
    %1402 = vmatprep.subr.mxu0 0.0
    %1403 = vmatpush1.xpose.msra.mxu0 0.0
    %1404 = vmatprep.subr.mxu0 0.0
    %1405 = vmatpush1.xpose.msra.mxu0 0.0
    %1406 = vmatprep.subr.mxu0 0.0
    %1407 = vmatpush1.xpose.msra.mxu0 0.0
    %1408 = vmatprep.subr.mxu0 0.0
    %1409 = vmatpush1.xpose.msra.mxu0 0.0
    %1410 = vmatprep.subr.mxu0 0.0
    %1411 = vmatpush1.xpose.msra.mxu0 0.0
    %1412 = vmatprep.subr.mxu0 0.0
    %1413 = vmatpush1.xpose.msra.mxu0 0.0
    %1414 = vmatprep.subr.mxu0 0.0
    %1415 = vmatpush1.xpose.msra.mxu0 0.0
    %1416 = vmatprep.subr.mxu0 0.0
    %1417 = vmatpush1.xpose.msra.mxu0 0.0
    %1418 = vmatprep.subr.mxu0 0.0
    %1419 = vmatpush1.xpose.msra.mxu0 0.0
    %1420 = vmatprep.subr.mxu0 0.0
    %1421 = vmatpush1.xpose.msra.mxu0 0.0
    %1422 = vmatprep.subr.mxu0 0.0
    %1423 = vmatpush1.xpose.msra.mxu0 0.0
    %1424 = vmatprep.subr.mxu0 0.0
    %1425 = vmatpush1.xpose.msra.mxu0 0.0
    %1426 = vmatprep.subr.mxu0 0.0
    %1427 = vmatpush1.xpose.msra.mxu0 0.0
    %1428 = vmatprep.subr.mxu0 0.0
    %1429 = vmatpush1.xpose.msra.mxu0 0.0
    %1430 = vmatprep.subr.mxu0 0.0
    %1431 = vmatpush1.xpose.msra.mxu0 0.0
    %1432 = vmatprep.subr.mxu0 0.0
    %1433 = vmatpush1.xpose.msra.mxu0 0.0
    %1434 = vmatprep.subr.mxu0 0.0
    %1435 = vmatpush1.xpose.msra.mxu0 0.0
    %1436 = vmatprep.subr.mxu0 0.0
    %1437 = vmatpush1.xpose.msra.mxu0 0.0
    %1438 = vmatprep.subr.mxu0 0.0
    %1439 = vmatpush1.xpose.msra.mxu0 0.0
    %1440 = vmatprep.subr.mxu0 0.0
    %1441 = vmatpush1.xpose.msra.mxu0 0.0
    %1442 = vmatprep.subr.mxu0 0.0
    %1443 = vmatpush1.xpose.msra.mxu0 0.0
    %1444 = vmatprep.subr.mxu0 0.0
    %1445 = vmatpush1.xpose.msra.mxu0 0.0
    %1446 = vmatprep.subr.mxu0 0.0
    %1447 = vmatpush1.xpose.msra.mxu0 0.0
    %1448 = vmatprep.subr.mxu0 0.0
    %1449 = vmatpush1.xpose.msra.mxu0 0.0
    %1450 = vmatprep.subr.mxu0 0.0
    %1451 = vmatpush1.xpose.msra.mxu0 0.0
    %1452 = vmatprep.subr.mxu0 0.0
    %1453 = vmatpush1.xpose.msra.mxu0 0.0
    %1454 = vmatprep.subr.mxu0 0.0
    %1455 = vmatpush1.xpose.msra.mxu0 0.0
    %1456 = vmatprep.subr.mxu0 0.0
    %1457 = vmatpush1.xpose.msra.mxu0 0.0
    %1458 = vmatprep.subr.mxu0 0.0
    %1459 = vmatpush1.xpose.msra.mxu0 0.0
    %1460 = vmatprep.subr.mxu0 0.0
    %1461 = vmatpush1.xpose.msra.mxu0 0.0
    %1462 = vmatprep.mubr.f32.mxu0 0.0
    %1463 = vmatmul.mubr.f32.gmra.mrb[0].mxu0 %v1394
    %v1464 = vpop.f32.mrb[0].mxu0
    %v1465 = vadd.f32 0.0, %v1464
    %v1466 = vpop.f32.mrb[0].mxu0
    %1467 = vdwg.mxu0
    %v1468 = vmul.f32 %v1465, 0.35355338
    %v1469 = vadd.f32 %v1468, %v208
    %v1470 = vsel %vm469, %v1469, -inf
    %1471 = vmax.xlane.f32.xlu0 %v1470
    %v1472 = vpop.xlane.xlu0 %1471
    %v1473 = vsub.f32 %v1469, %v1472
    %v1474 = vmul.f32 %v1473, 1.442695
    %v1475 = vpow.pop %v1474
    %v1476 = vsel %vm469, %v1475, 0.0
    %1477 = vadd.xlane.f32.xlu0 %v1476
    %v1478 = vpop.xlane.xlu0 %1477
    %v1479 = vrcp.pop %v1478
    %v1480 = vmul.f32 %v1475, %v1479
    %1482 = vrot.lane.b32.xlu0 %v466, 120
    %v1483 = vpop.permute.xlu0 %1482
    %v1486 = vsel %vm469, %v1480, 0
    %1488 = vmatprep.subr.mxu0 0.0
    %1489 = vmatpush1.msra.mxu0 %v1483
    %1490 = vmatprep.subr.mxu0 0.0
    %1491 = vmatpush1.msra.mxu0 0.0
    %1492 = vmatprep.subr.mxu0 0.0
    %1493 = vmatpush1.msra.mxu0 0.0
    %1494 = vmatprep.subr.mxu0 0.0
    %1495 = vmatpush1.msra.mxu0 0.0
    %1496 = vmatprep.subr.mxu0 0.0
    %1497 = vmatpush1.msra.mxu0 0.0
    %1498 = vmatprep.subr.mxu0 0.0
    %1499 = vmatpush1.msra.mxu0 0.0
    %1500 = vmatprep.subr.mxu0 0.0
    %1501 = vmatpush1.msra.mxu0 0.0
    %1502 = vmatprep.subr.mxu0 0.0
    %1503 = vmatpush1.msra.mxu0 0.0
    %1504 = vmatprep.subr.mxu0 0.0
    %1505 = vmatpush1.msra.mxu0 0.0
    %1506 = vmatprep.subr.mxu0 0.0
    %1507 = vmatpush1.msra.mxu0 0.0
    %1508 = vmatprep.subr.mxu0 0.0
    %1509 = vmatpush1.msra.mxu0 0.0
    %1510 = vmatprep.subr.mxu0 0.0
    %1511 = vmatpush1.msra.mxu0 0.0
    %1512 = vmatprep.subr.mxu0 0.0
    %1513 = vmatpush1.msra.mxu0 0.0
    %1514 = vmatprep.subr.mxu0 0.0
    %1515 = vmatpush1.msra.mxu0 0.0
    %1516 = vmatprep.subr.mxu0 0.0
    %1517 = vmatpush1.msra.mxu0 0.0
    %1518 = vmatprep.subr.mxu0 0.0
    %1519 = vmatpush1.msra.mxu0 0.0
    %1520 = vmatprep.subr.mxu0 0.0
    %1521 = vmatpush1.msra.mxu0 0.0
    %1522 = vmatprep.subr.mxu0 0.0
    %1523 = vmatpush1.msra.mxu0 0.0
    %1524 = vmatprep.subr.mxu0 0.0
    %1525 = vmatpush1.msra.mxu0 0.0
    %1526 = vmatprep.subr.mxu0 0.0
    %1527 = vmatpush1.msra.mxu0 0.0
    %1528 = vmatprep.subr.mxu0 0.0
    %1529 = vmatpush1.msra.mxu0 0.0
    %1530 = vmatprep.subr.mxu0 0.0
    %1531 = vmatpush1.msra.mxu0 0.0
    %1532 = vmatprep.subr.mxu0 0.0
    %1533 = vmatpush1.msra.mxu0 0.0
    %1534 = vmatprep.subr.mxu0 0.0
    %1535 = vmatpush1.msra.mxu0 0.0
    %1536 = vmatprep.subr.mxu0 0.0
    %1537 = vmatpush1.msra.mxu0 0.0
    %1538 = vmatprep.subr.mxu0 0.0
    %1539 = vmatpush1.msra.mxu0 0.0
    %1540 = vmatprep.subr.mxu0 0.0
    %1541 = vmatpush1.msra.mxu0 0.0
    %1542 = vmatprep.subr.mxu0 0.0
    %1543 = vmatpush1.msra.mxu0 0.0
    %1544 = vmatprep.subr.mxu0 0.0
    %1545 = vmatpush1.msra.mxu0 0.0
    %1546 = vmatprep.subr.mxu0 0.0
    %1547 = vmatpush1.msra.mxu0 0.0
    %1548 = vmatprep.subr.mxu0 0.0
    %1549 = vmatpush1.msra.mxu0 0.0
    %1550 = vmatprep.subr.mxu0 0.0
    %1551 = vmatpush1.msra.mxu0 0.0
    %1552 = vmatprep.mubr.f32.mxu0 0.0
    %1553 = vmatmul.mubr.f32.gmra.mrb[0].mxu0 %v1486
    %v1554 = vpop.f32.mrb[0].mxu0
    %v1555 = vadd.f32 0.0, %v1554
    %v1556 = vpop.f32.mrb[0].mxu0
    %1557 = vdwg.mxu0
    %1558 = vrot.lane.b32.xlu0 %v308, 112
    %v1559 = vpop.permute.xlu0 %1558
    %1560 = vrot.lane.b32.xlu0 %v387, 112
    %v1561 = vpop.permute.xlu0 %1560
    %v1562 = vsel %vm469, %v1559, 0
    %v1564 = vsel %vm469, %v1561, 0
    %1566 = vmatprep.subr.mxu0 0.0
    %1567 = vmatpush1.xpose.msra.mxu0 %v1564
    %1568 = vmatprep.subr.mxu0 0.0
    %1569 = vmatpush1.xpose.msra.mxu0 0.0
    %1570 = vmatprep.subr.mxu0 0.0
    %1571 = vmatpush1.xpose.msra.mxu0 0.0
    %1572 = vmatprep.subr.mxu0 0.0
    %1573 = vmatpush1.xpose.msra.mxu0 0.0
    %1574 = vmatprep.subr.mxu0 0.0
    %1575 = vmatpush1.xpose.msra.mxu0 0.0
    %1576 = vmatprep.subr.mxu0 0.0
    %1577 = vmatpush1.xpose.msra.mxu0 0.0
    %1578 = vmatprep.subr.mxu0 0.0
    %1579 = vmatpush1.xpose.msra.mxu0 0.0
    %1580 = vmatprep.subr.mxu0 0.0
    %1581 = vmatpush1.xpose.msra.mxu0 0.0
    %1582 = vmatprep.subr.mxu0 0.0
    %1583 = vmatpush1.xpose.msra.mxu0 0.0
    %1584 = vmatprep.subr.mxu0 0.0
    %1585 = vmatpush1.xpose.msra.mxu0 0.0
    %1586 = vmatprep.subr.mxu0 0.0
    %1587 = vmatpush1.xpose.msra.mxu0 0.0
    %1588 = vmatprep.subr.mxu0 0.0
    %1589 = vmatpush1.xpose.msra.mxu0 0.0
    %1590 = vmatprep.subr.mxu0 0.0
    %1591 = vmatpush1.xpose.msra.mxu0 0.0
    %1592 = vmatprep.subr.mxu0 0.0
    %1593 = vmatpush1.xpose.msra.mxu0 0.0
    %1594 = vmatprep.subr.mxu0 0.0
    %1595 = vmatpush1.xpose.msra.mxu0 0.0
    %1596 = vmatprep.subr.mxu0 0.0
    %1597 = vmatpush1.xpose.msra.mxu0 0.0
    %1598 = vmatprep.subr.mxu0 0.0
    %1599 = vmatpush1.xpose.msra.mxu0 0.0
    %1600 = vmatprep.subr.mxu0 0.0
    %1601 = vmatpush1.xpose.msra.mxu0 0.0
    %1602 = vmatprep.subr.mxu0 0.0
    %1603 = vmatpush1.xpose.msra.mxu0 0.0
    %1604 = vmatprep.subr.mxu0 0.0
    %1605 = vmatpush1.xpose.msra.mxu0 0.0
    %1606 = vmatprep.subr.mxu0 0.0
    %1607 = vmatpush1.xpose.msra.mxu0 0.0
    %1608 = vmatprep.subr.mxu0 0.0
    %1609 = vmatpush1.xpose.msra.mxu0 0.0
    %1610 = vmatprep.subr.mxu0 0.0
    %1611 = vmatpush1.xpose.msra.mxu0 0.0
    %1612 = vmatprep.subr.mxu0 0.0
    %1613 = vmatpush1.xpose.msra.mxu0 0.0
    %1614 = vmatprep.subr.mxu0 0.0
    %1615 = vmatpush1.xpose.msra.mxu0 0.0
    %1616 = vmatprep.subr.mxu0 0.0
    %1617 = vmatpush1.xpose.msra.mxu0 0.0
    %1618 = vmatprep.subr.mxu0 0.0
    %1619 = vmatpush1.xpose.msra.mxu0 0.0
    %1620 = vmatprep.subr.mxu0 0.0
    %1621 = vmatpush1.xpose.msra.mxu0 0.0
    %1622 = vmatprep.subr.mxu0 0.0
    %1623 = vmatpush1.xpose.msra.mxu0 0.0
    %1624 = vmatprep.subr.mxu0 0.0
    %1625 = vmatpush1.xpose.msra.mxu0 0.0
    %1626 = vmatprep.subr.mxu0 0.0
    %1627 = vmatpush1.xpose.msra.mxu0 0.0
    %1628 = vmatprep.subr.mxu0 0.0
    %1629 = vmatpush1.xpose.msra.mxu0 0.0
    %1630 = vmatprep.mubr.f32.mxu0 0.0
    %1631 = vmatmul.mubr.f32.gmra.mrb[0].mxu0 %v1562
    %v1632 = vpop.f32.mrb[0].mxu0
    %v1633 = vadd.f32 0.0, %v1632
    %v1634 = vpop.f32.mrb[0].mxu0
    %1635 = vdwg.mxu0
    %v1636 = vmul.f32 %v1633, 0.35355338
    %v1637 = vadd.f32 %v1636, %v208
    %v1638 = vsel %vm469, %v1637, -inf
    %1639 = vmax.xlane.f32.xlu0 %v1638
    %v1640 = vpop.xlane.xlu0 %1639
    %v1641 = vsub.f32 %v1637, %v1640
    %v1642 = vmul.f32 %v1641, 1.442695
    %v1643 = vpow.pop %v1642
    %v1644 = vsel %vm469, %v1643, 0.0
    %1645 = vadd.xlane.f32.xlu0 %v1644
    %v1646 = vpop.xlane.xlu0 %1645
    %v1647 = vrcp.pop %v1646
    %v1648 = vmul.f32 %v1643, %v1647
    %1649 = vrot.lane.b32.xlu0 %v466, 112
    %v1650 = vpop.permute.xlu0 %1649
    %v1653 = vsel %vm469, %v1648, 0
    %1655 = vmatprep.subr.mxu0 0.0
    %1656 = vmatpush1.msra.mxu0 %v1650
    %1657 = vmatprep.subr.mxu0 0.0
    %1658 = vmatpush1.msra.mxu0 0.0
    %1659 = vmatprep.subr.mxu0 0.0
    %1660 = vmatpush1.msra.mxu0 0.0
    %1661 = vmatprep.subr.mxu0 0.0
    %1662 = vmatpush1.msra.mxu0 0.0
    %1663 = vmatprep.subr.mxu0 0.0
    %1664 = vmatpush1.msra.mxu0 0.0
    %1665 = vmatprep.subr.mxu0 0.0
    %1666 = vmatpush1.msra.mxu0 0.0
    %1667 = vmatprep.subr.mxu0 0.0
    %1668 = vmatpush1.msra.mxu0 0.0
    %1669 = vmatprep.subr.mxu0 0.0
    %1670 = vmatpush1.msra.mxu0 0.0
    %1671 = vmatprep.subr.mxu0 0.0
    %1672 = vmatpush1.msra.mxu0 0.0
    %1673 = vmatprep.subr.mxu0 0.0
    %1674 = vmatpush1.msra.mxu0 0.0
    %1675 = vmatprep.subr.mxu0 0.0
    %1676 = vmatpush1.msra.mxu0 0.0
    %1677 = vmatprep.subr.mxu0 0.0
    %1678 = vmatpush1.msra.mxu0 0.0
    %1679 = vmatprep.subr.mxu0 0.0
    %1680 = vmatpush1.msra.mxu0 0.0
    %1681 = vmatprep.subr.mxu0 0.0
    %1682 = vmatpush1.msra.mxu0 0.0
    %1683 = vmatprep.subr.mxu0 0.0
    %1684 = vmatpush1.msra.mxu0 0.0
    %1685 = vmatprep.subr.mxu0 0.0
    %1686 = vmatpush1.msra.mxu0 0.0
    %1687 = vmatprep.subr.mxu0 0.0
    %1688 = vmatpush1.msra.mxu0 0.0
    %1689 = vmatprep.subr.mxu0 0.0
    %1690 = vmatpush1.msra.mxu0 0.0
    %1691 = vmatprep.subr.mxu0 0.0
    %1692 = vmatpush1.msra.mxu0 0.0
    %1693 = vmatprep.subr.mxu0 0.0
    %1694 = vmatpush1.msra.mxu0 0.0
    %1695 = vmatprep.subr.mxu0 0.0
    %1696 = vmatpush1.msra.mxu0 0.0
    %1697 = vmatprep.subr.mxu0 0.0
    %1698 = vmatpush1.msra.mxu0 0.0
    %1699 = vmatprep.subr.mxu0 0.0
    %1700 = vmatpush1.msra.mxu0 0.0
    %1701 = vmatprep.subr.mxu0 0.0
    %1702 = vmatpush1.msra.mxu0 0.0
    %1703 = vmatprep.subr.mxu0 0.0
    %1704 = vmatpush1.msra.mxu0 0.0
    %1705 = vmatprep.subr.mxu0 0.0
    %1706 = vmatpush1.msra.mxu0 0.0
    %1707 = vmatprep.subr.mxu0 0.0
    %1708 = vmatpush1.msra.mxu0 0.0
    %1709 = vmatprep.subr.mxu0 0.0
    %1710 = vmatpush1.msra.mxu0 0.0
    %1711 = vmatprep.subr.mxu0 0.0
    %1712 = vmatpush1.msra.mxu0 0.0
    %1713 = vmatprep.subr.mxu0 0.0
    %1714 = vmatpush1.msra.mxu0 0.0
    %1715 = vmatprep.subr.mxu0 0.0
    %1716 = vmatpush1.msra.mxu0 0.0
    %1717 = vmatprep.subr.mxu0 0.0
    %1718 = vmatpush1.msra.mxu0 0.0
    %1719 = vmatprep.mubr.f32.mxu0 0.0
    %1720 = vmatmul.mubr.f32.gmra.mrb[0].mxu0 %v1653
    %v1721 = vpop.f32.mrb[0].mxu0
    %v1722 = vadd.f32 0.0, %v1721
    %v1723 = vpop.f32.mrb[0].mxu0
    %1724 = vdwg.mxu0
    %1725 = vrot.lane.b32.xlu0 %v308, 104
    %v1726 = vpop.permute.xlu0 %1725
    %1727 = vrot.lane.b32.xlu0 %v387, 104
    %v1728 = vpop.permute.xlu0 %1727
    %v1729 = vsel %vm469, %v1726, 0
    %v1731 = vsel %vm469, %v1728, 0
    %1733 = vmatprep.subr.mxu0 0.0
    %1734 = vmatpush1.xpose.msra.mxu0 %v1731
    %1735 = vmatprep.subr.mxu0 0.0
    %1736 = vmatpush1.xpose.msra.mxu0 0.0
    %1737 = vmatprep.subr.mxu0 0.0
    %1738 = vmatpush1.xpose.msra.mxu0 0.0
    %1739 = vmatprep.subr.mxu0 0.0
    %1740 = vmatpush1.xpose.msra.mxu0 0.0
    %1741 = vmatprep.subr.mxu0 0.0
    %1742 = vmatpush1.xpose.msra.mxu0 0.0
    %1743 = vmatprep.subr.mxu0 0.0
    %1744 = vmatpush1.xpose.msra.mxu0 0.0
    %1745 = vmatprep.subr.mxu0 0.0
    %1746 = vmatpush1.xpose.msra.mxu0 0.0
    %1747 = vmatprep.subr.mxu0 0.0
    %1748 = vmatpush1.xpose.msra.mxu0 0.0
    %1749 = vmatprep.subr.mxu0 0.0
    %1750 = vmatpush1.xpose.msra.mxu0 0.0
    %1751 = vmatprep.subr.mxu0 0.0
    %1752 = vmatpush1.xpose.msra.mxu0 0.0
    %1753 = vmatprep.subr.mxu0 0.0
    %1754 = vmatpush1.xpose.msra.mxu0 0.0
    %1755 = vmatprep.subr.mxu0 0.0
    %1756 = vmatpush1.xpose.msra.mxu0 0.0
    %1757 = vmatprep.subr.mxu0 0.0
    %1758 = vmatpush1.xpose.msra.mxu0 0.0
    %1759 = vmatprep.subr.mxu0 0.0
    %1760 = vmatpush1.xpose.msra.mxu0 0.0
    %1761 = vmatprep.subr.mxu0 0.0
    %1762 = vmatpush1.xpose.msra.mxu0 0.0
    %1763 = vmatprep.subr.mxu0 0.0
    %1764 = vmatpush1.xpose.msra.mxu0 0.0
    %1765 = vmatprep.subr.mxu0 0.0
    %1766 = vmatpush1.xpose.msra.mxu0 0.0
    %1767 = vmatprep.subr.mxu0 0.0
    %1768 = vmatpush1.xpose.msra.mxu0 0.0
    %1769 = vmatprep.subr.mxu0 0.0
    %1770 = vmatpush1.xpose.msra.mxu0 0.0
    %1771 = vmatprep.subr.mxu0 0.0
    %1772 = vmatpush1.xpose.msra.mxu0 0.0
    %1773 = vmatprep.subr.mxu0 0.0
    %1774 = vmatpush1.xpose.msra.mxu0 0.0
    %1775 = vmatprep.subr.mxu0 0.0
    %1776 = vmatpush1.xpose.msra.mxu0 0.0
    %1777 = vmatprep.subr.mxu0 0.0
    %1778 = vmatpush1.xpose.msra.mxu0 0.0
    %1779 = vmatprep.subr.mxu0 0.0
    %1780 = vmatpush1.xpose.msra.mxu0 0.0
    %1781 = vmatprep.subr.mxu0 0.0
    %1782 = vmatpush1.xpose.msra.mxu0 0.0
    %1783 = vmatprep.subr.mxu0 0.0
    %1784 = vmatpush1.xpose.msra.mxu0 0.0
    %1785 = vmatprep.subr.mxu0 0.0
    %1786 = vmatpush1.xpose.msra.mxu0 0.0
    %1787 = vmatprep.subr.mxu0 0.0
    %1788 = vmatpush1.xpose.msra.mxu0 0.0
    %1789 = vmatprep.subr.mxu0 0.0
    %1790 = vmatpush1.xpose.msra.mxu0 0.0
    %1791 = vmatprep.subr.mxu0 0.0
    %1792 = vmatpush1.xpose.msra.mxu0 0.0
    %1793 = vmatprep.subr.mxu0 0.0
    %1794 = vmatpush1.xpose.msra.mxu0 0.0
    %1795 = vmatprep.subr.mxu0 0.0
    %1796 = vmatpush1.xpose.msra.mxu0 0.0
    %1797 = vmatprep.mubr.f32.mxu0 0.0
    %1798 = vmatmul.mubr.f32.gmra.mrb[0].mxu0 %v1729
    %v1799 = vpop.f32.mrb[0].mxu0
    %v1800 = vadd.f32 0.0, %v1799
    %v1801 = vpop.f32.mrb[0].mxu0
    %1802 = vdwg.mxu0
    %v1803 = vmul.f32 %v1800, 0.35355338
    %v1804 = vadd.f32 %v1803, %v208
    %v1805 = vsel %vm469, %v1804, -inf
    %1806 = vmax.xlane.f32.xlu0 %v1805
    %v1807 = vpop.xlane.xlu0 %1806
    %v1808 = vsub.f32 %v1804, %v1807
    %v1809 = vmul.f32 %v1808, 1.442695
    %v1810 = vpow.pop %v1809
    %v1811 = vsel %vm469, %v1810, 0.0
    %1812 = vadd.xlane.f32.xlu0 %v1811
    %v1813 = vpop.xlane.xlu0 %1812
    %v1814 = vrcp.pop %v1813
    %v1815 = vmul.f32 %v1810, %v1814
    %1816 = vrot.lane.b32.xlu0 %v466, 104
    %v1817 = vpop.permute.xlu0 %1816
    %v1820 = vsel %vm469, %v1815, 0
    %1822 = vmatprep.subr.mxu0 0.0
    %1823 = vmatpush1.msra.mxu0 %v1817
    %1824 = vmatprep.subr.mxu0 0.0
    %1825 = vmatpush1.msra.mxu0 0.0
    %1826 = vmatprep.subr.mxu0 0.0
    %1827 = vmatpush1.msra.mxu0 0.0
    %1828 = vmatprep.subr.mxu0 0.0
    %1829 = vmatpush1.msra.mxu0 0.0
    %1830 = vmatprep.subr.mxu0 0.0
    %1831 = vmatpush1.msra.mxu0 0.0
    %1832 = vmatprep.subr.mxu0 0.0
    %1833 = vmatpush1.msra.mxu0 0.0
    %1834 = vmatprep.subr.mxu0 0.0
    %1835 = vmatpush1.msra.mxu0 0.0
    %1836 = vmatprep.subr.mxu0 0.0
    %1837 = vmatpush1.msra.mxu0 0.0
    %1838 = vmatprep.subr.mxu0 0.0
    %1839 = vmatpush1.msra.mxu0 0.0
    %1840 = vmatprep.subr.mxu0 0.0
    %1841 = vmatpush1.msra.mxu0 0.0
    %1842 = vmatprep.subr.mxu0 0.0
    %1843 = vmatpush1.msra.mxu0 0.0
    %1844 = vmatprep.subr.mxu0 0.0
    %1845 = vmatpush1.msra.mxu0 0.0
    %1846 = vmatprep.subr.mxu0 0.0
    %1847 = vmatpush1.msra.mxu0 0.0
    %1848 = vmatprep.subr.mxu0 0.0
    %1849 = vmatpush1.msra.mxu0 0.0
    %1850 = vmatprep.subr.mxu0 0.0
    %1851 = vmatpush1.msra.mxu0 0.0
    %1852 = vmatprep.subr.mxu0 0.0
    %1853 = vmatpush1.msra.mxu0 0.0
    %1854 = vmatprep.subr.mxu0 0.0
    %1855 = vmatpush1.msra.mxu0 0.0
    %1856 = vmatprep.subr.mxu0 0.0
    %1857 = vmatpush1.msra.mxu0 0.0
    %1858 = vmatprep.subr.mxu0 0.0
    %1859 = vmatpush1.msra.mxu0 0.0
    %1860 = vmatprep.subr.mxu0 0.0
    %1861 = vmatpush1.msra.mxu0 0.0
    %1862 = vmatprep.subr.mxu0 0.0
    %1863 = vmatpush1.msra.mxu0 0.0
    %1864 = vmatprep.subr.mxu0 0.0
    %1865 = vmatpush1.msra.mxu0 0.0
    %1866 = vmatprep.subr.mxu0 0.0
    %1867 = vmatpush1.msra.mxu0 0.0
    %1868 = vmatprep.subr.mxu0 0.0
    %1869 = vmatpush1.msra.mxu0 0.0
    %1870 = vmatprep.subr.mxu0 0.0
    %1871 = vmatpush1.msra.mxu0 0.0
    %1872 = vmatprep.subr.mxu0 0.0
    %1873 = vmatpush1.msra.mxu0 0.0
    %1874 = vmatprep.subr.mxu0 0.0
    %1875 = vmatpush1.msra.mxu0 0.0
    %1876 = vmatprep.subr.mxu0 0.0
    %1877 = vmatpush1.msra.mxu0 0.0
    %1878 = vmatprep.subr.mxu0 0.0
    %1879 = vmatpush1.msra.mxu0 0.0
    %1880 = vmatprep.subr.mxu0 0.0
    %1881 = vmatpush1.msra.mxu0 0.0
    %1882 = vmatprep.subr.mxu0 0.0
    %1883 = vmatpush1.msra.mxu0 0.0
    %1884 = vmatprep.subr.mxu0 0.0
    %1885 = vmatpush1.msra.mxu0 0.0
    %1886 = vmatprep.mubr.f32.mxu0 0.0
    %1887 = vmatmul.mubr.f32.gmra.mrb[0].mxu0 %v1820
    %v1888 = vpop.f32.mrb[0].mxu0
    %v1889 = vadd.f32 0.0, %v1888
    %v1890 = vpop.f32.mrb[0].mxu0
    %1891 = vdwg.mxu0
    %1893 = vrot.lane.b32.xlu0 %v1555, 8
    %v1894 = vpop.permute.xlu0 %1893
    %1897 = vrot.lane.b32.xlu0 %v1722, 16
    %v1898 = vpop.permute.xlu0 %1897
    %1901 = vrot.lane.b32.xlu0 %v1889, 24
    %v1902 = vpop.permute.xlu0 %1901
    %v1904 = vsel %vm469, %v1387, %v1894
    %v1905 = vsel %vm1147, %v1904, %v1898
    %v1906 = vsel %vm1149, %v1905, %v1902
    %v1908 = vsel %vm165, %v1906, 0
    %1910 = vmatprep.subr.mxu0 0.0
    %1911 = vmatpush1.msra.mxu0 %v221
    %1912 = vmatprep.subr.mxu0 0.0
    %1913 = vmatpush1.msra.mxu0 %v222
    %1914 = vmatprep.subr.mxu0 0.0
    %1915 = vmatpush1.msra.mxu0 %v223
    %1916 = vmatprep.subr.mxu0 0.0
    %1917 = vmatpush1.msra.mxu0 %v224
    %1918 = vmatprep.subr.mxu0 0.0
    %1919 = vmatpush1.msra.mxu0 0.0
    %1920 = vmatprep.subr.mxu0 0.0
    %1921 = vmatpush1.msra.mxu0 0.0
    %1922 = vmatprep.subr.mxu0 0.0
    %1923 = vmatpush1.msra.mxu0 0.0
    %1924 = vmatprep.subr.mxu0 0.0
    %1925 = vmatpush1.msra.mxu0 0.0
    %1926 = vmatprep.subr.mxu0 0.0
    %1927 = vmatpush1.msra.mxu0 0.0
    %1928 = vmatprep.subr.mxu0 0.0
    %1929 = vmatpush1.msra.mxu0 0.0
    %1930 = vmatprep.subr.mxu0 0.0
    %1931 = vmatpush1.msra.mxu0 0.0
    %1932 = vmatprep.subr.mxu0 0.0
    %1933 = vmatpush1.msra.mxu0 0.0
    %1934 = vmatprep.subr.mxu0 0.0
    %1935 = vmatpush1.msra.mxu0 0.0
    %1936 = vmatprep.subr.mxu0 0.0
    %1937 = vmatpush1.msra.mxu0 0.0
    %1938 = vmatprep.subr.mxu0 0.0
    %1939 = vmatpush1.msra.mxu0 0.0
    %1940 = vmatprep.subr.mxu0 0.0
    %1941 = vmatpush1.msra.mxu0 0.0
    %1942 = vmatprep.subr.mxu0 0.0
    %1943 = vmatpush1.msra.mxu0 0.0
    %1944 = vmatprep.subr.mxu0 0.0
    %1945 = vmatpush1.msra.mxu0 0.0
    %1946 = vmatprep.subr.mxu0 0.0
    %1947 = vmatpush1.msra.mxu0 0.0
    %1948 = vmatprep.subr.mxu0 0.0
    %1949 = vmatpush1.msra.mxu0 0.0
    %1950 = vmatprep.subr.mxu0 0.0
    %1951 = vmatpush1.msra.mxu0 0.0
    %1952 = vmatprep.subr.mxu0 0.0
    %1953 = vmatpush1.msra.mxu0 0.0
    %1954 = vmatprep.subr.mxu0 0.0
    %1955 = vmatpush1.msra.mxu0 0.0
    %1956 = vmatprep.subr.mxu0 0.0
    %1957 = vmatpush1.msra.mxu0 0.0
    %1958 = vmatprep.subr.mxu0 0.0
    %1959 = vmatpush1.msra.mxu0 0.0
    %1960 = vmatprep.subr.mxu0 0.0
    %1961 = vmatpush1.msra.mxu0 0.0
    %1962 = vmatprep.subr.mxu0 0.0
    %1963 = vmatpush1.msra.mxu0 0.0
    %1964 = vmatprep.subr.mxu0 0.0
    %1965 = vmatpush1.msra.mxu0 0.0
    %1966 = vmatprep.subr.mxu0 0.0
    %1967 = vmatpush1.msra.mxu0 0.0
    %1968 = vmatprep.subr.mxu0 0.0
    %1969 = vmatpush1.msra.mxu0 0.0
    %1970 = vmatprep.subr.mxu0 0.0
    %1971 = vmatpush1.msra.mxu0 0.0
    %1972 = vmatprep.subr.mxu0 0.0
    %1973 = vmatpush1.msra.mxu0 0.0
    %1974 = vmatprep.mubr.f32.mxu0 0.0
    %1975 = vmatmul.mubr.f32.gmra.mrb[0].mxu0 %v1908
    %v1976 = vpop.f32.mrb[0].mxu0
    %v1977 = vadd.f32 %v1154, %v1976
    %v1978 = vpop.f32.mrb[0].mxu0
    %1979 = vdwg.mxu0
    %v1980 = vld [vmem:[%s1] sm:$0xff]
    %v1981 = vld [vmem:[%s1 + $0x8] sm:$0xff]
    %v1982 = vld [vmem:[%s1 + $0x10] sm:$0xff]
    %v1983 = vld [vmem:[%s1 + $0x18] sm:$0xff]
    %s1984 = scalar_lea.vmem %s4, 128
    %v1985 = vld [vmem:[%s1984] sm:$0xff]
    %v1986 = vld [vmem:[%s1984 + $0x8] sm:$0xff]
    %v1987 = vld [vmem:[%s1984 + $0x10] sm:$0xff]
    %v1988 = vld [vmem:[%s1984 + $0x18] sm:$0xff]
    %v1989 = vld [vmem:[%s1984 + $0x20] sm:$0xff]
    %v1990 = vld [vmem:[%s1984 + $0x28] sm:$0xff]
    %v1991 = vld [vmem:[%s1984 + $0x30] sm:$0xff]
    %v1992 = vld [vmem:[%s1984 + $0x38] sm:$0xff]
    %v1993 = vld [vmem:[%s1984 + $0x40] sm:$0xff]
    %v1994 = vld [vmem:[%s1984 + $0x48] sm:$0xff]
    %v1995 = vld [vmem:[%s1984 + $0x50] sm:$0xff]
    %v1996 = vld [vmem:[%s1984 + $0x58] sm:$0xff]
    %v1997 = vld [vmem:[%s1984 + $0x60] sm:$0xff]
    %v1998 = vld [vmem:[%s1984 + $0x68] sm:$0xff]
    %v1999 = vld [vmem:[%s1984 + $0x70] sm:$0xff]
    %v2000 = vld [vmem:[%s1984 + $0x78] sm:$0xff]
    %s2001 = scalar_lea.vmem %s5, 4
    %v2002 = vld [vmem:[%s2001] sm:$0xf]
    %v2003 = vlaneseq
    %v2004 = vshrl.u32 %v2003, 7
    %v2005 = vsub.s32 0, %v2004
    %v2006 = vrot.slane %v2002, %v2005
    %v2008 = vsel %vm165, %v1225, 0
    %v2011 = vsel %vm165, %v1977, 0
    %2013 = vmatprep.subr.mxu0 0.0
    %2014 = vmatpush1.msra.mxu0 %v1985
    %2015 = vmatprep.subr.mxu0 0.0
    %2016 = vmatpush1.msra.mxu0 %v1986
    %2017 = vmatprep.subr.mxu0 0.0
    %2018 = vmatpush1.msra.mxu0 %v1987
    %2019 = vmatprep.subr.mxu0 0.0
    %2020 = vmatpush1.msra.mxu0 %v1988
    %2021 = vmatprep.subr.mxu0 0.0
    %2022 = vmatpush1.msra.mxu0 0.0
    %2023 = vmatprep.subr.mxu0 0.0
    %2024 = vmatpush1.msra.mxu0 0.0
    %2025 = vmatprep.subr.mxu0 0.0
    %2026 = vmatpush1.msra.mxu0 0.0
    %2027 = vmatprep.subr.mxu0 0.0
    %2028 = vmatpush1.msra.mxu0 0.0
    %2029 = vmatprep.subr.mxu0 0.0
    %2030 = vmatpush1.msra.mxu0 0.0
    %2031 = vmatprep.subr.mxu0 0.0
    %2032 = vmatpush1.msra.mxu0 0.0
    %2033 = vmatprep.subr.mxu0 0.0
    %2034 = vmatpush1.msra.mxu0 0.0
    %2035 = vmatprep.subr.mxu0 0.0
    %2036 = vmatpush1.msra.mxu0 0.0
    %2037 = vmatprep.subr.mxu0 0.0
    %2038 = vmatpush1.msra.mxu0 0.0
    %2039 = vmatprep.subr.mxu0 0.0
    %2040 = vmatpush1.msra.mxu0 0.0
    %2041 = vmatprep.subr.mxu0 0.0
    %2042 = vmatpush1.msra.mxu0 0.0
    %2043 = vmatprep.subr.mxu0 0.0
    %2044 = vmatpush1.msra.mxu0 0.0
    %2045 = vmatprep.subr.mxu0 0.0
    %2046 = vmatpush1.msra.mxu0 0.0
    %2047 = vmatprep.subr.mxu0 0.0
    %2048 = vmatpush1.msra.mxu0 0.0
    %2049 = vmatprep.subr.mxu0 0.0
    %2050 = vmatpush1.msra.mxu0 0.0
    %2051 = vmatprep.subr.mxu0 0.0
    %2052 = vmatpush1.msra.mxu0 0.0
    %2053 = vmatprep.subr.mxu0 0.0
    %2054 = vmatpush1.msra.mxu0 0.0
    %2055 = vmatprep.subr.mxu0 0.0
    %2056 = vmatpush1.msra.mxu0 0.0
    %2057 = vmatprep.subr.mxu0 0.0
    %2058 = vmatpush1.msra.mxu0 0.0
    %2059 = vmatprep.subr.mxu0 0.0
    %2060 = vmatpush1.msra.mxu0 0.0
    %2061 = vmatprep.subr.mxu0 0.0
    %2062 = vmatpush1.msra.mxu0 0.0
    %2063 = vmatprep.subr.mxu0 0.0
    %2064 = vmatpush1.msra.mxu0 0.0
    %2065 = vmatprep.subr.mxu0 0.0
    %2066 = vmatpush1.msra.mxu0 0.0
    %2067 = vmatprep.subr.mxu0 0.0
    %2068 = vmatpush1.msra.mxu0 0.0
    %2069 = vmatprep.subr.mxu0 0.0
    %2070 = vmatpush1.msra.mxu0 0.0
    %2071 = vmatprep.subr.mxu0 0.0
    %2072 = vmatpush1.msra.mxu0 0.0
    %2073 = vmatprep.subr.mxu0 0.0
    %2074 = vmatpush1.msra.mxu0 0.0
    %2075 = vmatprep.subr.mxu0 0.0
    %2076 = vmatpush1.msra.mxu0 0.0
    %2077 = vmatprep.mubr.f32.mxu0 0.0
    %2078 = vmatmul.mubr.f32.gmra.mrb[0].mxu0 %v2008
    %v2079 = vpop.f32.mrb[0].mxu0
    %v2080 = vadd.f32 %v2006, %v2079
    %v2081 = vpop.f32.mrb[0].mxu0
    %2082 = vmatprep.mubr.f32.mxu0 0.0
    %2083 = vmatmul.mubr.f32.gmra.mrb[0].mxu0 %v2011
    %v2084 = vpop.f32.mrb[0].mxu0
    %v2085 = vadd.f32 %v2006, %v2084
    %v2086 = vpop.f32.mrb[0].mxu0
    %2087 = vdwg.mxu0
    %v2088 = vlaneseq
    %v2089 = vshrl.u32 %v2088, 7
    %v2090 = vsub.s32 1, %v2089
    %v2091 = vrot.slane %v2002, %v2090
    %v2093 = vsel %vm165, %v1980, 0
    %v2096 = vsel %vm165, %v1981, 0
    %v2099 = vsel %vm165, %v1982, 0
    %v2102 = vsel %vm165, %v1983, 0
    %2104 = vmatprep.subr.mxu0 0.0
    %2105 = vmatpush1.msra.mxu0 %v1989
    %2106 = vmatprep.subr.mxu0 0.0
    %2107 = vmatpush1.msra.mxu0 %v1990
    %2108 = vmatprep.subr.mxu0 0.0
    %2109 = vmatpush1.msra.mxu0 %v1991
    %2110 = vmatprep.subr.mxu0 0.0
    %2111 = vmatpush1.msra.mxu0 %v1992
    %2112 = vmatprep.subr.mxu0 0.0
    %2113 = vmatpush1.msra.mxu0 0.0
    %2114 = vmatprep.subr.mxu0 0.0
    %2115 = vmatpush1.msra.mxu0 0.0
    %2116 = vmatprep.subr.mxu0 0.0
    %2117 = vmatpush1.msra.mxu0 0.0
    %2118 = vmatprep.subr.mxu0 0.0
    %2119 = vmatpush1.msra.mxu0 0.0
    %2120 = vmatprep.subr.mxu0 0.0
    %2121 = vmatpush1.msra.mxu0 0.0
    %2122 = vmatprep.subr.mxu0 0.0
    %2123 = vmatpush1.msra.mxu0 0.0
    %2124 = vmatprep.subr.mxu0 0.0
    %2125 = vmatpush1.msra.mxu0 0.0
    %2126 = vmatprep.subr.mxu0 0.0
    %2127 = vmatpush1.msra.mxu0 0.0
    %2128 = vmatprep.subr.mxu0 0.0
    %2129 = vmatpush1.msra.mxu0 0.0
    %2130 = vmatprep.subr.mxu0 0.0
    %2131 = vmatpush1.msra.mxu0 0.0
    %2132 = vmatprep.subr.mxu0 0.0
    %2133 = vmatpush1.msra.mxu0 0.0
    %2134 = vmatprep.subr.mxu0 0.0
    %2135 = vmatpush1.msra.mxu0 0.0
    %2136 = vmatprep.subr.mxu0 0.0
    %2137 = vmatpush1.msra.mxu0 0.0
    %2138 = vmatprep.subr.mxu0 0.0
    %2139 = vmatpush1.msra.mxu0 0.0
    %2140 = vmatprep.subr.mxu0 0.0
    %2141 = vmatpush1.msra.mxu0 0.0
    %2142 = vmatprep.subr.mxu0 0.0
    %2143 = vmatpush1.msra.mxu0 0.0
    %2144 = vmatprep.subr.mxu0 0.0
    %2145 = vmatpush1.msra.mxu0 0.0
    %2146 = vmatprep.subr.mxu0 0.0
    %2147 = vmatpush1.msra.mxu0 0.0
    %2148 = vmatprep.subr.mxu0 0.0
    %2149 = vmatpush1.msra.mxu0 0.0
    %2150 = vmatprep.subr.mxu0 0.0
    %2151 = vmatpush1.msra.mxu0 0.0
    %2152 = vmatprep.subr.mxu0 0.0
    %2153 = vmatpush1.msra.mxu0 0.0
    %2154 = vmatprep.subr.mxu0 0.0
    %2155 = vmatpush1.msra.mxu0 0.0
    %2156 = vmatprep.subr.mxu0 0.0
    %2157 = vmatpush1.msra.mxu0 0.0
    %2158 = vmatprep.subr.mxu0 0.0
    %2159 = vmatpush1.msra.mxu0 0.0
    %2160 = vmatprep.subr.mxu0 0.0
    %2161 = vmatpush1.msra.mxu0 0.0
    %2162 = vmatprep.subr.mxu0 0.0
    %2163 = vmatpush1.msra.mxu0 0.0
    %2164 = vmatprep.subr.mxu0 0.0
    %2165 = vmatpush1.msra.mxu0 0.0
    %2166 = vmatprep.subr.mxu0 0.0
    %2167 = vmatpush1.msra.mxu0 0.0
    %2168 = vmatprep.mubr.f32.mxu0 0.0
    %2169 = vmatmul.mubr.f32.gmra.mrb[0].mxu0 %v2093
    %v2170 = vpop.f32.mrb[0].mxu0
    %v2171 = vadd.f32 %v2091, %v2170
    %v2172 = vpop.f32.mrb[0].mxu0
    %2173 = vmatprep.mubr.f32.mxu0 0.0
    %2174 = vmatmul.mubr.f32.gmra.mrb[0].mxu0 %v2096
    %v2175 = vpop.f32.mrb[0].mxu0
    %v2176 = vadd.f32 %v2091, %v2175
    %v2177 = vpop.f32.mrb[0].mxu0
    %2178 = vmatprep.mubr.f32.mxu0 0.0
    %2179 = vmatmul.mubr.f32.gmra.mrb[0].mxu0 %v2099
    %v2180 = vpop.f32.mrb[0].mxu0
    %v2181 = vadd.f32 %v2091, %v2180
    %v2182 = vpop.f32.mrb[0].mxu0
    %2183 = vmatprep.mubr.f32.mxu0 0.0
    %2184 = vmatmul.mubr.f32.gmra.mrb[0].mxu0 %v2102
    %v2185 = vpop.f32.mrb[0].mxu0
    %v2186 = vadd.f32 %v2091, %v2185
    %v2187 = vpop.f32.mrb[0].mxu0
    %2188 = vdwg.mxu0
    %v2189 = vlaneseq
    %v2190 = vshrl.u32 %v2189, 7
    %v2191 = vsub.s32 2, %v2190
    %v2192 = vrot.slane %v2002, %v2191
    %2193 = vmatprep.subr.mxu0 0.0
    %2194 = vmatpush1.msra.mxu0 %v1993
    %2195 = vmatprep.subr.mxu0 0.0
    %2196 = vmatpush1.msra.mxu0 %v1994
    %2197 = vmatprep.subr.mxu0 0.0
    %2198 = vmatpush1.msra.mxu0 %v1995
    %2199 = vmatprep.subr.mxu0 0.0
    %2200 = vmatpush1.msra.mxu0 %v1996
    %2201 = vmatprep.subr.mxu0 0.0
    %2202 = vmatpush1.msra.mxu0 0.0
    %2203 = vmatprep.subr.mxu0 0.0
    %2204 = vmatpush1.msra.mxu0 0.0
    %2205 = vmatprep.subr.mxu0 0.0
    %2206 = vmatpush1.msra.mxu0 0.0
    %2207 = vmatprep.subr.mxu0 0.0
    %2208 = vmatpush1.msra.mxu0 0.0
    %2209 = vmatprep.subr.mxu0 0.0
    %2210 = vmatpush1.msra.mxu0 0.0
    %2211 = vmatprep.subr.mxu0 0.0
    %2212 = vmatpush1.msra.mxu0 0.0
    %2213 = vmatprep.subr.mxu0 0.0
    %2214 = vmatpush1.msra.mxu0 0.0
    %2215 = vmatprep.subr.mxu0 0.0
    %2216 = vmatpush1.msra.mxu0 0.0
    %2217 = vmatprep.subr.mxu0 0.0
    %2218 = vmatpush1.msra.mxu0 0.0
    %2219 = vmatprep.subr.mxu0 0.0
    %2220 = vmatpush1.msra.mxu0 0.0
    %2221 = vmatprep.subr.mxu0 0.0
    %2222 = vmatpush1.msra.mxu0 0.0
    %2223 = vmatprep.subr.mxu0 0.0
    %2224 = vmatpush1.msra.mxu0 0.0
    %2225 = vmatprep.subr.mxu0 0.0
    %2226 = vmatpush1.msra.mxu0 0.0
    %2227 = vmatprep.subr.mxu0 0.0
    %2228 = vmatpush1.msra.mxu0 0.0
    %2229 = vmatprep.subr.mxu0 0.0
    %2230 = vmatpush1.msra.mxu0 0.0
    %2231 = vmatprep.subr.mxu0 0.0
    %2232 = vmatpush1.msra.mxu0 0.0
    %2233 = vmatprep.subr.mxu0 0.0
    %2234 = vmatpush1.msra.mxu0 0.0
    %2235 = vmatprep.subr.mxu0 0.0
    %2236 = vmatpush1.msra.mxu0 0.0
    %2237 = vmatprep.subr.mxu0 0.0
    %2238 = vmatpush1.msra.mxu0 0.0
    %2239 = vmatprep.subr.mxu0 0.0
    %2240 = vmatpush1.msra.mxu0 0.0
    %2241 = vmatprep.subr.mxu0 0.0
    %2242 = vmatpush1.msra.mxu0 0.0
    %2243 = vmatprep.subr.mxu0 0.0
    %2244 = vmatpush1.msra.mxu0 0.0
    %2245 = vmatprep.subr.mxu0 0.0
    %2246 = vmatpush1.msra.mxu0 0.0
    %2247 = vmatprep.subr.mxu0 0.0
    %2248 = vmatpush1.msra.mxu0 0.0
    %2249 = vmatprep.subr.mxu0 0.0
    %2250 = vmatpush1.msra.mxu0 0.0
    %2251 = vmatprep.subr.mxu0 0.0
    %2252 = vmatpush1.msra.mxu0 0.0
    %2253 = vmatprep.subr.mxu0 0.0
    %2254 = vmatpush1.msra.mxu0 0.0
    %2255 = vmatprep.subr.mxu0 0.0
    %2256 = vmatpush1.msra.mxu0 0.0
    %2257 = vmatprep.mubr.f32.mxu0 0.0
    %2258 = vmatmul.mubr.f32.gmra.mrb[0].mxu0 %v2093
    %v2259 = vpop.f32.mrb[0].mxu0
    %v2260 = vadd.f32 %v2192, %v2259
    %v2261 = vpop.f32.mrb[0].mxu0
    %2262 = vmatprep.mubr.f32.mxu0 0.0
    %2263 = vmatmul.mubr.f32.gmra.mrb[0].mxu0 %v2096
    %v2264 = vpop.f32.mrb[0].mxu0
    %v2265 = vadd.f32 %v2192, %v2264
    %v2266 = vpop.f32.mrb[0].mxu0
    %2267 = vmatprep.mubr.f32.mxu0 0.0
    %2268 = vmatmul.mubr.f32.gmra.mrb[0].mxu0 %v2099
    %v2269 = vpop.f32.mrb[0].mxu0
    %v2270 = vadd.f32 %v2192, %v2269
    %v2271 = vpop.f32.mrb[0].mxu0
    %2272 = vmatprep.mubr.f32.mxu0 0.0
    %2273 = vmatmul.mubr.f32.gmra.mrb[0].mxu0 %v2102
    %v2274 = vpop.f32.mrb[0].mxu0
    %v2275 = vadd.f32 %v2192, %v2274
    %v2276 = vpop.f32.mrb[0].mxu0
    %2277 = vdwg.mxu0
    %v2279 = vsel %vm469, %v2080, 0
    %v2282 = vsel %vm469, %v2171, 0
    %v2285 = vsel %vm469, %v2176, 0
    %2287 = vmatprep.subr.mxu0 0.0
    %2288 = vmatpush1.xpose.msra.mxu0 %v2282
    %2289 = vmatprep.subr.mxu0 0.0
    %2290 = vmatpush1.xpose.msra.mxu0 %v2285
    %2291 = vmatprep.subr.mxu0 0.0
    %2292 = vmatpush1.xpose.msra.mxu0 0.0
    %2293 = vmatprep.subr.mxu0 0.0
    %2294 = vmatpush1.xpose.msra.mxu0 0.0
    %2295 = vmatprep.subr.mxu0 0.0
    %2296 = vmatpush1.xpose.msra.mxu0 0.0
    %2297 = vmatprep.subr.mxu0 0.0
    %2298 = vmatpush1.xpose.msra.mxu0 0.0
    %2299 = vmatprep.subr.mxu0 0.0
    %2300 = vmatpush1.xpose.msra.mxu0 0.0
    %2301 = vmatprep.subr.mxu0 0.0
    %2302 = vmatpush1.xpose.msra.mxu0 0.0
    %2303 = vmatprep.subr.mxu0 0.0
    %2304 = vmatpush1.xpose.msra.mxu0 0.0
    %2305 = vmatprep.subr.mxu0 0.0
    %2306 = vmatpush1.xpose.msra.mxu0 0.0
    %2307 = vmatprep.subr.mxu0 0.0
    %2308 = vmatpush1.xpose.msra.mxu0 0.0
    %2309 = vmatprep.subr.mxu0 0.0
    %2310 = vmatpush1.xpose.msra.mxu0 0.0
    %2311 = vmatprep.subr.mxu0 0.0
    %2312 = vmatpush1.xpose.msra.mxu0 0.0
    %2313 = vmatprep.subr.mxu0 0.0
    %2314 = vmatpush1.xpose.msra.mxu0 0.0
    %2315 = vmatprep.subr.mxu0 0.0
    %2316 = vmatpush1.xpose.msra.mxu0 0.0
    %2317 = vmatprep.subr.mxu0 0.0
    %2318 = vmatpush1.xpose.msra.mxu0 0.0
    %2319 = vmatprep.subr.mxu0 0.0
    %2320 = vmatpush1.xpose.msra.mxu0 0.0
    %2321 = vmatprep.subr.mxu0 0.0
    %2322 = vmatpush1.xpose.msra.mxu0 0.0
    %2323 = vmatprep.subr.mxu0 0.0
    %2324 = vmatpush1.xpose.msra.mxu0 0.0
    %2325 = vmatprep.subr.mxu0 0.0
    %2326 = vmatpush1.xpose.msra.mxu0 0.0
    %2327 = vmatprep.subr.mxu0 0.0
    %2328 = vmatpush1.xpose.msra.mxu0 0.0
    %2329 = vmatprep.subr.mxu0 0.0
    %2330 = vmatpush1.xpose.msra.mxu0 0.0
    %2331 = vmatprep.subr.mxu0 0.0
    %2332 = vmatpush1.xpose.msra.mxu0 0.0
    %2333 = vmatprep.subr.mxu0 0.0
    %2334 = vmatpush1.xpose.msra.mxu0 0.0
    %2335 = vmatprep.subr.mxu0 0.0
    %2336 = vmatpush1.xpose.msra.mxu0 0.0
    %2337 = vmatprep.subr.mxu0 0.0
    %2338 = vmatpush1.xpose.msra.mxu0 0.0
    %2339 = vmatprep.subr.mxu0 0.0
    %2340 = vmatpush1.xpose.msra.mxu0 0.0
    %2341 = vmatprep.subr.mxu0 0.0
    %2342 = vmatpush1.xpose.msra.mxu0 0.0
    %2343 = vmatprep.subr.mxu0 0.0
    %2344 = vmatpush1.xpose.msra.mxu0 0.0
    %2345 = vmatprep.subr.mxu0 0.0
    %2346 = vmatpush1.xpose.msra.mxu0 0.0
    %2347 = vmatprep.subr.mxu0 0.0
    %2348 = vmatpush1.xpose.msra.mxu0 0.0
    %2349 = vmatprep.subr.mxu0 0.0
    %2350 = vmatpush1.xpose.msra.mxu0 0.0
    %2351 = vmatprep.mubr.f32.mxu0 0.0
    %2352 = vmatmul.mubr.f32.gmra.mrb[0].mxu0 %v2279
    %v2353 = vpop.f32.mrb[0].mxu0
    %v2354 = vadd.f32 0.0, %v2353
    %v2355 = vpop.f32.mrb[0].mxu0
    %2356 = vdwg.mxu0
    %v2357 = vmul.f32 %v2354, 0.35355338
    %v2358 = vsel %vm1147, %v2357, -inf
    %2359 = vmax.xlane.f32.xlu0 %v2358
    %v2360 = vpop.xlane.xlu0 %2359
    %v2361 = vsub.f32 %v2357, %v2360
    %v2362 = vmul.f32 %v2361, 1.442695
    %v2363 = vpow.pop %v2362
    %v2364 = vsel %vm1147, %v2363, 0.0
    %2365 = vadd.xlane.f32.xlu0 %v2364
    %v2366 = vpop.xlane.xlu0 %2365
    %v2367 = vrcp.pop %v2366
    %v2368 = vmul.f32 %v2363, %v2367
    %v2370 = vsel %vm1147, %v2368, 0
    %2372 = vmatprep.subr.mxu0 0.0
    %2373 = vmatpush1.msra.mxu0 %v2260
    %2374 = vmatprep.subr.mxu0 0.0
    %2375 = vmatpush1.msra.mxu0 %v2265
    %2376 = vmatprep.subr.mxu0 0.0
    %2377 = vmatpush1.msra.mxu0 0.0
    %2378 = vmatprep.subr.mxu0 0.0
    %2379 = vmatpush1.msra.mxu0 0.0
    %2380 = vmatprep.subr.mxu0 0.0
    %2381 = vmatpush1.msra.mxu0 0.0
    %2382 = vmatprep.subr.mxu0 0.0
    %2383 = vmatpush1.msra.mxu0 0.0
    %2384 = vmatprep.subr.mxu0 0.0
    %2385 = vmatpush1.msra.mxu0 0.0
    %2386 = vmatprep.subr.mxu0 0.0
    %2387 = vmatpush1.msra.mxu0 0.0
    %2388 = vmatprep.subr.mxu0 0.0
    %2389 = vmatpush1.msra.mxu0 0.0
    %2390 = vmatprep.subr.mxu0 0.0
    %2391 = vmatpush1.msra.mxu0 0.0
    %2392 = vmatprep.subr.mxu0 0.0
    %2393 = vmatpush1.msra.mxu0 0.0
    %2394 = vmatprep.subr.mxu0 0.0
    %2395 = vmatpush1.msra.mxu0 0.0
    %2396 = vmatprep.subr.mxu0 0.0
    %2397 = vmatpush1.msra.mxu0 0.0
    %2398 = vmatprep.subr.mxu0 0.0
    %2399 = vmatpush1.msra.mxu0 0.0
    %2400 = vmatprep.subr.mxu0 0.0
    %2401 = vmatpush1.msra.mxu0 0.0
    %2402 = vmatprep.subr.mxu0 0.0
    %2403 = vmatpush1.msra.mxu0 0.0
    %2404 = vmatprep.subr.mxu0 0.0
    %2405 = vmatpush1.msra.mxu0 0.0
    %2406 = vmatprep.subr.mxu0 0.0
    %2407 = vmatpush1.msra.mxu0 0.0
    %2408 = vmatprep.subr.mxu0 0.0
    %2409 = vmatpush1.msra.mxu0 0.0
    %2410 = vmatprep.subr.mxu0 0.0
    %2411 = vmatpush1.msra.mxu0 0.0
    %2412 = vmatprep.subr.mxu0 0.0
    %2413 = vmatpush1.msra.mxu0 0.0
    %2414 = vmatprep.subr.mxu0 0.0
    %2415 = vmatpush1.msra.mxu0 0.0
    %2416 = vmatprep.subr.mxu0 0.0
    %2417 = vmatpush1.msra.mxu0 0.0
    %2418 = vmatprep.subr.mxu0 0.0
    %2419 = vmatpush1.msra.mxu0 0.0
    %2420 = vmatprep.subr.mxu0 0.0
    %2421 = vmatpush1.msra.mxu0 0.0
    %2422 = vmatprep.subr.mxu0 0.0
    %2423 = vmatpush1.msra.mxu0 0.0
    %2424 = vmatprep.subr.mxu0 0.0
    %2425 = vmatpush1.msra.mxu0 0.0
    %2426 = vmatprep.subr.mxu0 0.0
    %2427 = vmatpush1.msra.mxu0 0.0
    %2428 = vmatprep.subr.mxu0 0.0
    %2429 = vmatpush1.msra.mxu0 0.0
    %2430 = vmatprep.subr.mxu0 0.0
    %2431 = vmatpush1.msra.mxu0 0.0
    %2432 = vmatprep.subr.mxu0 0.0
    %2433 = vmatpush1.msra.mxu0 0.0
    %2434 = vmatprep.subr.mxu0 0.0
    %2435 = vmatpush1.msra.mxu0 0.0
    %2436 = vmatprep.mubr.f32.mxu0 0.0
    %2437 = vmatmul.mubr.f32.gmra.mrb[0].mxu0 %v2370
    %v2438 = vpop.f32.mrb[0].mxu0
    %v2439 = vadd.f32 0.0, %v2438
    %v2440 = vpop.f32.mrb[0].mxu0
    %2441 = vdwg.mxu0
    %2442 = vrot.lane.b32.xlu0 %v2080, 120
    %v2443 = vpop.permute.xlu0 %2442
    %2444 = vrot.lane.b32.xlu0 %v2171, 120
    %v2445 = vpop.permute.xlu0 %2444
    %2446 = vrot.lane.b32.xlu0 %v2176, 120
    %v2447 = vpop.permute.xlu0 %2446
    %v2448 = vsel %vm469, %v2443, 0
    %v2450 = vsel %vm469, %v2445, 0
    %v2452 = vsel %vm469, %v2447, 0
    %2454 = vmatprep.subr.mxu0 0.0
    %2455 = vmatpush1.xpose.msra.mxu0 %v2450
    %2456 = vmatprep.subr.mxu0 0.0
    %2457 = vmatpush1.xpose.msra.mxu0 %v2452
    %2458 = vmatprep.subr.mxu0 0.0
    %2459 = vmatpush1.xpose.msra.mxu0 0.0
    %2460 = vmatprep.subr.mxu0 0.0
    %2461 = vmatpush1.xpose.msra.mxu0 0.0
    %2462 = vmatprep.subr.mxu0 0.0
    %2463 = vmatpush1.xpose.msra.mxu0 0.0
    %2464 = vmatprep.subr.mxu0 0.0
    %2465 = vmatpush1.xpose.msra.mxu0 0.0
    %2466 = vmatprep.subr.mxu0 0.0
    %2467 = vmatpush1.xpose.msra.mxu0 0.0
    %2468 = vmatprep.subr.mxu0 0.0
    %2469 = vmatpush1.xpose.msra.mxu0 0.0
    %2470 = vmatprep.subr.mxu0 0.0
    %2471 = vmatpush1.xpose.msra.mxu0 0.0
    %2472 = vmatprep.subr.mxu0 0.0
    %2473 = vmatpush1.xpose.msra.mxu0 0.0
    %2474 = vmatprep.subr.mxu0 0.0
    %2475 = vmatpush1.xpose.msra.mxu0 0.0
    %2476 = vmatprep.subr.mxu0 0.0
    %2477 = vmatpush1.xpose.msra.mxu0 0.0
    %2478 = vmatprep.subr.mxu0 0.0
    %2479 = vmatpush1.xpose.msra.mxu0 0.0
    %2480 = vmatprep.subr.mxu0 0.0
    %2481 = vmatpush1.xpose.msra.mxu0 0.0
    %2482 = vmatprep.subr.mxu0 0.0
    %2483 = vmatpush1.xpose.msra.mxu0 0.0
    %2484 = vmatprep.subr.mxu0 0.0
    %2485 = vmatpush1.xpose.msra.mxu0 0.0
    %2486 = vmatprep.subr.mxu0 0.0
    %2487 = vmatpush1.xpose.msra.mxu0 0.0
    %2488 = vmatprep.subr.mxu0 0.0
    %2489 = vmatpush1.xpose.msra.mxu0 0.0
    %2490 = vmatprep.subr.mxu0 0.0
    %2491 = vmatpush1.xpose.msra.mxu0 0.0
    %2492 = vmatprep.subr.mxu0 0.0
    %2493 = vmatpush1.xpose.msra.mxu0 0.0
    %2494 = vmatprep.subr.mxu0 0.0
    %2495 = vmatpush1.xpose.msra.mxu0 0.0
    %2496 = vmatprep.subr.mxu0 0.0
    %2497 = vmatpush1.xpose.msra.mxu0 0.0
    %2498 = vmatprep.subr.mxu0 0.0
    %2499 = vmatpush1.xpose.msra.mxu0 0.0
    %2500 = vmatprep.subr.mxu0 0.0
    %2501 = vmatpush1.xpose.msra.mxu0 0.0
    %2502 = vmatprep.subr.mxu0 0.0
    %2503 = vmatpush1.xpose.msra.mxu0 0.0
    %2504 = vmatprep.subr.mxu0 0.0
    %2505 = vmatpush1.xpose.msra.mxu0 0.0
    %2506 = vmatprep.subr.mxu0 0.0
    %2507 = vmatpush1.xpose.msra.mxu0 0.0
    %2508 = vmatprep.subr.mxu0 0.0
    %2509 = vmatpush1.xpose.msra.mxu0 0.0
    %2510 = vmatprep.subr.mxu0 0.0
    %2511 = vmatpush1.xpose.msra.mxu0 0.0
    %2512 = vmatprep.subr.mxu0 0.0
    %2513 = vmatpush1.xpose.msra.mxu0 0.0
    %2514 = vmatprep.subr.mxu0 0.0
    %2515 = vmatpush1.xpose.msra.mxu0 0.0
    %2516 = vmatprep.subr.mxu0 0.0
    %2517 = vmatpush1.xpose.msra.mxu0 0.0
    %2518 = vmatprep.mubr.f32.mxu0 0.0
    %2519 = vmatmul.mubr.f32.gmra.mrb[0].mxu0 %v2448
    %v2520 = vpop.f32.mrb[0].mxu0
    %v2521 = vadd.f32 0.0, %v2520
    %v2522 = vpop.f32.mrb[0].mxu0
    %2523 = vdwg.mxu0
    %v2524 = vmul.f32 %v2521, 0.35355338
    %v2525 = vsel %vm1147, %v2524, -inf
    %2526 = vmax.xlane.f32.xlu0 %v2525
    %v2527 = vpop.xlane.xlu0 %2526
    %v2528 = vsub.f32 %v2524, %v2527
    %v2529 = vmul.f32 %v2528, 1.442695
    %v2530 = vpow.pop %v2529
    %v2531 = vsel %vm1147, %v2530, 0.0
    %2532 = vadd.xlane.f32.xlu0 %v2531
    %v2533 = vpop.xlane.xlu0 %2532
    %v2534 = vrcp.pop %v2533
    %v2535 = vmul.f32 %v2530, %v2534
    %2538 = vrot.lane.b32.xlu0 %v2260, 120
    %v2539 = vpop.permute.xlu0 %2538
    %2540 = vrot.lane.b32.xlu0 %v2265, 120
    %v2541 = vpop.permute.xlu0 %2540
    %v2545 = vsel %vm1147, %v2535, 0
    %2547 = vmatprep.subr.mxu0 0.0
    %2548 = vmatpush1.msra.mxu0 %v2539
    %2549 = vmatprep.subr.mxu0 0.0
    %2550 = vmatpush1.msra.mxu0 %v2541
    %2551 = vmatprep.subr.mxu0 0.0
    %2552 = vmatpush1.msra.mxu0 0.0
    %2553 = vmatprep.subr.mxu0 0.0
    %2554 = vmatpush1.msra.mxu0 0.0
    %2555 = vmatprep.subr.mxu0 0.0
    %2556 = vmatpush1.msra.mxu0 0.0
    %2557 = vmatprep.subr.mxu0 0.0
    %2558 = vmatpush1.msra.mxu0 0.0
    %2559 = vmatprep.subr.mxu0 0.0
    %2560 = vmatpush1.msra.mxu0 0.0
    %2561 = vmatprep.subr.mxu0 0.0
    %2562 = vmatpush1.msra.mxu0 0.0
    %2563 = vmatprep.subr.mxu0 0.0
    %2564 = vmatpush1.msra.mxu0 0.0
    %2565 = vmatprep.subr.mxu0 0.0
    %2566 = vmatpush1.msra.mxu0 0.0
    %2567 = vmatprep.subr.mxu0 0.0
    %2568 = vmatpush1.msra.mxu0 0.0
    %2569 = vmatprep.subr.mxu0 0.0
    %2570 = vmatpush1.msra.mxu0 0.0
    %2571 = vmatprep.subr.mxu0 0.0
    %2572 = vmatpush1.msra.mxu0 0.0
    %2573 = vmatprep.subr.mxu0 0.0
    %2574 = vmatpush1.msra.mxu0 0.0
    %2575 = vmatprep.subr.mxu0 0.0
    %2576 = vmatpush1.msra.mxu0 0.0
    %2577 = vmatprep.subr.mxu0 0.0
    %2578 = vmatpush1.msra.mxu0 0.0
    %2579 = vmatprep.subr.mxu0 0.0
    %2580 = vmatpush1.msra.mxu0 0.0
    %2581 = vmatprep.subr.mxu0 0.0
    %2582 = vmatpush1.msra.mxu0 0.0
    %2583 = vmatprep.subr.mxu0 0.0
    %2584 = vmatpush1.msra.mxu0 0.0
    %2585 = vmatprep.subr.mxu0 0.0
    %2586 = vmatpush1.msra.mxu0 0.0
    %2587 = vmatprep.subr.mxu0 0.0
    %2588 = vmatpush1.msra.mxu0 0.0
    %2589 = vmatprep.subr.mxu0 0.0
    %2590 = vmatpush1.msra.mxu0 0.0
    %2591 = vmatprep.subr.mxu0 0.0
    %2592 = vmatpush1.msra.mxu0 0.0
    %2593 = vmatprep.subr.mxu0 0.0
    %2594 = vmatpush1.msra.mxu0 0.0
    %2595 = vmatprep.subr.mxu0 0.0
    %2596 = vmatpush1.msra.mxu0 0.0
    %2597 = vmatprep.subr.mxu0 0.0
    %2598 = vmatpush1.msra.mxu0 0.0
    %2599 = vmatprep.subr.mxu0 0.0
    %2600 = vmatpush1.msra.mxu0 0.0
    %2601 = vmatprep.subr.mxu0 0.0
    %2602 = vmatpush1.msra.mxu0 0.0
    %2603 = vmatprep.subr.mxu0 0.0
    %2604 = vmatpush1.msra.mxu0 0.0
    %2605 = vmatprep.subr.mxu0 0.0
    %2606 = vmatpush1.msra.mxu0 0.0
    %2607 = vmatprep.subr.mxu0 0.0
    %2608 = vmatpush1.msra.mxu0 0.0
    %2609 = vmatprep.subr.mxu0 0.0
    %2610 = vmatpush1.msra.mxu0 0.0
    %2611 = vmatprep.mubr.f32.mxu0 0.0
    %2612 = vmatmul.mubr.f32.gmra.mrb[0].mxu0 %v2545
    %v2613 = vpop.f32.mrb[0].mxu0
    %v2614 = vadd.f32 0.0, %v2613
    %v2615 = vpop.f32.mrb[0].mxu0
    %2616 = vdwg.mxu0
    %2617 = vrot.lane.b32.xlu0 %v2080, 112
    %v2618 = vpop.permute.xlu0 %2617
    %2619 = vrot.lane.b32.xlu0 %v2171, 112
    %v2620 = vpop.permute.xlu0 %2619
    %2621 = vrot.lane.b32.xlu0 %v2176, 112
    %v2622 = vpop.permute.xlu0 %2621
    %v2623 = vsel %vm469, %v2618, 0
    %v2625 = vsel %vm469, %v2620, 0
    %v2627 = vsel %vm469, %v2622, 0
    %2629 = vmatprep.subr.mxu0 0.0
    %2630 = vmatpush1.xpose.msra.mxu0 %v2625
    %2631 = vmatprep.subr.mxu0 0.0
    %2632 = vmatpush1.xpose.msra.mxu0 %v2627
    %2633 = vmatprep.subr.mxu0 0.0
    %2634 = vmatpush1.xpose.msra.mxu0 0.0
    %2635 = vmatprep.subr.mxu0 0.0
    %2636 = vmatpush1.xpose.msra.mxu0 0.0
    %2637 = vmatprep.subr.mxu0 0.0
    %2638 = vmatpush1.xpose.msra.mxu0 0.0
    %2639 = vmatprep.subr.mxu0 0.0
    %2640 = vmatpush1.xpose.msra.mxu0 0.0
    %2641 = vmatprep.subr.mxu0 0.0
    %2642 = vmatpush1.xpose.msra.mxu0 0.0
    %2643 = vmatprep.subr.mxu0 0.0
    %2644 = vmatpush1.xpose.msra.mxu0 0.0
    %2645 = vmatprep.subr.mxu0 0.0
    %2646 = vmatpush1.xpose.msra.mxu0 0.0
    %2647 = vmatprep.subr.mxu0 0.0
    %2648 = vmatpush1.xpose.msra.mxu0 0.0
    %2649 = vmatprep.subr.mxu0 0.0
    %2650 = vmatpush1.xpose.msra.mxu0 0.0
    %2651 = vmatprep.subr.mxu0 0.0
    %2652 = vmatpush1.xpose.msra.mxu0 0.0
    %2653 = vmatprep.subr.mxu0 0.0
    %2654 = vmatpush1.xpose.msra.mxu0 0.0
    %2655 = vmatprep.subr.mxu0 0.0
    %2656 = vmatpush1.xpose.msra.mxu0 0.0
    %2657 = vmatprep.subr.mxu0 0.0
    %2658 = vmatpush1.xpose.msra.mxu0 0.0
    %2659 = vmatprep.subr.mxu0 0.0
    %2660 = vmatpush1.xpose.msra.mxu0 0.0
    %2661 = vmatprep.subr.mxu0 0.0
    %2662 = vmatpush1.xpose.msra.mxu0 0.0
    %2663 = vmatprep.subr.mxu0 0.0
    %2664 = vmatpush1.xpose.msra.mxu0 0.0
    %2665 = vmatprep.subr.mxu0 0.0
    %2666 = vmatpush1.xpose.msra.mxu0 0.0
    %2667 = vmatprep.subr.mxu0 0.0
    %2668 = vmatpush1.xpose.msra.mxu0 0.0
    %2669 = vmatprep.subr.mxu0 0.0
    %2670 = vmatpush1.xpose.msra.mxu0 0.0
    %2671 = vmatprep.subr.mxu0 0.0
    %2672 = vmatpush1.xpose.msra.mxu0 0.0
    %2673 = vmatprep.subr.mxu0 0.0
    %2674 = vmatpush1.xpose.msra.mxu0 0.0
    %2675 = vmatprep.subr.mxu0 0.0
    %2676 = vmatpush1.xpose.msra.mxu0 0.0
    %2677 = vmatprep.subr.mxu0 0.0
    %2678 = vmatpush1.xpose.msra.mxu0 0.0
    %2679 = vmatprep.subr.mxu0 0.0
    %2680 = vmatpush1.xpose.msra.mxu0 0.0
    %2681 = vmatprep.subr.mxu0 0.0
    %2682 = vmatpush1.xpose.msra.mxu0 0.0
    %2683 = vmatprep.subr.mxu0 0.0
    %2684 = vmatpush1.xpose.msra.mxu0 0.0
    %2685 = vmatprep.subr.mxu0 0.0
    %2686 = vmatpush1.xpose.msra.mxu0 0.0
    %2687 = vmatprep.subr.mxu0 0.0
    %2688 = vmatpush1.xpose.msra.mxu0 0.0
    %2689 = vmatprep.subr.mxu0 0.0
    %2690 = vmatpush1.xpose.msra.mxu0 0.0
    %2691 = vmatprep.subr.mxu0 0.0
    %2692 = vmatpush1.xpose.msra.mxu0 0.0
    %2693 = vmatprep.mubr.f32.mxu0 0.0
    %2694 = vmatmul.mubr.f32.gmra.mrb[0].mxu0 %v2623
    %v2695 = vpop.f32.mrb[0].mxu0
    %v2696 = vadd.f32 0.0, %v2695
    %v2697 = vpop.f32.mrb[0].mxu0
    %2698 = vdwg.mxu0
    %v2699 = vmul.f32 %v2696, 0.35355338
    %v2700 = vsel %vm1147, %v2699, -inf
    %2701 = vmax.xlane.f32.xlu0 %v2700
    %v2702 = vpop.xlane.xlu0 %2701
    %v2703 = vsub.f32 %v2699, %v2702
    %v2704 = vmul.f32 %v2703, 1.442695
    %v2705 = vpow.pop %v2704
    %v2706 = vsel %vm1147, %v2705, 0.0
    %2707 = vadd.xlane.f32.xlu0 %v2706
    %v2708 = vpop.xlane.xlu0 %2707
    %v2709 = vrcp.pop %v2708
    %v2710 = vmul.f32 %v2705, %v2709
    %2711 = vrot.lane.b32.xlu0 %v2260, 112
    %v2712 = vpop.permute.xlu0 %2711
    %2713 = vrot.lane.b32.xlu0 %v2265, 112
    %v2714 = vpop.permute.xlu0 %2713
    %v2718 = vsel %vm1147, %v2710, 0
    %2720 = vmatprep.subr.mxu0 0.0
    %2721 = vmatpush1.msra.mxu0 %v2712
    %2722 = vmatprep.subr.mxu0 0.0
    %2723 = vmatpush1.msra.mxu0 %v2714
    %2724 = vmatprep.subr.mxu0 0.0
    %2725 = vmatpush1.msra.mxu0 0.0
    %2726 = vmatprep.subr.mxu0 0.0
    %2727 = vmatpush1.msra.mxu0 0.0
    %2728 = vmatprep.subr.mxu0 0.0
    %2729 = vmatpush1.msra.mxu0 0.0
    %2730 = vmatprep.subr.mxu0 0.0
    %2731 = vmatpush1.msra.mxu0 0.0
    %2732 = vmatprep.subr.mxu0 0.0
    %2733 = vmatpush1.msra.mxu0 0.0
    %2734 = vmatprep.subr.mxu0 0.0
    %2735 = vmatpush1.msra.mxu0 0.0
    %2736 = vmatprep.subr.mxu0 0.0
    %2737 = vmatpush1.msra.mxu0 0.0
    %2738 = vmatprep.subr.mxu0 0.0
    %2739 = vmatpush1.msra.mxu0 0.0
    %2740 = vmatprep.subr.mxu0 0.0
    %2741 = vmatpush1.msra.mxu0 0.0
    %2742 = vmatprep.subr.mxu0 0.0
    %2743 = vmatpush1.msra.mxu0 0.0
    %2744 = vmatprep.subr.mxu0 0.0
    %2745 = vmatpush1.msra.mxu0 0.0
    %2746 = vmatprep.subr.mxu0 0.0
    %2747 = vmatpush1.msra.mxu0 0.0
    %2748 = vmatprep.subr.mxu0 0.0
    %2749 = vmatpush1.msra.mxu0 0.0
    %2750 = vmatprep.subr.mxu0 0.0
    %2751 = vmatpush1.msra.mxu0 0.0
    %2752 = vmatprep.subr.mxu0 0.0
    %2753 = vmatpush1.msra.mxu0 0.0
    %2754 = vmatprep.subr.mxu0 0.0
    %2755 = vmatpush1.msra.mxu0 0.0
    %2756 = vmatprep.subr.mxu0 0.0
    %2757 = vmatpush1.msra.mxu0 0.0
    %2758 = vmatprep.subr.mxu0 0.0
    %2759 = vmatpush1.msra.mxu0 0.0
    %2760 = vmatprep.subr.mxu0 0.0
    %2761 = vmatpush1.msra.mxu0 0.0
    %2762 = vmatprep.subr.mxu0 0.0
    %2763 = vmatpush1.msra.mxu0 0.0
    %2764 = vmatprep.subr.mxu0 0.0
    %2765 = vmatpush1.msra.mxu0 0.0
    %2766 = vmatprep.subr.mxu0 0.0
    %2767 = vmatpush1.msra.mxu0 0.0
    %2768 = vmatprep.subr.mxu0 0.0
    %2769 = vmatpush1.msra.mxu0 0.0
    %2770 = vmatprep.subr.mxu0 0.0
    %2771 = vmatpush1.msra.mxu0 0.0
    %2772 = vmatprep.subr.mxu0 0.0
    %2773 = vmatpush1.msra.mxu0 0.0
    %2774 = vmatprep.subr.mxu0 0.0
    %2775 = vmatpush1.msra.mxu0 0.0
    %2776 = vmatprep.subr.mxu0 0.0
    %2777 = vmatpush1.msra.mxu0 0.0
    %2778 = vmatprep.subr.mxu0 0.0
    %2779 = vmatpush1.msra.mxu0 0.0
    %2780 = vmatprep.subr.mxu0 0.0
    %2781 = vmatpush1.msra.mxu0 0.0
    %2782 = vmatprep.subr.mxu0 0.0
    %2783 = vmatpush1.msra.mxu0 0.0
    %2784 = vmatprep.mubr.f32.mxu0 0.0
    %2785 = vmatmul.mubr.f32.gmra.mrb[0].mxu0 %v2718
    %v2786 = vpop.f32.mrb[0].mxu0
    %v2787 = vadd.f32 0.0, %v2786
    %v2788 = vpop.f32.mrb[0].mxu0
    %2789 = vdwg.mxu0
    %2790 = vrot.lane.b32.xlu0 %v2080, 104
    %v2791 = vpop.permute.xlu0 %2790
    %2792 = vrot.lane.b32.xlu0 %v2171, 104
    %v2793 = vpop.permute.xlu0 %2792
    %2794 = vrot.lane.b32.xlu0 %v2176, 104
    %v2795 = vpop.permute.xlu0 %2794
    %v2796 = vsel %vm469, %v2791, 0
    %v2798 = vsel %vm469, %v2793, 0
    %v2800 = vsel %vm469, %v2795, 0
    %2802 = vmatprep.subr.mxu0 0.0
    %2803 = vmatpush1.xpose.msra.mxu0 %v2798
    %2804 = vmatprep.subr.mxu0 0.0
    %2805 = vmatpush1.xpose.msra.mxu0 %v2800
    %2806 = vmatprep.subr.mxu0 0.0
    %2807 = vmatpush1.xpose.msra.mxu0 0.0
    %2808 = vmatprep.subr.mxu0 0.0
    %2809 = vmatpush1.xpose.msra.mxu0 0.0
    %2810 = vmatprep.subr.mxu0 0.0
    %2811 = vmatpush1.xpose.msra.mxu0 0.0
    %2812 = vmatprep.subr.mxu0 0.0
    %2813 = vmatpush1.xpose.msra.mxu0 0.0
    %2814 = vmatprep.subr.mxu0 0.0
    %2815 = vmatpush1.xpose.msra.mxu0 0.0
    %2816 = vmatprep.subr.mxu0 0.0
    %2817 = vmatpush1.xpose.msra.mxu0 0.0
    %2818 = vmatprep.subr.mxu0 0.0
    %2819 = vmatpush1.xpose.msra.mxu0 0.0
    %2820 = vmatprep.subr.mxu0 0.0
    %2821 = vmatpush1.xpose.msra.mxu0 0.0
    %2822 = vmatprep.subr.mxu0 0.0
    %2823 = vmatpush1.xpose.msra.mxu0 0.0
    %2824 = vmatprep.subr.mxu0 0.0
    %2825 = vmatpush1.xpose.msra.mxu0 0.0
    %2826 = vmatprep.subr.mxu0 0.0
    %2827 = vmatpush1.xpose.msra.mxu0 0.0
    %2828 = vmatprep.subr.mxu0 0.0
    %2829 = vmatpush1.xpose.msra.mxu0 0.0
    %2830 = vmatprep.subr.mxu0 0.0
    %2831 = vmatpush1.xpose.msra.mxu0 0.0
    %2832 = vmatprep.subr.mxu0 0.0
    %2833 = vmatpush1.xpose.msra.mxu0 0.0
    %2834 = vmatprep.subr.mxu0 0.0
    %2835 = vmatpush1.xpose.msra.mxu0 0.0
    %2836 = vmatprep.subr.mxu0 0.0
    %2837 = vmatpush1.xpose.msra.mxu0 0.0
    %2838 = vmatprep.subr.mxu0 0.0
    %2839 = vmatpush1.xpose.msra.mxu0 0.0
    %2840 = vmatprep.subr.mxu0 0.0
    %2841 = vmatpush1.xpose.msra.mxu0 0.0
    %2842 = vmatprep.subr.mxu0 0.0
    %2843 = vmatpush1.xpose.msra.mxu0 0.0
    %2844 = vmatprep.subr.mxu0 0.0
    %2845 = vmatpush1.xpose.msra.mxu0 0.0
    %2846 = vmatprep.subr.mxu0 0.0
    %2847 = vmatpush1.xpose.msra.mxu0 0.0
    %2848 = vmatprep.subr.mxu0 0.0
    %2849 = vmatpush1.xpose.msra.mxu0 0.0
    %2850 = vmatprep.subr.mxu0 0.0
    %2851 = vmatpush1.xpose.msra.mxu0 0.0
    %2852 = vmatprep.subr.mxu0 0.0
    %2853 = vmatpush1.xpose.msra.mxu0 0.0
    %2854 = vmatprep.subr.mxu0 0.0
    %2855 = vmatpush1.xpose.msra.mxu0 0.0
    %2856 = vmatprep.subr.mxu0 0.0
    %2857 = vmatpush1.xpose.msra.mxu0 0.0
    %2858 = vmatprep.subr.mxu0 0.0
    %2859 = vmatpush1.xpose.msra.mxu0 0.0
    %2860 = vmatprep.subr.mxu0 0.0
    %2861 = vmatpush1.xpose.msra.mxu0 0.0
    %2862 = vmatprep.subr.mxu0 0.0
    %2863 = vmatpush1.xpose.msra.mxu0 0.0
    %2864 = vmatprep.subr.mxu0 0.0
    %2865 = vmatpush1.xpose.msra.mxu0 0.0
    %2866 = vmatprep.mubr.f32.mxu0 0.0
    %2867 = vmatmul.mubr.f32.gmra.mrb[0].mxu0 %v2796
    %v2868 = vpop.f32.mrb[0].mxu0
    %v2869 = vadd.f32 0.0, %v2868
    %v2870 = vpop.f32.mrb[0].mxu0
    %2871 = vdwg.mxu0
    %v2872 = vmul.f32 %v2869, 0.35355338
    %v2873 = vsel %vm1147, %v2872, -inf
    %2874 = vmax.xlane.f32.xlu0 %v2873
    %v2875 = vpop.xlane.xlu0 %2874
    %v2876 = vsub.f32 %v2872, %v2875
    %v2877 = vmul.f32 %v2876, 1.442695
    %v2878 = vpow.pop %v2877
    %v2879 = vsel %vm1147, %v2878, 0.0
    %2880 = vadd.xlane.f32.xlu0 %v2879
    %v2881 = vpop.xlane.xlu0 %2880
    %v2882 = vrcp.pop %v2881
    %v2883 = vmul.f32 %v2878, %v2882
    %2884 = vrot.lane.b32.xlu0 %v2260, 104
    %v2885 = vpop.permute.xlu0 %2884
    %2886 = vrot.lane.b32.xlu0 %v2265, 104
    %v2887 = vpop.permute.xlu0 %2886
    %v2891 = vsel %vm1147, %v2883, 0
    %2893 = vmatprep.subr.mxu0 0.0
    %2894 = vmatpush1.msra.mxu0 %v2885
    %2895 = vmatprep.subr.mxu0 0.0
    %2896 = vmatpush1.msra.mxu0 %v2887
    %2897 = vmatprep.subr.mxu0 0.0
    %2898 = vmatpush1.msra.mxu0 0.0
    %2899 = vmatprep.subr.mxu0 0.0
    %2900 = vmatpush1.msra.mxu0 0.0
    %2901 = vmatprep.subr.mxu0 0.0
    %2902 = vmatpush1.msra.mxu0 0.0
    %2903 = vmatprep.subr.mxu0 0.0
    %2904 = vmatpush1.msra.mxu0 0.0
    %2905 = vmatprep.subr.mxu0 0.0
    %2906 = vmatpush1.msra.mxu0 0.0
    %2907 = vmatprep.subr.mxu0 0.0
    %2908 = vmatpush1.msra.mxu0 0.0
    %2909 = vmatprep.subr.mxu0 0.0
    %2910 = vmatpush1.msra.mxu0 0.0
    %2911 = vmatprep.subr.mxu0 0.0
    %2912 = vmatpush1.msra.mxu0 0.0
    %2913 = vmatprep.subr.mxu0 0.0
    %2914 = vmatpush1.msra.mxu0 0.0
    %2915 = vmatprep.subr.mxu0 0.0
    %2916 = vmatpush1.msra.mxu0 0.0
    %2917 = vmatprep.subr.mxu0 0.0
    %2918 = vmatpush1.msra.mxu0 0.0
    %2919 = vmatprep.subr.mxu0 0.0
    %2920 = vmatpush1.msra.mxu0 0.0
    %2921 = vmatprep.subr.mxu0 0.0
    %2922 = vmatpush1.msra.mxu0 0.0
    %2923 = vmatprep.subr.mxu0 0.0
    %2924 = vmatpush1.msra.mxu0 0.0
    %2925 = vmatprep.subr.mxu0 0.0
    %2926 = vmatpush1.msra.mxu0 0.0
    %2927 = vmatprep.subr.mxu0 0.0
    %2928 = vmatpush1.msra.mxu0 0.0
    %2929 = vmatprep.subr.mxu0 0.0
    %2930 = vmatpush1.msra.mxu0 0.0
    %2931 = vmatprep.subr.mxu0 0.0
    %2932 = vmatpush1.msra.mxu0 0.0
    %2933 = vmatprep.subr.mxu0 0.0
    %2934 = vmatpush1.msra.mxu0 0.0
    %2935 = vmatprep.subr.mxu0 0.0
    %2936 = vmatpush1.msra.mxu0 0.0
    %2937 = vmatprep.subr.mxu0 0.0
    %2938 = vmatpush1.msra.mxu0 0.0
    %2939 = vmatprep.subr.mxu0 0.0
    %2940 = vmatpush1.msra.mxu0 0.0
    %2941 = vmatprep.subr.mxu0 0.0
    %2942 = vmatpush1.msra.mxu0 0.0
    %2943 = vmatprep.subr.mxu0 0.0
    %2944 = vmatpush1.msra.mxu0 0.0
    %2945 = vmatprep.subr.mxu0 0.0
    %2946 = vmatpush1.msra.mxu0 0.0
    %2947 = vmatprep.subr.mxu0 0.0
    %2948 = vmatpush1.msra.mxu0 0.0
    %2949 = vmatprep.subr.mxu0 0.0
    %2950 = vmatpush1.msra.mxu0 0.0
    %2951 = vmatprep.subr.mxu0 0.0
    %2952 = vmatpush1.msra.mxu0 0.0
    %2953 = vmatprep.subr.mxu0 0.0
    %2954 = vmatpush1.msra.mxu0 0.0
    %2955 = vmatprep.subr.mxu0 0.0
    %2956 = vmatpush1.msra.mxu0 0.0
    %2957 = vmatprep.mubr.f32.mxu0 0.0
    %2958 = vmatmul.mubr.f32.gmra.mrb[0].mxu0 %v2891
    %v2959 = vpop.f32.mrb[0].mxu0
    %v2960 = vadd.f32 0.0, %v2959
    %v2961 = vpop.f32.mrb[0].mxu0
    %2962 = vdwg.mxu0
    %2964 = vrot.lane.b32.xlu0 %v2614, 8
    %v2965 = vpop.permute.xlu0 %2964
    %2968 = vrot.lane.b32.xlu0 %v2787, 16
    %v2969 = vpop.permute.xlu0 %2968
    %2972 = vrot.lane.b32.xlu0 %v2960, 24
    %v2973 = vpop.permute.xlu0 %2972
    %v2975 = vsel %vm469, %v2439, %v2965
    %v2976 = vsel %vm1147, %v2975, %v2969
    %v2977 = vsel %vm1149, %v2976, %v2973
    %v2978 = vlaneseq
    %v2979 = vshrl.u32 %v2978, 7
    %v2980 = vsub.s32 3, %v2979
    %v2981 = vrot.slane %v2002, %v2980
    %v2983 = vsel %vm165, %v2977, 0
    %2985 = vmatprep.subr.mxu0 0.0
    %2986 = vmatpush1.msra.mxu0 %v1997
    %2987 = vmatprep.subr.mxu0 0.0
    %2988 = vmatpush1.msra.mxu0 %v1998
    %2989 = vmatprep.subr.mxu0 0.0
    %2990 = vmatpush1.msra.mxu0 %v1999
    %2991 = vmatprep.subr.mxu0 0.0
    %2992 = vmatpush1.msra.mxu0 %v2000
    %2993 = vmatprep.subr.mxu0 0.0
    %2994 = vmatpush1.msra.mxu0 0.0
    %2995 = vmatprep.subr.mxu0 0.0
    %2996 = vmatpush1.msra.mxu0 0.0
    %2997 = vmatprep.subr.mxu0 0.0
    %2998 = vmatpush1.msra.mxu0 0.0
    %2999 = vmatprep.subr.mxu0 0.0
    %3000 = vmatpush1.msra.mxu0 0.0
    %3001 = vmatprep.subr.mxu0 0.0
    %3002 = vmatpush1.msra.mxu0 0.0
    %3003 = vmatprep.subr.mxu0 0.0
    %3004 = vmatpush1.msra.mxu0 0.0
    %3005 = vmatprep.subr.mxu0 0.0
    %3006 = vmatpush1.msra.mxu0 0.0
    %3007 = vmatprep.subr.mxu0 0.0
    %3008 = vmatpush1.msra.mxu0 0.0
    %3009 = vmatprep.subr.mxu0 0.0
    %3010 = vmatpush1.msra.mxu0 0.0
    %3011 = vmatprep.subr.mxu0 0.0
    %3012 = vmatpush1.msra.mxu0 0.0
    %3013 = vmatprep.subr.mxu0 0.0
    %3014 = vmatpush1.msra.mxu0 0.0
    %3015 = vmatprep.subr.mxu0 0.0
    %3016 = vmatpush1.msra.mxu0 0.0
    %3017 = vmatprep.subr.mxu0 0.0
    %3018 = vmatpush1.msra.mxu0 0.0
    %3019 = vmatprep.subr.mxu0 0.0
    %3020 = vmatpush1.msra.mxu0 0.0
    %3021 = vmatprep.subr.mxu0 0.0
    %3022 = vmatpush1.msra.mxu0 0.0
    %3023 = vmatprep.subr.mxu0 0.0
    %3024 = vmatpush1.msra.mxu0 0.0
    %3025 = vmatprep.subr.mxu0 0.0
    %3026 = vmatpush1.msra.mxu0 0.0
    %3027 = vmatprep.subr.mxu0 0.0
    %3028 = vmatpush1.msra.mxu0 0.0
    %3029 = vmatprep.subr.mxu0 0.0
    %3030 = vmatpush1.msra.mxu0 0.0
    %3031 = vmatprep.subr.mxu0 0.0
    %3032 = vmatpush1.msra.mxu0 0.0
    %3033 = vmatprep.subr.mxu0 0.0
    %3034 = vmatpush1.msra.mxu0 0.0
    %3035 = vmatprep.subr.mxu0 0.0
    %3036 = vmatpush1.msra.mxu0 0.0
    %3037 = vmatprep.subr.mxu0 0.0
    %3038 = vmatpush1.msra.mxu0 0.0
    %3039 = vmatprep.subr.mxu0 0.0
    %3040 = vmatpush1.msra.mxu0 0.0
    %3041 = vmatprep.subr.mxu0 0.0
    %3042 = vmatpush1.msra.mxu0 0.0
    %3043 = vmatprep.subr.mxu0 0.0
    %3044 = vmatpush1.msra.mxu0 0.0
    %3045 = vmatprep.subr.mxu0 0.0
    %3046 = vmatpush1.msra.mxu0 0.0
    %3047 = vmatprep.subr.mxu0 0.0
    %3048 = vmatpush1.msra.mxu0 0.0
    %3049 = vmatprep.mubr.f32.mxu0 0.0
    %3050 = vmatmul.mubr.f32.gmra.mrb[0].mxu0 %v2983
    %v3051 = vpop.f32.mrb[0].mxu0
    %v3052 = vadd.f32 %v2981, %v3051
    %v3053 = vpop.f32.mrb[0].mxu0
    %3054 = vdwg.mxu0
    %v3056 = vsel %vm469, %v2085, 0
    %v3059 = vsel %vm469, %v2181, 0
    %v3062 = vsel %vm469, %v2186, 0
    %3064 = vmatprep.subr.mxu0 0.0
    %3065 = vmatpush1.xpose.msra.mxu0 %v3059
    %3066 = vmatprep.subr.mxu0 0.0
    %3067 = vmatpush1.xpose.msra.mxu0 %v3062
    %3068 = vmatprep.subr.mxu0 0.0
    %3069 = vmatpush1.xpose.msra.mxu0 0.0
    %3070 = vmatprep.subr.mxu0 0.0
    %3071 = vmatpush1.xpose.msra.mxu0 0.0
    %3072 = vmatprep.subr.mxu0 0.0
    %3073 = vmatpush1.xpose.msra.mxu0 0.0
    %3074 = vmatprep.subr.mxu0 0.0
    %3075 = vmatpush1.xpose.msra.mxu0 0.0
    %3076 = vmatprep.subr.mxu0 0.0
    %3077 = vmatpush1.xpose.msra.mxu0 0.0
    %3078 = vmatprep.subr.mxu0 0.0
    %3079 = vmatpush1.xpose.msra.mxu0 0.0
    %3080 = vmatprep.subr.mxu0 0.0
    %3081 = vmatpush1.xpose.msra.mxu0 0.0
    %3082 = vmatprep.subr.mxu0 0.0
    %3083 = vmatpush1.xpose.msra.mxu0 0.0
    %3084 = vmatprep.subr.mxu0 0.0
    %3085 = vmatpush1.xpose.msra.mxu0 0.0
    %3086 = vmatprep.subr.mxu0 0.0
    %3087 = vmatpush1.xpose.msra.mxu0 0.0
    %3088 = vmatprep.subr.mxu0 0.0
    %3089 = vmatpush1.xpose.msra.mxu0 0.0
    %3090 = vmatprep.subr.mxu0 0.0
    %3091 = vmatpush1.xpose.msra.mxu0 0.0
    %3092 = vmatprep.subr.mxu0 0.0
    %3093 = vmatpush1.xpose.msra.mxu0 0.0
    %3094 = vmatprep.subr.mxu0 0.0
    %3095 = vmatpush1.xpose.msra.mxu0 0.0
    %3096 = vmatprep.subr.mxu0 0.0
    %3097 = vmatpush1.xpose.msra.mxu0 0.0
    %3098 = vmatprep.subr.mxu0 0.0
    %3099 = vmatpush1.xpose.msra.mxu0 0.0
    %3100 = vmatprep.subr.mxu0 0.0
    %3101 = vmatpush1.xpose.msra.mxu0 0.0
    %3102 = vmatprep.subr.mxu0 0.0
    %3103 = vmatpush1.xpose.msra.mxu0 0.0
    %3104 = vmatprep.subr.mxu0 0.0
    %3105 = vmatpush1.xpose.msra.mxu0 0.0
    %3106 = vmatprep.subr.mxu0 0.0
    %3107 = vmatpush1.xpose.msra.mxu0 0.0
    %3108 = vmatprep.subr.mxu0 0.0
    %3109 = vmatpush1.xpose.msra.mxu0 0.0
    %3110 = vmatprep.subr.mxu0 0.0
    %3111 = vmatpush1.xpose.msra.mxu0 0.0
    %3112 = vmatprep.subr.mxu0 0.0
    %3113 = vmatpush1.xpose.msra.mxu0 0.0
    %3114 = vmatprep.subr.mxu0 0.0
    %3115 = vmatpush1.xpose.msra.mxu0 0.0
    %3116 = vmatprep.subr.mxu0 0.0
    %3117 = vmatpush1.xpose.msra.mxu0 0.0
    %3118 = vmatprep.subr.mxu0 0.0
    %3119 = vmatpush1.xpose.msra.mxu0 0.0
    %3120 = vmatprep.subr.mxu0 0.0
    %3121 = vmatpush1.xpose.msra.mxu0 0.0
    %3122 = vmatprep.subr.mxu0 0.0
    %3123 = vmatpush1.xpose.msra.mxu0 0.0
    %3124 = vmatprep.subr.mxu0 0.0
    %3125 = vmatpush1.xpose.msra.mxu0 0.0
    %3126 = vmatprep.subr.mxu0 0.0
    %3127 = vmatpush1.xpose.msra.mxu0 0.0
    %3128 = vmatprep.mubr.f32.mxu0 0.0
    %3129 = vmatmul.mubr.f32.gmra.mrb[0].mxu0 %v3056
    %v3130 = vpop.f32.mrb[0].mxu0
    %v3131 = vadd.f32 0.0, %v3130
    %v3132 = vpop.f32.mrb[0].mxu0
    %3133 = vdwg.mxu0
    %v3134 = vmul.f32 %v3131, 0.35355338
    %v3135 = vsel %vm1147, %v3134, -inf
    %3136 = vmax.xlane.f32.xlu0 %v3135
    %v3137 = vpop.xlane.xlu0 %3136
    %v3138 = vsub.f32 %v3134, %v3137
    %v3139 = vmul.f32 %v3138, 1.442695
    %v3140 = vpow.pop %v3139
    %v3141 = vsel %vm1147, %v3140, 0.0
    %3142 = vadd.xlane.f32.xlu0 %v3141
    %v3143 = vpop.xlane.xlu0 %3142
    %v3144 = vrcp.pop %v3143
    %v3145 = vmul.f32 %v3140, %v3144
    %v3147 = vsel %vm1147, %v3145, 0
    %3149 = vmatprep.subr.mxu0 0.0
    %3150 = vmatpush1.msra.mxu0 %v2270
    %3151 = vmatprep.subr.mxu0 0.0
    %3152 = vmatpush1.msra.mxu0 %v2275
    %3153 = vmatprep.subr.mxu0 0.0
    %3154 = vmatpush1.msra.mxu0 0.0
    %3155 = vmatprep.subr.mxu0 0.0
    %3156 = vmatpush1.msra.mxu0 0.0
    %3157 = vmatprep.subr.mxu0 0.0
    %3158 = vmatpush1.msra.mxu0 0.0
    %3159 = vmatprep.subr.mxu0 0.0
    %3160 = vmatpush1.msra.mxu0 0.0
    %3161 = vmatprep.subr.mxu0 0.0
    %3162 = vmatpush1.msra.mxu0 0.0
    %3163 = vmatprep.subr.mxu0 0.0
    %3164 = vmatpush1.msra.mxu0 0.0
    %3165 = vmatprep.subr.mxu0 0.0
    %3166 = vmatpush1.msra.mxu0 0.0
    %3167 = vmatprep.subr.mxu0 0.0
    %3168 = vmatpush1.msra.mxu0 0.0
    %3169 = vmatprep.subr.mxu0 0.0
    %3170 = vmatpush1.msra.mxu0 0.0
    %3171 = vmatprep.subr.mxu0 0.0
    %3172 = vmatpush1.msra.mxu0 0.0
    %3173 = vmatprep.subr.mxu0 0.0
    %3174 = vmatpush1.msra.mxu0 0.0
    %3175 = vmatprep.subr.mxu0 0.0
    %3176 = vmatpush1.msra.mxu0 0.0
    %3177 = vmatprep.subr.mxu0 0.0
    %3178 = vmatpush1.msra.mxu0 0.0
    %3179 = vmatprep.subr.mxu0 0.0
    %3180 = vmatpush1.msra.mxu0 0.0
    %3181 = vmatprep.subr.mxu0 0.0
    %3182 = vmatpush1.msra.mxu0 0.0
    %3183 = vmatprep.subr.mxu0 0.0
    %3184 = vmatpush1.msra.mxu0 0.0
    %3185 = vmatprep.subr.mxu0 0.0
    %3186 = vmatpush1.msra.mxu0 0.0
    %3187 = vmatprep.subr.mxu0 0.0
    %3188 = vmatpush1.msra.mxu0 0.0
    %3189 = vmatprep.subr.mxu0 0.0
    %3190 = vmatpush1.msra.mxu0 0.0
    %3191 = vmatprep.subr.mxu0 0.0
    %3192 = vmatpush1.msra.mxu0 0.0
    %3193 = vmatprep.subr.mxu0 0.0
    %3194 = vmatpush1.msra.mxu0 0.0
    %3195 = vmatprep.subr.mxu0 0.0
    %3196 = vmatpush1.msra.mxu0 0.0
    %3197 = vmatprep.subr.mxu0 0.0
    %3198 = vmatpush1.msra.mxu0 0.0
    %3199 = vmatprep.subr.mxu0 0.0
    %3200 = vmatpush1.msra.mxu0 0.0
    %3201 = vmatprep.subr.mxu0 0.0
    %3202 = vmatpush1.msra.mxu0 0.0
    %3203 = vmatprep.subr.mxu0 0.0
    %3204 = vmatpush1.msra.mxu0 0.0
    %3205 = vmatprep.subr.mxu0 0.0
    %3206 = vmatpush1.msra.mxu0 0.0
    %3207 = vmatprep.subr.mxu0 0.0
    %3208 = vmatpush1.msra.mxu0 0.0
    %3209 = vmatprep.subr.mxu0 0.0
    %3210 = vmatpush1.msra.mxu0 0.0
    %3211 = vmatprep.subr.mxu0 0.0
    %3212 = vmatpush1.msra.mxu0 0.0
    %3213 = vmatprep.mubr.f32.mxu0 0.0
    %3214 = vmatmul.mubr.f32.gmra.mrb[0].mxu0 %v3147
    %v3215 = vpop.f32.mrb[0].mxu0
    %v3216 = vadd.f32 0.0, %v3215
    %v3217 = vpop.f32.mrb[0].mxu0
    %3218 = vdwg.mxu0
    %3219 = vrot.lane.b32.xlu0 %v2085, 120
    %v3220 = vpop.permute.xlu0 %3219
    %3221 = vrot.lane.b32.xlu0 %v2181, 120
    %v3222 = vpop.permute.xlu0 %3221
    %3223 = vrot.lane.b32.xlu0 %v2186, 120
    %v3224 = vpop.permute.xlu0 %3223
    %v3225 = vsel %vm469, %v3220, 0
    %v3227 = vsel %vm469, %v3222, 0
    %v3229 = vsel %vm469, %v3224, 0
    %3231 = vmatprep.subr.mxu0 0.0
    %3232 = vmatpush1.xpose.msra.mxu0 %v3227
    %3233 = vmatprep.subr.mxu0 0.0
    %3234 = vmatpush1.xpose.msra.mxu0 %v3229
    %3235 = vmatprep.subr.mxu0 0.0
    %3236 = vmatpush1.xpose.msra.mxu0 0.0
    %3237 = vmatprep.subr.mxu0 0.0
    %3238 = vmatpush1.xpose.msra.mxu0 0.0
    %3239 = vmatprep.subr.mxu0 0.0
    %3240 = vmatpush1.xpose.msra.mxu0 0.0
    %3241 = vmatprep.subr.mxu0 0.0
    %3242 = vmatpush1.xpose.msra.mxu0 0.0
    %3243 = vmatprep.subr.mxu0 0.0
    %3244 = vmatpush1.xpose.msra.mxu0 0.0
    %3245 = vmatprep.subr.mxu0 0.0
    %3246 = vmatpush1.xpose.msra.mxu0 0.0
    %3247 = vmatprep.subr.mxu0 0.0
    %3248 = vmatpush1.xpose.msra.mxu0 0.0
    %3249 = vmatprep.subr.mxu0 0.0
    %3250 = vmatpush1.xpose.msra.mxu0 0.0
    %3251 = vmatprep.subr.mxu0 0.0
    %3252 = vmatpush1.xpose.msra.mxu0 0.0
    %3253 = vmatprep.subr.mxu0 0.0
    %3254 = vmatpush1.xpose.msra.mxu0 0.0
    %3255 = vmatprep.subr.mxu0 0.0
    %3256 = vmatpush1.xpose.msra.mxu0 0.0
    %3257 = vmatprep.subr.mxu0 0.0
    %3258 = vmatpush1.xpose.msra.mxu0 0.0
    %3259 = vmatprep.subr.mxu0 0.0
    %3260 = vmatpush1.xpose.msra.mxu0 0.0
    %3261 = vmatprep.subr.mxu0 0.0
    %3262 = vmatpush1.xpose.msra.mxu0 0.0
    %3263 = vmatprep.subr.mxu0 0.0
    %3264 = vmatpush1.xpose.msra.mxu0 0.0
    %3265 = vmatprep.subr.mxu0 0.0
    %3266 = vmatpush1.xpose.msra.mxu0 0.0
    %3267 = vmatprep.subr.mxu0 0.0
    %3268 = vmatpush1.xpose.msra.mxu0 0.0
    %3269 = vmatprep.subr.mxu0 0.0
    %3270 = vmatpush1.xpose.msra.mxu0 0.0
    %3271 = vmatprep.subr.mxu0 0.0
    %3272 = vmatpush1.xpose.msra.mxu0 0.0
    %3273 = vmatprep.subr.mxu0 0.0
    %3274 = vmatpush1.xpose.msra.mxu0 0.0
    %3275 = vmatprep.subr.mxu0 0.0
    %3276 = vmatpush1.xpose.msra.mxu0 0.0
    %3277 = vmatprep.subr.mxu0 0.0
    %3278 = vmatpush1.xpose.msra.mxu0 0.0
    %3279 = vmatprep.subr.mxu0 0.0
    %3280 = vmatpush1.xpose.msra.mxu0 0.0
    %3281 = vmatprep.subr.mxu0 0.0
    %3282 = vmatpush1.xpose.msra.mxu0 0.0
    %3283 = vmatprep.subr.mxu0 0.0
    %3284 = vmatpush1.xpose.msra.mxu0 0.0
    %3285 = vmatprep.subr.mxu0 0.0
    %3286 = vmatpush1.xpose.msra.mxu0 0.0
    %3287 = vmatprep.subr.mxu0 0.0
    %3288 = vmatpush1.xpose.msra.mxu0 0.0
    %3289 = vmatprep.subr.mxu0 0.0
    %3290 = vmatpush1.xpose.msra.mxu0 0.0
    %3291 = vmatprep.subr.mxu0 0.0
    %3292 = vmatpush1.xpose.msra.mxu0 0.0
    %3293 = vmatprep.subr.mxu0 0.0
    %3294 = vmatpush1.xpose.msra.mxu0 0.0
    %3295 = vmatprep.mubr.f32.mxu0 0.0
    %3296 = vmatmul.mubr.f32.gmra.mrb[0].mxu0 %v3225
    %v3297 = vpop.f32.mrb[0].mxu0
    %v3298 = vadd.f32 0.0, %v3297
    %v3299 = vpop.f32.mrb[0].mxu0
    %3300 = vdwg.mxu0
    %v3301 = vmul.f32 %v3298, 0.35355338
    %v3302 = vsel %vm1147, %v3301, -inf
    %3303 = vmax.xlane.f32.xlu0 %v3302
    %v3304 = vpop.xlane.xlu0 %3303
    %v3305 = vsub.f32 %v3301, %v3304
    %v3306 = vmul.f32 %v3305, 1.442695
    %v3307 = vpow.pop %v3306
    %v3308 = vsel %vm1147, %v3307, 0.0
    %3309 = vadd.xlane.f32.xlu0 %v3308
    %v3310 = vpop.xlane.xlu0 %3309
    %v3311 = vrcp.pop %v3310
    %v3312 = vmul.f32 %v3307, %v3311
    %3315 = vrot.lane.b32.xlu0 %v2270, 120
    %v3316 = vpop.permute.xlu0 %3315
    %3317 = vrot.lane.b32.xlu0 %v2275, 120
    %v3318 = vpop.permute.xlu0 %3317
    %v3322 = vsel %vm1147, %v3312, 0
    %3324 = vmatprep.subr.mxu0 0.0
    %3325 = vmatpush1.msra.mxu0 %v3316
    %3326 = vmatprep.subr.mxu0 0.0
    %3327 = vmatpush1.msra.mxu0 %v3318
    %3328 = vmatprep.subr.mxu0 0.0
    %3329 = vmatpush1.msra.mxu0 0.0
    %3330 = vmatprep.subr.mxu0 0.0
    %3331 = vmatpush1.msra.mxu0 0.0
    %3332 = vmatprep.subr.mxu0 0.0
    %3333 = vmatpush1.msra.mxu0 0.0
    %3334 = vmatprep.subr.mxu0 0.0
    %3335 = vmatpush1.msra.mxu0 0.0
    %3336 = vmatprep.subr.mxu0 0.0
    %3337 = vmatpush1.msra.mxu0 0.0
    %3338 = vmatprep.subr.mxu0 0.0
    %3339 = vmatpush1.msra.mxu0 0.0
    %3340 = vmatprep.subr.mxu0 0.0
    %3341 = vmatpush1.msra.mxu0 0.0
    %3342 = vmatprep.subr.mxu0 0.0
    %3343 = vmatpush1.msra.mxu0 0.0
    %3344 = vmatprep.subr.mxu0 0.0
    %3345 = vmatpush1.msra.mxu0 0.0
    %3346 = vmatprep.subr.mxu0 0.0
    %3347 = vmatpush1.msra.mxu0 0.0
    %3348 = vmatprep.subr.mxu0 0.0
    %3349 = vmatpush1.msra.mxu0 0.0
    %3350 = vmatprep.subr.mxu0 0.0
    %3351 = vmatpush1.msra.mxu0 0.0
    %3352 = vmatprep.subr.mxu0 0.0
    %3353 = vmatpush1.msra.mxu0 0.0
    %3354 = vmatprep.subr.mxu0 0.0
    %3355 = vmatpush1.msra.mxu0 0.0
    %3356 = vmatprep.subr.mxu0 0.0
    %3357 = vmatpush1.msra.mxu0 0.0
    %3358 = vmatprep.subr.mxu0 0.0
    %3359 = vmatpush1.msra.mxu0 0.0
    %3360 = vmatprep.subr.mxu0 0.0
    %3361 = vmatpush1.msra.mxu0 0.0
    %3362 = vmatprep.subr.mxu0 0.0
    %3363 = vmatpush1.msra.mxu0 0.0
    %3364 = vmatprep.subr.mxu0 0.0
    %3365 = vmatpush1.msra.mxu0 0.0
    %3366 = vmatprep.subr.mxu0 0.0
    %3367 = vmatpush1.msra.mxu0 0.0
    %3368 = vmatprep.subr.mxu0 0.0
    %3369 = vmatpush1.msra.mxu0 0.0
    %3370 = vmatprep.subr.mxu0 0.0
    %3371 = vmatpush1.msra.mxu0 0.0
    %3372 = vmatprep.subr.mxu0 0.0
    %3373 = vmatpush1.msra.mxu0 0.0
    %3374 = vmatprep.subr.mxu0 0.0
    %3375 = vmatpush1.msra.mxu0 0.0
    %3376 = vmatprep.subr.mxu0 0.0
    %3377 = vmatpush1.msra.mxu0 0.0
    %3378 = vmatprep.subr.mxu0 0.0
    %3379 = vmatpush1.msra.mxu0 0.0
    %3380 = vmatprep.subr.mxu0 0.0
    %3381 = vmatpush1.msra.mxu0 0.0
    %3382 = vmatprep.subr.mxu0 0.0
    %3383 = vmatpush1.msra.mxu0 0.0
    %3384 = vmatprep.subr.mxu0 0.0
    %3385 = vmatpush1.msra.mxu0 0.0
    %3386 = vmatprep.subr.mxu0 0.0
    %3387 = vmatpush1.msra.mxu0 0.0
    %3388 = vmatprep.mubr.f32.mxu0 0.0
    %3389 = vmatmul.mubr.f32.gmra.mrb[0].mxu0 %v3322
    %v3390 = vpop.f32.mrb[0].mxu0
    %v3391 = vadd.f32 0.0, %v3390
    %v3392 = vpop.f32.mrb[0].mxu0
    %3393 = vdwg.mxu0
    %3394 = vrot.lane.b32.xlu0 %v2085, 112
    %v3395 = vpop.permute.xlu0 %3394
    %3396 = vrot.lane.b32.xlu0 %v2181, 112
    %v3397 = vpop.permute.xlu0 %3396
    %3398 = vrot.lane.b32.xlu0 %v2186, 112
    %v3399 = vpop.permute.xlu0 %3398
    %v3400 = vsel %vm469, %v3395, 0
    %v3402 = vsel %vm469, %v3397, 0
    %v3404 = vsel %vm469, %v3399, 0
    %3406 = vmatprep.subr.mxu0 0.0
    %3407 = vmatpush1.xpose.msra.mxu0 %v3402
    %3408 = vmatprep.subr.mxu0 0.0
    %3409 = vmatpush1.xpose.msra.mxu0 %v3404
    %3410 = vmatprep.subr.mxu0 0.0
    %3411 = vmatpush1.xpose.msra.mxu0 0.0
    %3412 = vmatprep.subr.mxu0 0.0
    %3413 = vmatpush1.xpose.msra.mxu0 0.0
    %3414 = vmatprep.subr.mxu0 0.0
    %3415 = vmatpush1.xpose.msra.mxu0 0.0
    %3416 = vmatprep.subr.mxu0 0.0
    %3417 = vmatpush1.xpose.msra.mxu0 0.0
    %3418 = vmatprep.subr.mxu0 0.0
    %3419 = vmatpush1.xpose.msra.mxu0 0.0
    %3420 = vmatprep.subr.mxu0 0.0
    %3421 = vmatpush1.xpose.msra.mxu0 0.0
    %3422 = vmatprep.subr.mxu0 0.0
    %3423 = vmatpush1.xpose.msra.mxu0 0.0
    %3424 = vmatprep.subr.mxu0 0.0
    %3425 = vmatpush1.xpose.msra.mxu0 0.0
    %3426 = vmatprep.subr.mxu0 0.0
    %3427 = vmatpush1.xpose.msra.mxu0 0.0
    %3428 = vmatprep.subr.mxu0 0.0
    %3429 = vmatpush1.xpose.msra.mxu0 0.0
    %3430 = vmatprep.subr.mxu0 0.0
    %3431 = vmatpush1.xpose.msra.mxu0 0.0
    %3432 = vmatprep.subr.mxu0 0.0
    %3433 = vmatpush1.xpose.msra.mxu0 0.0
    %3434 = vmatprep.subr.mxu0 0.0
    %3435 = vmatpush1.xpose.msra.mxu0 0.0
    %3436 = vmatprep.subr.mxu0 0.0
    %3437 = vmatpush1.xpose.msra.mxu0 0.0
    %3438 = vmatprep.subr.mxu0 0.0
    %3439 = vmatpush1.xpose.msra.mxu0 0.0
    %3440 = vmatprep.subr.mxu0 0.0
    %3441 = vmatpush1.xpose.msra.mxu0 0.0
    %3442 = vmatprep.subr.mxu0 0.0
    %3443 = vmatpush1.xpose.msra.mxu0 0.0
    %3444 = vmatprep.subr.mxu0 0.0
    %3445 = vmatpush1.xpose.msra.mxu0 0.0
    %3446 = vmatprep.subr.mxu0 0.0
    %3447 = vmatpush1.xpose.msra.mxu0 0.0
    %3448 = vmatprep.subr.mxu0 0.0
    %3449 = vmatpush1.xpose.msra.mxu0 0.0
    %3450 = vmatprep.subr.mxu0 0.0
    %3451 = vmatpush1.xpose.msra.mxu0 0.0
    %3452 = vmatprep.subr.mxu0 0.0
    %3453 = vmatpush1.xpose.msra.mxu0 0.0
    %3454 = vmatprep.subr.mxu0 0.0
    %3455 = vmatpush1.xpose.msra.mxu0 0.0
    %3456 = vmatprep.subr.mxu0 0.0
    %3457 = vmatpush1.xpose.msra.mxu0 0.0
    %3458 = vmatprep.subr.mxu0 0.0
    %3459 = vmatpush1.xpose.msra.mxu0 0.0
    %3460 = vmatprep.subr.mxu0 0.0
    %3461 = vmatpush1.xpose.msra.mxu0 0.0
    %3462 = vmatprep.subr.mxu0 0.0
    %3463 = vmatpush1.xpose.msra.mxu0 0.0
    %3464 = vmatprep.subr.mxu0 0.0
    %3465 = vmatpush1.xpose.msra.mxu0 0.0
    %3466 = vmatprep.subr.mxu0 0.0
    %3467 = vmatpush1.xpose.msra.mxu0 0.0
    %3468 = vmatprep.subr.mxu0 0.0
    %3469 = vmatpush1.xpose.msra.mxu0 0.0
    %3470 = vmatprep.mubr.f32.mxu0 0.0
    %3471 = vmatmul.mubr.f32.gmra.mrb[0].mxu0 %v3400
    %v3472 = vpop.f32.mrb[0].mxu0
    %v3473 = vadd.f32 0.0, %v3472
    %v3474 = vpop.f32.mrb[0].mxu0
    %3475 = vdwg.mxu0
    %v3476 = vmul.f32 %v3473, 0.35355338
    %v3477 = vsel %vm1147, %v3476, -inf
    %3478 = vmax.xlane.f32.xlu0 %v3477
    %v3479 = vpop.xlane.xlu0 %3478
    %v3480 = vsub.f32 %v3476, %v3479
    %v3481 = vmul.f32 %v3480, 1.442695
    %v3482 = vpow.pop %v3481
    %v3483 = vsel %vm1147, %v3482, 0.0
    %3484 = vadd.xlane.f32.xlu0 %v3483
    %v3485 = vpop.xlane.xlu0 %3484
    %v3486 = vrcp.pop %v3485
    %v3487 = vmul.f32 %v3482, %v3486
    %3488 = vrot.lane.b32.xlu0 %v2270, 112
    %v3489 = vpop.permute.xlu0 %3488
    %3490 = vrot.lane.b32.xlu0 %v2275, 112
    %v3491 = vpop.permute.xlu0 %3490
    %v3495 = vsel %vm1147, %v3487, 0
    %3497 = vmatprep.subr.mxu0 0.0
    %3498 = vmatpush1.msra.mxu0 %v3489
    %3499 = vmatprep.subr.mxu0 0.0
    %3500 = vmatpush1.msra.mxu0 %v3491
    %3501 = vmatprep.subr.mxu0 0.0
    %3502 = vmatpush1.msra.mxu0 0.0
    %3503 = vmatprep.subr.mxu0 0.0
    %3504 = vmatpush1.msra.mxu0 0.0
    %3505 = vmatprep.subr.mxu0 0.0
    %3506 = vmatpush1.msra.mxu0 0.0
    %3507 = vmatprep.subr.mxu0 0.0
    %3508 = vmatpush1.msra.mxu0 0.0
    %3509 = vmatprep.subr.mxu0 0.0
    %3510 = vmatpush1.msra.mxu0 0.0
    %3511 = vmatprep.subr.mxu0 0.0
    %3512 = vmatpush1.msra.mxu0 0.0
    %3513 = vmatprep.subr.mxu0 0.0
    %3514 = vmatpush1.msra.mxu0 0.0
    %3515 = vmatprep.subr.mxu0 0.0
    %3516 = vmatpush1.msra.mxu0 0.0
    %3517 = vmatprep.subr.mxu0 0.0
    %3518 = vmatpush1.msra.mxu0 0.0
    %3519 = vmatprep.subr.mxu0 0.0
    %3520 = vmatpush1.msra.mxu0 0.0
    %3521 = vmatprep.subr.mxu0 0.0
    %3522 = vmatpush1.msra.mxu0 0.0
    %3523 = vmatprep.subr.mxu0 0.0
    %3524 = vmatpush1.msra.mxu0 0.0
    %3525 = vmatprep.subr.mxu0 0.0
    %3526 = vmatpush1.msra.mxu0 0.0
    %3527 = vmatprep.subr.mxu0 0.0
    %3528 = vmatpush1.msra.mxu0 0.0
    %3529 = vmatprep.subr.mxu0 0.0
    %3530 = vmatpush1.msra.mxu0 0.0
    %3531 = vmatprep.subr.mxu0 0.0
    %3532 = vmatpush1.msra.mxu0 0.0
    %3533 = vmatprep.subr.mxu0 0.0
    %3534 = vmatpush1.msra.mxu0 0.0
    %3535 = vmatprep.subr.mxu0 0.0
    %3536 = vmatpush1.msra.mxu0 0.0
    %3537 = vmatprep.subr.mxu0 0.0
    %3538 = vmatpush1.msra.mxu0 0.0
    %3539 = vmatprep.subr.mxu0 0.0
    %3540 = vmatpush1.msra.mxu0 0.0
    %3541 = vmatprep.subr.mxu0 0.0
    %3542 = vmatpush1.msra.mxu0 0.0
    %3543 = vmatprep.subr.mxu0 0.0
    %3544 = vmatpush1.msra.mxu0 0.0
    %3545 = vmatprep.subr.mxu0 0.0
    %3546 = vmatpush1.msra.mxu0 0.0
    %3547 = vmatprep.subr.mxu0 0.0
    %3548 = vmatpush1.msra.mxu0 0.0
    %3549 = vmatprep.subr.mxu0 0.0
    %3550 = vmatpush1.msra.mxu0 0.0
    %3551 = vmatprep.subr.mxu0 0.0
    %3552 = vmatpush1.msra.mxu0 0.0
    %3553 = vmatprep.subr.mxu0 0.0
    %3554 = vmatpush1.msra.mxu0 0.0
    %3555 = vmatprep.subr.mxu0 0.0
    %3556 = vmatpush1.msra.mxu0 0.0
    %3557 = vmatprep.subr.mxu0 0.0
    %3558 = vmatpush1.msra.mxu0 0.0
    %3559 = vmatprep.subr.mxu0 0.0
    %3560 = vmatpush1.msra.mxu0 0.0
    %3561 = vmatprep.mubr.f32.mxu0 0.0
    %3562 = vmatmul.mubr.f32.gmra.mrb[0].mxu0 %v3495
    %v3563 = vpop.f32.mrb[0].mxu0
    %v3564 = vadd.f32 0.0, %v3563
    %v3565 = vpop.f32.mrb[0].mxu0
    %3566 = vdwg.mxu0
    %3567 = vrot.lane.b32.xlu0 %v2085, 104
    %v3568 = vpop.permute.xlu0 %3567
    %3569 = vrot.lane.b32.xlu0 %v2181, 104
    %v3570 = vpop.permute.xlu0 %3569
    %3571 = vrot.lane.b32.xlu0 %v2186, 104
    %v3572 = vpop.permute.xlu0 %3571
    %v3573 = vsel %vm469, %v3568, 0
    %v3575 = vsel %vm469, %v3570, 0
    %v3577 = vsel %vm469, %v3572, 0
    %3579 = vmatprep.subr.mxu0 0.0
    %3580 = vmatpush1.xpose.msra.mxu0 %v3575
    %3581 = vmatprep.subr.mxu0 0.0
    %3582 = vmatpush1.xpose.msra.mxu0 %v3577
    %3583 = vmatprep.subr.mxu0 0.0
    %3584 = vmatpush1.xpose.msra.mxu0 0.0
    %3585 = vmatprep.subr.mxu0 0.0
    %3586 = vmatpush1.xpose.msra.mxu0 0.0
    %3587 = vmatprep.subr.mxu0 0.0
    %3588 = vmatpush1.xpose.msra.mxu0 0.0
    %3589 = vmatprep.subr.mxu0 0.0
    %3590 = vmatpush1.xpose.msra.mxu0 0.0
    %3591 = vmatprep.subr.mxu0 0.0
    %3592 = vmatpush1.xpose.msra.mxu0 0.0
    %3593 = vmatprep.subr.mxu0 0.0
    %3594 = vmatpush1.xpose.msra.mxu0 0.0
    %3595 = vmatprep.subr.mxu0 0.0
    %3596 = vmatpush1.xpose.msra.mxu0 0.0
    %3597 = vmatprep.subr.mxu0 0.0
    %3598 = vmatpush1.xpose.msra.mxu0 0.0
    %3599 = vmatprep.subr.mxu0 0.0
    %3600 = vmatpush1.xpose.msra.mxu0 0.0
    %3601 = vmatprep.subr.mxu0 0.0
    %3602 = vmatpush1.xpose.msra.mxu0 0.0
    %3603 = vmatprep.subr.mxu0 0.0
    %3604 = vmatpush1.xpose.msra.mxu0 0.0
    %3605 = vmatprep.subr.mxu0 0.0
    %3606 = vmatpush1.xpose.msra.mxu0 0.0
    %3607 = vmatprep.subr.mxu0 0.0
    %3608 = vmatpush1.xpose.msra.mxu0 0.0
    %3609 = vmatprep.subr.mxu0 0.0
    %3610 = vmatpush1.xpose.msra.mxu0 0.0
    %3611 = vmatprep.subr.mxu0 0.0
    %3612 = vmatpush1.xpose.msra.mxu0 0.0
    %3613 = vmatprep.subr.mxu0 0.0
    %3614 = vmatpush1.xpose.msra.mxu0 0.0
    %3615 = vmatprep.subr.mxu0 0.0
    %3616 = vmatpush1.xpose.msra.mxu0 0.0
    %3617 = vmatprep.subr.mxu0 0.0
    %3618 = vmatpush1.xpose.msra.mxu0 0.0
    %3619 = vmatprep.subr.mxu0 0.0
    %3620 = vmatpush1.xpose.msra.mxu0 0.0
    %3621 = vmatprep.subr.mxu0 0.0
    %3622 = vmatpush1.xpose.msra.mxu0 0.0
    %3623 = vmatprep.subr.mxu0 0.0
    %3624 = vmatpush1.xpose.msra.mxu0 0.0
    %3625 = vmatprep.subr.mxu0 0.0
    %3626 = vmatpush1.xpose.msra.mxu0 0.0
    %3627 = vmatprep.subr.mxu0 0.0
    %3628 = vmatpush1.xpose.msra.mxu0 0.0
    %3629 = vmatprep.subr.mxu0 0.0
    %3630 = vmatpush1.xpose.msra.mxu0 0.0
    %3631 = vmatprep.subr.mxu0 0.0
    %3632 = vmatpush1.xpose.msra.mxu0 0.0
    %3633 = vmatprep.subr.mxu0 0.0
    %3634 = vmatpush1.xpose.msra.mxu0 0.0
    %3635 = vmatprep.subr.mxu0 0.0
    %3636 = vmatpush1.xpose.msra.mxu0 0.0
    %3637 = vmatprep.subr.mxu0 0.0
    %3638 = vmatpush1.xpose.msra.mxu0 0.0
    %3639 = vmatprep.subr.mxu0 0.0
    %3640 = vmatpush1.xpose.msra.mxu0 0.0
    %3641 = vmatprep.subr.mxu0 0.0
    %3642 = vmatpush1.xpose.msra.mxu0 0.0
    %3643 = vmatprep.mubr.f32.mxu0 0.0
    %3644 = vmatmul.mubr.f32.gmra.mrb[0].mxu0 %v3573
    %v3645 = vpop.f32.mrb[0].mxu0
    %v3646 = vadd.f32 0.0, %v3645
    %v3647 = vpop.f32.mrb[0].mxu0
    %3648 = vdwg.mxu0
    %v3649 = vmul.f32 %v3646, 0.35355338
    %v3650 = vsel %vm1147, %v3649, -inf
    %3651 = vmax.xlane.f32.xlu0 %v3650
    %v3652 = vpop.xlane.xlu0 %3651
    %v3653 = vsub.f32 %v3649, %v3652
    %v3654 = vmul.f32 %v3653, 1.442695
    %v3655 = vpow.pop %v3654
    %v3656 = vsel %vm1147, %v3655, 0.0
    %3657 = vadd.xlane.f32.xlu0 %v3656
    %v3658 = vpop.xlane.xlu0 %3657
    %v3659 = vrcp.pop %v3658
    %v3660 = vmul.f32 %v3655, %v3659
    %3661 = vrot.lane.b32.xlu0 %v2270, 104
    %v3662 = vpop.permute.xlu0 %3661
    %3663 = vrot.lane.b32.xlu0 %v2275, 104
    %v3664 = vpop.permute.xlu0 %3663
    %v3668 = vsel %vm1147, %v3660, 0
    %3670 = vmatprep.subr.mxu0 0.0
    %3671 = vmatpush1.msra.mxu0 %v3662
    %3672 = vmatprep.subr.mxu0 0.0
    %3673 = vmatpush1.msra.mxu0 %v3664
    %3674 = vmatprep.subr.mxu0 0.0
    %3675 = vmatpush1.msra.mxu0 0.0
    %3676 = vmatprep.subr.mxu0 0.0
    %3677 = vmatpush1.msra.mxu0 0.0
    %3678 = vmatprep.subr.mxu0 0.0
    %3679 = vmatpush1.msra.mxu0 0.0
    %3680 = vmatprep.subr.mxu0 0.0
    %3681 = vmatpush1.msra.mxu0 0.0
    %3682 = vmatprep.subr.mxu0 0.0
    %3683 = vmatpush1.msra.mxu0 0.0
    %3684 = vmatprep.subr.mxu0 0.0
    %3685 = vmatpush1.msra.mxu0 0.0
    %3686 = vmatprep.subr.mxu0 0.0
    %3687 = vmatpush1.msra.mxu0 0.0
    %3688 = vmatprep.subr.mxu0 0.0
    %3689 = vmatpush1.msra.mxu0 0.0
    %3690 = vmatprep.subr.mxu0 0.0
    %3691 = vmatpush1.msra.mxu0 0.0
    %3692 = vmatprep.subr.mxu0 0.0
    %3693 = vmatpush1.msra.mxu0 0.0
    %3694 = vmatprep.subr.mxu0 0.0
    %3695 = vmatpush1.msra.mxu0 0.0
    %3696 = vmatprep.subr.mxu0 0.0
    %3697 = vmatpush1.msra.mxu0 0.0
    %3698 = vmatprep.subr.mxu0 0.0
    %3699 = vmatpush1.msra.mxu0 0.0
    %3700 = vmatprep.subr.mxu0 0.0
    %3701 = vmatpush1.msra.mxu0 0.0
    %3702 = vmatprep.subr.mxu0 0.0
    %3703 = vmatpush1.msra.mxu0 0.0
    %3704 = vmatprep.subr.mxu0 0.0
    %3705 = vmatpush1.msra.mxu0 0.0
    %3706 = vmatprep.subr.mxu0 0.0
    %3707 = vmatpush1.msra.mxu0 0.0
    %3708 = vmatprep.subr.mxu0 0.0
    %3709 = vmatpush1.msra.mxu0 0.0
    %3710 = vmatprep.subr.mxu0 0.0
    %3711 = vmatpush1.msra.mxu0 0.0
    %3712 = vmatprep.subr.mxu0 0.0
    %3713 = vmatpush1.msra.mxu0 0.0
    %3714 = vmatprep.subr.mxu0 0.0
    %3715 = vmatpush1.msra.mxu0 0.0
    %3716 = vmatprep.subr.mxu0 0.0
    %3717 = vmatpush1.msra.mxu0 0.0
    %3718 = vmatprep.subr.mxu0 0.0
    %3719 = vmatpush1.msra.mxu0 0.0
    %3720 = vmatprep.subr.mxu0 0.0
    %3721 = vmatpush1.msra.mxu0 0.0
    %3722 = vmatprep.subr.mxu0 0.0
    %3723 = vmatpush1.msra.mxu0 0.0
    %3724 = vmatprep.subr.mxu0 0.0
    %3725 = vmatpush1.msra.mxu0 0.0
    %3726 = vmatprep.subr.mxu0 0.0
    %3727 = vmatpush1.msra.mxu0 0.0
    %3728 = vmatprep.subr.mxu0 0.0
    %3729 = vmatpush1.msra.mxu0 0.0
    %3730 = vmatprep.subr.mxu0 0.0
    %3731 = vmatpush1.msra.mxu0 0.0
    %3732 = vmatprep.subr.mxu0 0.0
    %3733 = vmatpush1.msra.mxu0 0.0
    %3734 = vmatprep.mubr.f32.mxu0 0.0
    %3735 = vmatmul.mubr.f32.gmra.mrb[0].mxu0 %v3668
    %v3736 = vpop.f32.mrb[0].mxu0
    %v3737 = vadd.f32 0.0, %v3736
    %v3738 = vpop.f32.mrb[0].mxu0
    %3739 = vdwg.mxu0
    %3741 = vrot.lane.b32.xlu0 %v3391, 8
    %v3742 = vpop.permute.xlu0 %3741
    %3745 = vrot.lane.b32.xlu0 %v3564, 16
    %v3746 = vpop.permute.xlu0 %3745
    %3749 = vrot.lane.b32.xlu0 %v3737, 24
    %v3750 = vpop.permute.xlu0 %3749
    %v3752 = vsel %vm469, %v3216, %v3742
    %v3753 = vsel %vm1147, %v3752, %v3746
    %v3754 = vsel %vm1149, %v3753, %v3750
    %v3756 = vsel %vm165, %v3754, 0
    %3758 = vmatprep.subr.mxu0 0.0
    %3759 = vmatpush1.msra.mxu0 %v1997
    %3760 = vmatprep.subr.mxu0 0.0
    %3761 = vmatpush1.msra.mxu0 %v1998
    %3762 = vmatprep.subr.mxu0 0.0
    %3763 = vmatpush1.msra.mxu0 %v1999
    %3764 = vmatprep.subr.mxu0 0.0
    %3765 = vmatpush1.msra.mxu0 %v2000
    %3766 = vmatprep.subr.mxu0 0.0
    %3767 = vmatpush1.msra.mxu0 0.0
    %3768 = vmatprep.subr.mxu0 0.0
    %3769 = vmatpush1.msra.mxu0 0.0
    %3770 = vmatprep.subr.mxu0 0.0
    %3771 = vmatpush1.msra.mxu0 0.0
    %3772 = vmatprep.subr.mxu0 0.0
    %3773 = vmatpush1.msra.mxu0 0.0
    %3774 = vmatprep.subr.mxu0 0.0
    %3775 = vmatpush1.msra.mxu0 0.0
    %3776 = vmatprep.subr.mxu0 0.0
    %3777 = vmatpush1.msra.mxu0 0.0
    %3778 = vmatprep.subr.mxu0 0.0
    %3779 = vmatpush1.msra.mxu0 0.0
    %3780 = vmatprep.subr.mxu0 0.0
    %3781 = vmatpush1.msra.mxu0 0.0
    %3782 = vmatprep.subr.mxu0 0.0
    %3783 = vmatpush1.msra.mxu0 0.0
    %3784 = vmatprep.subr.mxu0 0.0
    %3785 = vmatpush1.msra.mxu0 0.0
    %3786 = vmatprep.subr.mxu0 0.0
    %3787 = vmatpush1.msra.mxu0 0.0
    %3788 = vmatprep.subr.mxu0 0.0
    %3789 = vmatpush1.msra.mxu0 0.0
    %3790 = vmatprep.subr.mxu0 0.0
    %3791 = vmatpush1.msra.mxu0 0.0
    %3792 = vmatprep.subr.mxu0 0.0
    %3793 = vmatpush1.msra.mxu0 0.0
    %3794 = vmatprep.subr.mxu0 0.0
    %3795 = vmatpush1.msra.mxu0 0.0
    %3796 = vmatprep.subr.mxu0 0.0
    %3797 = vmatpush1.msra.mxu0 0.0
    %3798 = vmatprep.subr.mxu0 0.0
    %3799 = vmatpush1.msra.mxu0 0.0
    %3800 = vmatprep.subr.mxu0 0.0
    %3801 = vmatpush1.msra.mxu0 0.0
    %3802 = vmatprep.subr.mxu0 0.0
    %3803 = vmatpush1.msra.mxu0 0.0
    %3804 = vmatprep.subr.mxu0 0.0
    %3805 = vmatpush1.msra.mxu0 0.0
    %3806 = vmatprep.subr.mxu0 0.0
    %3807 = vmatpush1.msra.mxu0 0.0
    %3808 = vmatprep.subr.mxu0 0.0
    %3809 = vmatpush1.msra.mxu0 0.0
    %3810 = vmatprep.subr.mxu0 0.0
    %3811 = vmatpush1.msra.mxu0 0.0
    %3812 = vmatprep.subr.mxu0 0.0
    %3813 = vmatpush1.msra.mxu0 0.0
    %3814 = vmatprep.subr.mxu0 0.0
    %3815 = vmatpush1.msra.mxu0 0.0
    %3816 = vmatprep.subr.mxu0 0.0
    %3817 = vmatpush1.msra.mxu0 0.0
    %3818 = vmatprep.subr.mxu0 0.0
    %3819 = vmatpush1.msra.mxu0 0.0
    %3820 = vmatprep.subr.mxu0 0.0
    %3821 = vmatpush1.msra.mxu0 0.0
    %3822 = vmatprep.mubr.f32.mxu0 0.0
    %3823 = vmatmul.mubr.f32.gmra.mrb[0].mxu0 %v3756
    %v3824 = vpop.f32.mrb[0].mxu0
    %v3825 = vadd.f32 %v2981, %v3824
    %v3826 = vpop.f32.mrb[0].mxu0
    %3827 = vdwg.mxu0
    %s3828 = scalar_lea.vmem %s4, 256
    %v3829 = vld [vmem:[%s3828] sm:$0xff]
    %v3830 = vld [vmem:[%s3828 + $0x8] sm:$0xff]
    %v3831 = vld [vmem:[%s3828 + $0x10] sm:$0xff]
    %v3832 = vld [vmem:[%s3828 + $0x18] sm:$0xff]
    %v3833 = vld [vmem:[%s3828 + $0x20] sm:$0xff]
    %v3834 = vld [vmem:[%s3828 + $0x28] sm:$0xff]
    %v3835 = vld [vmem:[%s3828 + $0x30] sm:$0xff]
    %v3836 = vld [vmem:[%s3828 + $0x38] sm:$0xff]
    %v3837 = vld [vmem:[%s3828 + $0x40] sm:$0xff]
    %v3838 = vld [vmem:[%s3828 + $0x48] sm:$0xff]
    %v3839 = vld [vmem:[%s3828 + $0x50] sm:$0xff]
    %v3840 = vld [vmem:[%s3828 + $0x58] sm:$0xff]
    %v3841 = vld [vmem:[%s3828 + $0x60] sm:$0xff]
    %v3842 = vld [vmem:[%s3828 + $0x68] sm:$0xff]
    %v3843 = vld [vmem:[%s3828 + $0x70] sm:$0xff]
    %v3844 = vld [vmem:[%s3828 + $0x78] sm:$0xff]
    %s3845 = scalar_lea.vmem %s5, 8
    %v3846 = vld [vmem:[%s3845] sm:$0xf]
    %v3847 = vlaneseq
    %v3848 = vshrl.u32 %v3847, 7
    %v3849 = vsub.s32 0, %v3848
    %v3850 = vrot.slane %v3846, %v3849
    %v3852 = vsel %vm165, %v3052, 0
    %v3855 = vsel %vm165, %v3825, 0
    %3857 = vmatprep.subr.mxu0 0.0
    %3858 = vmatpush1.msra.mxu0 %v3829
    %3859 = vmatprep.subr.mxu0 0.0
    %3860 = vmatpush1.msra.mxu0 %v3830
    %3861 = vmatprep.subr.mxu0 0.0
    %3862 = vmatpush1.msra.mxu0 %v3831
    %3863 = vmatprep.subr.mxu0 0.0
    %3864 = vmatpush1.msra.mxu0 %v3832
    %3865 = vmatprep.subr.mxu0 0.0
    %3866 = vmatpush1.msra.mxu0 0.0
    %3867 = vmatprep.subr.mxu0 0.0
    %3868 = vmatpush1.msra.mxu0 0.0
    %3869 = vmatprep.subr.mxu0 0.0
    %3870 = vmatpush1.msra.mxu0 0.0
    %3871 = vmatprep.subr.mxu0 0.0
    %3872 = vmatpush1.msra.mxu0 0.0
    %3873 = vmatprep.subr.mxu0 0.0
    %3874 = vmatpush1.msra.mxu0 0.0
    %3875 = vmatprep.subr.mxu0 0.0
    %3876 = vmatpush1.msra.mxu0 0.0
    %3877 = vmatprep.subr.mxu0 0.0
    %3878 = vmatpush1.msra.mxu0 0.0
    %3879 = vmatprep.subr.mxu0 0.0
    %3880 = vmatpush1.msra.mxu0 0.0
    %3881 = vmatprep.subr.mxu0 0.0
    %3882 = vmatpush1.msra.mxu0 0.0
    %3883 = vmatprep.subr.mxu0 0.0
    %3884 = vmatpush1.msra.mxu0 0.0
    %3885 = vmatprep.subr.mxu0 0.0
    %3886 = vmatpush1.msra.mxu0 0.0
    %3887 = vmatprep.subr.mxu0 0.0
    %3888 = vmatpush1.msra.mxu0 0.0
    %3889 = vmatprep.subr.mxu0 0.0
    %3890 = vmatpush1.msra.mxu0 0.0
    %3891 = vmatprep.subr.mxu0 0.0
    %3892 = vmatpush1.msra.mxu0 0.0
    %3893 = vmatprep.subr.mxu0 0.0
    %3894 = vmatpush1.msra.mxu0 0.0
    %3895 = vmatprep.subr.mxu0 0.0
    %3896 = vmatpush1.msra.mxu0 0.0
    %3897 = vmatprep.subr.mxu0 0.0
    %3898 = vmatpush1.msra.mxu0 0.0
    %3899 = vmatprep.subr.mxu0 0.0
    %3900 = vmatpush1.msra.mxu0 0.0
    %3901 = vmatprep.subr.mxu0 0.0
    %3902 = vmatpush1.msra.mxu0 0.0
    %3903 = vmatprep.subr.mxu0 0.0
    %3904 = vmatpush1.msra.mxu0 0.0
    %3905 = vmatprep.subr.mxu0 0.0
    %3906 = vmatpush1.msra.mxu0 0.0
    %3907 = vmatprep.subr.mxu0 0.0
    %3908 = vmatpush1.msra.mxu0 0.0
    %3909 = vmatprep.subr.mxu0 0.0
    %3910 = vmatpush1.msra.mxu0 0.0
    %3911 = vmatprep.subr.mxu0 0.0
    %3912 = vmatpush1.msra.mxu0 0.0
    %3913 = vmatprep.subr.mxu0 0.0
    %3914 = vmatpush1.msra.mxu0 0.0
    %3915 = vmatprep.subr.mxu0 0.0
    %3916 = vmatpush1.msra.mxu0 0.0
    %3917 = vmatprep.subr.mxu0 0.0
    %3918 = vmatpush1.msra.mxu0 0.0
    %3919 = vmatprep.subr.mxu0 0.0
    %3920 = vmatpush1.msra.mxu0 0.0
    %3921 = vmatprep.mubr.f32.mxu0 0.0
    %3922 = vmatmul.mubr.f32.gmra.mrb[0].mxu0 %v3852
    %v3923 = vpop.f32.mrb[0].mxu0
    %v3924 = vadd.f32 %v3850, %v3923
    %v3925 = vpop.f32.mrb[0].mxu0
    %3926 = vmatprep.mubr.f32.mxu0 0.0
    %3927 = vmatmul.mubr.f32.gmra.mrb[0].mxu0 %v3855
    %v3928 = vpop.f32.mrb[0].mxu0
    %v3929 = vadd.f32 %v3850, %v3928
    %v3930 = vpop.f32.mrb[0].mxu0
    %3931 = vdwg.mxu0
    %v3932 = vlaneseq
    %v3933 = vshrl.u32 %v3932, 7
    %v3934 = vsub.s32 1, %v3933
    %v3935 = vrot.slane %v3846, %v3934
    %3936 = vmatprep.subr.mxu0 0.0
    %3937 = vmatpush1.msra.mxu0 %v3833
    %3938 = vmatprep.subr.mxu0 0.0
    %3939 = vmatpush1.msra.mxu0 %v3834
    %3940 = vmatprep.subr.mxu0 0.0
    %3941 = vmatpush1.msra.mxu0 %v3835
    %3942 = vmatprep.subr.mxu0 0.0
    %3943 = vmatpush1.msra.mxu0 %v3836
    %3944 = vmatprep.subr.mxu0 0.0
    %3945 = vmatpush1.msra.mxu0 0.0
    %3946 = vmatprep.subr.mxu0 0.0
    %3947 = vmatpush1.msra.mxu0 0.0
    %3948 = vmatprep.subr.mxu0 0.0
    %3949 = vmatpush1.msra.mxu0 0.0
    %3950 = vmatprep.subr.mxu0 0.0
    %3951 = vmatpush1.msra.mxu0 0.0
    %3952 = vmatprep.subr.mxu0 0.0
    %3953 = vmatpush1.msra.mxu0 0.0
    %3954 = vmatprep.subr.mxu0 0.0
    %3955 = vmatpush1.msra.mxu0 0.0
    %3956 = vmatprep.subr.mxu0 0.0
    %3957 = vmatpush1.msra.mxu0 0.0
    %3958 = vmatprep.subr.mxu0 0.0
    %3959 = vmatpush1.msra.mxu0 0.0
    %3960 = vmatprep.subr.mxu0 0.0
    %3961 = vmatpush1.msra.mxu0 0.0
    %3962 = vmatprep.subr.mxu0 0.0
    %3963 = vmatpush1.msra.mxu0 0.0
    %3964 = vmatprep.subr.mxu0 0.0
    %3965 = vmatpush1.msra.mxu0 0.0
    %3966 = vmatprep.subr.mxu0 0.0
    %3967 = vmatpush1.msra.mxu0 0.0
    %3968 = vmatprep.subr.mxu0 0.0
    %3969 = vmatpush1.msra.mxu0 0.0
    %3970 = vmatprep.subr.mxu0 0.0
    %3971 = vmatpush1.msra.mxu0 0.0
    %3972 = vmatprep.subr.mxu0 0.0
    %3973 = vmatpush1.msra.mxu0 0.0
    %3974 = vmatprep.subr.mxu0 0.0
    %3975 = vmatpush1.msra.mxu0 0.0
    %3976 = vmatprep.subr.mxu0 0.0
    %3977 = vmatpush1.msra.mxu0 0.0
    %3978 = vmatprep.subr.mxu0 0.0
    %3979 = vmatpush1.msra.mxu0 0.0
    %3980 = vmatprep.subr.mxu0 0.0
    %3981 = vmatpush1.msra.mxu0 0.0
    %3982 = vmatprep.subr.mxu0 0.0
    %3983 = vmatpush1.msra.mxu0 0.0
    %3984 = vmatprep.subr.mxu0 0.0
    %3985 = vmatpush1.msra.mxu0 0.0
    %3986 = vmatprep.subr.mxu0 0.0
    %3987 = vmatpush1.msra.mxu0 0.0
    %3988 = vmatprep.subr.mxu0 0.0
    %3989 = vmatpush1.msra.mxu0 0.0
    %3990 = vmatprep.subr.mxu0 0.0
    %3991 = vmatpush1.msra.mxu0 0.0
    %3992 = vmatprep.subr.mxu0 0.0
    %3993 = vmatpush1.msra.mxu0 0.0
    %3994 = vmatprep.subr.mxu0 0.0
    %3995 = vmatpush1.msra.mxu0 0.0
    %3996 = vmatprep.subr.mxu0 0.0
    %3997 = vmatpush1.msra.mxu0 0.0
    %3998 = vmatprep.subr.mxu0 0.0
    %3999 = vmatpush1.msra.mxu0 0.0
    %4000 = vmatprep.mubr.f32.mxu0 0.0
    %4001 = vmatmul.mubr.f32.gmra.mrb[0].mxu0 %v2093
    %v4002 = vpop.f32.mrb[0].mxu0
    %v4003 = vadd.f32 %v3935, %v4002
    %v4004 = vpop.f32.mrb[0].mxu0
    %4005 = vmatprep.mubr.f32.mxu0 0.0
    %4006 = vmatmul.mubr.f32.gmra.mrb[0].mxu0 %v2096
    %v4007 = vpop.f32.mrb[0].mxu0
    %v4008 = vadd.f32 %v3935, %v4007
    %v4009 = vpop.f32.mrb[0].mxu0
    %4010 = vmatprep.mubr.f32.mxu0 0.0
    %4011 = vmatmul.mubr.f32.gmra.mrb[0].mxu0 %v2099
    %v4012 = vpop.f32.mrb[0].mxu0
    %v4013 = vadd.f32 %v3935, %v4012
    %v4014 = vpop.f32.mrb[0].mxu0
    %4015 = vmatprep.mubr.f32.mxu0 0.0
    %4016 = vmatmul.mubr.f32.gmra.mrb[0].mxu0 %v2102
    %v4017 = vpop.f32.mrb[0].mxu0
    %v4018 = vadd.f32 %v3935, %v4017
    %v4019 = vpop.f32.mrb[0].mxu0
    %4020 = vdwg.mxu0
    %v4021 = vlaneseq
    %v4022 = vshrl.u32 %v4021, 7
    %v4023 = vsub.s32 2, %v4022
    %v4024 = vrot.slane %v3846, %v4023
    %4025 = vmatprep.subr.mxu0 0.0
    %4026 = vmatpush1.msra.mxu0 %v3837
    %4027 = vmatprep.subr.mxu0 0.0
    %4028 = vmatpush1.msra.mxu0 %v3838
    %4029 = vmatprep.subr.mxu0 0.0
    %4030 = vmatpush1.msra.mxu0 %v3839
    %4031 = vmatprep.subr.mxu0 0.0
    %4032 = vmatpush1.msra.mxu0 %v3840
    %4033 = vmatprep.subr.mxu0 0.0
    %4034 = vmatpush1.msra.mxu0 0.0
    %4035 = vmatprep.subr.mxu0 0.0
    %4036 = vmatpush1.msra.mxu0 0.0
    %4037 = vmatprep.subr.mxu0 0.0
    %4038 = vmatpush1.msra.mxu0 0.0
    %4039 = vmatprep.subr.mxu0 0.0
    %4040 = vmatpush1.msra.mxu0 0.0
    %4041 = vmatprep.subr.mxu0 0.0
    %4042 = vmatpush1.msra.mxu0 0.0
    %4043 = vmatprep.subr.mxu0 0.0
    %4044 = vmatpush1.msra.mxu0 0.0
    %4045 = vmatprep.subr.mxu0 0.0
    %4046 = vmatpush1.msra.mxu0 0.0
    %4047 = vmatprep.subr.mxu0 0.0
    %4048 = vmatpush1.msra.mxu0 0.0
    %4049 = vmatprep.subr.mxu0 0.0
    %4050 = vmatpush1.msra.mxu0 0.0
    %4051 = vmatprep.subr.mxu0 0.0
    %4052 = vmatpush1.msra.mxu0 0.0
    %4053 = vmatprep.subr.mxu0 0.0
    %4054 = vmatpush1.msra.mxu0 0.0
    %4055 = vmatprep.subr.mxu0 0.0
    %4056 = vmatpush1.msra.mxu0 0.0
    %4057 = vmatprep.subr.mxu0 0.0
    %4058 = vmatpush1.msra.mxu0 0.0
    %4059 = vmatprep.subr.mxu0 0.0
    %4060 = vmatpush1.msra.mxu0 0.0
    %4061 = vmatprep.subr.mxu0 0.0
    %4062 = vmatpush1.msra.mxu0 0.0
    %4063 = vmatprep.subr.mxu0 0.0
    %4064 = vmatpush1.msra.mxu0 0.0
    %4065 = vmatprep.subr.mxu0 0.0
    %4066 = vmatpush1.msra.mxu0 0.0
    %4067 = vmatprep.subr.mxu0 0.0
    %4068 = vmatpush1.msra.mxu0 0.0
    %4069 = vmatprep.subr.mxu0 0.0
    %4070 = vmatpush1.msra.mxu0 0.0
    %4071 = vmatprep.subr.mxu0 0.0
    %4072 = vmatpush1.msra.mxu0 0.0
    %4073 = vmatprep.subr.mxu0 0.0
    %4074 = vmatpush1.msra.mxu0 0.0
    %4075 = vmatprep.subr.mxu0 0.0
    %4076 = vmatpush1.msra.mxu0 0.0
    %4077 = vmatprep.subr.mxu0 0.0
    %4078 = vmatpush1.msra.mxu0 0.0
    %4079 = vmatprep.subr.mxu0 0.0
    %4080 = vmatpush1.msra.mxu0 0.0
    %4081 = vmatprep.subr.mxu0 0.0
    %4082 = vmatpush1.msra.mxu0 0.0
    %4083 = vmatprep.subr.mxu0 0.0
    %4084 = vmatpush1.msra.mxu0 0.0
    %4085 = vmatprep.subr.mxu0 0.0
    %4086 = vmatpush1.msra.mxu0 0.0
    %4087 = vmatprep.subr.mxu0 0.0
    %4088 = vmatpush1.msra.mxu0 0.0
    %4089 = vmatprep.mubr.f32.mxu0 0.0
    %4090 = vmatmul.mubr.f32.gmra.mrb[0].mxu0 %v2093
    %v4091 = vpop.f32.mrb[0].mxu0
    %v4092 = vadd.f32 %v4024, %v4091
    %v4093 = vpop.f32.mrb[0].mxu0
    %4094 = vmatprep.mubr.f32.mxu0 0.0
    %4095 = vmatmul.mubr.f32.gmra.mrb[0].mxu0 %v2096
    %v4096 = vpop.f32.mrb[0].mxu0
    %v4097 = vadd.f32 %v4024, %v4096
    %v4098 = vpop.f32.mrb[0].mxu0
    %4099 = vmatprep.mubr.f32.mxu0 0.0
    %4100 = vmatmul.mubr.f32.gmra.mrb[0].mxu0 %v2099
    %v4101 = vpop.f32.mrb[0].mxu0
    %v4102 = vadd.f32 %v4024, %v4101
    %v4103 = vpop.f32.mrb[0].mxu0
    %4104 = vmatprep.mubr.f32.mxu0 0.0
    %4105 = vmatmul.mubr.f32.gmra.mrb[0].mxu0 %v2102
    %v4106 = vpop.f32.mrb[0].mxu0
    %v4107 = vadd.f32 %v4024, %v4106
    %v4108 = vpop.f32.mrb[0].mxu0
    %4109 = vdwg.mxu0
    %v4111 = vsel %vm469, %v3924, 0
    %v4114 = vsel %vm469, %v4003, 0
    %v4117 = vsel %vm469, %v4008, 0
    %4119 = vmatprep.subr.mxu0 0.0
    %4120 = vmatpush1.xpose.msra.mxu0 %v4114
    %4121 = vmatprep.subr.mxu0 0.0
    %4122 = vmatpush1.xpose.msra.mxu0 %v4117
    %4123 = vmatprep.subr.mxu0 0.0
    %4124 = vmatpush1.xpose.msra.mxu0 0.0
    %4125 = vmatprep.subr.mxu0 0.0
    %4126 = vmatpush1.xpose.msra.mxu0 0.0
    %4127 = vmatprep.subr.mxu0 0.0
    %4128 = vmatpush1.xpose.msra.mxu0 0.0
    %4129 = vmatprep.subr.mxu0 0.0
    %4130 = vmatpush1.xpose.msra.mxu0 0.0
    %4131 = vmatprep.subr.mxu0 0.0
    %4132 = vmatpush1.xpose.msra.mxu0 0.0
    %4133 = vmatprep.subr.mxu0 0.0
    %4134 = vmatpush1.xpose.msra.mxu0 0.0
    %4135 = vmatprep.subr.mxu0 0.0
    %4136 = vmatpush1.xpose.msra.mxu0 0.0
    %4137 = vmatprep.subr.mxu0 0.0
    %4138 = vmatpush1.xpose.msra.mxu0 0.0
    %4139 = vmatprep.subr.mxu0 0.0
    %4140 = vmatpush1.xpose.msra.mxu0 0.0
    %4141 = vmatprep.subr.mxu0 0.0
    %4142 = vmatpush1.xpose.msra.mxu0 0.0
    %4143 = vmatprep.subr.mxu0 0.0
    %4144 = vmatpush1.xpose.msra.mxu0 0.0
    %4145 = vmatprep.subr.mxu0 0.0
    %4146 = vmatpush1.xpose.msra.mxu0 0.0
    %4147 = vmatprep.subr.mxu0 0.0
    %4148 = vmatpush1.xpose.msra.mxu0 0.0
    %4149 = vmatprep.subr.mxu0 0.0
    %4150 = vmatpush1.xpose.msra.mxu0 0.0
    %4151 = vmatprep.subr.mxu0 0.0
    %4152 = vmatpush1.xpose.msra.mxu0 0.0
    %4153 = vmatprep.subr.mxu0 0.0
    %4154 = vmatpush1.xpose.msra.mxu0 0.0
    %4155 = vmatprep.subr.mxu0 0.0
    %4156 = vmatpush1.xpose.msra.mxu0 0.0
    %4157 = vmatprep.subr.mxu0 0.0
    %4158 = vmatpush1.xpose.msra.mxu0 0.0
    %4159 = vmatprep.subr.mxu0 0.0
    %4160 = vmatpush1.xpose.msra.mxu0 0.0
    %4161 = vmatprep.subr.mxu0 0.0
    %4162 = vmatpush1.xpose.msra.mxu0 0.0
    %4163 = vmatprep.subr.mxu0 0.0
    %4164 = vmatpush1.xpose.msra.mxu0 0.0
    %4165 = vmatprep.subr.mxu0 0.0
    %4166 = vmatpush1.xpose.msra.mxu0 0.0
    %4167 = vmatprep.subr.mxu0 0.0
    %4168 = vmatpush1.xpose.msra.mxu0 0.0
    %4169 = vmatprep.subr.mxu0 0.0
    %4170 = vmatpush1.xpose.msra.mxu0 0.0
    %4171 = vmatprep.subr.mxu0 0.0
    %4172 = vmatpush1.xpose.msra.mxu0 0.0
    %4173 = vmatprep.subr.mxu0 0.0
    %4174 = vmatpush1.xpose.msra.mxu0 0.0
    %4175 = vmatprep.subr.mxu0 0.0
    %4176 = vmatpush1.xpose.msra.mxu0 0.0
    %4177 = vmatprep.subr.mxu0 0.0
    %4178 = vmatpush1.xpose.msra.mxu0 0.0
    %4179 = vmatprep.subr.mxu0 0.0
    %4180 = vmatpush1.xpose.msra.mxu0 0.0
    %4181 = vmatprep.subr.mxu0 0.0
    %4182 = vmatpush1.xpose.msra.mxu0 0.0
    %4183 = vmatprep.mubr.f32.mxu0 0.0
    %4184 = vmatmul.mubr.f32.gmra.mrb[0].mxu0 %v4111
    %v4185 = vpop.f32.mrb[0].mxu0
    %v4186 = vadd.f32 0.0, %v4185
    %v4187 = vpop.f32.mrb[0].mxu0
    %4188 = vdwg.mxu0
    %v4189 = vmul.f32 %v4186, 0.35355338
    %v4190 = vsel %vm1147, %v4189, -inf
    %4191 = vmax.xlane.f32.xlu0 %v4190
    %v4192 = vpop.xlane.xlu0 %4191
    %v4193 = vsub.f32 %v4189, %v4192
    %v4194 = vmul.f32 %v4193, 1.442695
    %v4195 = vpow.pop %v4194
    %v4196 = vsel %vm1147, %v4195, 0.0
    %4197 = vadd.xlane.f32.xlu0 %v4196
    %v4198 = vpop.xlane.xlu0 %4197
    %v4199 = vrcp.pop %v4198
    %v4200 = vmul.f32 %v4195, %v4199
    %v4202 = vsel %vm1147, %v4200, 0
    %4204 = vmatprep.subr.mxu0 0.0
    %4205 = vmatpush1.msra.mxu0 %v4092
    %4206 = vmatprep.subr.mxu0 0.0
    %4207 = vmatpush1.msra.mxu0 %v4097
    %4208 = vmatprep.subr.mxu0 0.0
    %4209 = vmatpush1.msra.mxu0 0.0
    %4210 = vmatprep.subr.mxu0 0.0
    %4211 = vmatpush1.msra.mxu0 0.0
    %4212 = vmatprep.subr.mxu0 0.0
    %4213 = vmatpush1.msra.mxu0 0.0
    %4214 = vmatprep.subr.mxu0 0.0
    %4215 = vmatpush1.msra.mxu0 0.0
    %4216 = vmatprep.subr.mxu0 0.0
    %4217 = vmatpush1.msra.mxu0 0.0
    %4218 = vmatprep.subr.mxu0 0.0
    %4219 = vmatpush1.msra.mxu0 0.0
    %4220 = vmatprep.subr.mxu0 0.0
    %4221 = vmatpush1.msra.mxu0 0.0
    %4222 = vmatprep.subr.mxu0 0.0
    %4223 = vmatpush1.msra.mxu0 0.0
    %4224 = vmatprep.subr.mxu0 0.0
    %4225 = vmatpush1.msra.mxu0 0.0
    %4226 = vmatprep.subr.mxu0 0.0
    %4227 = vmatpush1.msra.mxu0 0.0
    %4228 = vmatprep.subr.mxu0 0.0
    %4229 = vmatpush1.msra.mxu0 0.0
    %4230 = vmatprep.subr.mxu0 0.0
    %4231 = vmatpush1.msra.mxu0 0.0
    %4232 = vmatprep.subr.mxu0 0.0
    %4233 = vmatpush1.msra.mxu0 0.0
    %4234 = vmatprep.subr.mxu0 0.0
    %4235 = vmatpush1.msra.mxu0 0.0
    %4236 = vmatprep.subr.mxu0 0.0
    %4237 = vmatpush1.msra.mxu0 0.0
    %4238 = vmatprep.subr.mxu0 0.0
    %4239 = vmatpush1.msra.mxu0 0.0
    %4240 = vmatprep.subr.mxu0 0.0
    %4241 = vmatpush1.msra.mxu0 0.0
    %4242 = vmatprep.subr.mxu0 0.0
    %4243 = vmatpush1.msra.mxu0 0.0
    %4244 = vmatprep.subr.mxu0 0.0
    %4245 = vmatpush1.msra.mxu0 0.0
    %4246 = vmatprep.subr.mxu0 0.0
    %4247 = vmatpush1.msra.mxu0 0.0
    %4248 = vmatprep.subr.mxu0 0.0
    %4249 = vmatpush1.msra.mxu0 0.0
    %4250 = vmatprep.subr.mxu0 0.0
    %4251 = vmatpush1.msra.mxu0 0.0
    %4252 = vmatprep.subr.mxu0 0.0
    %4253 = vmatpush1.msra.mxu0 0.0
    %4254 = vmatprep.subr.mxu0 0.0
    %4255 = vmatpush1.msra.mxu0 0.0
    %4256 = vmatprep.subr.mxu0 0.0
    %4257 = vmatpush1.msra.mxu0 0.0
    %4258 = vmatprep.subr.mxu0 0.0
    %4259 = vmatpush1.msra.mxu0 0.0
    %4260 = vmatprep.subr.mxu0 0.0
    %4261 = vmatpush1.msra.mxu0 0.0
    %4262 = vmatprep.subr.mxu0 0.0
    %4263 = vmatpush1.msra.mxu0 0.0
    %4264 = vmatprep.subr.mxu0 0.0
    %4265 = vmatpush1.msra.mxu0 0.0
    %4266 = vmatprep.subr.mxu0 0.0
    %4267 = vmatpush1.msra.mxu0 0.0
    %4268 = vmatprep.mubr.f32.mxu0 0.0
    %4269 = vmatmul.mubr.f32.gmra.mrb[0].mxu0 %v4202
    %v4270 = vpop.f32.mrb[0].mxu0
    %v4271 = vadd.f32 0.0, %v4270
    %v4272 = vpop.f32.mrb[0].mxu0
    %4273 = vdwg.mxu0
    %4274 = vrot.lane.b32.xlu0 %v3924, 120
    %v4275 = vpop.permute.xlu0 %4274
    %4276 = vrot.lane.b32.xlu0 %v4003, 120
    %v4277 = vpop.permute.xlu0 %4276
    %4278 = vrot.lane.b32.xlu0 %v4008, 120
    %v4279 = vpop.permute.xlu0 %4278
    %v4280 = vsel %vm469, %v4275, 0
    %v4282 = vsel %vm469, %v4277, 0
    %v4284 = vsel %vm469, %v4279, 0
    %4286 = vmatprep.subr.mxu0 0.0
    %4287 = vmatpush1.xpose.msra.mxu0 %v4282
    %4288 = vmatprep.subr.mxu0 0.0
    %4289 = vmatpush1.xpose.msra.mxu0 %v4284
    %4290 = vmatprep.subr.mxu0 0.0
    %4291 = vmatpush1.xpose.msra.mxu0 0.0
    %4292 = vmatprep.subr.mxu0 0.0
    %4293 = vmatpush1.xpose.msra.mxu0 0.0
    %4294 = vmatprep.subr.mxu0 0.0
    %4295 = vmatpush1.xpose.msra.mxu0 0.0
    %4296 = vmatprep.subr.mxu0 0.0
    %4297 = vmatpush1.xpose.msra.mxu0 0.0
    %4298 = vmatprep.subr.mxu0 0.0
    %4299 = vmatpush1.xpose.msra.mxu0 0.0
    %4300 = vmatprep.subr.mxu0 0.0
    %4301 = vmatpush1.xpose.msra.mxu0 0.0
    %4302 = vmatprep.subr.mxu0 0.0
    %4303 = vmatpush1.xpose.msra.mxu0 0.0
    %4304 = vmatprep.subr.mxu0 0.0
    %4305 = vmatpush1.xpose.msra.mxu0 0.0
    %4306 = vmatprep.subr.mxu0 0.0
    %4307 = vmatpush1.xpose.msra.mxu0 0.0
    %4308 = vmatprep.subr.mxu0 0.0
    %4309 = vmatpush1.xpose.msra.mxu0 0.0
    %4310 = vmatprep.subr.mxu0 0.0
    %4311 = vmatpush1.xpose.msra.mxu0 0.0
    %4312 = vmatprep.subr.mxu0 0.0
    %4313 = vmatpush1.xpose.msra.mxu0 0.0
    %4314 = vmatprep.subr.mxu0 0.0
    %4315 = vmatpush1.xpose.msra.mxu0 0.0
    %4316 = vmatprep.subr.mxu0 0.0
    %4317 = vmatpush1.xpose.msra.mxu0 0.0
    %4318 = vmatprep.subr.mxu0 0.0
    %4319 = vmatpush1.xpose.msra.mxu0 0.0
    %4320 = vmatprep.subr.mxu0 0.0
    %4321 = vmatpush1.xpose.msra.mxu0 0.0
    %4322 = vmatprep.subr.mxu0 0.0
    %4323 = vmatpush1.xpose.msra.mxu0 0.0
    %4324 = vmatprep.subr.mxu0 0.0
    %4325 = vmatpush1.xpose.msra.mxu0 0.0
    %4326 = vmatprep.subr.mxu0 0.0
    %4327 = vmatpush1.xpose.msra.mxu0 0.0
    %4328 = vmatprep.subr.mxu0 0.0
    %4329 = vmatpush1.xpose.msra.mxu0 0.0
    %4330 = vmatprep.subr.mxu0 0.0
    %4331 = vmatpush1.xpose.msra.mxu0 0.0
    %4332 = vmatprep.subr.mxu0 0.0
    %4333 = vmatpush1.xpose.msra.mxu0 0.0
    %4334 = vmatprep.subr.mxu0 0.0
    %4335 = vmatpush1.xpose.msra.mxu0 0.0
    %4336 = vmatprep.subr.mxu0 0.0
    %4337 = vmatpush1.xpose.msra.mxu0 0.0
    %4338 = vmatprep.subr.mxu0 0.0
    %4339 = vmatpush1.xpose.msra.mxu0 0.0
    %4340 = vmatprep.subr.mxu0 0.0
    %4341 = vmatpush1.xpose.msra.mxu0 0.0
    %4342 = vmatprep.subr.mxu0 0.0
    %4343 = vmatpush1.xpose.msra.mxu0 0.0
    %4344 = vmatprep.subr.mxu0 0.0
    %4345 = vmatpush1.xpose.msra.mxu0 0.0
    %4346 = vmatprep.subr.mxu0 0.0
    %4347 = vmatpush1.xpose.msra.mxu0 0.0
    %4348 = vmatprep.subr.mxu0 0.0
    %4349 = vmatpush1.xpose.msra.mxu0 0.0
    %4350 = vmatprep.mubr.f32.mxu0 0.0
    %4351 = vmatmul.mubr.f32.gmra.mrb[0].mxu0 %v4280
    %v4352 = vpop.f32.mrb[0].mxu0
    %v4353 = vadd.f32 0.0, %v4352
    %v4354 = vpop.f32.mrb[0].mxu0
    %4355 = vdwg.mxu0
    %v4356 = vmul.f32 %v4353, 0.35355338
    %v4357 = vsel %vm1147, %v4356, -inf
    %4358 = vmax.xlane.f32.xlu0 %v4357
    %v4359 = vpop.xlane.xlu0 %4358
    %v4360 = vsub.f32 %v4356, %v4359
    %v4361 = vmul.f32 %v4360, 1.442695
    %v4362 = vpow.pop %v4361
    %v4363 = vsel %vm1147, %v4362, 0.0
    %4364 = vadd.xlane.f32.xlu0 %v4363
    %v4365 = vpop.xlane.xlu0 %4364
    %v4366 = vrcp.pop %v4365
    %v4367 = vmul.f32 %v4362, %v4366
    %4370 = vrot.lane.b32.xlu0 %v4092, 120
    %v4371 = vpop.permute.xlu0 %4370
    %4372 = vrot.lane.b32.xlu0 %v4097, 120
    %v4373 = vpop.permute.xlu0 %4372
    %v4377 = vsel %vm1147, %v4367, 0
    %4379 = vmatprep.subr.mxu0 0.0
    %4380 = vmatpush1.msra.mxu0 %v4371
    %4381 = vmatprep.subr.mxu0 0.0
    %4382 = vmatpush1.msra.mxu0 %v4373
    %4383 = vmatprep.subr.mxu0 0.0
    %4384 = vmatpush1.msra.mxu0 0.0
    %4385 = vmatprep.subr.mxu0 0.0
    %4386 = vmatpush1.msra.mxu0 0.0
    %4387 = vmatprep.subr.mxu0 0.0
    %4388 = vmatpush1.msra.mxu0 0.0
    %4389 = vmatprep.subr.mxu0 0.0
    %4390 = vmatpush1.msra.mxu0 0.0
    %4391 = vmatprep.subr.mxu0 0.0
    %4392 = vmatpush1.msra.mxu0 0.0
    %4393 = vmatprep.subr.mxu0 0.0
    %4394 = vmatpush1.msra.mxu0 0.0
    %4395 = vmatprep.subr.mxu0 0.0
    %4396 = vmatpush1.msra.mxu0 0.0
    %4397 = vmatprep.subr.mxu0 0.0
    %4398 = vmatpush1.msra.mxu0 0.0
    %4399 = vmatprep.subr.mxu0 0.0
    %4400 = vmatpush1.msra.mxu0 0.0
    %4401 = vmatprep.subr.mxu0 0.0
    %4402 = vmatpush1.msra.mxu0 0.0
    %4403 = vmatprep.subr.mxu0 0.0
    %4404 = vmatpush1.msra.mxu0 0.0
    %4405 = vmatprep.subr.mxu0 0.0
    %4406 = vmatpush1.msra.mxu0 0.0
    %4407 = vmatprep.subr.mxu0 0.0
    %4408 = vmatpush1.msra.mxu0 0.0
    %4409 = vmatprep.subr.mxu0 0.0
    %4410 = vmatpush1.msra.mxu0 0.0
    %4411 = vmatprep.subr.mxu0 0.0
    %4412 = vmatpush1.msra.mxu0 0.0
    %4413 = vmatprep.subr.mxu0 0.0
    %4414 = vmatpush1.msra.mxu0 0.0
    %4415 = vmatprep.subr.mxu0 0.0
    %4416 = vmatpush1.msra.mxu0 0.0
    %4417 = vmatprep.subr.mxu0 0.0
    %4418 = vmatpush1.msra.mxu0 0.0
    %4419 = vmatprep.subr.mxu0 0.0
    %4420 = vmatpush1.msra.mxu0 0.0
    %4421 = vmatprep.subr.mxu0 0.0
    %4422 = vmatpush1.msra.mxu0 0.0
    %4423 = vmatprep.subr.mxu0 0.0
    %4424 = vmatpush1.msra.mxu0 0.0
    %4425 = vmatprep.subr.mxu0 0.0
    %4426 = vmatpush1.msra.mxu0 0.0
    %4427 = vmatprep.subr.mxu0 0.0
    %4428 = vmatpush1.msra.mxu0 0.0
    %4429 = vmatprep.subr.mxu0 0.0
    %4430 = vmatpush1.msra.mxu0 0.0
    %4431 = vmatprep.subr.mxu0 0.0
    %4432 = vmatpush1.msra.mxu0 0.0
    %4433 = vmatprep.subr.mxu0 0.0
    %4434 = vmatpush1.msra.mxu0 0.0
    %4435 = vmatprep.subr.mxu0 0.0
    %4436 = vmatpush1.msra.mxu0 0.0
    %4437 = vmatprep.subr.mxu0 0.0
    %4438 = vmatpush1.msra.mxu0 0.0
    %4439 = vmatprep.subr.mxu0 0.0
    %4440 = vmatpush1.msra.mxu0 0.0
    %4441 = vmatprep.subr.mxu0 0.0
    %4442 = vmatpush1.msra.mxu0 0.0
    %4443 = vmatprep.mubr.f32.mxu0 0.0
    %4444 = vmatmul.mubr.f32.gmra.mrb[0].mxu0 %v4377
    %v4445 = vpop.f32.mrb[0].mxu0
    %v4446 = vadd.f32 0.0, %v4445
    %v4447 = vpop.f32.mrb[0].mxu0
    %4448 = vdwg.mxu0
    %4449 = vrot.lane.b32.xlu0 %v3924, 112
    %v4450 = vpop.permute.xlu0 %4449
    %4451 = vrot.lane.b32.xlu0 %v4003, 112
    %v4452 = vpop.permute.xlu0 %4451
    %4453 = vrot.lane.b32.xlu0 %v4008, 112
    %v4454 = vpop.permute.xlu0 %4453
    %v4455 = vsel %vm469, %v4450, 0
    %v4457 = vsel %vm469, %v4452, 0
    %v4459 = vsel %vm469, %v4454, 0
    %4461 = vmatprep.subr.mxu0 0.0
    %4462 = vmatpush1.xpose.msra.mxu0 %v4457
    %4463 = vmatprep.subr.mxu0 0.0
    %4464 = vmatpush1.xpose.msra.mxu0 %v4459
    %4465 = vmatprep.subr.mxu0 0.0
    %4466 = vmatpush1.xpose.msra.mxu0 0.0
    %4467 = vmatprep.subr.mxu0 0.0
    %4468 = vmatpush1.xpose.msra.mxu0 0.0
    %4469 = vmatprep.subr.mxu0 0.0
    %4470 = vmatpush1.xpose.msra.mxu0 0.0
    %4471 = vmatprep.subr.mxu0 0.0
    %4472 = vmatpush1.xpose.msra.mxu0 0.0
    %4473 = vmatprep.subr.mxu0 0.0
    %4474 = vmatpush1.xpose.msra.mxu0 0.0
    %4475 = vmatprep.subr.mxu0 0.0
    %4476 = vmatpush1.xpose.msra.mxu0 0.0
    %4477 = vmatprep.subr.mxu0 0.0
    %4478 = vmatpush1.xpose.msra.mxu0 0.0
    %4479 = vmatprep.subr.mxu0 0.0
    %4480 = vmatpush1.xpose.msra.mxu0 0.0
    %4481 = vmatprep.subr.mxu0 0.0
    %4482 = vmatpush1.xpose.msra.mxu0 0.0
    %4483 = vmatprep.subr.mxu0 0.0
    %4484 = vmatpush1.xpose.msra.mxu0 0.0
    %4485 = vmatprep.subr.mxu0 0.0
    %4486 = vmatpush1.xpose.msra.mxu0 0.0
    %4487 = vmatprep.subr.mxu0 0.0
    %4488 = vmatpush1.xpose.msra.mxu0 0.0
    %4489 = vmatprep.subr.mxu0 0.0
    %4490 = vmatpush1.xpose.msra.mxu0 0.0
    %4491 = vmatprep.subr.mxu0 0.0
    %4492 = vmatpush1.xpose.msra.mxu0 0.0
    %4493 = vmatprep.subr.mxu0 0.0
    %4494 = vmatpush1.xpose.msra.mxu0 0.0
    %4495 = vmatprep.subr.mxu0 0.0
    %4496 = vmatpush1.xpose.msra.mxu0 0.0
    %4497 = vmatprep.subr.mxu0 0.0
    %4498 = vmatpush1.xpose.msra.mxu0 0.0
    %4499 = vmatprep.subr.mxu0 0.0
    %4500 = vmatpush1.xpose.msra.mxu0 0.0
    %4501 = vmatprep.subr.mxu0 0.0
    %4502 = vmatpush1.xpose.msra.mxu0 0.0
    %4503 = vmatprep.subr.mxu0 0.0
    %4504 = vmatpush1.xpose.msra.mxu0 0.0
    %4505 = vmatprep.subr.mxu0 0.0
    %4506 = vmatpush1.xpose.msra.mxu0 0.0
    %4507 = vmatprep.subr.mxu0 0.0
    %4508 = vmatpush1.xpose.msra.mxu0 0.0
    %4509 = vmatprep.subr.mxu0 0.0
    %4510 = vmatpush1.xpose.msra.mxu0 0.0
    %4511 = vmatprep.subr.mxu0 0.0
    %4512 = vmatpush1.xpose.msra.mxu0 0.0
    %4513 = vmatprep.subr.mxu0 0.0
    %4514 = vmatpush1.xpose.msra.mxu0 0.0
    %4515 = vmatprep.subr.mxu0 0.0
    %4516 = vmatpush1.xpose.msra.mxu0 0.0
    %4517 = vmatprep.subr.mxu0 0.0
    %4518 = vmatpush1.xpose.msra.mxu0 0.0
    %4519 = vmatprep.subr.mxu0 0.0
    %4520 = vmatpush1.xpose.msra.mxu0 0.0
    %4521 = vmatprep.subr.mxu0 0.0
    %4522 = vmatpush1.xpose.msra.mxu0 0.0
    %4523 = vmatprep.subr.mxu0 0.0
    %4524 = vmatpush1.xpose.msra.mxu0 0.0
    %4525 = vmatprep.mubr.f32.mxu0 0.0
    %4526 = vmatmul.mubr.f32.gmra.mrb[0].mxu0 %v4455
    %v4527 = vpop.f32.mrb[0].mxu0
    %v4528 = vadd.f32 0.0, %v4527
    %v4529 = vpop.f32.mrb[0].mxu0
    %4530 = vdwg.mxu0
    %v4531 = vmul.f32 %v4528, 0.35355338
    %v4532 = vsel %vm1147, %v4531, -inf
    %4533 = vmax.xlane.f32.xlu0 %v4532
    %v4534 = vpop.xlane.xlu0 %4533
    %v4535 = vsub.f32 %v4531, %v4534
    %v4536 = vmul.f32 %v4535, 1.442695
    %v4537 = vpow.pop %v4536
    %v4538 = vsel %vm1147, %v4537, 0.0
    %4539 = vadd.xlane.f32.xlu0 %v4538
    %v4540 = vpop.xlane.xlu0 %4539
    %v4541 = vrcp.pop %v4540
    %v4542 = vmul.f32 %v4537, %v4541
    %4543 = vrot.lane.b32.xlu0 %v4092, 112
    %v4544 = vpop.permute.xlu0 %4543
    %4545 = vrot.lane.b32.xlu0 %v4097, 112
    %v4546 = vpop.permute.xlu0 %4545
    %v4550 = vsel %vm1147, %v4542, 0
    %4552 = vmatprep.subr.mxu0 0.0
    %4553 = vmatpush1.msra.mxu0 %v4544
    %4554 = vmatprep.subr.mxu0 0.0
    %4555 = vmatpush1.msra.mxu0 %v4546
    %4556 = vmatprep.subr.mxu0 0.0
    %4557 = vmatpush1.msra.mxu0 0.0
    %4558 = vmatprep.subr.mxu0 0.0
    %4559 = vmatpush1.msra.mxu0 0.0
    %4560 = vmatprep.subr.mxu0 0.0
    %4561 = vmatpush1.msra.mxu0 0.0
    %4562 = vmatprep.subr.mxu0 0.0
    %4563 = vmatpush1.msra.mxu0 0.0
    %4564 = vmatprep.subr.mxu0 0.0
    %4565 = vmatpush1.msra.mxu0 0.0
    %4566 = vmatprep.subr.mxu0 0.0
    %4567 = vmatpush1.msra.mxu0 0.0
    %4568 = vmatprep.subr.mxu0 0.0
    %4569 = vmatpush1.msra.mxu0 0.0
    %4570 = vmatprep.subr.mxu0 0.0
    %4571 = vmatpush1.msra.mxu0 0.0
    %4572 = vmatprep.subr.mxu0 0.0
    %4573 = vmatpush1.msra.mxu0 0.0
    %4574 = vmatprep.subr.mxu0 0.0
    %4575 = vmatpush1.msra.mxu0 0.0
    %4576 = vmatprep.subr.mxu0 0.0
    %4577 = vmatpush1.msra.mxu0 0.0
    %4578 = vmatprep.subr.mxu0 0.0
    %4579 = vmatpush1.msra.mxu0 0.0
    %4580 = vmatprep.subr.mxu0 0.0
    %4581 = vmatpush1.msra.mxu0 0.0
    %4582 = vmatprep.subr.mxu0 0.0
    %4583 = vmatpush1.msra.mxu0 0.0
    %4584 = vmatprep.subr.mxu0 0.0
    %4585 = vmatpush1.msra.mxu0 0.0
    %4586 = vmatprep.subr.mxu0 0.0
    %4587 = vmatpush1.msra.mxu0 0.0
    %4588 = vmatprep.subr.mxu0 0.0
    %4589 = vmatpush1.msra.mxu0 0.0
    %4590 = vmatprep.subr.mxu0 0.0
    %4591 = vmatpush1.msra.mxu0 0.0
    %4592 = vmatprep.subr.mxu0 0.0
    %4593 = vmatpush1.msra.mxu0 0.0
    %4594 = vmatprep.subr.mxu0 0.0
    %4595 = vmatpush1.msra.mxu0 0.0
    %4596 = vmatprep.subr.mxu0 0.0
    %4597 = vmatpush1.msra.mxu0 0.0
    %4598 = vmatprep.subr.mxu0 0.0
    %4599 = vmatpush1.msra.mxu0 0.0
    %4600 = vmatprep.subr.mxu0 0.0
    %4601 = vmatpush1.msra.mxu0 0.0
    %4602 = vmatprep.subr.mxu0 0.0
    %4603 = vmatpush1.msra.mxu0 0.0
    %4604 = vmatprep.subr.mxu0 0.0
    %4605 = vmatpush1.msra.mxu0 0.0
    %4606 = vmatprep.subr.mxu0 0.0
    %4607 = vmatpush1.msra.mxu0 0.0
    %4608 = vmatprep.subr.mxu0 0.0
    %4609 = vmatpush1.msra.mxu0 0.0
    %4610 = vmatprep.subr.mxu0 0.0
    %4611 = vmatpush1.msra.mxu0 0.0
    %4612 = vmatprep.subr.mxu0 0.0
    %4613 = vmatpush1.msra.mxu0 0.0
    %4614 = vmatprep.subr.mxu0 0.0
    %4615 = vmatpush1.msra.mxu0 0.0
    %4616 = vmatprep.mubr.f32.mxu0 0.0
    %4617 = vmatmul.mubr.f32.gmra.mrb[0].mxu0 %v4550
    %v4618 = vpop.f32.mrb[0].mxu0
    %v4619 = vadd.f32 0.0, %v4618
    %v4620 = vpop.f32.mrb[0].mxu0
    %4621 = vdwg.mxu0
    %4622 = vrot.lane.b32.xlu0 %v3924, 104
    %v4623 = vpop.permute.xlu0 %4622
    %4624 = vrot.lane.b32.xlu0 %v4003, 104
    %v4625 = vpop.permute.xlu0 %4624
    %4626 = vrot.lane.b32.xlu0 %v4008, 104
    %v4627 = vpop.permute.xlu0 %4626
    %v4628 = vsel %vm469, %v4623, 0
    %v4630 = vsel %vm469, %v4625, 0
    %v4632 = vsel %vm469, %v4627, 0
    %4634 = vmatprep.subr.mxu0 0.0
    %4635 = vmatpush1.xpose.msra.mxu0 %v4630
    %4636 = vmatprep.subr.mxu0 0.0
    %4637 = vmatpush1.xpose.msra.mxu0 %v4632
    %4638 = vmatprep.subr.mxu0 0.0
    %4639 = vmatpush1.xpose.msra.mxu0 0.0
    %4640 = vmatprep.subr.mxu0 0.0
    %4641 = vmatpush1.xpose.msra.mxu0 0.0
    %4642 = vmatprep.subr.mxu0 0.0
    %4643 = vmatpush1.xpose.msra.mxu0 0.0
    %4644 = vmatprep.subr.mxu0 0.0
    %4645 = vmatpush1.xpose.msra.mxu0 0.0
    %4646 = vmatprep.subr.mxu0 0.0
    %4647 = vmatpush1.xpose.msra.mxu0 0.0
    %4648 = vmatprep.subr.mxu0 0.0
    %4649 = vmatpush1.xpose.msra.mxu0 0.0
    %4650 = vmatprep.subr.mxu0 0.0
    %4651 = vmatpush1.xpose.msra.mxu0 0.0
    %4652 = vmatprep.subr.mxu0 0.0
    %4653 = vmatpush1.xpose.msra.mxu0 0.0
    %4654 = vmatprep.subr.mxu0 0.0
    %4655 = vmatpush1.xpose.msra.mxu0 0.0
    %4656 = vmatprep.subr.mxu0 0.0
    %4657 = vmatpush1.xpose.msra.mxu0 0.0
    %4658 = vmatprep.subr.mxu0 0.0
    %4659 = vmatpush1.xpose.msra.mxu0 0.0
    %4660 = vmatprep.subr.mxu0 0.0
    %4661 = vmatpush1.xpose.msra.mxu0 0.0
    %4662 = vmatprep.subr.mxu0 0.0
    %4663 = vmatpush1.xpose.msra.mxu0 0.0
    %4664 = vmatprep.subr.mxu0 0.0
    %4665 = vmatpush1.xpose.msra.mxu0 0.0
    %4666 = vmatprep.subr.mxu0 0.0
    %4667 = vmatpush1.xpose.msra.mxu0 0.0
    %4668 = vmatprep.subr.mxu0 0.0
    %4669 = vmatpush1.xpose.msra.mxu0 0.0
    %4670 = vmatprep.subr.mxu0 0.0
    %4671 = vmatpush1.xpose.msra.mxu0 0.0
    %4672 = vmatprep.subr.mxu0 0.0
    %4673 = vmatpush1.xpose.msra.mxu0 0.0
    %4674 = vmatprep.subr.mxu0 0.0
    %4675 = vmatpush1.xpose.msra.mxu0 0.0
    %4676 = vmatprep.subr.mxu0 0.0
    %4677 = vmatpush1.xpose.msra.mxu0 0.0
    %4678 = vmatprep.subr.mxu0 0.0
    %4679 = vmatpush1.xpose.msra.mxu0 0.0
    %4680 = vmatprep.subr.mxu0 0.0
    %4681 = vmatpush1.xpose.msra.mxu0 0.0
    %4682 = vmatprep.subr.mxu0 0.0
    %4683 = vmatpush1.xpose.msra.mxu0 0.0
    %4684 = vmatprep.subr.mxu0 0.0
    %4685 = vmatpush1.xpose.msra.mxu0 0.0
    %4686 = vmatprep.subr.mxu0 0.0
    %4687 = vmatpush1.xpose.msra.mxu0 0.0
    %4688 = vmatprep.subr.mxu0 0.0
    %4689 = vmatpush1.xpose.msra.mxu0 0.0
    %4690 = vmatprep.subr.mxu0 0.0
    %4691 = vmatpush1.xpose.msra.mxu0 0.0
    %4692 = vmatprep.subr.mxu0 0.0
    %4693 = vmatpush1.xpose.msra.mxu0 0.0
    %4694 = vmatprep.subr.mxu0 0.0
    %4695 = vmatpush1.xpose.msra.mxu0 0.0
    %4696 = vmatprep.subr.mxu0 0.0
    %4697 = vmatpush1.xpose.msra.mxu0 0.0
    %4698 = vmatprep.mubr.f32.mxu0 0.0
    %4699 = vmatmul.mubr.f32.gmra.mrb[0].mxu0 %v4628
    %v4700 = vpop.f32.mrb[0].mxu0
    %v4701 = vadd.f32 0.0, %v4700
    %v4702 = vpop.f32.mrb[0].mxu0
    %4703 = vdwg.mxu0
    %v4704 = vmul.f32 %v4701, 0.35355338
    %v4705 = vsel %vm1147, %v4704, -inf
    %4706 = vmax.xlane.f32.xlu0 %v4705
    %v4707 = vpop.xlane.xlu0 %4706
    %v4708 = vsub.f32 %v4704, %v4707
    %v4709 = vmul.f32 %v4708, 1.442695
    %v4710 = vpow.pop %v4709
    %v4711 = vsel %vm1147, %v4710, 0.0
    %4712 = vadd.xlane.f32.xlu0 %v4711
    %v4713 = vpop.xlane.xlu0 %4712
    %v4714 = vrcp.pop %v4713
    %v4715 = vmul.f32 %v4710, %v4714
    %4716 = vrot.lane.b32.xlu0 %v4092, 104
    %v4717 = vpop.permute.xlu0 %4716
    %4718 = vrot.lane.b32.xlu0 %v4097, 104
    %v4719 = vpop.permute.xlu0 %4718
    %v4723 = vsel %vm1147, %v4715, 0
    %4725 = vmatprep.subr.mxu0 0.0
    %4726 = vmatpush1.msra.mxu0 %v4717
    %4727 = vmatprep.subr.mxu0 0.0
    %4728 = vmatpush1.msra.mxu0 %v4719
    %4729 = vmatprep.subr.mxu0 0.0
    %4730 = vmatpush1.msra.mxu0 0.0
    %4731 = vmatprep.subr.mxu0 0.0
    %4732 = vmatpush1.msra.mxu0 0.0
    %4733 = vmatprep.subr.mxu0 0.0
    %4734 = vmatpush1.msra.mxu0 0.0
    %4735 = vmatprep.subr.mxu0 0.0
    %4736 = vmatpush1.msra.mxu0 0.0
    %4737 = vmatprep.subr.mxu0 0.0
    %4738 = vmatpush1.msra.mxu0 0.0
    %4739 = vmatprep.subr.mxu0 0.0
    %4740 = vmatpush1.msra.mxu0 0.0
    %4741 = vmatprep.subr.mxu0 0.0
    %4742 = vmatpush1.msra.mxu0 0.0
    %4743 = vmatprep.subr.mxu0 0.0
    %4744 = vmatpush1.msra.mxu0 0.0
    %4745 = vmatprep.subr.mxu0 0.0
    %4746 = vmatpush1.msra.mxu0 0.0
    %4747 = vmatprep.subr.mxu0 0.0
    %4748 = vmatpush1.msra.mxu0 0.0
    %4749 = vmatprep.subr.mxu0 0.0
    %4750 = vmatpush1.msra.mxu0 0.0
    %4751 = vmatprep.subr.mxu0 0.0
    %4752 = vmatpush1.msra.mxu0 0.0
    %4753 = vmatprep.subr.mxu0 0.0
    %4754 = vmatpush1.msra.mxu0 0.0
    %4755 = vmatprep.subr.mxu0 0.0
    %4756 = vmatpush1.msra.mxu0 0.0
    %4757 = vmatprep.subr.mxu0 0.0
    %4758 = vmatpush1.msra.mxu0 0.0
    %4759 = vmatprep.subr.mxu0 0.0
    %4760 = vmatpush1.msra.mxu0 0.0
    %4761 = vmatprep.subr.mxu0 0.0
    %4762 = vmatpush1.msra.mxu0 0.0
    %4763 = vmatprep.subr.mxu0 0.0
    %4764 = vmatpush1.msra.mxu0 0.0
    %4765 = vmatprep.subr.mxu0 0.0
    %4766 = vmatpush1.msra.mxu0 0.0
    %4767 = vmatprep.subr.mxu0 0.0
    %4768 = vmatpush1.msra.mxu0 0.0
    %4769 = vmatprep.subr.mxu0 0.0
    %4770 = vmatpush1.msra.mxu0 0.0
    %4771 = vmatprep.subr.mxu0 0.0
    %4772 = vmatpush1.msra.mxu0 0.0
    %4773 = vmatprep.subr.mxu0 0.0
    %4774 = vmatpush1.msra.mxu0 0.0
    %4775 = vmatprep.subr.mxu0 0.0
    %4776 = vmatpush1.msra.mxu0 0.0
    %4777 = vmatprep.subr.mxu0 0.0
    %4778 = vmatpush1.msra.mxu0 0.0
    %4779 = vmatprep.subr.mxu0 0.0
    %4780 = vmatpush1.msra.mxu0 0.0
    %4781 = vmatprep.subr.mxu0 0.0
    %4782 = vmatpush1.msra.mxu0 0.0
    %4783 = vmatprep.subr.mxu0 0.0
    %4784 = vmatpush1.msra.mxu0 0.0
    %4785 = vmatprep.subr.mxu0 0.0
    %4786 = vmatpush1.msra.mxu0 0.0
    %4787 = vmatprep.subr.mxu0 0.0
    %4788 = vmatpush1.msra.mxu0 0.0
    %4789 = vmatprep.mubr.f32.mxu0 0.0
    %4790 = vmatmul.mubr.f32.gmra.mrb[0].mxu0 %v4723
    %v4791 = vpop.f32.mrb[0].mxu0
    %v4792 = vadd.f32 0.0, %v4791
    %v4793 = vpop.f32.mrb[0].mxu0
    %4794 = vdwg.mxu0
    %4796 = vrot.lane.b32.xlu0 %v4446, 8
    %v4797 = vpop.permute.xlu0 %4796
    %4800 = vrot.lane.b32.xlu0 %v4619, 16
    %v4801 = vpop.permute.xlu0 %4800
    %4804 = vrot.lane.b32.xlu0 %v4792, 24
    %v4805 = vpop.permute.xlu0 %4804
    %v4807 = vsel %vm469, %v4271, %v4797
    %v4808 = vsel %vm1147, %v4807, %v4801
    %v4809 = vsel %vm1149, %v4808, %v4805
    %v4810 = vlaneseq
    %v4811 = vshrl.u32 %v4810, 7
    %v4812 = vsub.s32 3, %v4811
    %v4813 = vrot.slane %v3846, %v4812
    %v4815 = vsel %vm165, %v4809, 0
    %4817 = vmatprep.subr.mxu0 0.0
    %4818 = vmatpush1.msra.mxu0 %v3841
    %4819 = vmatprep.subr.mxu0 0.0
    %4820 = vmatpush1.msra.mxu0 %v3842
    %4821 = vmatprep.subr.mxu0 0.0
    %4822 = vmatpush1.msra.mxu0 %v3843
    %4823 = vmatprep.subr.mxu0 0.0
    %4824 = vmatpush1.msra.mxu0 %v3844
    %4825 = vmatprep.subr.mxu0 0.0
    %4826 = vmatpush1.msra.mxu0 0.0
    %4827 = vmatprep.subr.mxu0 0.0
    %4828 = vmatpush1.msra.mxu0 0.0
    %4829 = vmatprep.subr.mxu0 0.0
    %4830 = vmatpush1.msra.mxu0 0.0
    %4831 = vmatprep.subr.mxu0 0.0
    %4832 = vmatpush1.msra.mxu0 0.0
    %4833 = vmatprep.subr.mxu0 0.0
    %4834 = vmatpush1.msra.mxu0 0.0
    %4835 = vmatprep.subr.mxu0 0.0
    %4836 = vmatpush1.msra.mxu0 0.0
    %4837 = vmatprep.subr.mxu0 0.0
    %4838 = vmatpush1.msra.mxu0 0.0
    %4839 = vmatprep.subr.mxu0 0.0
    %4840 = vmatpush1.msra.mxu0 0.0
    %4841 = vmatprep.subr.mxu0 0.0
    %4842 = vmatpush1.msra.mxu0 0.0
    %4843 = vmatprep.subr.mxu0 0.0
    %4844 = vmatpush1.msra.mxu0 0.0
    %4845 = vmatprep.subr.mxu0 0.0
    %4846 = vmatpush1.msra.mxu0 0.0
    %4847 = vmatprep.subr.mxu0 0.0
    %4848 = vmatpush1.msra.mxu0 0.0
    %4849 = vmatprep.subr.mxu0 0.0
    %4850 = vmatpush1.msra.mxu0 0.0
    %4851 = vmatprep.subr.mxu0 0.0
    %4852 = vmatpush1.msra.mxu0 0.0
    %4853 = vmatprep.subr.mxu0 0.0
    %4854 = vmatpush1.msra.mxu0 0.0
    %4855 = vmatprep.subr.mxu0 0.0
    %4856 = vmatpush1.msra.mxu0 0.0
    %4857 = vmatprep.subr.mxu0 0.0
    %4858 = vmatpush1.msra.mxu0 0.0
    %4859 = vmatprep.subr.mxu0 0.0
    %4860 = vmatpush1.msra.mxu0 0.0
    %4861 = vmatprep.subr.mxu0 0.0
    %4862 = vmatpush1.msra.mxu0 0.0
    %4863 = vmatprep.subr.mxu0 0.0
    %4864 = vmatpush1.msra.mxu0 0.0
    %4865 = vmatprep.subr.mxu0 0.0
    %4866 = vmatpush1.msra.mxu0 0.0
    %4867 = vmatprep.subr.mxu0 0.0
    %4868 = vmatpush1.msra.mxu0 0.0
    %4869 = vmatprep.subr.mxu0 0.0
    %4870 = vmatpush1.msra.mxu0 0.0
    %4871 = vmatprep.subr.mxu0 0.0
    %4872 = vmatpush1.msra.mxu0 0.0
    %4873 = vmatprep.subr.mxu0 0.0
    %4874 = vmatpush1.msra.mxu0 0.0
    %4875 = vmatprep.subr.mxu0 0.0
    %4876 = vmatpush1.msra.mxu0 0.0
    %4877 = vmatprep.subr.mxu0 0.0
    %4878 = vmatpush1.msra.mxu0 0.0
    %4879 = vmatprep.subr.mxu0 0.0
    %4880 = vmatpush1.msra.mxu0 0.0
    %4881 = vmatprep.mubr.f32.mxu0 0.0
    %4882 = vmatmul.mubr.f32.gmra.mrb[0].mxu0 %v4815
    %v4883 = vpop.f32.mrb[0].mxu0
    %v4884 = vadd.f32 %v4813, %v4883
    %v4885 = vpop.f32.mrb[0].mxu0
    %4886 = vdwg.mxu0
    %v4888 = vsel %vm469, %v3929, 0
    %v4891 = vsel %vm469, %v4013, 0
    %v4894 = vsel %vm469, %v4018, 0
    %4896 = vmatprep.subr.mxu0 0.0
    %4897 = vmatpush1.xpose.msra.mxu0 %v4891
    %4898 = vmatprep.subr.mxu0 0.0
    %4899 = vmatpush1.xpose.msra.mxu0 %v4894
    %4900 = vmatprep.subr.mxu0 0.0
    %4901 = vmatpush1.xpose.msra.mxu0 0.0
    %4902 = vmatprep.subr.mxu0 0.0
    %4903 = vmatpush1.xpose.msra.mxu0 0.0
    %4904 = vmatprep.subr.mxu0 0.0
    %4905 = vmatpush1.xpose.msra.mxu0 0.0
    %4906 = vmatprep.subr.mxu0 0.0
    %4907 = vmatpush1.xpose.msra.mxu0 0.0
    %4908 = vmatprep.subr.mxu0 0.0
    %4909 = vmatpush1.xpose.msra.mxu0 0.0
    %4910 = vmatprep.subr.mxu0 0.0
    %4911 = vmatpush1.xpose.msra.mxu0 0.0
    %4912 = vmatprep.subr.mxu0 0.0
    %4913 = vmatpush1.xpose.msra.mxu0 0.0
    %4914 = vmatprep.subr.mxu0 0.0
    %4915 = vmatpush1.xpose.msra.mxu0 0.0
    %4916 = vmatprep.subr.mxu0 0.0
    %4917 = vmatpush1.xpose.msra.mxu0 0.0
    %4918 = vmatprep.subr.mxu0 0.0
    %4919 = vmatpush1.xpose.msra.mxu0 0.0
    %4920 = vmatprep.subr.mxu0 0.0
    %4921 = vmatpush1.xpose.msra.mxu0 0.0
    %4922 = vmatprep.subr.mxu0 0.0
    %4923 = vmatpush1.xpose.msra.mxu0 0.0
    %4924 = vmatprep.subr.mxu0 0.0
    %4925 = vmatpush1.xpose.msra.mxu0 0.0
    %4926 = vmatprep.subr.mxu0 0.0
    %4927 = vmatpush1.xpose.msra.mxu0 0.0
    %4928 = vmatprep.subr.mxu0 0.0
    %4929 = vmatpush1.xpose.msra.mxu0 0.0
    %4930 = vmatprep.subr.mxu0 0.0
    %4931 = vmatpush1.xpose.msra.mxu0 0.0
    %4932 = vmatprep.subr.mxu0 0.0
    %4933 = vmatpush1.xpose.msra.mxu0 0.0
    %4934 = vmatprep.subr.mxu0 0.0
    %4935 = vmatpush1.xpose.msra.mxu0 0.0
    %4936 = vmatprep.subr.mxu0 0.0
    %4937 = vmatpush1.xpose.msra.mxu0 0.0
    %4938 = vmatprep.subr.mxu0 0.0
    %4939 = vmatpush1.xpose.msra.mxu0 0.0
    %4940 = vmatprep.subr.mxu0 0.0
    %4941 = vmatpush1.xpose.msra.mxu0 0.0
    %4942 = vmatprep.subr.mxu0 0.0
    %4943 = vmatpush1.xpose.msra.mxu0 0.0
    %4944 = vmatprep.subr.mxu0 0.0
    %4945 = vmatpush1.xpose.msra.mxu0 0.0
    %4946 = vmatprep.subr.mxu0 0.0
    %4947 = vmatpush1.xpose.msra.mxu0 0.0
    %4948 = vmatprep.subr.mxu0 0.0
    %4949 = vmatpush1.xpose.msra.mxu0 0.0
    %4950 = vmatprep.subr.mxu0 0.0
    %4951 = vmatpush1.xpose.msra.mxu0 0.0
    %4952 = vmatprep.subr.mxu0 0.0
    %4953 = vmatpush1.xpose.msra.mxu0 0.0
    %4954 = vmatprep.subr.mxu0 0.0
    %4955 = vmatpush1.xpose.msra.mxu0 0.0
    %4956 = vmatprep.subr.mxu0 0.0
    %4957 = vmatpush1.xpose.msra.mxu0 0.0
    %4958 = vmatprep.subr.mxu0 0.0
    %4959 = vmatpush1.xpose.msra.mxu0 0.0
    %4960 = vmatprep.mubr.f32.mxu0 0.0
    %4961 = vmatmul.mubr.f32.gmra.mrb[0].mxu0 %v4888
    %v4962 = vpop.f32.mrb[0].mxu0
    %v4963 = vadd.f32 0.0, %v4962
    %v4964 = vpop.f32.mrb[0].mxu0
    %4965 = vdwg.mxu0
    %v4966 = vmul.f32 %v4963, 0.35355338
    %v4967 = vsel %vm1147, %v4966, -inf
    %4968 = vmax.xlane.f32.xlu0 %v4967
    %v4969 = vpop.xlane.xlu0 %4968
    %v4970 = vsub.f32 %v4966, %v4969
    %v4971 = vmul.f32 %v4970, 1.442695
    %v4972 = vpow.pop %v4971
    %v4973 = vsel %vm1147, %v4972, 0.0
    %4974 = vadd.xlane.f32.xlu0 %v4973
    %v4975 = vpop.xlane.xlu0 %4974
    %v4976 = vrcp.pop %v4975
    %v4977 = vmul.f32 %v4972, %v4976
    %v4979 = vsel %vm1147, %v4977, 0
    %4981 = vmatprep.subr.mxu0 0.0
    %4982 = vmatpush1.msra.mxu0 %v4102
    %4983 = vmatprep.subr.mxu0 0.0
    %4984 = vmatpush1.msra.mxu0 %v4107
    %4985 = vmatprep.subr.mxu0 0.0
    %4986 = vmatpush1.msra.mxu0 0.0
    %4987 = vmatprep.subr.mxu0 0.0
    %4988 = vmatpush1.msra.mxu0 0.0
    %4989 = vmatprep.subr.mxu0 0.0
    %4990 = vmatpush1.msra.mxu0 0.0
    %4991 = vmatprep.subr.mxu0 0.0
    %4992 = vmatpush1.msra.mxu0 0.0
    %4993 = vmatprep.subr.mxu0 0.0
    %4994 = vmatpush1.msra.mxu0 0.0
    %4995 = vmatprep.subr.mxu0 0.0
    %4996 = vmatpush1.msra.mxu0 0.0
    %4997 = vmatprep.subr.mxu0 0.0
    %4998 = vmatpush1.msra.mxu0 0.0
    %4999 = vmatprep.subr.mxu0 0.0
    %5000 = vmatpush1.msra.mxu0 0.0
    %5001 = vmatprep.subr.mxu0 0.0
    %5002 = vmatpush1.msra.mxu0 0.0
    %5003 = vmatprep.subr.mxu0 0.0
    %5004 = vmatpush1.msra.mxu0 0.0
    %5005 = vmatprep.subr.mxu0 0.0
    %5006 = vmatpush1.msra.mxu0 0.0
    %5007 = vmatprep.subr.mxu0 0.0
    %5008 = vmatpush1.msra.mxu0 0.0
    %5009 = vmatprep.subr.mxu0 0.0
    %5010 = vmatpush1.msra.mxu0 0.0
    %5011 = vmatprep.subr.mxu0 0.0
    %5012 = vmatpush1.msra.mxu0 0.0
    %5013 = vmatprep.subr.mxu0 0.0
    %5014 = vmatpush1.msra.mxu0 0.0
    %5015 = vmatprep.subr.mxu0 0.0
    %5016 = vmatpush1.msra.mxu0 0.0
    %5017 = vmatprep.subr.mxu0 0.0
    %5018 = vmatpush1.msra.mxu0 0.0
    %5019 = vmatprep.subr.mxu0 0.0
    %5020 = vmatpush1.msra.mxu0 0.0
    %5021 = vmatprep.subr.mxu0 0.0
    %5022 = vmatpush1.msra.mxu0 0.0
    %5023 = vmatprep.subr.mxu0 0.0
    %5024 = vmatpush1.msra.mxu0 0.0
    %5025 = vmatprep.subr.mxu0 0.0
    %5026 = vmatpush1.msra.mxu0 0.0
    %5027 = vmatprep.subr.mxu0 0.0
    %5028 = vmatpush1.msra.mxu0 0.0
    %5029 = vmatprep.subr.mxu0 0.0
    %5030 = vmatpush1.msra.mxu0 0.0
    %5031 = vmatprep.subr.mxu0 0.0
    %5032 = vmatpush1.msra.mxu0 0.0
    %5033 = vmatprep.subr.mxu0 0.0
    %5034 = vmatpush1.msra.mxu0 0.0
    %5035 = vmatprep.subr.mxu0 0.0
    %5036 = vmatpush1.msra.mxu0 0.0
    %5037 = vmatprep.subr.mxu0 0.0
    %5038 = vmatpush1.msra.mxu0 0.0
    %5039 = vmatprep.subr.mxu0 0.0
    %5040 = vmatpush1.msra.mxu0 0.0
    %5041 = vmatprep.subr.mxu0 0.0
    %5042 = vmatpush1.msra.mxu0 0.0
    %5043 = vmatprep.subr.mxu0 0.0
    %5044 = vmatpush1.msra.mxu0 0.0
    %5045 = vmatprep.mubr.f32.mxu0 0.0
    %5046 = vmatmul.mubr.f32.gmra.mrb[0].mxu0 %v4979
    %v5047 = vpop.f32.mrb[0].mxu0
    %v5048 = vadd.f32 0.0, %v5047
    %v5049 = vpop.f32.mrb[0].mxu0
    %5050 = vdwg.mxu0
    %5051 = vrot.lane.b32.xlu0 %v3929, 120
    %v5052 = vpop.permute.xlu0 %5051
    %5053 = vrot.lane.b32.xlu0 %v4013, 120
    %v5054 = vpop.permute.xlu0 %5053
    %5055 = vrot.lane.b32.xlu0 %v4018, 120
    %v5056 = vpop.permute.xlu0 %5055
    %v5057 = vsel %vm469, %v5052, 0
    %v5059 = vsel %vm469, %v5054, 0
    %v5061 = vsel %vm469, %v5056, 0
    %5063 = vmatprep.subr.mxu0 0.0
    %5064 = vmatpush1.xpose.msra.mxu0 %v5059
    %5065 = vmatprep.subr.mxu0 0.0
    %5066 = vmatpush1.xpose.msra.mxu0 %v5061
    %5067 = vmatprep.subr.mxu0 0.0
    %5068 = vmatpush1.xpose.msra.mxu0 0.0
    %5069 = vmatprep.subr.mxu0 0.0
    %5070 = vmatpush1.xpose.msra.mxu0 0.0
    %5071 = vmatprep.subr.mxu0 0.0
    %5072 = vmatpush1.xpose.msra.mxu0 0.0
    %5073 = vmatprep.subr.mxu0 0.0
    %5074 = vmatpush1.xpose.msra.mxu0 0.0
    %5075 = vmatprep.subr.mxu0 0.0
    %5076 = vmatpush1.xpose.msra.mxu0 0.0
    %5077 = vmatprep.subr.mxu0 0.0
    %5078 = vmatpush1.xpose.msra.mxu0 0.0
    %5079 = vmatprep.subr.mxu0 0.0
    %5080 = vmatpush1.xpose.msra.mxu0 0.0
    %5081 = vmatprep.subr.mxu0 0.0
    %5082 = vmatpush1.xpose.msra.mxu0 0.0
    %5083 = vmatprep.subr.mxu0 0.0
    %5084 = vmatpush1.xpose.msra.mxu0 0.0
    %5085 = vmatprep.subr.mxu0 0.0
    %5086 = vmatpush1.xpose.msra.mxu0 0.0
    %5087 = vmatprep.subr.mxu0 0.0
    %5088 = vmatpush1.xpose.msra.mxu0 0.0
    %5089 = vmatprep.subr.mxu0 0.0
    %5090 = vmatpush1.xpose.msra.mxu0 0.0
    %5091 = vmatprep.subr.mxu0 0.0
    %5092 = vmatpush1.xpose.msra.mxu0 0.0
    %5093 = vmatprep.subr.mxu0 0.0
    %5094 = vmatpush1.xpose.msra.mxu0 0.0
    %5095 = vmatprep.subr.mxu0 0.0
    %5096 = vmatpush1.xpose.msra.mxu0 0.0
    %5097 = vmatprep.subr.mxu0 0.0
    %5098 = vmatpush1.xpose.msra.mxu0 0.0
    %5099 = vmatprep.subr.mxu0 0.0
    %5100 = vmatpush1.xpose.msra.mxu0 0.0
    %5101 = vmatprep.subr.mxu0 0.0
    %5102 = vmatpush1.xpose.msra.mxu0 0.0
    %5103 = vmatprep.subr.mxu0 0.0
    %5104 = vmatpush1.xpose.msra.mxu0 0.0
    %5105 = vmatprep.subr.mxu0 0.0
    %5106 = vmatpush1.xpose.msra.mxu0 0.0
    %5107 = vmatprep.subr.mxu0 0.0
    %5108 = vmatpush1.xpose.msra.mxu0 0.0
    %5109 = vmatprep.subr.mxu0 0.0
    %5110 = vmatpush1.xpose.msra.mxu0 0.0
    %5111 = vmatprep.subr.mxu0 0.0
    %5112 = vmatpush1.xpose.msra.mxu0 0.0
    %5113 = vmatprep.subr.mxu0 0.0
    %5114 = vmatpush1.xpose.msra.mxu0 0.0
    %5115 = vmatprep.subr.mxu0 0.0
    %5116 = vmatpush1.xpose.msra.mxu0 0.0
    %5117 = vmatprep.subr.mxu0 0.0
    %5118 = vmatpush1.xpose.msra.mxu0 0.0
    %5119 = vmatprep.subr.mxu0 0.0
    %5120 = vmatpush1.xpose.msra.mxu0 0.0
    %5121 = vmatprep.subr.mxu0 0.0
    %5122 = vmatpush1.xpose.msra.mxu0 0.0
    %5123 = vmatprep.subr.mxu0 0.0
    %5124 = vmatpush1.xpose.msra.mxu0 0.0
    %5125 = vmatprep.subr.mxu0 0.0
    %5126 = vmatpush1.xpose.msra.mxu0 0.0
    %5127 = vmatprep.mubr.f32.mxu0 0.0
    %5128 = vmatmul.mubr.f32.gmra.mrb[0].mxu0 %v5057
    %v5129 = vpop.f32.mrb[0].mxu0
    %v5130 = vadd.f32 0.0, %v5129
    %v5131 = vpop.f32.mrb[0].mxu0
    %5132 = vdwg.mxu0
    %v5133 = vmul.f32 %v5130, 0.35355338
    %v5134 = vsel %vm1147, %v5133, -inf
    %5135 = vmax.xlane.f32.xlu0 %v5134
    %v5136 = vpop.xlane.xlu0 %5135
    %v5137 = vsub.f32 %v5133, %v5136
    %v5138 = vmul.f32 %v5137, 1.442695
    %v5139 = vpow.pop %v5138
    %v5140 = vsel %vm1147, %v5139, 0.0
    %5141 = vadd.xlane.f32.xlu0 %v5140
    %v5142 = vpop.xlane.xlu0 %5141
    %v5143 = vrcp.pop %v5142
    %v5144 = vmul.f32 %v5139, %v5143
    %5147 = vrot.lane.b32.xlu0 %v4102, 120
    %v5148 = vpop.permute.xlu0 %5147
    %5149 = vrot.lane.b32.xlu0 %v4107, 120
    %v5150 = vpop.permute.xlu0 %5149
    %v5154 = vsel %vm1147, %v5144, 0
    %5156 = vmatprep.subr.mxu0 0.0
    %5157 = vmatpush1.msra.mxu0 %v5148
    %5158 = vmatprep.subr.mxu0 0.0
    %5159 = vmatpush1.msra.mxu0 %v5150
    %5160 = vmatprep.subr.mxu0 0.0
    %5161 = vmatpush1.msra.mxu0 0.0
    %5162 = vmatprep.subr.mxu0 0.0
    %5163 = vmatpush1.msra.mxu0 0.0
    %5164 = vmatprep.subr.mxu0 0.0
    %5165 = vmatpush1.msra.mxu0 0.0
    %5166 = vmatprep.subr.mxu0 0.0
    %5167 = vmatpush1.msra.mxu0 0.0
    %5168 = vmatprep.subr.mxu0 0.0
    %5169 = vmatpush1.msra.mxu0 0.0
    %5170 = vmatprep.subr.mxu0 0.0
    %5171 = vmatpush1.msra.mxu0 0.0
    %5172 = vmatprep.subr.mxu0 0.0
    %5173 = vmatpush1.msra.mxu0 0.0
    %5174 = vmatprep.subr.mxu0 0.0
    %5175 = vmatpush1.msra.mxu0 0.0
    %5176 = vmatprep.subr.mxu0 0.0
    %5177 = vmatpush1.msra.mxu0 0.0
    %5178 = vmatprep.subr.mxu0 0.0
    %5179 = vmatpush1.msra.mxu0 0.0
    %5180 = vmatprep.subr.mxu0 0.0
    %5181 = vmatpush1.msra.mxu0 0.0
    %5182 = vmatprep.subr.mxu0 0.0
    %5183 = vmatpush1.msra.mxu0 0.0
    %5184 = vmatprep.subr.mxu0 0.0
    %5185 = vmatpush1.msra.mxu0 0.0
    %5186 = vmatprep.subr.mxu0 0.0
    %5187 = vmatpush1.msra.mxu0 0.0
    %5188 = vmatprep.subr.mxu0 0.0
    %5189 = vmatpush1.msra.mxu0 0.0
    %5190 = vmatprep.subr.mxu0 0.0
    %5191 = vmatpush1.msra.mxu0 0.0
    %5192 = vmatprep.subr.mxu0 0.0
    %5193 = vmatpush1.msra.mxu0 0.0
    %5194 = vmatprep.subr.mxu0 0.0
    %5195 = vmatpush1.msra.mxu0 0.0
    %5196 = vmatprep.subr.mxu0 0.0
    %5197 = vmatpush1.msra.mxu0 0.0
    %5198 = vmatprep.subr.mxu0 0.0
    %5199 = vmatpush1.msra.mxu0 0.0
    %5200 = vmatprep.subr.mxu0 0.0
    %5201 = vmatpush1.msra.mxu0 0.0
    %5202 = vmatprep.subr.mxu0 0.0
    %5203 = vmatpush1.msra.mxu0 0.0
    %5204 = vmatprep.subr.mxu0 0.0
    %5205 = vmatpush1.msra.mxu0 0.0
    %5206 = vmatprep.subr.mxu0 0.0
    %5207 = vmatpush1.msra.mxu0 0.0
    %5208 = vmatprep.subr.mxu0 0.0
    %5209 = vmatpush1.msra.mxu0 0.0
    %5210 = vmatprep.subr.mxu0 0.0
    %5211 = vmatpush1.msra.mxu0 0.0
    %5212 = vmatprep.subr.mxu0 0.0
    %5213 = vmatpush1.msra.mxu0 0.0
    %5214 = vmatprep.subr.mxu0 0.0
    %5215 = vmatpush1.msra.mxu0 0.0
    %5216 = vmatprep.subr.mxu0 0.0
    %5217 = vmatpush1.msra.mxu0 0.0
    %5218 = vmatprep.subr.mxu0 0.0
    %5219 = vmatpush1.msra.mxu0 0.0
    %5220 = vmatprep.mubr.f32.mxu0 0.0
    %5221 = vmatmul.mubr.f32.gmra.mrb[0].mxu0 %v5154
    %v5222 = vpop.f32.mrb[0].mxu0
    %v5223 = vadd.f32 0.0, %v5222
    %v5224 = vpop.f32.mrb[0].mxu0
    %5225 = vdwg.mxu0
    %5226 = vrot.lane.b32.xlu0 %v3929, 112
    %v5227 = vpop.permute.xlu0 %5226
    %5228 = vrot.lane.b32.xlu0 %v4013, 112
    %v5229 = vpop.permute.xlu0 %5228
    %5230 = vrot.lane.b32.xlu0 %v4018, 112
    %v5231 = vpop.permute.xlu0 %5230
    %v5232 = vsel %vm469, %v5227, 0
    %v5234 = vsel %vm469, %v5229, 0
    %v5236 = vsel %vm469, %v5231, 0
    %5238 = vmatprep.subr.mxu0 0.0
    %5239 = vmatpush1.xpose.msra.mxu0 %v5234
    %5240 = vmatprep.subr.mxu0 0.0
    %5241 = vmatpush1.xpose.msra.mxu0 %v5236
    %5242 = vmatprep.subr.mxu0 0.0
    %5243 = vmatpush1.xpose.msra.mxu0 0.0
    %5244 = vmatprep.subr.mxu0 0.0
    %5245 = vmatpush1.xpose.msra.mxu0 0.0
    %5246 = vmatprep.subr.mxu0 0.0
    %5247 = vmatpush1.xpose.msra.mxu0 0.0
    %5248 = vmatprep.subr.mxu0 0.0
    %5249 = vmatpush1.xpose.msra.mxu0 0.0
    %5250 = vmatprep.subr.mxu0 0.0
    %5251 = vmatpush1.xpose.msra.mxu0 0.0
    %5252 = vmatprep.subr.mxu0 0.0
    %5253 = vmatpush1.xpose.msra.mxu0 0.0
    %5254 = vmatprep.subr.mxu0 0.0
    %5255 = vmatpush1.xpose.msra.mxu0 0.0
    %5256 = vmatprep.subr.mxu0 0.0
    %5257 = vmatpush1.xpose.msra.mxu0 0.0
    %5258 = vmatprep.subr.mxu0 0.0
    %5259 = vmatpush1.xpose.msra.mxu0 0.0
    %5260 = vmatprep.subr.mxu0 0.0
    %5261 = vmatpush1.xpose.msra.mxu0 0.0
    %5262 = vmatprep.subr.mxu0 0.0
    %5263 = vmatpush1.xpose.msra.mxu0 0.0
    %5264 = vmatprep.subr.mxu0 0.0
    %5265 = vmatpush1.xpose.msra.mxu0 0.0
    %5266 = vmatprep.subr.mxu0 0.0
    %5267 = vmatpush1.xpose.msra.mxu0 0.0
    %5268 = vmatprep.subr.mxu0 0.0
    %5269 = vmatpush1.xpose.msra.mxu0 0.0
    %5270 = vmatprep.subr.mxu0 0.0
    %5271 = vmatpush1.xpose.msra.mxu0 0.0
    %5272 = vmatprep.subr.mxu0 0.0
    %5273 = vmatpush1.xpose.msra.mxu0 0.0
    %5274 = vmatprep.subr.mxu0 0.0
    %5275 = vmatpush1.xpose.msra.mxu0 0.0
    %5276 = vmatprep.subr.mxu0 0.0
    %5277 = vmatpush1.xpose.msra.mxu0 0.0
    %5278 = vmatprep.subr.mxu0 0.0
    %5279 = vmatpush1.xpose.msra.mxu0 0.0
    %5280 = vmatprep.subr.mxu0 0.0
    %5281 = vmatpush1.xpose.msra.mxu0 0.0
    %5282 = vmatprep.subr.mxu0 0.0
    %5283 = vmatpush1.xpose.msra.mxu0 0.0
    %5284 = vmatprep.subr.mxu0 0.0
    %5285 = vmatpush1.xpose.msra.mxu0 0.0
    %5286 = vmatprep.subr.mxu0 0.0
    %5287 = vmatpush1.xpose.msra.mxu0 0.0
    %5288 = vmatprep.subr.mxu0 0.0
    %5289 = vmatpush1.xpose.msra.mxu0 0.0
    %5290 = vmatprep.subr.mxu0 0.0
    %5291 = vmatpush1.xpose.msra.mxu0 0.0
    %5292 = vmatprep.subr.mxu0 0.0
    %5293 = vmatpush1.xpose.msra.mxu0 0.0
    %5294 = vmatprep.subr.mxu0 0.0
    %5295 = vmatpush1.xpose.msra.mxu0 0.0
    %5296 = vmatprep.subr.mxu0 0.0
    %5297 = vmatpush1.xpose.msra.mxu0 0.0
    %5298 = vmatprep.subr.mxu0 0.0
    %5299 = vmatpush1.xpose.msra.mxu0 0.0
    %5300 = vmatprep.subr.mxu0 0.0
    %5301 = vmatpush1.xpose.msra.mxu0 0.0
    %5302 = vmatprep.mubr.f32.mxu0 0.0
    %5303 = vmatmul.mubr.f32.gmra.mrb[0].mxu0 %v5232
    %v5304 = vpop.f32.mrb[0].mxu0
    %v5305 = vadd.f32 0.0, %v5304
    %v5306 = vpop.f32.mrb[0].mxu0
    %5307 = vdwg.mxu0
    %v5308 = vmul.f32 %v5305, 0.35355338
    %v5309 = vsel %vm1147, %v5308, -inf
    %5310 = vmax.xlane.f32.xlu0 %v5309
    %v5311 = vpop.xlane.xlu0 %5310
    %v5312 = vsub.f32 %v5308, %v5311
    %v5313 = vmul.f32 %v5312, 1.442695
    %v5314 = vpow.pop %v5313
    %v5315 = vsel %vm1147, %v5314, 0.0
    %5316 = vadd.xlane.f32.xlu0 %v5315
    %v5317 = vpop.xlane.xlu0 %5316
    %v5318 = vrcp.pop %v5317
    %v5319 = vmul.f32 %v5314, %v5318
    %5320 = vrot.lane.b32.xlu0 %v4102, 112
    %v5321 = vpop.permute.xlu0 %5320
    %5322 = vrot.lane.b32.xlu0 %v4107, 112
    %v5323 = vpop.permute.xlu0 %5322
    %v5327 = vsel %vm1147, %v5319, 0
    %5329 = vmatprep.subr.mxu0 0.0
    %5330 = vmatpush1.msra.mxu0 %v5321
    %5331 = vmatprep.subr.mxu0 0.0
    %5332 = vmatpush1.msra.mxu0 %v5323
    %5333 = vmatprep.subr.mxu0 0.0
    %5334 = vmatpush1.msra.mxu0 0.0
    %5335 = vmatprep.subr.mxu0 0.0
    %5336 = vmatpush1.msra.mxu0 0.0
    %5337 = vmatprep.subr.mxu0 0.0
    %5338 = vmatpush1.msra.mxu0 0.0
    %5339 = vmatprep.subr.mxu0 0.0
    %5340 = vmatpush1.msra.mxu0 0.0
    %5341 = vmatprep.subr.mxu0 0.0
    %5342 = vmatpush1.msra.mxu0 0.0
    %5343 = vmatprep.subr.mxu0 0.0
    %5344 = vmatpush1.msra.mxu0 0.0
    %5345 = vmatprep.subr.mxu0 0.0
    %5346 = vmatpush1.msra.mxu0 0.0
    %5347 = vmatprep.subr.mxu0 0.0
    %5348 = vmatpush1.msra.mxu0 0.0
    %5349 = vmatprep.subr.mxu0 0.0
    %5350 = vmatpush1.msra.mxu0 0.0
    %5351 = vmatprep.subr.mxu0 0.0
    %5352 = vmatpush1.msra.mxu0 0.0
    %5353 = vmatprep.subr.mxu0 0.0
    %5354 = vmatpush1.msra.mxu0 0.0
    %5355 = vmatprep.subr.mxu0 0.0
    %5356 = vmatpush1.msra.mxu0 0.0
    %5357 = vmatprep.subr.mxu0 0.0
    %5358 = vmatpush1.msra.mxu0 0.0
    %5359 = vmatprep.subr.mxu0 0.0
    %5360 = vmatpush1.msra.mxu0 0.0
    %5361 = vmatprep.subr.mxu0 0.0
    %5362 = vmatpush1.msra.mxu0 0.0
    %5363 = vmatprep.subr.mxu0 0.0
    %5364 = vmatpush1.msra.mxu0 0.0
    %5365 = vmatprep.subr.mxu0 0.0
    %5366 = vmatpush1.msra.mxu0 0.0
    %5367 = vmatprep.subr.mxu0 0.0
    %5368 = vmatpush1.msra.mxu0 0.0
    %5369 = vmatprep.subr.mxu0 0.0
    %5370 = vmatpush1.msra.mxu0 0.0
    %5371 = vmatprep.subr.mxu0 0.0
    %5372 = vmatpush1.msra.mxu0 0.0
    %5373 = vmatprep.subr.mxu0 0.0
    %5374 = vmatpush1.msra.mxu0 0.0
    %5375 = vmatprep.subr.mxu0 0.0
    %5376 = vmatpush1.msra.mxu0 0.0
    %5377 = vmatprep.subr.mxu0 0.0
    %5378 = vmatpush1.msra.mxu0 0.0
    %5379 = vmatprep.subr.mxu0 0.0
    %5380 = vmatpush1.msra.mxu0 0.0
    %5381 = vmatprep.subr.mxu0 0.0
    %5382 = vmatpush1.msra.mxu0 0.0
    %5383 = vmatprep.subr.mxu0 0.0
    %5384 = vmatpush1.msra.mxu0 0.0
    %5385 = vmatprep.subr.mxu0 0.0
    %5386 = vmatpush1.msra.mxu0 0.0
    %5387 = vmatprep.subr.mxu0 0.0
    %5388 = vmatpush1.msra.mxu0 0.0
    %5389 = vmatprep.subr.mxu0 0.0
    %5390 = vmatpush1.msra.mxu0 0.0
    %5391 = vmatprep.subr.mxu0 0.0
    %5392 = vmatpush1.msra.mxu0 0.0
    %5393 = vmatprep.mubr.f32.mxu0 0.0
    %5394 = vmatmul.mubr.f32.gmra.mrb[0].mxu0 %v5327
    %v5395 = vpop.f32.mrb[0].mxu0
    %v5396 = vadd.f32 0.0, %v5395
    %v5397 = vpop.f32.mrb[0].mxu0
    %5398 = vdwg.mxu0
    %5399 = vrot.lane.b32.xlu0 %v3929, 104
    %v5400 = vpop.permute.xlu0 %5399
    %5401 = vrot.lane.b32.xlu0 %v4013, 104
    %v5402 = vpop.permute.xlu0 %5401
    %5403 = vrot.lane.b32.xlu0 %v4018, 104
    %v5404 = vpop.permute.xlu0 %5403
    %v5405 = vsel %vm469, %v5400, 0
    %v5407 = vsel %vm469, %v5402, 0
    %v5409 = vsel %vm469, %v5404, 0
    %5411 = vmatprep.subr.mxu0 0.0
    %5412 = vmatpush1.xpose.msra.mxu0 %v5407
    %5413 = vmatprep.subr.mxu0 0.0
    %5414 = vmatpush1.xpose.msra.mxu0 %v5409
    %5415 = vmatprep.subr.mxu0 0.0
    %5416 = vmatpush1.xpose.msra.mxu0 0.0
    %5417 = vmatprep.subr.mxu0 0.0
    %5418 = vmatpush1.xpose.msra.mxu0 0.0
    %5419 = vmatprep.subr.mxu0 0.0
    %5420 = vmatpush1.xpose.msra.mxu0 0.0
    %5421 = vmatprep.subr.mxu0 0.0
    %5422 = vmatpush1.xpose.msra.mxu0 0.0
    %5423 = vmatprep.subr.mxu0 0.0
    %5424 = vmatpush1.xpose.msra.mxu0 0.0
    %5425 = vmatprep.subr.mxu0 0.0
    %5426 = vmatpush1.xpose.msra.mxu0 0.0
    %5427 = vmatprep.subr.mxu0 0.0
    %5428 = vmatpush1.xpose.msra.mxu0 0.0
    %5429 = vmatprep.subr.mxu0 0.0
    %5430 = vmatpush1.xpose.msra.mxu0 0.0
    %5431 = vmatprep.subr.mxu0 0.0
    %5432 = vmatpush1.xpose.msra.mxu0 0.0
    %5433 = vmatprep.subr.mxu0 0.0
    %5434 = vmatpush1.xpose.msra.mxu0 0.0
    %5435 = vmatprep.subr.mxu0 0.0
    %5436 = vmatpush1.xpose.msra.mxu0 0.0
    %5437 = vmatprep.subr.mxu0 0.0
    %5438 = vmatpush1.xpose.msra.mxu0 0.0
    %5439 = vmatprep.subr.mxu0 0.0
    %5440 = vmatpush1.xpose.msra.mxu0 0.0
    %5441 = vmatprep.subr.mxu0 0.0
    %5442 = vmatpush1.xpose.msra.mxu0 0.0
    %5443 = vmatprep.subr.mxu0 0.0
    %5444 = vmatpush1.xpose.msra.mxu0 0.0
    %5445 = vmatprep.subr.mxu0 0.0
    %5446 = vmatpush1.xpose.msra.mxu0 0.0
    %5447 = vmatprep.subr.mxu0 0.0
    %5448 = vmatpush1.xpose.msra.mxu0 0.0
    %5449 = vmatprep.subr.mxu0 0.0
    %5450 = vmatpush1.xpose.msra.mxu0 0.0
    %5451 = vmatprep.subr.mxu0 0.0
    %5452 = vmatpush1.xpose.msra.mxu0 0.0
    %5453 = vmatprep.subr.mxu0 0.0
    %5454 = vmatpush1.xpose.msra.mxu0 0.0
    %5455 = vmatprep.subr.mxu0 0.0
    %5456 = vmatpush1.xpose.msra.mxu0 0.0
    %5457 = vmatprep.subr.mxu0 0.0
    %5458 = vmatpush1.xpose.msra.mxu0 0.0
    %5459 = vmatprep.subr.mxu0 0.0
    %5460 = vmatpush1.xpose.msra.mxu0 0.0
    %5461 = vmatprep.subr.mxu0 0.0
    %5462 = vmatpush1.xpose.msra.mxu0 0.0
    %5463 = vmatprep.subr.mxu0 0.0
    %5464 = vmatpush1.xpose.msra.mxu0 0.0
    %5465 = vmatprep.subr.mxu0 0.0
    %5466 = vmatpush1.xpose.msra.mxu0 0.0
    %5467 = vmatprep.subr.mxu0 0.0
    %5468 = vmatpush1.xpose.msra.mxu0 0.0
    %5469 = vmatprep.subr.mxu0 0.0
    %5470 = vmatpush1.xpose.msra.mxu0 0.0
    %5471 = vmatprep.subr.mxu0 0.0
    %5472 = vmatpush1.xpose.msra.mxu0 0.0
    %5473 = vmatprep.subr.mxu0 0.0
    %5474 = vmatpush1.xpose.msra.mxu0 0.0
    %5475 = vmatprep.mubr.f32.mxu0 0.0
    %5476 = vmatmul.mubr.f32.gmra.mrb[0].mxu0 %v5405
    %v5477 = vpop.f32.mrb[0].mxu0
    %v5478 = vadd.f32 0.0, %v5477
    %v5479 = vpop.f32.mrb[0].mxu0
    %5480 = vdwg.mxu0
    %v5481 = vmul.f32 %v5478, 0.35355338
    %v5482 = vsel %vm1147, %v5481, -inf
    %5483 = vmax.xlane.f32.xlu0 %v5482
    %v5484 = vpop.xlane.xlu0 %5483
    %v5485 = vsub.f32 %v5481, %v5484
    %v5486 = vmul.f32 %v5485, 1.442695
    %v5487 = vpow.pop %v5486
    %v5488 = vsel %vm1147, %v5487, 0.0
    %5489 = vadd.xlane.f32.xlu0 %v5488
    %v5490 = vpop.xlane.xlu0 %5489
    %v5491 = vrcp.pop %v5490
    %v5492 = vmul.f32 %v5487, %v5491
    %5493 = vrot.lane.b32.xlu0 %v4102, 104
    %v5494 = vpop.permute.xlu0 %5493
    %5495 = vrot.lane.b32.xlu0 %v4107, 104
    %v5496 = vpop.permute.xlu0 %5495
    %v5500 = vsel %vm1147, %v5492, 0
    %5502 = vmatprep.subr.mxu0 0.0
    %5503 = vmatpush1.msra.mxu0 %v5494
    %5504 = vmatprep.subr.mxu0 0.0
    %5505 = vmatpush1.msra.mxu0 %v5496
    %5506 = vmatprep.subr.mxu0 0.0
    %5507 = vmatpush1.msra.mxu0 0.0
    %5508 = vmatprep.subr.mxu0 0.0
    %5509 = vmatpush1.msra.mxu0 0.0
    %5510 = vmatprep.subr.mxu0 0.0
    %5511 = vmatpush1.msra.mxu0 0.0
    %5512 = vmatprep.subr.mxu0 0.0
    %5513 = vmatpush1.msra.mxu0 0.0
    %5514 = vmatprep.subr.mxu0 0.0
    %5515 = vmatpush1.msra.mxu0 0.0
    %5516 = vmatprep.subr.mxu0 0.0
    %5517 = vmatpush1.msra.mxu0 0.0
    %5518 = vmatprep.subr.mxu0 0.0
    %5519 = vmatpush1.msra.mxu0 0.0
    %5520 = vmatprep.subr.mxu0 0.0
    %5521 = vmatpush1.msra.mxu0 0.0
    %5522 = vmatprep.subr.mxu0 0.0
    %5523 = vmatpush1.msra.mxu0 0.0
    %5524 = vmatprep.subr.mxu0 0.0
    %5525 = vmatpush1.msra.mxu0 0.0
    %5526 = vmatprep.subr.mxu0 0.0
    %5527 = vmatpush1.msra.mxu0 0.0
    %5528 = vmatprep.subr.mxu0 0.0
    %5529 = vmatpush1.msra.mxu0 0.0
    %5530 = vmatprep.subr.mxu0 0.0
    %5531 = vmatpush1.msra.mxu0 0.0
    %5532 = vmatprep.subr.mxu0 0.0
    %5533 = vmatpush1.msra.mxu0 0.0
    %5534 = vmatprep.subr.mxu0 0.0
    %5535 = vmatpush1.msra.mxu0 0.0
    %5536 = vmatprep.subr.mxu0 0.0
    %5537 = vmatpush1.msra.mxu0 0.0
    %5538 = vmatprep.subr.mxu0 0.0
    %5539 = vmatpush1.msra.mxu0 0.0
    %5540 = vmatprep.subr.mxu0 0.0
    %5541 = vmatpush1.msra.mxu0 0.0
    %5542 = vmatprep.subr.mxu0 0.0
    %5543 = vmatpush1.msra.mxu0 0.0
    %5544 = vmatprep.subr.mxu0 0.0
    %5545 = vmatpush1.msra.mxu0 0.0
    %5546 = vmatprep.subr.mxu0 0.0
    %5547 = vmatpush1.msra.mxu0 0.0
    %5548 = vmatprep.subr.mxu0 0.0
    %5549 = vmatpush1.msra.mxu0 0.0
    %5550 = vmatprep.subr.mxu0 0.0
    %5551 = vmatpush1.msra.mxu0 0.0
    %5552 = vmatprep.subr.mxu0 0.0
    %5553 = vmatpush1.msra.mxu0 0.0
    %5554 = vmatprep.subr.mxu0 0.0
    %5555 = vmatpush1.msra.mxu0 0.0
    %5556 = vmatprep.subr.mxu0 0.0
    %5557 = vmatpush1.msra.mxu0 0.0
    %5558 = vmatprep.subr.mxu0 0.0
    %5559 = vmatpush1.msra.mxu0 0.0
    %5560 = vmatprep.subr.mxu0 0.0
    %5561 = vmatpush1.msra.mxu0 0.0
    %5562 = vmatprep.subr.mxu0 0.0
    %5563 = vmatpush1.msra.mxu0 0.0
    %5564 = vmatprep.subr.mxu0 0.0
    %5565 = vmatpush1.msra.mxu0 0.0
    %5566 = vmatprep.mubr.f32.mxu0 0.0
    %5567 = vmatmul.mubr.f32.gmra.mrb[0].mxu0 %v5500
    %v5568 = vpop.f32.mrb[0].mxu0
    %v5569 = vadd.f32 0.0, %v5568
    %v5570 = vpop.f32.mrb[0].mxu0
    %5571 = vdwg.mxu0
    %5573 = vrot.lane.b32.xlu0 %v5223, 8
    %v5574 = vpop.permute.xlu0 %5573
    %5577 = vrot.lane.b32.xlu0 %v5396, 16
    %v5578 = vpop.permute.xlu0 %5577
    %5581 = vrot.lane.b32.xlu0 %v5569, 24
    %v5582 = vpop.permute.xlu0 %5581
    %v5584 = vsel %vm469, %v5048, %v5574
    %v5585 = vsel %vm1147, %v5584, %v5578
    %v5586 = vsel %vm1149, %v5585, %v5582
    %v5588 = vsel %vm165, %v5586, 0
    %5590 = vmatprep.subr.mxu0 0.0
    %5591 = vmatpush1.msra.mxu0 %v3841
    %5592 = vmatprep.subr.mxu0 0.0
    %5593 = vmatpush1.msra.mxu0 %v3842
    %5594 = vmatprep.subr.mxu0 0.0
    %5595 = vmatpush1.msra.mxu0 %v3843
    %5596 = vmatprep.subr.mxu0 0.0
    %5597 = vmatpush1.msra.mxu0 %v3844
    %5598 = vmatprep.subr.mxu0 0.0
    %5599 = vmatpush1.msra.mxu0 0.0
    %5600 = vmatprep.subr.mxu0 0.0
    %5601 = vmatpush1.msra.mxu0 0.0
    %5602 = vmatprep.subr.mxu0 0.0
    %5603 = vmatpush1.msra.mxu0 0.0
    %5604 = vmatprep.subr.mxu0 0.0
    %5605 = vmatpush1.msra.mxu0 0.0
    %5606 = vmatprep.subr.mxu0 0.0
    %5607 = vmatpush1.msra.mxu0 0.0
    %5608 = vmatprep.subr.mxu0 0.0
    %5609 = vmatpush1.msra.mxu0 0.0
    %5610 = vmatprep.subr.mxu0 0.0
    %5611 = vmatpush1.msra.mxu0 0.0
    %5612 = vmatprep.subr.mxu0 0.0
    %5613 = vmatpush1.msra.mxu0 0.0
    %5614 = vmatprep.subr.mxu0 0.0
    %5615 = vmatpush1.msra.mxu0 0.0
    %5616 = vmatprep.subr.mxu0 0.0
    %5617 = vmatpush1.msra.mxu0 0.0
    %5618 = vmatprep.subr.mxu0 0.0
    %5619 = vmatpush1.msra.mxu0 0.0
    %5620 = vmatprep.subr.mxu0 0.0
    %5621 = vmatpush1.msra.mxu0 0.0
    %5622 = vmatprep.subr.mxu0 0.0
    %5623 = vmatpush1.msra.mxu0 0.0
    %5624 = vmatprep.subr.mxu0 0.0
    %5625 = vmatpush1.msra.mxu0 0.0
    %5626 = vmatprep.subr.mxu0 0.0
    %5627 = vmatpush1.msra.mxu0 0.0
    %5628 = vmatprep.subr.mxu0 0.0
    %5629 = vmatpush1.msra.mxu0 0.0
    %5630 = vmatprep.subr.mxu0 0.0
    %5631 = vmatpush1.msra.mxu0 0.0
    %5632 = vmatprep.subr.mxu0 0.0
    %5633 = vmatpush1.msra.mxu0 0.0
    %5634 = vmatprep.subr.mxu0 0.0
    %5635 = vmatpush1.msra.mxu0 0.0
    %5636 = vmatprep.subr.mxu0 0.0
    %5637 = vmatpush1.msra.mxu0 0.0
    %5638 = vmatprep.subr.mxu0 0.0
    %5639 = vmatpush1.msra.mxu0 0.0
    %5640 = vmatprep.subr.mxu0 0.0
    %5641 = vmatpush1.msra.mxu0 0.0
    %5642 = vmatprep.subr.mxu0 0.0
    %5643 = vmatpush1.msra.mxu0 0.0
    %5644 = vmatprep.subr.mxu0 0.0
    %5645 = vmatpush1.msra.mxu0 0.0
    %5646 = vmatprep.subr.mxu0 0.0
    %5647 = vmatpush1.msra.mxu0 0.0
    %5648 = vmatprep.subr.mxu0 0.0
    %5649 = vmatpush1.msra.mxu0 0.0
    %5650 = vmatprep.subr.mxu0 0.0
    %5651 = vmatpush1.msra.mxu0 0.0
    %5652 = vmatprep.subr.mxu0 0.0
    %5653 = vmatpush1.msra.mxu0 0.0
    %5654 = vmatprep.mubr.f32.mxu0 0.0
    %5655 = vmatmul.mubr.f32.gmra.mrb[0].mxu0 %v5588
    %v5656 = vpop.f32.mrb[0].mxu0
    %v5657 = vadd.f32 %v4813, %v5656
    %v5658 = vpop.f32.mrb[0].mxu0
    %5659 = vdwg.mxu0
    %v5660 = vsel %vm165, %v4884, 0.0
    %5661 = vadd.xlane.f32.xlu0 %v5660
    %v5662 = vpop.xlane.xlu0 %5661
    %v5663 = vsel %vm165, %v5657, 0.0
    %5664 = vadd.xlane.f32.xlu0 %v5663
    %v5665 = vpop.xlane.xlu0 %5664
    %v5666 = vmul.f32 %v5662, %v172
    %v5667 = vmul.f32 %v5665, %v172
    %v5668 = vsub.f32 %v4884, %v5666
    %v5669 = vsub.f32 %v5657, %v5667
    %v5670 = vmul.f32 %v5668, %v5668
    %v5671 = vmul.f32 %v5669, %v5669
    %v5672 = vsel %vm165, %v5670, 0.0
    %5673 = vadd.xlane.f32.xlu0 %v5672
    %v5674 = vpop.xlane.xlu0 %5673
    %v5675 = vsel %vm165, %v5671, 0.0
    %5676 = vadd.xlane.f32.xlu0 %v5675
    %v5677 = vpop.xlane.xlu0 %5676
    %v5678 = vmul.f32 %v5674, %v172
    %v5679 = vmul.f32 %v5677, %v172
    %v5680 = vadd.f32 %v5678, 1e-05
    %v5681 = vadd.f32 %v5679, 1e-05
    %v5682 = vrsqrt.pop %v5680
    %v5683 = vrsqrt.pop %v5681
    %v5684 = vmul.f32 %v5668, %v5682
    %v5685 = vmul.f32 %v5669, %v5683
    %v5686 = vlaneseq
    %v5687 = vshrl.u32 %v5686, 7
    %v5688 = vsub.s32 2, %v5687
    %v5689 = vrot.slane %v164, %v5688
    %v5690 = vmul.f32 %v5684, %v5689
    %v5691 = vmul.f32 %v5685, %v5689
    %v5692 = vlaneseq
    %v5693 = vshrl.u32 %v5692, 7
    %v5694 = vsub.s32 3, %v5693
    %v5695 = vrot.slane %v164, %v5694
    %v5696 = vadd.f32 %v5690, %v5695
    %v5697 = vadd.f32 %v5691, %v5695
    %v5698 = vld [vmem:[%s6] sm:$0xff]
    %v5699 = vld [vmem:[%s6 + $0x8] sm:$0xff]
    %v5700 = vld [vmem:[%s6 + $0x10] sm:$0xff]
    %v5701 = vld [vmem:[%s6 + $0x18] sm:$0xff]
    %v5702 = vld [vmem:[%s7] sm:$0x1]
    %v5704 = vlaneseq
    %v5705 = vshrl.u32 %v5704, 7
    %v5706 = vsub.s32 0, %v5705
    %v5707 = vrot.slane %v5702, %v5706
    %v5710 = vsel %vm165, %v5696, 0
    %v5713 = vsel %vm165, %v5697, 0
    %5715 = vmatprep.subr.mxu0 0.0
    %5716 = vmatpush1.msra.mxu0 %v5698
    %5717 = vmatprep.subr.mxu0 0.0
    %5718 = vmatpush1.msra.mxu0 %v5699
    %5719 = vmatprep.subr.mxu0 0.0
    %5720 = vmatpush1.msra.mxu0 %v5700
    %5721 = vmatprep.subr.mxu0 0.0
    %5722 = vmatpush1.msra.mxu0 %v5701
    %5723 = vmatprep.subr.mxu0 0.0
    %5724 = vmatpush1.msra.mxu0 0.0
    %5725 = vmatprep.subr.mxu0 0.0
    %5726 = vmatpush1.msra.mxu0 0.0
    %5727 = vmatprep.subr.mxu0 0.0
    %5728 = vmatpush1.msra.mxu0 0.0
    %5729 = vmatprep.subr.mxu0 0.0
    %5730 = vmatpush1.msra.mxu0 0.0
    %5731 = vmatprep.subr.mxu0 0.0
    %5732 = vmatpush1.msra.mxu0 0.0
    %5733 = vmatprep.subr.mxu0 0.0
    %5734 = vmatpush1.msra.mxu0 0.0
    %5735 = vmatprep.subr.mxu0 0.0
    %5736 = vmatpush1.msra.mxu0 0.0
    %5737 = vmatprep.subr.mxu0 0.0
    %5738 = vmatpush1.msra.mxu0 0.0
    %5739 = vmatprep.subr.mxu0 0.0
    %5740 = vmatpush1.msra.mxu0 0.0
    %5741 = vmatprep.subr.mxu0 0.0
    %5742 = vmatpush1.msra.mxu0 0.0
    %5743 = vmatprep.subr.mxu0 0.0
    %5744 = vmatpush1.msra.mxu0 0.0
    %5745 = vmatprep.subr.mxu0 0.0
    %5746 = vmatpush1.msra.mxu0 0.0
    %5747 = vmatprep.subr.mxu0 0.0
    %5748 = vmatpush1.msra.mxu0 0.0
    %5749 = vmatprep.subr.mxu0 0.0
    %5750 = vmatpush1.msra.mxu0 0.0
    %5751 = vmatprep.subr.mxu0 0.0
    %5752 = vmatpush1.msra.mxu0 0.0
    %5753 = vmatprep.subr.mxu0 0.0
    %5754 = vmatpush1.msra.mxu0 0.0
    %5755 = vmatprep.subr.mxu0 0.0
    %5756 = vmatpush1.msra.mxu0 0.0
    %5757 = vmatprep.subr.mxu0 0.0
    %5758 = vmatpush1.msra.mxu0 0.0
    %5759 = vmatprep.subr.mxu0 0.0
    %5760 = vmatpush1.msra.mxu0 0.0
    %5761 = vmatprep.subr.mxu0 0.0
    %5762 = vmatpush1.msra.mxu0 0.0
    %5763 = vmatprep.subr.mxu0 0.0
    %5764 = vmatpush1.msra.mxu0 0.0
    %5765 = vmatprep.subr.mxu0 0.0
    %5766 = vmatpush1.msra.mxu0 0.0
    %5767 = vmatprep.subr.mxu0 0.0
    %5768 = vmatpush1.msra.mxu0 0.0
    %5769 = vmatprep.subr.mxu0 0.0
    %5770 = vmatpush1.msra.mxu0 0.0
    %5771 = vmatprep.subr.mxu0 0.0
    %5772 = vmatpush1.msra.mxu0 0.0
    %5773 = vmatprep.subr.mxu0 0.0
    %5774 = vmatpush1.msra.mxu0 0.0
    %5775 = vmatprep.subr.mxu0 0.0
    %5776 = vmatpush1.msra.mxu0 0.0
    %5777 = vmatprep.subr.mxu0 0.0
    %5778 = vmatpush1.msra.mxu0 0.0
    %5779 = vmatprep.mubr.f32.mxu0 0.0
    %5780 = vmatmul.mubr.f32.gmra.mrb[0].mxu0 %v5710
    %v5781 = vpop.f32.mrb[0].mxu0
    %v5782 = vadd.f32 %v5707, %v5781
    %v5783 = vpop.f32.mrb[0].mxu0
    %5784 = vmatprep.mubr.f32.mxu0 0.0
    %5785 = vmatmul.mubr.f32.gmra.mrb[0].mxu0 %v5713
    %v5786 = vpop.f32.mrb[0].mxu0
    %v5787 = vadd.f32 %v5707, %v5786
    %v5788 = vpop.f32.mrb[0].mxu0
    %5789 = vdwg.mxu0
    %v5790 = vsel %vm78, %v5782, -inf
    %5791 = vmax.xlane.f32.xlu0 %v5790
    %v5792 = vpop.xlane.xlu0 %5791
    %v5793 = vsel %vm78, %v5787, -inf
    %5794 = vmax.xlane.f32.xlu0 %v5793
    %v5795 = vpop.xlane.xlu0 %5794
    %v5796 = vsub.f32 %v5782, %v5792
    %v5797 = vsub.f32 %v5787, %v5795
    %v5798 = vmul.f32 %v5796, 1.442695
    %v5799 = vpow.pop %v5798
    %v5800 = vmul.f32 %v5797, 1.442695
    %v5801 = vpow.pop %v5800
    %v5802 = vsel %vm78, %v5799, 0.0
    %5803 = vadd.xlane.f32.xlu0 %v5802
    %v5804 = vpop.xlane.xlu0 %5803
    %v5805 = vsel %vm78, %v5801, 0.0
    %5806 = vadd.xlane.f32.xlu0 %v5805
    %v5807 = vpop.xlane.xlu0 %5806
    %v5808 = vrcp.pop %v5804
    %v5809 = vrcp.pop %v5807
    %v5810 = vmul.f32 %v5799, %v5808
    %v5811 = vmul.f32 %v5801, %v5809
    %5812 = vst.msk [vmem:[#allocation2] sm:$0xff] %vm78, %v5810
    %5813 = vst.msk [vmem:[#allocation2 + $0x8] sm:$0xff] %vm78, %v5811
    // Predicated region
    $region34: #{decoder_forward.1} parent=1 // pred_check
      _
    $region35: #{decoder_forward.1} parent=1 // pred_check_branch
      %5815 = sbr.rel (0) target = $region37
    $region36: #{decoder_forward.1} parent=1 // pred_region
      %s5817 = ssub.s32 256, 256
      %5818 = vsyncadd [#allocation3], %s5817
      %s5819 = sshll.u32 [#allocation2], 4
      %s5820 = int_to_ptr.vmem [resolvable:$true] %s5819
      %5825 = dma.vmem_to_hbm [thread:$0]  %s5820, 256, %s8, [#allocation3], 128, 128, 8
    $region37: #{decoder_forward.1} parent=1 // pred_fallthru
      _
    // Predicated region
    $region38: #{decoder_forward.1} parent=1 // pred_check
      _
    $region39: #{decoder_forward.1} parent=1 // pred_check_branch
      %5827 = sbr.rel (0) target = $region41
    $region40: #{decoder_forward.1} parent=1 // pred_region
      %5828 = dma.done [#allocation3], 256
    $region41: #{decoder_forward.1} parent=1 // pred_fallthru
      _
    %5829 = vsyncpa [#allocation3], 1

</llo_original>
